<compile_context>
chip_gen: v5e
topology: v5e:2x2
jax: 0.10.0
libtpu: 0.0.40
codegen_flags: <defaults>
</compile_context>

<pallas_src>
import functools
import numpy as np
import jax
import jax.numpy as jnp
from jax import lax
from jax.experimental import pallas as pl
from jax.experimental.pallas import tpu as pltpu


# ------------------------------ fused kernel --------------------------------

def _denoiser_kernel(a_ref, s_ref, x0_ref, noise_ref, con_ref, temb_ref,
                     cos_ref, sin_ref,
                     p1xw_ref, p1tw_ref, p1b_ref,
                     qw_ref, qb_ref, vw_ref, vb_ref, ow_ref, ob_ref,
                     lng_ref, lnb_ref,
                     oupw_ref, oupb_ref, p2w_ref, p2b_ref,
                     out_ref, *, num_head, eps):
    """Full Denosier forward for one batch element (grid axis 0 = batch)."""
    f32 = jnp.float32

    # ---- q_sample prologue: x_noisy = sqrt(acp)*x0 + sqrt(1-acp)*noise -----
    xn = (a_ref[...] * x0_ref[...] + s_ref[...] * noise_ref[...])[0]  # (N, 10)

    con = con_ref[0]                    # (N, INP)  condition features
    temb = temb_ref[...]                # (1, 128)  shared time embedding
    cos = cos_ref[...]                  # (N, Dh)
    sin_signed = sin_ref[...]           # (N, Dh)   rotate_half sign baked in

    # ---- proj1: concat([x_noisy, t_emb], -1) @ W1 + b1 (split-weight form) --
    n_tok = xn.shape[0]
    temb_b = jnp.broadcast_to(temb, (n_tok, temb.shape[1]))            # (N,128)
    h = (jnp.dot(xn, p1xw_ref[...], preferred_element_type=f32)
         + jnp.dot(temb_b, p1tw_ref[...], preferred_element_type=f32)
         + p1b_ref[...])                                               # (N,INP)

    num_layers, _, hid = qw_ref.shape
    H = num_head
    Dh = hid // H
    half = Dh // 2
    scale = float(Dh) ** (-0.5)

    # ---- 10 X_Attention layers (block1: sa0..sa3, ca; block2: same) --------
    for l in range(num_layers):
        # X_Attention: q = Q(con), v = V(h); scores are q·v exactly as the
        # reference ('bihd,bjhd->bhij' with q and v).
        # NOTE: the reference also builds k = K(x) and applies RoPE to it, but
        # k never feeds the attention — dead code, skipped.
        q = jnp.dot(con, qw_ref[l], preferred_element_type=f32) + qb_ref[l]
        v = jnp.dot(h, vw_ref[l], preferred_element_type=f32) + vb_ref[l]

        heads = []
        for hh in range(H):
            lo = hh * Dh
            qh = q[:, lo:lo + Dh]                                      # (N,Dh)
            vh = v[:, lo:lo + Dh]
            # RoPE on q: rq = q*cos + rotate_half(q)*sin
            # rotate_half = lane half-swap; the minus sign lives in sin_signed.
            qsw = jnp.concatenate([qh[:, half:], qh[:, :half]], axis=-1)
            rq = qh * cos + qsw * sin_signed
            # scores q·v, softmax over keys
            sc = lax.dot_general(rq, vh, (((1,), (1,)), ((), ())),
                                 preferred_element_type=f32) * scale   # (N,N)
            sc = sc - jnp.max(sc, axis=-1, keepdims=True)
            p = jnp.exp(sc)
            p = p * pl.reciprocal(jnp.sum(p, axis=-1, keepdims=True),
                                  approx=True)
            heads.append(jnp.dot(p, vh, preferred_element_type=f32))   # (N,Dh)
        att = jnp.concatenate(heads, axis=-1)                          # (N,HID)

        # output projection + residual
        h = jnp.dot(att, ow_ref[l], preferred_element_type=f32) + ob_ref[l] + h

        # LayerNorm (biased variance, like torch) + ReLU
        mu = jnp.mean(h, axis=-1, keepdims=True)
        hc = h - mu
        var = jnp.mean(hc * hc, axis=-1, keepdims=True)
        h = hc * lax.rsqrt(var + eps) * lng_ref[l] + lnb_ref[l]
        h = jnp.maximum(h, 0.0)

    # ---- head: oup then proj2 -----------------------------------------------
    h = jnp.dot(h, oupw_ref[...], preferred_element_type=f32) + oupb_ref[...]
    h = jnp.dot(h, p2w_ref[...], preferred_element_type=f32) + p2b_ref[...]
    out_ref[0] = h


def fused_denoiser(x0, noise, a, s, con, t_emb, cos, sin_signed, packed, *,
                   num_head):
    B, N, Cin = x0.shape
    INP = packed['qw'].shape[1]
    HID = packed['qw'].shape[2]
    Dh = HID // num_head
    OUT = packed['p2w'].shape[1]

    def batched_spec(shape):
        return pl.BlockSpec(shape, lambda b: (b,) + (0,) * (len(shape) - 1))

    def shared_spec(shape):
        return pl.BlockSpec(shape, lambda b: (0,) * len(shape))

    in_specs = [
        batched_spec((1, 1, 1)),            # a   = sqrt_alphas_cumprod[t[b]]
        batched_spec((1, 1, 1)),            # s   = sqrt_1m_alphas_cumprod[t[b]]
        batched_spec((1, N, Cin)),          # x0
        batched_spec((1, N, Cin)),          # noise
        batched_spec((1, N, INP)),          # condition
        shared_spec(t_emb.shape),           # t_emb (1, 128)
        shared_spec((N, Dh)),               # rope cos
        shared_spec((N, Dh)),               # rope sin (signed)
        shared_spec(packed['p1xw'].shape),  # proj1 weight (x rows)
        shared_spec(packed['p1tw'].shape),  # proj1 weight (t-emb rows)
        shared_spec(packed['p1b'].shape),
        shared_spec(packed['qw'].shape),    # stacked per-layer weights
        shared_spec(packed['qb'].shape),
        shared_spec(packed['vw'].shape),
        shared_spec(packed['vb'].shape),
        shared_spec(packed['ow'].shape),
        shared_spec(packed['ob'].shape),
        shared_spec(packed['lng'].shape),
        shared_spec(packed['lnb'].shape),
        shared_spec(packed['oupw'].shape),
        shared_spec(packed['oupb'].shape),
        shared_spec(packed['p2w'].shape),
        shared_spec(packed['p2b'].shape),
    ]

    return pl.pallas_call(
        functools.partial(_denoiser_kernel, num_head=num_head, eps=1e-5),
        grid=(B,),
        in_specs=in_specs,
        out_specs=pl.BlockSpec((1, N, OUT), lambda b: (b, 0, 0)),
        out_shape=jax.ShapeDtypeStruct((B, N, OUT), jnp.float32),
        compiler_params=pltpu.CompilerParams(
            dimension_semantics=("parallel",)),   # v7x: one TC per batch elem
    )(a, s, x0, noise, con, t_emb, cos, sin_signed,
      packed['p1xw'], packed['p1tw'], packed['p1b'],
      packed['qw'], packed['qb'], packed['vw'], packed['vb'],
      packed['ow'], packed['ob'], packed['lng'], packed['lnb'],
      packed['oupw'], packed['oupb'], packed['p2w'], packed['p2b'])


# ------------------------------ host-side glue -------------------------------

def rope_tables(n, d, base=10000.0):
    """cos table and sign-baked sin table so rotate_half reduces to a lane
    half-swap: rq = q*cos + cat([q_hi, q_lo], -1) * sin_signed."""
    half = d // 2
    theta = 1.0 / (base ** (np.arange(0, d, 2, dtype=np.float32) / d))  # (half,)
    idx = np.arange(n, dtype=np.float32)
    idx_theta = np.einsum('n,d->nd', idx, theta)                        # (n, half)
    idx_theta2 = np.concatenate([idx_theta, idx_theta], axis=1)         # (n, d)
    cos = np.cos(idx_theta2).astype(np.float32)
    sin = np.sin(idx_theta2).astype(np.float32)
    sin_signed = np.concatenate([-sin[:, :half], sin[:, half:]], axis=1)
    return jnp.asarray(cos), jnp.asarray(sin_signed)


def diffusion_forward(x, con, packed, sched, rope, rff_B, key, *, num_head,
                      num_timesteps):
    """Diffusion.forward(x, con) == loss_fn(x, con, random t) -> scalar loss."""
    b, n, _ = x.shape
    kt, kn = jax.random.split(key)
    t = jax.random.randint(kt, (b,), 0, num_timesteps)
    noise = jax.random.normal(kn, x.shape, jnp.float32)

    a = sched['sqrt_alphas_cumprod'][t][:, None, None]                  # (B,1,1)
    s = sched['sqrt_one_minus_alphas_cumprod'][t][:, None, None]        # (B,1,1)

    # rff.layers.GaussianEncoding(sigma=10, input_size=b, encoded_size=64):
    # one (128,) embedding computed from the whole t vector, shared across the
    # batch and tokens (matches the reference's .repeat(b, n, 1)).
    proj = 2.0 * jnp.pi * (t.astype(jnp.float32) @ rff_B.T)             # (64,)
    t_emb = jnp.concatenate([jnp.cos(proj), jnp.sin(proj)])[None, :]    # (1,128)

    cos, sin_signed = rope
    out = fused_denoiser(x, noise, a, s, con, t_emb, cos, sin_signed,
                         packed, num_head=num_head)

    target = noise                                    # objective == 'pred_noise'
    se = (out - target) ** 2
    loss = se.reshape(b, -1) * sched['loss_weight'][t][:, None]
    return loss.mean()


# ------------------------------ initialization ------------------------------

def make_schedule(timesteps):
    scale = 1000.0 / timesteps
    betas = np.linspace(scale * 1e-4, scale * 0.02, timesteps, dtype=np.float64)
    alphas = 1.0 - betas
    acp = np.cumprod(alphas)
    return {
        'sqrt_alphas_cumprod': jnp.asarray(np.sqrt(acp), jnp.float32),
        'sqrt_one_minus_alphas_cumprod': jnp.asarray(np.sqrt(1.0 - acp),
                                                     jnp.float32),
        'loss_weight': jnp.ones((timesteps,), jnp.float32),  # pred_noise
    }


def init_linear(key, fan_in, fan_out):
    k1, k2 = jax.random.split(key)
    bound = 1.0 / np.sqrt(fan_in)
    return {'w': jax.random.uniform(k1, (fan_in, fan_out), jnp.float32,
                                    -bound, bound),
            'b': jax.random.uniform(k2, (fan_out,), jnp.float32,
                                    -bound, bound)}


def init_xattn(key, inp, hidden):
    ks = jax.random.split(key, 4)
    return {'Q': init_linear(ks[0], inp, hidden),
            'K': init_linear(ks[1], inp, hidden),  # parity only; dead in reference
            'V': init_linear(ks[2], inp, hidden),
            'O': init_linear(ks[3], hidden, inp)}


def init_attention_block(key, inp, hidden):
    ks = jax.random.split(key, 5)
    return {'sa': [init_xattn(ks[i], inp, hidden) for i in range(4)],
            'ca': init_xattn(ks[4], inp, hidden),
            'ln': [{'g': jnp.ones((inp,), jnp.float32),
                    'b': jnp.zeros((inp,), jnp.float32)} for _ in range(5)]}


def init_denosier(key, inp, oup, hidden):
    ks = jax.random.split(key, 5)
    return {'proj1': init_linear(ks[0], 138, inp),   # 138 = 10 (traj) + 128 (t-emb)
            'block1': init_attention_block(ks[1], inp, hidden),
            'block2': init_attention_block(ks[2], inp, hidden),
            'oup': init_linear(ks[3], inp, oup),
            'proj2': init_linear(ks[4], oup, 10)}


def pack_params(p):
    """Stack the 10 X_Attention layers / LayerNorms so the fused kernel can
    index them with a static layer id; split proj1 into x / t-emb row blocks."""
    layers = list(p['block1']['sa']) + [p['block1']['ca']] \
           + list(p['block2']['sa']) + [p['block2']['ca']]
    lns = list(p['block1']['ln']) + list(p['block2']['ln'])
    return {
        'p1xw': p['proj1']['w'][:10, :],
        'p1tw': p['proj1']['w'][10:, :],
        'p1b':  p['proj1']['b'][None, :],
        'qw': jnp.stack([l['Q']['w'] for l in layers]),
        'qb': jnp.stack([l['Q']['b'][None, :] for l in layers]),
        'vw': jnp.stack([l['V']['w'] for l in layers]),
        'vb': jnp.stack([l['V']['b'][None, :] for l in layers]),
        'ow': jnp.stack([l['O']['w'] for l in layers]),
        'ob': jnp.stack([l['O']['b'][None, :] for l in layers]),
        'lng': jnp.stack([ln['g'][None, :] for ln in lns]),
        'lnb': jnp.stack([ln['b'][None, :] for ln in lns]),
        'oupw': p['oup']['w'],
        'oupb': p['oup']['b'][None, :],
        'p2w': p['proj2']['w'],
        'p2b': p['proj2']['b'][None, :],
    }


# ----------------------------------- main -----------------------------------

if __name__ == "__main__":
    B, N = 2, 8                       # batch, num joints/tokens
    INP, OUP, HID, NHEAD = 64, 32, 64, 4
    TIMESTEPS = 100

    root = jax.random.PRNGKey(0)
    kp, kx, kc, krff, kfwd = jax.random.split(root, 5)

    params = init_denosier(kp, INP, OUP, HID)
    packed = pack_params(params)
    sched = make_schedule(TIMESTEPS)
    rope = rope_tables(N, HID // NHEAD)            # hoisted once, shared by all layers
    # GaussianEncoding(sigma=10, input_size=B, encoded_size=64) projection matrix
    rff_B = jax.random.normal(krff, (64, B), jnp.float32) * 10.0

    x = jax.random.normal(kx, (B, N, 10), jnp.float32)      # trajectory features
    con = jax.random.normal(kc, (B, N, INP), jnp.float32)   # condition features

    fwd = jax.jit(functools.partial(diffusion_forward,
                                    num_head=NHEAD,
                                    num_timesteps=TIMESTEPS))
    loss = fwd(x, con, packed, sched, rope, rff_B, kfwd)
    jax.block_until_ready(loss)
    assert np.isfinite(float(loss))
    print("KERNEL_OK")
</pallas_src>

<mosaic_0001>
module attributes {stable_mosaic.version = 11 : i64} {
  func.func @_denoiser_kernel(%arg0: i32, %arg1: memref<1x1x1xf32, #tpu.memory_space<vmem>>, %arg2: memref<1x1x1xf32, #tpu.memory_space<vmem>>, %arg3: memref<1x8x10xf32, #tpu.memory_space<vmem>>, %arg4: memref<1x8x10xf32, #tpu.memory_space<vmem>>, %arg5: memref<1x8x64xf32, #tpu.memory_space<vmem>>, %arg6: memref<1x128xf32, #tpu.memory_space<vmem>>, %arg7: memref<8x16xf32, #tpu.memory_space<vmem>>, %arg8: memref<8x16xf32, #tpu.memory_space<vmem>>, %arg9: memref<10x64xf32, #tpu.memory_space<vmem>>, %arg10: memref<128x64xf32, #tpu.memory_space<vmem>>, %arg11: memref<1x64xf32, #tpu.memory_space<vmem>>, %arg12: memref<10x64x64xf32, #tpu.memory_space<vmem>>, %arg13: memref<10x1x64xf32, #tpu.memory_space<vmem>>, %arg14: memref<10x64x64xf32, #tpu.memory_space<vmem>>, %arg15: memref<10x1x64xf32, #tpu.memory_space<vmem>>, %arg16: memref<10x64x64xf32, #tpu.memory_space<vmem>>, %arg17: memref<10x1x64xf32, #tpu.memory_space<vmem>>, %arg18: memref<10x1x64xf32, #tpu.memory_space<vmem>>, %arg19: memref<10x1x64xf32, #tpu.memory_space<vmem>>, %arg20: memref<64x32xf32, #tpu.memory_space<vmem>>, %arg21: memref<1x32xf32, #tpu.memory_space<vmem>>, %arg22: memref<32x10xf32, #tpu.memory_space<vmem>>, %arg23: memref<1x10xf32, #tpu.memory_space<vmem>>, %arg24: memref<1x8x10xf32, #tpu.memory_space<vmem>>) attributes {dimension_semantics = [#tpu.dimension_semantics<parallel>], iteration_bounds = array<i64: 2>, scalar_prefetch = 0 : i64, scratch_operands = 0 : i64, tpu.core_type = #tpu.core_type<tc>, window_params = [{transform_indices = @transform_0, window_bounds = array<i64: 1, 1, 1>}, {transform_indices = @transform_1, window_bounds = array<i64: 1, 1, 1>}, {transform_indices = @transform_2, window_bounds = array<i64: 1, 8, 10>}, {transform_indices = @transform_3, window_bounds = array<i64: 1, 8, 10>}, {transform_indices = @transform_4, window_bounds = array<i64: 1, 8, 64>}, {pipeline_mode = #tpu.pipeline_mode<synchronous>, transform_indices = @transform_5, window_bounds = array<i64: 1, 128>}, {pipeline_mode = #tpu.pipeline_mode<synchronous>, transform_indices = @transform_6, window_bounds = array<i64: 8, 16>}, {pipeline_mode = #tpu.pipeline_mode<synchronous>, transform_indices = @transform_7, window_bounds = array<i64: 8, 16>}, {pipeline_mode = #tpu.pipeline_mode<synchronous>, transform_indices = @transform_8, window_bounds = array<i64: 10, 64>}, {pipeline_mode = #tpu.pipeline_mode<synchronous>, transform_indices = @transform_9, window_bounds = array<i64: 128, 64>}, {pipeline_mode = #tpu.pipeline_mode<synchronous>, transform_indices = @transform_10, window_bounds = array<i64: 1, 64>}, {pipeline_mode = #tpu.pipeline_mode<synchronous>, transform_indices = @transform_11, window_bounds = array<i64: 10, 64, 64>}, {pipeline_mode = #tpu.pipeline_mode<synchronous>, transform_indices = @transform_12, window_bounds = array<i64: 10, 1, 64>}, {pipeline_mode = #tpu.pipeline_mode<synchronous>, transform_indices = @transform_13, window_bounds = array<i64: 10, 64, 64>}, {pipeline_mode = #tpu.pipeline_mode<synchronous>, transform_indices = @transform_14, window_bounds = array<i64: 10, 1, 64>}, {pipeline_mode = #tpu.pipeline_mode<synchronous>, transform_indices = @transform_15, window_bounds = array<i64: 10, 64, 64>}, {pipeline_mode = #tpu.pipeline_mode<synchronous>, transform_indices = @transform_16, window_bounds = array<i64: 10, 1, 64>}, {pipeline_mode = #tpu.pipeline_mode<synchronous>, transform_indices = @transform_17, window_bounds = array<i64: 10, 1, 64>}, {pipeline_mode = #tpu.pipeline_mode<synchronous>, transform_indices = @transform_18, window_bounds = array<i64: 10, 1, 64>}, {pipeline_mode = #tpu.pipeline_mode<synchronous>, transform_indices = @transform_19, window_bounds = array<i64: 64, 32>}, {pipeline_mode = #tpu.pipeline_mode<synchronous>, transform_indices = @transform_20, window_bounds = array<i64: 1, 32>}, {pipeline_mode = #tpu.pipeline_mode<synchronous>, transform_indices = @transform_21, window_bounds = array<i64: 32, 10>}, {pipeline_mode = #tpu.pipeline_mode<synchronous>, transform_indices = @transform_22, window_bounds = array<i64: 1, 10>}, {transform_indices = @transform_23, window_bounds = array<i64: 1, 8, 10>}]} {
    %c0 = arith.constant 0 : index
    %c0_0 = arith.constant 0 : index
    %c0_1 = arith.constant 0 : index
    %0 = vector.load %arg1[%c0, %c0_0, %c0_1] : memref<1x1x1xf32, #tpu.memory_space<vmem>>, vector<1x1x1xf32>
    %c0_2 = arith.constant 0 : index
    %c0_3 = arith.constant 0 : index
    %c0_4 = arith.constant 0 : index
    %1 = vector.load %arg3[%c0_2, %c0_3, %c0_4] : memref<1x8x10xf32, #tpu.memory_space<vmem>>, vector<1x8x10xf32>
    %2 = vector.broadcast %0 : vector<1x1x1xf32> to vector<1x8x10xf32>
    %3 = arith.mulf %2, %1 : vector<1x8x10xf32>
    %c0_5 = arith.constant 0 : index
    %c0_6 = arith.constant 0 : index
    %c0_7 = arith.constant 0 : index
    %4 = vector.load %arg2[%c0_5, %c0_6, %c0_7] : memref<1x1x1xf32, #tpu.memory_space<vmem>>, vector<1x1x1xf32>
    %c0_8 = arith.constant 0 : index
    %c0_9 = arith.constant 0 : index
    %c0_10 = arith.constant 0 : index
    %5 = vector.load %arg4[%c0_8, %c0_9, %c0_10] : memref<1x8x10xf32, #tpu.memory_space<vmem>>, vector<1x8x10xf32>
    %6 = vector.broadcast %4 : vector<1x1x1xf32> to vector<1x8x10xf32>
    %7 = arith.mulf %6, %5 : vector<1x8x10xf32>
    %8 = arith.addf %3, %7 : vector<1x8x10xf32>
    %9 = vector.shape_cast %8 : vector<1x8x10xf32> to vector<8x10xf32>
    %c0_11 = arith.constant 0 : index
    %c0_12 = arith.constant 0 : index
    %c0_13 = arith.constant 0 : index
    %10 = vector.load %arg5[%c0_11, %c0_12, %c0_13] : memref<1x8x64xf32, #tpu.memory_space<vmem>>, vector<1x8x64xf32>
    %11 = vector.shape_cast %10 : vector<1x8x64xf32> to vector<8x64xf32>
    %c0_14 = arith.constant 0 : index
    %c0_15 = arith.constant 0 : index
    %12 = vector.load %arg6[%c0_14, %c0_15] : memref<1x128xf32, #tpu.memory_space<vmem>>, vector<1x128xf32>
    %c0_16 = arith.constant 0 : index
    %c0_17 = arith.constant 0 : index
    %13 = vector.load %arg7[%c0_16, %c0_17] : memref<8x16xf32, #tpu.memory_space<vmem>>, vector<8x16xf32>
    %c0_18 = arith.constant 0 : index
    %c0_19 = arith.constant 0 : index
    %14 = vector.load %arg8[%c0_18, %c0_19] : memref<8x16xf32, #tpu.memory_space<vmem>>, vector<8x16xf32>
    %15 = vector.shape_cast %12 : vector<1x128xf32> to vector<1x128xf32>
    %16 = vector.broadcast %15 : vector<1x128xf32> to vector<8x128xf32>
    %c0_20 = arith.constant 0 : index
    %c0_21 = arith.constant 0 : index
    %17 = vector.load %arg9[%c0_20, %c0_21] : memref<10x64xf32, #tpu.memory_space<vmem>>, vector<10x64xf32>
    %cst = arith.constant dense<0.000000e+00> : vector<8x64xf32>
    %18 = tpu.matmul %9, %17, %cst {dimension_numbers = #tpu.dot_dimension_numbers<[1], [0], [0], [1], [0, 0, 1, 1], [], []>} : vector<8x10xf32>, vector<10x64xf32>, vector<8x64xf32> -> vector<8x64xf32>
    %c0_22 = arith.constant 0 : index
    %c0_23 = arith.constant 0 : index
    %19 = vector.load %arg10[%c0_22, %c0_23] : memref<128x64xf32, #tpu.memory_space<vmem>>, vector<128x64xf32>
    %cst_24 = arith.constant dense<0.000000e+00> : vector<8x64xf32>
    %20 = tpu.matmul %16, %19, %cst_24 {dimension_numbers = #tpu.dot_dimension_numbers<[1], [0], [0], [1], [0, 0, 1, 1], [], []>} : vector<8x128xf32>, vector<128x64xf32>, vector<8x64xf32> -> vector<8x64xf32>
    %21 = arith.addf %18, %20 : vector<8x64xf32>
    %c0_25 = arith.constant 0 : index
    %c0_26 = arith.constant 0 : index
    %22 = vector.load %arg11[%c0_25, %c0_26] : memref<1x64xf32, #tpu.memory_space<vmem>>, vector<1x64xf32>
    %23 = vector.broadcast %22 : vector<1x64xf32> to vector<8x64xf32>
    %24 = arith.addf %21, %23 : vector<8x64xf32>
    %c0_27 = arith.constant 0 : index
    %c0_28 = arith.constant 0 : index
    %c0_29 = arith.constant 0 : index
    %25 = vector.load %arg12[%c0_27, %c0_28, %c0_29] : memref<10x64x64xf32, #tpu.memory_space<vmem>>, vector<1x64x64xf32>
    %26 = vector.shape_cast %25 : vector<1x64x64xf32> to vector<64x64xf32>
    %cst_30 = arith.constant dense<0.000000e+00> : vector<8x64xf32>
    %27 = tpu.matmul %11, %26, %cst_30 {dimension_numbers = #tpu.dot_dimension_numbers<[1], [0], [0], [1], [0, 0, 1, 1], [], []>} : vector<8x64xf32>, vector<64x64xf32>, vector<8x64xf32> -> vector<8x64xf32>
    %c0_31 = arith.constant 0 : index
    %c0_32 = arith.constant 0 : index
    %c0_33 = arith.constant 0 : index
    %28 = vector.load %arg13[%c0_31, %c0_32, %c0_33] : memref<10x1x64xf32, #tpu.memory_space<vmem>>, vector<1x1x64xf32>
    %29 = vector.shape_cast %28 : vector<1x1x64xf32> to vector<1x64xf32>
    %30 = vector.broadcast %29 : vector<1x64xf32> to vector<8x64xf32>
    %31 = arith.addf %27, %30 : vector<8x64xf32>
    %c0_34 = arith.constant 0 : index
    %c0_35 = arith.constant 0 : index
    %c0_36 = arith.constant 0 : index
    %32 = vector.load %arg14[%c0_34, %c0_35, %c0_36] : memref<10x64x64xf32, #tpu.memory_space<vmem>>, vector<1x64x64xf32>
    %33 = vector.shape_cast %32 : vector<1x64x64xf32> to vector<64x64xf32>
    %cst_37 = arith.constant dense<0.000000e+00> : vector<8x64xf32>
    %34 = tpu.matmul %24, %33, %cst_37 {dimension_numbers = #tpu.dot_dimension_numbers<[1], [0], [0], [1], [0, 0, 1, 1], [], []>} : vector<8x64xf32>, vector<64x64xf32>, vector<8x64xf32> -> vector<8x64xf32>
    %c0_38 = arith.constant 0 : index
    %c0_39 = arith.constant 0 : index
    %c0_40 = arith.constant 0 : index
    %35 = vector.load %arg15[%c0_38, %c0_39, %c0_40] : memref<10x1x64xf32, #tpu.memory_space<vmem>>, vector<1x1x64xf32>
    %36 = vector.shape_cast %35 : vector<1x1x64xf32> to vector<1x64xf32>
    %37 = vector.broadcast %36 : vector<1x64xf32> to vector<8x64xf32>
    %38 = arith.addf %34, %37 : vector<8x64xf32>
    %39 = vector.extract_strided_slice %31 {offsets = [0, 0], sizes = [8, 16], strides = [1, 1]} : vector<8x64xf32> to vector<8x16xf32>
    %40 = vector.extract_strided_slice %38 {offsets = [0, 0], sizes = [8, 16], strides = [1, 1]} : vector<8x64xf32> to vector<8x16xf32>
    %41 = vector.extract_strided_slice %39 {offsets = [0, 8], sizes = [8, 8], strides = [1, 1]} : vector<8x16xf32> to vector<8x8xf32>
    %42 = vector.extract_strided_slice %39 {offsets = [0, 0], sizes = [8, 8], strides = [1, 1]} : vector<8x16xf32> to vector<8x8xf32>
    %43 = tpu.concatenate %41, %42 in 1 : vector<8x8xf32>, vector<8x8xf32> -> vector<8x16xf32>
    %44 = arith.mulf %39, %13 : vector<8x16xf32>
    %45 = arith.mulf %43, %14 : vector<8x16xf32>
    %46 = arith.addf %44, %45 : vector<8x16xf32>
    %cst_41 = arith.constant dense<0.000000e+00> : vector<8x8xf32>
    %47 = tpu.matmul %46, %40, %cst_41 {dimension_numbers = #tpu.dot_dimension_numbers<[1], [1], [0], [0], [0, 0, 1, 0], [], []>} : vector<8x16xf32>, vector<8x16xf32>, vector<8x8xf32> -> vector<8x8xf32>
    %cst_42 = arith.constant 2.500000e-01 : f32
    %48 = vector.broadcast %cst_42 : f32 to vector<8x8xf32>
    %49 = arith.mulf %47, %48 : vector<8x8xf32>
    %cst_43 = arith.constant dense<0xFF800000> : vector<8xf32>
    %50 = vector.multi_reduction <maximumf>, %49, %cst_43 [1] : vector<8x8xf32> to vector<8xf32>
    %51 = vector.shape_cast %50 : vector<8xf32> to vector<8x1xf32>
    %52 = vector.broadcast %51 : vector<8x1xf32> to vector<8x8xf32>
    %53 = arith.subf %49, %52 : vector<8x8xf32>
    %54 = math.exp %53 : vector<8x8xf32>
    %cst_44 = arith.constant dense<0.000000e+00> : vector<8xf32>
    %55 = vector.multi_reduction <add>, %54, %cst_44 [1] : vector<8x8xf32> to vector<8xf32>
    %56 = vector.shape_cast %55 : vector<8xf32> to vector<8x1xf32>
    %57 = tpu.reciprocal %56 {approx = true} : vector<8x1xf32> -> vector<8x1xf32>
    %58 = vector.broadcast %57 : vector<8x1xf32> to vector<8x8xf32>
    %59 = arith.mulf %54, %58 : vector<8x8xf32>
    %cst_45 = arith.constant dense<0.000000e+00> : vector<8x16xf32>
    %60 = tpu.matmul %59, %40, %cst_45 {dimension_numbers = #tpu.dot_dimension_numbers<[1], [0], [0], [1], [0, 0, 1, 1], [], []>} : vector<8x8xf32>, vector<8x16xf32>, vector<8x16xf32> -> vector<8x16xf32>
    %61 = vector.extract_strided_slice %31 {offsets = [0, 16], sizes = [8, 16], strides = [1, 1]} : vector<8x64xf32> to vector<8x16xf32>
    %62 = vector.extract_strided_slice %38 {offsets = [0, 16], sizes = [8, 16], strides = [1, 1]} : vector<8x64xf32> to vector<8x16xf32>
    %63 = vector.extract_strided_slice %61 {offsets = [0, 8], sizes = [8, 8], strides = [1, 1]} : vector<8x16xf32> to vector<8x8xf32>
    %64 = vector.extract_strided_slice %61 {offsets = [0, 0], sizes = [8, 8], strides = [1, 1]} : vector<8x16xf32> to vector<8x8xf32>
    %65 = tpu.concatenate %63, %64 in 1 : vector<8x8xf32>, vector<8x8xf32> -> vector<8x16xf32>
    %66 = arith.mulf %61, %13 : vector<8x16xf32>
    %67 = arith.mulf %65, %14 : vector<8x16xf32>
    %68 = arith.addf %66, %67 : vector<8x16xf32>
    %cst_46 = arith.constant dense<0.000000e+00> : vector<8x8xf32>
    %69 = tpu.matmul %68, %62, %cst_46 {dimension_numbers = #tpu.dot_dimension_numbers<[1], [1], [0], [0], [0, 0, 1, 0], [], []>} : vector<8x16xf32>, vector<8x16xf32>, vector<8x8xf32> -> vector<8x8xf32>
    %cst_47 = arith.constant 2.500000e-01 : f32
    %70 = vector.broadcast %cst_47 : f32 to vector<8x8xf32>
    %71 = arith.mulf %69, %70 : vector<8x8xf32>
    %cst_48 = arith.constant dense<0xFF800000> : vector<8xf32>
    %72 = vector.multi_reduction <maximumf>, %71, %cst_48 [1] : vector<8x8xf32> to vector<8xf32>
    %73 = vector.shape_cast %72 : vector<8xf32> to vector<8x1xf32>
    %74 = vector.broadcast %73 : vector<8x1xf32> to vector<8x8xf32>
    %75 = arith.subf %71, %74 : vector<8x8xf32>
    %76 = math.exp %75 : vector<8x8xf32>
    %cst_49 = arith.constant dense<0.000000e+00> : vector<8xf32>
    %77 = vector.multi_reduction <add>, %76, %cst_49 [1] : vector<8x8xf32> to vector<8xf32>
    %78 = vector.shape_cast %77 : vector<8xf32> to vector<8x1xf32>
    %79 = tpu.reciprocal %78 {approx = true} : vector<8x1xf32> -> vector<8x1xf32>
    %80 = vector.broadcast %79 : vector<8x1xf32> to vector<8x8xf32>
    %81 = arith.mulf %76, %80 : vector<8x8xf32>
    %cst_50 = arith.constant dense<0.000000e+00> : vector<8x16xf32>
    %82 = tpu.matmul %81, %62, %cst_50 {dimension_numbers = #tpu.dot_dimension_numbers<[1], [0], [0], [1], [0, 0, 1, 1], [], []>} : vector<8x8xf32>, vector<8x16xf32>, vector<8x16xf32> -> vector<8x16xf32>
    %83 = vector.extract_strided_slice %31 {offsets = [0, 32], sizes = [8, 16], strides = [1, 1]} : vector<8x64xf32> to vector<8x16xf32>
    %84 = vector.extract_strided_slice %38 {offsets = [0, 32], sizes = [8, 16], strides = [1, 1]} : vector<8x64xf32> to vector<8x16xf32>
    %85 = vector.extract_strided_slice %83 {offsets = [0, 8], sizes = [8, 8], strides = [1, 1]} : vector<8x16xf32> to vector<8x8xf32>
    %86 = vector.extract_strided_slice %83 {offsets = [0, 0], sizes = [8, 8], strides = [1, 1]} : vector<8x16xf32> to vector<8x8xf32>
    %87 = tpu.concatenate %85, %86 in 1 : vector<8x8xf32>, vector<8x8xf32> -> vector<8x16xf32>
    %88 = arith.mulf %83, %13 : vector<8x16xf32>
    %89 = arith.mulf %87, %14 : vector<8x16xf32>
    %90 = arith.addf %88, %89 : vector<8x16xf32>
    %cst_51 = arith.constant dense<0.000000e+00> : vector<8x8xf32>
    %91 = tpu.matmul %90, %84, %cst_51 {dimension_numbers = #tpu.dot_dimension_numbers<[1], [1], [0], [0], [0, 0, 1, 0], [], []>} : vector<8x16xf32>, vector<8x16xf32>, vector<8x8xf32> -> vector<8x8xf32>
    %cst_52 = arith.constant 2.500000e-01 : f32
    %92 = vector.broadcast %cst_52 : f32 to vector<8x8xf32>
    %93 = arith.mulf %91, %92 : vector<8x8xf32>
    %cst_53 = arith.constant dense<0xFF800000> : vector<8xf32>
    %94 = vector.multi_reduction <maximumf>, %93, %cst_53 [1] : vector<8x8xf32> to vector<8xf32>
    %95 = vector.shape_cast %94 : vector<8xf32> to vector<8x1xf32>
    %96 = vector.broadcast %95 : vector<8x1xf32> to vector<8x8xf32>
    %97 = arith.subf %93, %96 : vector<8x8xf32>
    %98 = math.exp %97 : vector<8x8xf32>
    %cst_54 = arith.constant dense<0.000000e+00> : vector<8xf32>
    %99 = vector.multi_reduction <add>, %98, %cst_54 [1] : vector<8x8xf32> to vector<8xf32>
    %100 = vector.shape_cast %99 : vector<8xf32> to vector<8x1xf32>
    %101 = tpu.reciprocal %100 {approx = true} : vector<8x1xf32> -> vector<8x1xf32>
    %102 = vector.broadcast %101 : vector<8x1xf32> to vector<8x8xf32>
    %103 = arith.mulf %98, %102 : vector<8x8xf32>
    %cst_55 = arith.constant dense<0.000000e+00> : vector<8x16xf32>
    %104 = tpu.matmul %103, %84, %cst_55 {dimension_numbers = #tpu.dot_dimension_numbers<[1], [0], [0], [1], [0, 0, 1, 1], [], []>} : vector<8x8xf32>, vector<8x16xf32>, vector<8x16xf32> -> vector<8x16xf32>
    %105 = vector.extract_strided_slice %31 {offsets = [0, 48], sizes = [8, 16], strides = [1, 1]} : vector<8x64xf32> to vector<8x16xf32>
    %106 = vector.extract_strided_slice %38 {offsets = [0, 48], sizes = [8, 16], strides = [1, 1]} : vector<8x64xf32> to vector<8x16xf32>
    %107 = vector.extract_strided_slice %105 {offsets = [0, 8], sizes = [8, 8], strides = [1, 1]} : vector<8x16xf32> to vector<8x8xf32>
    %108 = vector.extract_strided_slice %105 {offsets = [0, 0], sizes = [8, 8], strides = [1, 1]} : vector<8x16xf32> to vector<8x8xf32>
    %109 = tpu.concatenate %107, %108 in 1 : vector<8x8xf32>, vector<8x8xf32> -> vector<8x16xf32>
    %110 = arith.mulf %105, %13 : vector<8x16xf32>
    %111 = arith.mulf %109, %14 : vector<8x16xf32>
    %112 = arith.addf %110, %111 : vector<8x16xf32>
    %cst_56 = arith.constant dense<0.000000e+00> : vector<8x8xf32>
    %113 = tpu.matmul %112, %106, %cst_56 {dimension_numbers = #tpu.dot_dimension_numbers<[1], [1], [0], [0], [0, 0, 1, 0], [], []>} : vector<8x16xf32>, vector<8x16xf32>, vector<8x8xf32> -> vector<8x8xf32>
    %cst_57 = arith.constant 2.500000e-01 : f32
    %114 = vector.broadcast %cst_57 : f32 to vector<8x8xf32>
    %115 = arith.mulf %113, %114 : vector<8x8xf32>
    %cst_58 = arith.constant dense<0xFF800000> : vector<8xf32>
    %116 = vector.multi_reduction <maximumf>, %115, %cst_58 [1] : vector<8x8xf32> to vector<8xf32>
    %117 = vector.shape_cast %116 : vector<8xf32> to vector<8x1xf32>
    %118 = vector.broadcast %117 : vector<8x1xf32> to vector<8x8xf32>
    %119 = arith.subf %115, %118 : vector<8x8xf32>
    %120 = math.exp %119 : vector<8x8xf32>
    %cst_59 = arith.constant dense<0.000000e+00> : vector<8xf32>
    %121 = vector.multi_reduction <add>, %120, %cst_59 [1] : vector<8x8xf32> to vector<8xf32>
    %122 = vector.shape_cast %121 : vector<8xf32> to vector<8x1xf32>
    %123 = tpu.reciprocal %122 {approx = true} : vector<8x1xf32> -> vector<8x1xf32>
    %124 = vector.broadcast %123 : vector<8x1xf32> to vector<8x8xf32>
    %125 = arith.mulf %120, %124 : vector<8x8xf32>
    %cst_60 = arith.constant dense<0.000000e+00> : vector<8x16xf32>
    %126 = tpu.matmul %125, %106, %cst_60 {dimension_numbers = #tpu.dot_dimension_numbers<[1], [0], [0], [1], [0, 0, 1, 1], [], []>} : vector<8x8xf32>, vector<8x16xf32>, vector<8x16xf32> -> vector<8x16xf32>
    %127 = tpu.concatenate %60, %82, %104, %126 in 1 : vector<8x16xf32>, vector<8x16xf32>, vector<8x16xf32>, vector<8x16xf32> -> vector<8x64xf32>
    %c0_61 = arith.constant 0 : index
    %c0_62 = arith.constant 0 : index
    %c0_63 = arith.constant 0 : index
    %128 = vector.load %arg16[%c0_61, %c0_62, %c0_63] : memref<10x64x64xf32, #tpu.memory_space<vmem>>, vector<1x64x64xf32>
    %129 = vector.shape_cast %128 : vector<1x64x64xf32> to vector<64x64xf32>
    %cst_64 = arith.constant dense<0.000000e+00> : vector<8x64xf32>
    %130 = tpu.matmul %127, %129, %cst_64 {dimension_numbers = #tpu.dot_dimension_numbers<[1], [0], [0], [1], [0, 0, 1, 1], [], []>} : vector<8x64xf32>, vector<64x64xf32>, vector<8x64xf32> -> vector<8x64xf32>
    %c0_65 = arith.constant 0 : index
    %c0_66 = arith.constant 0 : index
    %c0_67 = arith.constant 0 : index
    %131 = vector.load %arg17[%c0_65, %c0_66, %c0_67] : memref<10x1x64xf32, #tpu.memory_space<vmem>>, vector<1x1x64xf32>
    %132 = vector.shape_cast %131 : vector<1x1x64xf32> to vector<1x64xf32>
    %133 = vector.broadcast %132 : vector<1x64xf32> to vector<8x64xf32>
    %134 = arith.addf %130, %133 : vector<8x64xf32>
    %135 = arith.addf %134, %24 : vector<8x64xf32>
    %cst_68 = arith.constant dense<0.000000e+00> : vector<8xf32>
    %136 = vector.multi_reduction <add>, %135, %cst_68 [1] : vector<8x64xf32> to vector<8xf32>
    %137 = vector.shape_cast %136 : vector<8xf32> to vector<8x1xf32>
    %cst_69 = arith.constant 6.400000e+01 : f32
    %138 = vector.broadcast %cst_69 : f32 to vector<8x1xf32>
    %139 = arith.divf %137, %138 : vector<8x1xf32>
    %140 = vector.broadcast %139 : vector<8x1xf32> to vector<8x64xf32>
    %141 = arith.subf %135, %140 : vector<8x64xf32>
    %142 = arith.mulf %141, %141 : vector<8x64xf32>
    %cst_70 = arith.constant dense<0.000000e+00> : vector<8xf32>
    %143 = vector.multi_reduction <add>, %142, %cst_70 [1] : vector<8x64xf32> to vector<8xf32>
    %144 = vector.shape_cast %143 : vector<8xf32> to vector<8x1xf32>
    %cst_71 = arith.constant 6.400000e+01 : f32
    %145 = vector.broadcast %cst_71 : f32 to vector<8x1xf32>
    %146 = arith.divf %144, %145 : vector<8x1xf32>
    %cst_72 = arith.constant 9.99999974E-6 : f32
    %147 = vector.broadcast %cst_72 : f32 to vector<8x1xf32>
    %148 = arith.addf %146, %147 : vector<8x1xf32>
    %149 = math.rsqrt %148 : vector<8x1xf32>
    %150 = vector.broadcast %149 : vector<8x1xf32> to vector<8x64xf32>
    %151 = arith.mulf %141, %150 : vector<8x64xf32>
    %c0_73 = arith.constant 0 : index
    %c0_74 = arith.constant 0 : index
    %c0_75 = arith.constant 0 : index
    %152 = vector.load %arg18[%c0_73, %c0_74, %c0_75] : memref<10x1x64xf32, #tpu.memory_space<vmem>>, vector<1x1x64xf32>
    %153 = vector.shape_cast %152 : vector<1x1x64xf32> to vector<1x64xf32>
    %154 = vector.broadcast %153 : vector<1x64xf32> to vector<8x64xf32>
    %155 = arith.mulf %151, %154 : vector<8x64xf32>
    %c0_76 = arith.constant 0 : index
    %c0_77 = arith.constant 0 : index
    %c0_78 = arith.constant 0 : index
    %156 = vector.load %arg19[%c0_76, %c0_77, %c0_78] : memref<10x1x64xf32, #tpu.memory_space<vmem>>, vector<1x1x64xf32>
    %157 = vector.shape_cast %156 : vector<1x1x64xf32> to vector<1x64xf32>
    %158 = vector.broadcast %157 : vector<1x64xf32> to vector<8x64xf32>
    %159 = arith.addf %155, %158 : vector<8x64xf32>
    %cst_79 = arith.constant 0.000000e+00 : f32
    %160 = vector.broadcast %cst_79 : f32 to vector<8x64xf32>
    %161 = arith.maximumf %159, %160 : vector<8x64xf32>
    %c1 = arith.constant 1 : index
    %c0_80 = arith.constant 0 : index
    %c0_81 = arith.constant 0 : index
    %162 = vector.load %arg12[%c1, %c0_80, %c0_81] : memref<10x64x64xf32, #tpu.memory_space<vmem>>, vector<1x64x64xf32>
    %163 = vector.shape_cast %162 : vector<1x64x64xf32> to vector<64x64xf32>
    %cst_82 = arith.constant dense<0.000000e+00> : vector<8x64xf32>
    %164 = tpu.matmul %11, %163, %cst_82 {dimension_numbers = #tpu.dot_dimension_numbers<[1], [0], [0], [1], [0, 0, 1, 1], [], []>} : vector<8x64xf32>, vector<64x64xf32>, vector<8x64xf32> -> vector<8x64xf32>
    %c1_83 = arith.constant 1 : index
    %c0_84 = arith.constant 0 : index
    %c0_85 = arith.constant 0 : index
    %165 = vector.load %arg13[%c1_83, %c0_84, %c0_85] : memref<10x1x64xf32, #tpu.memory_space<vmem>>, vector<1x1x64xf32>
    %166 = vector.shape_cast %165 : vector<1x1x64xf32> to vector<1x64xf32>
    %167 = vector.broadcast %166 : vector<1x64xf32> to vector<8x64xf32>
    %168 = arith.addf %164, %167 : vector<8x64xf32>
    %c1_86 = arith.constant 1 : index
    %c0_87 = arith.constant 0 : index
    %c0_88 = arith.constant 0 : index
    %169 = vector.load %arg14[%c1_86, %c0_87, %c0_88] : memref<10x64x64xf32, #tpu.memory_space<vmem>>, vector<1x64x64xf32>
    %170 = vector.shape_cast %169 : vector<1x64x64xf32> to vector<64x64xf32>
    %cst_89 = arith.constant dense<0.000000e+00> : vector<8x64xf32>
    %171 = tpu.matmul %161, %170, %cst_89 {dimension_numbers = #tpu.dot_dimension_numbers<[1], [0], [0], [1], [0, 0, 1, 1], [], []>} : vector<8x64xf32>, vector<64x64xf32>, vector<8x64xf32> -> vector<8x64xf32>
    %c1_90 = arith.constant 1 : index
    %c0_91 = arith.constant 0 : index
    %c0_92 = arith.constant 0 : index
    %172 = vector.load %arg15[%c1_90, %c0_91, %c0_92] : memref<10x1x64xf32, #tpu.memory_space<vmem>>, vector<1x1x64xf32>
    %173 = vector.shape_cast %172 : vector<1x1x64xf32> to vector<1x64xf32>
    %174 = vector.broadcast %173 : vector<1x64xf32> to vector<8x64xf32>
    %175 = arith.addf %171, %174 : vector<8x64xf32>
    %176 = vector.extract_strided_slice %168 {offsets = [0, 0], sizes = [8, 16], strides = [1, 1]} : vector<8x64xf32> to vector<8x16xf32>
    %177 = vector.extract_strided_slice %175 {offsets = [0, 0], sizes = [8, 16], strides = [1, 1]} : vector<8x64xf32> to vector<8x16xf32>
    %178 = vector.extract_strided_slice %176 {offsets = [0, 8], sizes = [8, 8], strides = [1, 1]} : vector<8x16xf32> to vector<8x8xf32>
    %179 = vector.extract_strided_slice %176 {offsets = [0, 0], sizes = [8, 8], strides = [1, 1]} : vector<8x16xf32> to vector<8x8xf32>
    %180 = tpu.concatenate %178, %179 in 1 : vector<8x8xf32>, vector<8x8xf32> -> vector<8x16xf32>
    %181 = arith.mulf %176, %13 : vector<8x16xf32>
    %182 = arith.mulf %180, %14 : vector<8x16xf32>
    %183 = arith.addf %181, %182 : vector<8x16xf32>
    %cst_93 = arith.constant dense<0.000000e+00> : vector<8x8xf32>
    %184 = tpu.matmul %183, %177, %cst_93 {dimension_numbers = #tpu.dot_dimension_numbers<[1], [1], [0], [0], [0, 0, 1, 0], [], []>} : vector<8x16xf32>, vector<8x16xf32>, vector<8x8xf32> -> vector<8x8xf32>
    %cst_94 = arith.constant 2.500000e-01 : f32
    %185 = vector.broadcast %cst_94 : f32 to vector<8x8xf32>
    %186 = arith.mulf %184, %185 : vector<8x8xf32>
    %cst_95 = arith.constant dense<0xFF800000> : vector<8xf32>
    %187 = vector.multi_reduction <maximumf>, %186, %cst_95 [1] : vector<8x8xf32> to vector<8xf32>
    %188 = vector.shape_cast %187 : vector<8xf32> to vector<8x1xf32>
    %189 = vector.broadcast %188 : vector<8x1xf32> to vector<8x8xf32>
    %190 = arith.subf %186, %189 : vector<8x8xf32>
    %191 = math.exp %190 : vector<8x8xf32>
    %cst_96 = arith.constant dense<0.000000e+00> : vector<8xf32>
    %192 = vector.multi_reduction <add>, %191, %cst_96 [1] : vector<8x8xf32> to vector<8xf32>
    %193 = vector.shape_cast %192 : vector<8xf32> to vector<8x1xf32>
    %194 = tpu.reciprocal %193 {approx = true} : vector<8x1xf32> -> vector<8x1xf32>
    %195 = vector.broadcast %194 : vector<8x1xf32> to vector<8x8xf32>
    %196 = arith.mulf %191, %195 : vector<8x8xf32>
    %cst_97 = arith.constant dense<0.000000e+00> : vector<8x16xf32>
    %197 = tpu.matmul %196, %177, %cst_97 {dimension_numbers = #tpu.dot_dimension_numbers<[1], [0], [0], [1], [0, 0, 1, 1], [], []>} : vector<8x8xf32>, vector<8x16xf32>, vector<8x16xf32> -> vector<8x16xf32>
    %198 = vector.extract_strided_slice %168 {offsets = [0, 16], sizes = [8, 16], strides = [1, 1]} : vector<8x64xf32> to vector<8x16xf32>
    %199 = vector.extract_strided_slice %175 {offsets = [0, 16], sizes = [8, 16], strides = [1, 1]} : vector<8x64xf32> to vector<8x16xf32>
    %200 = vector.extract_strided_slice %198 {offsets = [0, 8], sizes = [8, 8], strides = [1, 1]} : vector<8x16xf32> to vector<8x8xf32>
    %201 = vector.extract_strided_slice %198 {offsets = [0, 0], sizes = [8, 8], strides = [1, 1]} : vector<8x16xf32> to vector<8x8xf32>
    %202 = tpu.concatenate %200, %201 in 1 : vector<8x8xf32>, vector<8x8xf32> -> vector<8x16xf32>
    %203 = arith.mulf %198, %13 : vector<8x16xf32>
    %204 = arith.mulf %202, %14 : vector<8x16xf32>
    %205 = arith.addf %203, %204 : vector<8x16xf32>
    %cst_98 = arith.constant dense<0.000000e+00> : vector<8x8xf32>
    %206 = tpu.matmul %205, %199, %cst_98 {dimension_numbers = #tpu.dot_dimension_numbers<[1], [1], [0], [0], [0, 0, 1, 0], [], []>} : vector<8x16xf32>, vector<8x16xf32>, vector<8x8xf32> -> vector<8x8xf32>
    %cst_99 = arith.constant 2.500000e-01 : f32
    %207 = vector.broadcast %cst_99 : f32 to vector<8x8xf32>
    %208 = arith.mulf %206, %207 : vector<8x8xf32>
    %cst_100 = arith.constant dense<0xFF800000> : vector<8xf32>
    %209 = vector.multi_reduction <maximumf>, %208, %cst_100 [1] : vector<8x8xf32> to vector<8xf32>
    %210 = vector.shape_cast %209 : vector<8xf32> to vector<8x1xf32>
    %211 = vector.broadcast %210 : vector<8x1xf32> to vector<8x8xf32>
    %212 = arith.subf %208, %211 : vector<8x8xf32>
    %213 = math.exp %212 : vector<8x8xf32>
    %cst_101 = arith.constant dense<0.000000e+00> : vector<8xf32>
    %214 = vector.multi_reduction <add>, %213, %cst_101 [1] : vector<8x8xf32> to vector<8xf32>
    %215 = vector.shape_cast %214 : vector<8xf32> to vector<8x1xf32>
    %216 = tpu.reciprocal %215 {approx = true} : vector<8x1xf32> -> vector<8x1xf32>
    %217 = vector.broadcast %216 : vector<8x1xf32> to vector<8x8xf32>
    %218 = arith.mulf %213, %217 : vector<8x8xf32>
    %cst_102 = arith.constant dense<0.000000e+00> : vector<8x16xf32>
    %219 = tpu.matmul %218, %199, %cst_102 {dimension_numbers = #tpu.dot_dimension_numbers<[1], [0], [0], [1], [0, 0, 1, 1], [], []>} : vector<8x8xf32>, vector<8x16xf32>, vector<8x16xf32> -> vector<8x16xf32>
    %220 = vector.extract_strided_slice %168 {offsets = [0, 32], sizes = [8, 16], strides = [1, 1]} : vector<8x64xf32> to vector<8x16xf32>
    %221 = vector.extract_strided_slice %175 {offsets = [0, 32], sizes = [8, 16], strides = [1, 1]} : vector<8x64xf32> to vector<8x16xf32>
    %222 = vector.extract_strided_slice %220 {offsets = [0, 8], sizes = [8, 8], strides = [1, 1]} : vector<8x16xf32> to vector<8x8xf32>
    %223 = vector.extract_strided_slice %220 {offsets = [0, 0], sizes = [8, 8], strides = [1, 1]} : vector<8x16xf32> to vector<8x8xf32>
    %224 = tpu.concatenate %222, %223 in 1 : vector<8x8xf32>, vector<8x8xf32> -> vector<8x16xf32>
    %225 = arith.mulf %220, %13 : vector<8x16xf32>
    %226 = arith.mulf %224, %14 : vector<8x16xf32>
    %227 = arith.addf %225, %226 : vector<8x16xf32>
    %cst_103 = arith.constant dense<0.000000e+00> : vector<8x8xf32>
    %228 = tpu.matmul %227, %221, %cst_103 {dimension_numbers = #tpu.dot_dimension_numbers<[1], [1], [0], [0], [0, 0, 1, 0], [], []>} : vector<8x16xf32>, vector<8x16xf32>, vector<8x8xf32> -> vector<8x8xf32>
    %cst_104 = arith.constant 2.500000e-01 : f32
    %229 = vector.broadcast %cst_104 : f32 to vector<8x8xf32>
    %230 = arith.mulf %228, %229 : vector<8x8xf32>
    %cst_105 = arith.constant dense<0xFF800000> : vector<8xf32>
    %231 = vector.multi_reduction <maximumf>, %230, %cst_105 [1] : vector<8x8xf32> to vector<8xf32>
    %232 = vector.shape_cast %231 : vector<8xf32> to vector<8x1xf32>
    %233 = vector.broadcast %232 : vector<8x1xf32> to vector<8x8xf32>
    %234 = arith.subf %230, %233 : vector<8x8xf32>
    %235 = math.exp %234 : vector<8x8xf32>
    %cst_106 = arith.constant dense<0.000000e+00> : vector<8xf32>
    %236 = vector.multi_reduction <add>, %235, %cst_106 [1] : vector<8x8xf32> to vector<8xf32>
    %237 = vector.shape_cast %236 : vector<8xf32> to vector<8x1xf32>
    %238 = tpu.reciprocal %237 {approx = true} : vector<8x1xf32> -> vector<8x1xf32>
    %239 = vector.broadcast %238 : vector<8x1xf32> to vector<8x8xf32>
    %240 = arith.mulf %235, %239 : vector<8x8xf32>
    %cst_107 = arith.constant dense<0.000000e+00> : vector<8x16xf32>
    %241 = tpu.matmul %240, %221, %cst_107 {dimension_numbers = #tpu.dot_dimension_numbers<[1], [0], [0], [1], [0, 0, 1, 1], [], []>} : vector<8x8xf32>, vector<8x16xf32>, vector<8x16xf32> -> vector<8x16xf32>
    %242 = vector.extract_strided_slice %168 {offsets = [0, 48], sizes = [8, 16], strides = [1, 1]} : vector<8x64xf32> to vector<8x16xf32>
    %243 = vector.extract_strided_slice %175 {offsets = [0, 48], sizes = [8, 16], strides = [1, 1]} : vector<8x64xf32> to vector<8x16xf32>
    %244 = vector.extract_strided_slice %242 {offsets = [0, 8], sizes = [8, 8], strides = [1, 1]} : vector<8x16xf32> to vector<8x8xf32>
    %245 = vector.extract_strided_slice %242 {offsets = [0, 0], sizes = [8, 8], strides = [1, 1]} : vector<8x16xf32> to vector<8x8xf32>
    %246 = tpu.concatenate %244, %245 in 1 : vector<8x8xf32>, vector<8x8xf32> -> vector<8x16xf32>
    %247 = arith.mulf %242, %13 : vector<8x16xf32>
    %248 = arith.mulf %246, %14 : vector<8x16xf32>
    %249 = arith.addf %247, %248 : vector<8x16xf32>
    %cst_108 = arith.constant dense<0.000000e+00> : vector<8x8xf32>
    %250 = tpu.matmul %249, %243, %cst_108 {dimension_numbers = #tpu.dot_dimension_numbers<[1], [1], [0], [0], [0, 0, 1, 0], [], []>} : vector<8x16xf32>, vector<8x16xf32>, vector<8x8xf32> -> vector<8x8xf32>
    %cst_109 = arith.constant 2.500000e-01 : f32
    %251 = vector.broadcast %cst_109 : f32 to vector<8x8xf32>
    %252 = arith.mulf %250, %251 : vector<8x8xf32>
    %cst_110 = arith.constant dense<0xFF800000> : vector<8xf32>
    %253 = vector.multi_reduction <maximumf>, %252, %cst_110 [1] : vector<8x8xf32> to vector<8xf32>
    %254 = vector.shape_cast %253 : vector<8xf32> to vector<8x1xf32>
    %255 = vector.broadcast %254 : vector<8x1xf32> to vector<8x8xf32>
    %256 = arith.subf %252, %255 : vector<8x8xf32>
    %257 = math.exp %256 : vector<8x8xf32>
    %cst_111 = arith.constant dense<0.000000e+00> : vector<8xf32>
    %258 = vector.multi_reduction <add>, %257, %cst_111 [1] : vector<8x8xf32> to vector<8xf32>
    %259 = vector.shape_cast %258 : vector<8xf32> to vector<8x1xf32>
    %260 = tpu.reciprocal %259 {approx = true} : vector<8x1xf32> -> vector<8x1xf32>
    %261 = vector.broadcast %260 : vector<8x1xf32> to vector<8x8xf32>
    %262 = arith.mulf %257, %261 : vector<8x8xf32>
    %cst_112 = arith.constant dense<0.000000e+00> : vector<8x16xf32>
    %263 = tpu.matmul %262, %243, %cst_112 {dimension_numbers = #tpu.dot_dimension_numbers<[1], [0], [0], [1], [0, 0, 1, 1], [], []>} : vector<8x8xf32>, vector<8x16xf32>, vector<8x16xf32> -> vector<8x16xf32>
    %264 = tpu.concatenate %197, %219, %241, %263 in 1 : vector<8x16xf32>, vector<8x16xf32>, vector<8x16xf32>, vector<8x16xf32> -> vector<8x64xf32>
    %c1_113 = arith.constant 1 : index
    %c0_114 = arith.constant 0 : index
    %c0_115 = arith.constant 0 : index
    %265 = vector.load %arg16[%c1_113, %c0_114, %c0_115] : memref<10x64x64xf32, #tpu.memory_space<vmem>>, vector<1x64x64xf32>
    %266 = vector.shape_cast %265 : vector<1x64x64xf32> to vector<64x64xf32>
    %cst_116 = arith.constant dense<0.000000e+00> : vector<8x64xf32>
    %267 = tpu.matmul %264, %266, %cst_116 {dimension_numbers = #tpu.dot_dimension_numbers<[1], [0], [0], [1], [0, 0, 1, 1], [], []>} : vector<8x64xf32>, vector<64x64xf32>, vector<8x64xf32> -> vector<8x64xf32>
    %c1_117 = arith.constant 1 : index
    %c0_118 = arith.constant 0 : index
    %c0_119 = arith.constant 0 : index
    %268 = vector.load %arg17[%c1_117, %c0_118, %c0_119] : memref<10x1x64xf32, #tpu.memory_space<vmem>>, vector<1x1x64xf32>
    %269 = vector.shape_cast %268 : vector<1x1x64xf32> to vector<1x64xf32>
    %270 = vector.broadcast %269 : vector<1x64xf32> to vector<8x64xf32>
    %271 = arith.addf %267, %270 : vector<8x64xf32>
    %272 = arith.addf %271, %161 : vector<8x64xf32>
    %cst_120 = arith.constant dense<0.000000e+00> : vector<8xf32>
    %273 = vector.multi_reduction <add>, %272, %cst_120 [1] : vector<8x64xf32> to vector<8xf32>
    %274 = vector.shape_cast %273 : vector<8xf32> to vector<8x1xf32>
    %cst_121 = arith.constant 6.400000e+01 : f32
    %275 = vector.broadcast %cst_121 : f32 to vector<8x1xf32>
    %276 = arith.divf %274, %275 : vector<8x1xf32>
    %277 = vector.broadcast %276 : vector<8x1xf32> to vector<8x64xf32>
    %278 = arith.subf %272, %277 : vector<8x64xf32>
    %279 = arith.mulf %278, %278 : vector<8x64xf32>
    %cst_122 = arith.constant dense<0.000000e+00> : vector<8xf32>
    %280 = vector.multi_reduction <add>, %279, %cst_122 [1] : vector<8x64xf32> to vector<8xf32>
    %281 = vector.shape_cast %280 : vector<8xf32> to vector<8x1xf32>
    %cst_123 = arith.constant 6.400000e+01 : f32
    %282 = vector.broadcast %cst_123 : f32 to vector<8x1xf32>
    %283 = arith.divf %281, %282 : vector<8x1xf32>
    %cst_124 = arith.constant 9.99999974E-6 : f32
    %284 = vector.broadcast %cst_124 : f32 to vector<8x1xf32>
    %285 = arith.addf %283, %284 : vector<8x1xf32>
    %286 = math.rsqrt %285 : vector<8x1xf32>
    %287 = vector.broadcast %286 : vector<8x1xf32> to vector<8x64xf32>
    %288 = arith.mulf %278, %287 : vector<8x64xf32>
    %c1_125 = arith.constant 1 : index
    %c0_126 = arith.constant 0 : index
    %c0_127 = arith.constant 0 : index
    %289 = vector.load %arg18[%c1_125, %c0_126, %c0_127] : memref<10x1x64xf32, #tpu.memory_space<vmem>>, vector<1x1x64xf32>
    %290 = vector.shape_cast %289 : vector<1x1x64xf32> to vector<1x64xf32>
    %291 = vector.broadcast %290 : vector<1x64xf32> to vector<8x64xf32>
    %292 = arith.mulf %288, %291 : vector<8x64xf32>
    %c1_128 = arith.constant 1 : index
    %c0_129 = arith.constant 0 : index
    %c0_130 = arith.constant 0 : index
    %293 = vector.load %arg19[%c1_128, %c0_129, %c0_130] : memref<10x1x64xf32, #tpu.memory_space<vmem>>, vector<1x1x64xf32>
    %294 = vector.shape_cast %293 : vector<1x1x64xf32> to vector<1x64xf32>
    %295 = vector.broadcast %294 : vector<1x64xf32> to vector<8x64xf32>
    %296 = arith.addf %292, %295 : vector<8x64xf32>
    %cst_131 = arith.constant 0.000000e+00 : f32
    %297 = vector.broadcast %cst_131 : f32 to vector<8x64xf32>
    %298 = arith.maximumf %296, %297 : vector<8x64xf32>
    %c2 = arith.constant 2 : index
    %c0_132 = arith.constant 0 : index
    %c0_133 = arith.constant 0 : index
    %299 = vector.load %arg12[%c2, %c0_132, %c0_133] : memref<10x64x64xf32, #tpu.memory_space<vmem>>, vector<1x64x64xf32>
    %300 = vector.shape_cast %299 : vector<1x64x64xf32> to vector<64x64xf32>
    %cst_134 = arith.constant dense<0.000000e+00> : vector<8x64xf32>
    %301 = tpu.matmul %11, %300, %cst_134 {dimension_numbers = #tpu.dot_dimension_numbers<[1], [0], [0], [1], [0, 0, 1, 1], [], []>} : vector<8x64xf32>, vector<64x64xf32>, vector<8x64xf32> -> vector<8x64xf32>
    %c2_135 = arith.constant 2 : index
    %c0_136 = arith.constant 0 : index
    %c0_137 = arith.constant 0 : index
    %302 = vector.load %arg13[%c2_135, %c0_136, %c0_137] : memref<10x1x64xf32, #tpu.memory_space<vmem>>, vector<1x1x64xf32>
    %303 = vector.shape_cast %302 : vector<1x1x64xf32> to vector<1x64xf32>
    %304 = vector.broadcast %303 : vector<1x64xf32> to vector<8x64xf32>
    %305 = arith.addf %301, %304 : vector<8x64xf32>
    %c2_138 = arith.constant 2 : index
    %c0_139 = arith.constant 0 : index
    %c0_140 = arith.constant 0 : index
    %306 = vector.load %arg14[%c2_138, %c0_139, %c0_140] : memref<10x64x64xf32, #tpu.memory_space<vmem>>, vector<1x64x64xf32>
    %307 = vector.shape_cast %306 : vector<1x64x64xf32> to vector<64x64xf32>
    %cst_141 = arith.constant dense<0.000000e+00> : vector<8x64xf32>
    %308 = tpu.matmul %298, %307, %cst_141 {dimension_numbers = #tpu.dot_dimension_numbers<[1], [0], [0], [1], [0, 0, 1, 1], [], []>} : vector<8x64xf32>, vector<64x64xf32>, vector<8x64xf32> -> vector<8x64xf32>
    %c2_142 = arith.constant 2 : index
    %c0_143 = arith.constant 0 : index
    %c0_144 = arith.constant 0 : index
    %309 = vector.load %arg15[%c2_142, %c0_143, %c0_144] : memref<10x1x64xf32, #tpu.memory_space<vmem>>, vector<1x1x64xf32>
    %310 = vector.shape_cast %309 : vector<1x1x64xf32> to vector<1x64xf32>
    %311 = vector.broadcast %310 : vector<1x64xf32> to vector<8x64xf32>
    %312 = arith.addf %308, %311 : vector<8x64xf32>
    %313 = vector.extract_strided_slice %305 {offsets = [0, 0], sizes = [8, 16], strides = [1, 1]} : vector<8x64xf32> to vector<8x16xf32>
    %314 = vector.extract_strided_slice %312 {offsets = [0, 0], sizes = [8, 16], strides = [1, 1]} : vector<8x64xf32> to vector<8x16xf32>
    %315 = vector.extract_strided_slice %313 {offsets = [0, 8], sizes = [8, 8], strides = [1, 1]} : vector<8x16xf32> to vector<8x8xf32>
    %316 = vector.extract_strided_slice %313 {offsets = [0, 0], sizes = [8, 8], strides = [1, 1]} : vector<8x16xf32> to vector<8x8xf32>
    %317 = tpu.concatenate %315, %316 in 1 : vector<8x8xf32>, vector<8x8xf32> -> vector<8x16xf32>
    %318 = arith.mulf %313, %13 : vector<8x16xf32>
    %319 = arith.mulf %317, %14 : vector<8x16xf32>
    %320 = arith.addf %318, %319 : vector<8x16xf32>
    %cst_145 = arith.constant dense<0.000000e+00> : vector<8x8xf32>
    %321 = tpu.matmul %320, %314, %cst_145 {dimension_numbers = #tpu.dot_dimension_numbers<[1], [1], [0], [0], [0, 0, 1, 0], [], []>} : vector<8x16xf32>, vector<8x16xf32>, vector<8x8xf32> -> vector<8x8xf32>
    %cst_146 = arith.constant 2.500000e-01 : f32
    %322 = vector.broadcast %cst_146 : f32 to vector<8x8xf32>
    %323 = arith.mulf %321, %322 : vector<8x8xf32>
    %cst_147 = arith.constant dense<0xFF800000> : vector<8xf32>
    %324 = vector.multi_reduction <maximumf>, %323, %cst_147 [1] : vector<8x8xf32> to vector<8xf32>
    %325 = vector.shape_cast %324 : vector<8xf32> to vector<8x1xf32>
    %326 = vector.broadcast %325 : vector<8x1xf32> to vector<8x8xf32>
    %327 = arith.subf %323, %326 : vector<8x8xf32>
    %328 = math.exp %327 : vector<8x8xf32>
    %cst_148 = arith.constant dense<0.000000e+00> : vector<8xf32>
    %329 = vector.multi_reduction <add>, %328, %cst_148 [1] : vector<8x8xf32> to vector<8xf32>
    %330 = vector.shape_cast %329 : vector<8xf32> to vector<8x1xf32>
    %331 = tpu.reciprocal %330 {approx = true} : vector<8x1xf32> -> vector<8x1xf32>
    %332 = vector.broadcast %331 : vector<8x1xf32> to vector<8x8xf32>
    %333 = arith.mulf %328, %332 : vector<8x8xf32>
    %cst_149 = arith.constant dense<0.000000e+00> : vector<8x16xf32>
    %334 = tpu.matmul %333, %314, %cst_149 {dimension_numbers = #tpu.dot_dimension_numbers<[1], [0], [0], [1], [0, 0, 1, 1], [], []>} : vector<8x8xf32>, vector<8x16xf32>, vector<8x16xf32> -> vector<8x16xf32>
    %335 = vector.extract_strided_slice %305 {offsets = [0, 16], sizes = [8, 16], strides = [1, 1]} : vector<8x64xf32> to vector<8x16xf32>
    %336 = vector.extract_strided_slice %312 {offsets = [0, 16], sizes = [8, 16], strides = [1, 1]} : vector<8x64xf32> to vector<8x16xf32>
    %337 = vector.extract_strided_slice %335 {offsets = [0, 8], sizes = [8, 8], strides = [1, 1]} : vector<8x16xf32> to vector<8x8xf32>
    %338 = vector.extract_strided_slice %335 {offsets = [0, 0], sizes = [8, 8], strides = [1, 1]} : vector<8x16xf32> to vector<8x8xf32>
    %339 = tpu.concatenate %337, %338 in 1 : vector<8x8xf32>, vector<8x8xf32> -> vector<8x16xf32>
    %340 = arith.mulf %335, %13 : vector<8x16xf32>
    %341 = arith.mulf %339, %14 : vector<8x16xf32>
    %342 = arith.addf %340, %341 : vector<8x16xf32>
    %cst_150 = arith.constant dense<0.000000e+00> : vector<8x8xf32>
    %343 = tpu.matmul %342, %336, %cst_150 {dimension_numbers = #tpu.dot_dimension_numbers<[1], [1], [0], [0], [0, 0, 1, 0], [], []>} : vector<8x16xf32>, vector<8x16xf32>, vector<8x8xf32> -> vector<8x8xf32>
    %cst_151 = arith.constant 2.500000e-01 : f32
    %344 = vector.broadcast %cst_151 : f32 to vector<8x8xf32>
    %345 = arith.mulf %343, %344 : vector<8x8xf32>
    %cst_152 = arith.constant dense<0xFF800000> : vector<8xf32>
    %346 = vector.multi_reduction <maximumf>, %345, %cst_152 [1] : vector<8x8xf32> to vector<8xf32>
    %347 = vector.shape_cast %346 : vector<8xf32> to vector<8x1xf32>
    %348 = vector.broadcast %347 : vector<8x1xf32> to vector<8x8xf32>
    %349 = arith.subf %345, %348 : vector<8x8xf32>
    %350 = math.exp %349 : vector<8x8xf32>
    %cst_153 = arith.constant dense<0.000000e+00> : vector<8xf32>
    %351 = vector.multi_reduction <add>, %350, %cst_153 [1] : vector<8x8xf32> to vector<8xf32>
    %352 = vector.shape_cast %351 : vector<8xf32> to vector<8x1xf32>
    %353 = tpu.reciprocal %352 {approx = true} : vector<8x1xf32> -> vector<8x1xf32>
    %354 = vector.broadcast %353 : vector<8x1xf32> to vector<8x8xf32>
    %355 = arith.mulf %350, %354 : vector<8x8xf32>
    %cst_154 = arith.constant dense<0.000000e+00> : vector<8x16xf32>
    %356 = tpu.matmul %355, %336, %cst_154 {dimension_numbers = #tpu.dot_dimension_numbers<[1], [0], [0], [1], [0, 0, 1, 1], [], []>} : vector<8x8xf32>, vector<8x16xf32>, vector<8x16xf32> -> vector<8x16xf32>
    %357 = vector.extract_strided_slice %305 {offsets = [0, 32], sizes = [8, 16], strides = [1, 1]} : vector<8x64xf32> to vector<8x16xf32>
    %358 = vector.extract_strided_slice %312 {offsets = [0, 32], sizes = [8, 16], strides = [1, 1]} : vector<8x64xf32> to vector<8x16xf32>
    %359 = vector.extract_strided_slice %357 {offsets = [0, 8], sizes = [8, 8], strides = [1, 1]} : vector<8x16xf32> to vector<8x8xf32>
    %360 = vector.extract_strided_slice %357 {offsets = [0, 0], sizes = [8, 8], strides = [1, 1]} : vector<8x16xf32> to vector<8x8xf32>
    %361 = tpu.concatenate %359, %360 in 1 : vector<8x8xf32>, vector<8x8xf32> -> vector<8x16xf32>
    %362 = arith.mulf %357, %13 : vector<8x16xf32>
    %363 = arith.mulf %361, %14 : vector<8x16xf32>
    %364 = arith.addf %362, %363 : vector<8x16xf32>
    %cst_155 = arith.constant dense<0.000000e+00> : vector<8x8xf32>
    %365 = tpu.matmul %364, %358, %cst_155 {dimension_numbers = #tpu.dot_dimension_numbers<[1], [1], [0], [0], [0, 0, 1, 0], [], []>} : vector<8x16xf32>, vector<8x16xf32>, vector<8x8xf32> -> vector<8x8xf32>
    %cst_156 = arith.constant 2.500000e-01 : f32
    %366 = vector.broadcast %cst_156 : f32 to vector<8x8xf32>
    %367 = arith.mulf %365, %366 : vector<8x8xf32>
    %cst_157 = arith.constant dense<0xFF800000> : vector<8xf32>
    %368 = vector.multi_reduction <maximumf>, %367, %cst_157 [1] : vector<8x8xf32> to vector<8xf32>
    %369 = vector.shape_cast %368 : vector<8xf32> to vector<8x1xf32>
    %370 = vector.broadcast %369 : vector<8x1xf32> to vector<8x8xf32>
    %371 = arith.subf %367, %370 : vector<8x8xf32>
    %372 = math.exp %371 : vector<8x8xf32>
    %cst_158 = arith.constant dense<0.000000e+00> : vector<8xf32>
    %373 = vector.multi_reduction <add>, %372, %cst_158 [1] : vector<8x8xf32> to vector<8xf32>
    %374 = vector.shape_cast %373 : vector<8xf32> to vector<8x1xf32>
    %375 = tpu.reciprocal %374 {approx = true} : vector<8x1xf32> -> vector<8x1xf32>
    %376 = vector.broadcast %375 : vector<8x1xf32> to vector<8x8xf32>
    %377 = arith.mulf %372, %376 : vector<8x8xf32>
    %cst_159 = arith.constant dense<0.000000e+00> : vector<8x16xf32>
    %378 = tpu.matmul %377, %358, %cst_159 {dimension_numbers = #tpu.dot_dimension_numbers<[1], [0], [0], [1], [0, 0, 1, 1], [], []>} : vector<8x8xf32>, vector<8x16xf32>, vector<8x16xf32> -> vector<8x16xf32>
    %379 = vector.extract_strided_slice %305 {offsets = [0, 48], sizes = [8, 16], strides = [1, 1]} : vector<8x64xf32> to vector<8x16xf32>
    %380 = vector.extract_strided_slice %312 {offsets = [0, 48], sizes = [8, 16], strides = [1, 1]} : vector<8x64xf32> to vector<8x16xf32>
    %381 = vector.extract_strided_slice %379 {offsets = [0, 8], sizes = [8, 8], strides = [1, 1]} : vector<8x16xf32> to vector<8x8xf32>
    %382 = vector.extract_strided_slice %379 {offsets = [0, 0], sizes = [8, 8], strides = [1, 1]} : vector<8x16xf32> to vector<8x8xf32>
    %383 = tpu.concatenate %381, %382 in 1 : vector<8x8xf32>, vector<8x8xf32> -> vector<8x16xf32>
    %384 = arith.mulf %379, %13 : vector<8x16xf32>
    %385 = arith.mulf %383, %14 : vector<8x16xf32>
    %386 = arith.addf %384, %385 : vector<8x16xf32>
    %cst_160 = arith.constant dense<0.000000e+00> : vector<8x8xf32>
    %387 = tpu.matmul %386, %380, %cst_160 {dimension_numbers = #tpu.dot_dimension_numbers<[1], [1], [0], [0], [0, 0, 1, 0], [], []>} : vector<8x16xf32>, vector<8x16xf32>, vector<8x8xf32> -> vector<8x8xf32>
    %cst_161 = arith.constant 2.500000e-01 : f32
    %388 = vector.broadcast %cst_161 : f32 to vector<8x8xf32>
    %389 = arith.mulf %387, %388 : vector<8x8xf32>
    %cst_162 = arith.constant dense<0xFF800000> : vector<8xf32>
    %390 = vector.multi_reduction <maximumf>, %389, %cst_162 [1] : vector<8x8xf32> to vector<8xf32>
    %391 = vector.shape_cast %390 : vector<8xf32> to vector<8x1xf32>
    %392 = vector.broadcast %391 : vector<8x1xf32> to vector<8x8xf32>
    %393 = arith.subf %389, %392 : vector<8x8xf32>
    %394 = math.exp %393 : vector<8x8xf32>
    %cst_163 = arith.constant dense<0.000000e+00> : vector<8xf32>
    %395 = vector.multi_reduction <add>, %394, %cst_163 [1] : vector<8x8xf32> to vector<8xf32>
    %396 = vector.shape_cast %395 : vector<8xf32> to vector<8x1xf32>
    %397 = tpu.reciprocal %396 {approx = true} : vector<8x1xf32> -> vector<8x1xf32>
    %398 = vector.broadcast %397 : vector<8x1xf32> to vector<8x8xf32>
    %399 = arith.mulf %394, %398 : vector<8x8xf32>
    %cst_164 = arith.constant dense<0.000000e+00> : vector<8x16xf32>
    %400 = tpu.matmul %399, %380, %cst_164 {dimension_numbers = #tpu.dot_dimension_numbers<[1], [0], [0], [1], [0, 0, 1, 1], [], []>} : vector<8x8xf32>, vector<8x16xf32>, vector<8x16xf32> -> vector<8x16xf32>
    %401 = tpu.concatenate %334, %356, %378, %400 in 1 : vector<8x16xf32>, vector<8x16xf32>, vector<8x16xf32>, vector<8x16xf32> -> vector<8x64xf32>
    %c2_165 = arith.constant 2 : index
    %c0_166 = arith.constant 0 : index
    %c0_167 = arith.constant 0 : index
    %402 = vector.load %arg16[%c2_165, %c0_166, %c0_167] : memref<10x64x64xf32, #tpu.memory_space<vmem>>, vector<1x64x64xf32>
    %403 = vector.shape_cast %402 : vector<1x64x64xf32> to vector<64x64xf32>
    %cst_168 = arith.constant dense<0.000000e+00> : vector<8x64xf32>
    %404 = tpu.matmul %401, %403, %cst_168 {dimension_numbers = #tpu.dot_dimension_numbers<[1], [0], [0], [1], [0, 0, 1, 1], [], []>} : vector<8x64xf32>, vector<64x64xf32>, vector<8x64xf32> -> vector<8x64xf32>
    %c2_169 = arith.constant 2 : index
    %c0_170 = arith.constant 0 : index
    %c0_171 = arith.constant 0 : index
    %405 = vector.load %arg17[%c2_169, %c0_170, %c0_171] : memref<10x1x64xf32, #tpu.memory_space<vmem>>, vector<1x1x64xf32>
    %406 = vector.shape_cast %405 : vector<1x1x64xf32> to vector<1x64xf32>
    %407 = vector.broadcast %406 : vector<1x64xf32> to vector<8x64xf32>
    %408 = arith.addf %404, %407 : vector<8x64xf32>
    %409 = arith.addf %408, %298 : vector<8x64xf32>
    %cst_172 = arith.constant dense<0.000000e+00> : vector<8xf32>
    %410 = vector.multi_reduction <add>, %409, %cst_172 [1] : vector<8x64xf32> to vector<8xf32>
    %411 = vector.shape_cast %410 : vector<8xf32> to vector<8x1xf32>
    %cst_173 = arith.constant 6.400000e+01 : f32
    %412 = vector.broadcast %cst_173 : f32 to vector<8x1xf32>
    %413 = arith.divf %411, %412 : vector<8x1xf32>
    %414 = vector.broadcast %413 : vector<8x1xf32> to vector<8x64xf32>
    %415 = arith.subf %409, %414 : vector<8x64xf32>
    %416 = arith.mulf %415, %415 : vector<8x64xf32>
    %cst_174 = arith.constant dense<0.000000e+00> : vector<8xf32>
    %417 = vector.multi_reduction <add>, %416, %cst_174 [1] : vector<8x64xf32> to vector<8xf32>
    %418 = vector.shape_cast %417 : vector<8xf32> to vector<8x1xf32>
    %cst_175 = arith.constant 6.400000e+01 : f32
    %419 = vector.broadcast %cst_175 : f32 to vector<8x1xf32>
    %420 = arith.divf %418, %419 : vector<8x1xf32>
    %cst_176 = arith.constant 9.99999974E-6 : f32
    %421 = vector.broadcast %cst_176 : f32 to vector<8x1xf32>
    %422 = arith.addf %420, %421 : vector<8x1xf32>
    %423 = math.rsqrt %422 : vector<8x1xf32>
    %424 = vector.broadcast %423 : vector<8x1xf32> to vector<8x64xf32>
    %425 = arith.mulf %415, %424 : vector<8x64xf32>
    %c2_177 = arith.constant 2 : index
    %c0_178 = arith.constant 0 : index
    %c0_179 = arith.constant 0 : index
    %426 = vector.load %arg18[%c2_177, %c0_178, %c0_179] : memref<10x1x64xf32, #tpu.memory_space<vmem>>, vector<1x1x64xf32>
    %427 = vector.shape_cast %426 : vector<1x1x64xf32> to vector<1x64xf32>
    %428 = vector.broadcast %427 : vector<1x64xf32> to vector<8x64xf32>
    %429 = arith.mulf %425, %428 : vector<8x64xf32>
    %c2_180 = arith.constant 2 : index
    %c0_181 = arith.constant 0 : index
    %c0_182 = arith.constant 0 : index
    %430 = vector.load %arg19[%c2_180, %c0_181, %c0_182] : memref<10x1x64xf32, #tpu.memory_space<vmem>>, vector<1x1x64xf32>
    %431 = vector.shape_cast %430 : vector<1x1x64xf32> to vector<1x64xf32>
    %432 = vector.broadcast %431 : vector<1x64xf32> to vector<8x64xf32>
    %433 = arith.addf %429, %432 : vector<8x64xf32>
    %cst_183 = arith.constant 0.000000e+00 : f32
    %434 = vector.broadcast %cst_183 : f32 to vector<8x64xf32>
    %435 = arith.maximumf %433, %434 : vector<8x64xf32>
    %c3 = arith.constant 3 : index
    %c0_184 = arith.constant 0 : index
    %c0_185 = arith.constant 0 : index
    %436 = vector.load %arg12[%c3, %c0_184, %c0_185] : memref<10x64x64xf32, #tpu.memory_space<vmem>>, vector<1x64x64xf32>
    %437 = vector.shape_cast %436 : vector<1x64x64xf32> to vector<64x64xf32>
    %cst_186 = arith.constant dense<0.000000e+00> : vector<8x64xf32>
    %438 = tpu.matmul %11, %437, %cst_186 {dimension_numbers = #tpu.dot_dimension_numbers<[1], [0], [0], [1], [0, 0, 1, 1], [], []>} : vector<8x64xf32>, vector<64x64xf32>, vector<8x64xf32> -> vector<8x64xf32>
    %c3_187 = arith.constant 3 : index
    %c0_188 = arith.constant 0 : index
    %c0_189 = arith.constant 0 : index
    %439 = vector.load %arg13[%c3_187, %c0_188, %c0_189] : memref<10x1x64xf32, #tpu.memory_space<vmem>>, vector<1x1x64xf32>
    %440 = vector.shape_cast %439 : vector<1x1x64xf32> to vector<1x64xf32>
    %441 = vector.broadcast %440 : vector<1x64xf32> to vector<8x64xf32>
    %442 = arith.addf %438, %441 : vector<8x64xf32>
    %c3_190 = arith.constant 3 : index
    %c0_191 = arith.constant 0 : index
    %c0_192 = arith.constant 0 : index
    %443 = vector.load %arg14[%c3_190, %c0_191, %c0_192] : memref<10x64x64xf32, #tpu.memory_space<vmem>>, vector<1x64x64xf32>
    %444 = vector.shape_cast %443 : vector<1x64x64xf32> to vector<64x64xf32>
    %cst_193 = arith.constant dense<0.000000e+00> : vector<8x64xf32>
    %445 = tpu.matmul %435, %444, %cst_193 {dimension_numbers = #tpu.dot_dimension_numbers<[1], [0], [0], [1], [0, 0, 1, 1], [], []>} : vector<8x64xf32>, vector<64x64xf32>, vector<8x64xf32> -> vector<8x64xf32>
    %c3_194 = arith.constant 3 : index
    %c0_195 = arith.constant 0 : index
    %c0_196 = arith.constant 0 : index
    %446 = vector.load %arg15[%c3_194, %c0_195, %c0_196] : memref<10x1x64xf32, #tpu.memory_space<vmem>>, vector<1x1x64xf32>
    %447 = vector.shape_cast %446 : vector<1x1x64xf32> to vector<1x64xf32>
    %448 = vector.broadcast %447 : vector<1x64xf32> to vector<8x64xf32>
    %449 = arith.addf %445, %448 : vector<8x64xf32>
    %450 = vector.extract_strided_slice %442 {offsets = [0, 0], sizes = [8, 16], strides = [1, 1]} : vector<8x64xf32> to vector<8x16xf32>
    %451 = vector.extract_strided_slice %449 {offsets = [0, 0], sizes = [8, 16], strides = [1, 1]} : vector<8x64xf32> to vector<8x16xf32>
    %452 = vector.extract_strided_slice %450 {offsets = [0, 8], sizes = [8, 8], strides = [1, 1]} : vector<8x16xf32> to vector<8x8xf32>
    %453 = vector.extract_strided_slice %450 {offsets = [0, 0], sizes = [8, 8], strides = [1, 1]} : vector<8x16xf32> to vector<8x8xf32>
    %454 = tpu.concatenate %452, %453 in 1 : vector<8x8xf32>, vector<8x8xf32> -> vector<8x16xf32>
    %455 = arith.mulf %450, %13 : vector<8x16xf32>
    %456 = arith.mulf %454, %14 : vector<8x16xf32>
    %457 = arith.addf %455, %456 : vector<8x16xf32>
    %cst_197 = arith.constant dense<0.000000e+00> : vector<8x8xf32>
    %458 = tpu.matmul %457, %451, %cst_197 {dimension_numbers = #tpu.dot_dimension_numbers<[1], [1], [0], [0], [0, 0, 1, 0], [], []>} : vector<8x16xf32>, vector<8x16xf32>, vector<8x8xf32> -> vector<8x8xf32>
    %cst_198 = arith.constant 2.500000e-01 : f32
    %459 = vector.broadcast %cst_198 : f32 to vector<8x8xf32>
    %460 = arith.mulf %458, %459 : vector<8x8xf32>
    %cst_199 = arith.constant dense<0xFF800000> : vector<8xf32>
    %461 = vector.multi_reduction <maximumf>, %460, %cst_199 [1] : vector<8x8xf32> to vector<8xf32>
    %462 = vector.shape_cast %461 : vector<8xf32> to vector<8x1xf32>
    %463 = vector.broadcast %462 : vector<8x1xf32> to vector<8x8xf32>
    %464 = arith.subf %460, %463 : vector<8x8xf32>
    %465 = math.exp %464 : vector<8x8xf32>
    %cst_200 = arith.constant dense<0.000000e+00> : vector<8xf32>
    %466 = vector.multi_reduction <add>, %465, %cst_200 [1] : vector<8x8xf32> to vector<8xf32>
    %467 = vector.shape_cast %466 : vector<8xf32> to vector<8x1xf32>
    %468 = tpu.reciprocal %467 {approx = true} : vector<8x1xf32> -> vector<8x1xf32>
    %469 = vector.broadcast %468 : vector<8x1xf32> to vector<8x8xf32>
    %470 = arith.mulf %465, %469 : vector<8x8xf32>
    %cst_201 = arith.constant dense<0.000000e+00> : vector<8x16xf32>
    %471 = tpu.matmul %470, %451, %cst_201 {dimension_numbers = #tpu.dot_dimension_numbers<[1], [0], [0], [1], [0, 0, 1, 1], [], []>} : vector<8x8xf32>, vector<8x16xf32>, vector<8x16xf32> -> vector<8x16xf32>
    %472 = vector.extract_strided_slice %442 {offsets = [0, 16], sizes = [8, 16], strides = [1, 1]} : vector<8x64xf32> to vector<8x16xf32>
    %473 = vector.extract_strided_slice %449 {offsets = [0, 16], sizes = [8, 16], strides = [1, 1]} : vector<8x64xf32> to vector<8x16xf32>
    %474 = vector.extract_strided_slice %472 {offsets = [0, 8], sizes = [8, 8], strides = [1, 1]} : vector<8x16xf32> to vector<8x8xf32>
    %475 = vector.extract_strided_slice %472 {offsets = [0, 0], sizes = [8, 8], strides = [1, 1]} : vector<8x16xf32> to vector<8x8xf32>
    %476 = tpu.concatenate %474, %475 in 1 : vector<8x8xf32>, vector<8x8xf32> -> vector<8x16xf32>
    %477 = arith.mulf %472, %13 : vector<8x16xf32>
    %478 = arith.mulf %476, %14 : vector<8x16xf32>
    %479 = arith.addf %477, %478 : vector<8x16xf32>
    %cst_202 = arith.constant dense<0.000000e+00> : vector<8x8xf32>
    %480 = tpu.matmul %479, %473, %cst_202 {dimension_numbers = #tpu.dot_dimension_numbers<[1], [1], [0], [0], [0, 0, 1, 0], [], []>} : vector<8x16xf32>, vector<8x16xf32>, vector<8x8xf32> -> vector<8x8xf32>
    %cst_203 = arith.constant 2.500000e-01 : f32
    %481 = vector.broadcast %cst_203 : f32 to vector<8x8xf32>
    %482 = arith.mulf %480, %481 : vector<8x8xf32>
    %cst_204 = arith.constant dense<0xFF800000> : vector<8xf32>
    %483 = vector.multi_reduction <maximumf>, %482, %cst_204 [1] : vector<8x8xf32> to vector<8xf32>
    %484 = vector.shape_cast %483 : vector<8xf32> to vector<8x1xf32>
    %485 = vector.broadcast %484 : vector<8x1xf32> to vector<8x8xf32>
    %486 = arith.subf %482, %485 : vector<8x8xf32>
    %487 = math.exp %486 : vector<8x8xf32>
    %cst_205 = arith.constant dense<0.000000e+00> : vector<8xf32>
    %488 = vector.multi_reduction <add>, %487, %cst_205 [1] : vector<8x8xf32> to vector<8xf32>
    %489 = vector.shape_cast %488 : vector<8xf32> to vector<8x1xf32>
    %490 = tpu.reciprocal %489 {approx = true} : vector<8x1xf32> -> vector<8x1xf32>
    %491 = vector.broadcast %490 : vector<8x1xf32> to vector<8x8xf32>
    %492 = arith.mulf %487, %491 : vector<8x8xf32>
    %cst_206 = arith.constant dense<0.000000e+00> : vector<8x16xf32>
    %493 = tpu.matmul %492, %473, %cst_206 {dimension_numbers = #tpu.dot_dimension_numbers<[1], [0], [0], [1], [0, 0, 1, 1], [], []>} : vector<8x8xf32>, vector<8x16xf32>, vector<8x16xf32> -> vector<8x16xf32>
    %494 = vector.extract_strided_slice %442 {offsets = [0, 32], sizes = [8, 16], strides = [1, 1]} : vector<8x64xf32> to vector<8x16xf32>
    %495 = vector.extract_strided_slice %449 {offsets = [0, 32], sizes = [8, 16], strides = [1, 1]} : vector<8x64xf32> to vector<8x16xf32>
    %496 = vector.extract_strided_slice %494 {offsets = [0, 8], sizes = [8, 8], strides = [1, 1]} : vector<8x16xf32> to vector<8x8xf32>
    %497 = vector.extract_strided_slice %494 {offsets = [0, 0], sizes = [8, 8], strides = [1, 1]} : vector<8x16xf32> to vector<8x8xf32>
    %498 = tpu.concatenate %496, %497 in 1 : vector<8x8xf32>, vector<8x8xf32> -> vector<8x16xf32>
    %499 = arith.mulf %494, %13 : vector<8x16xf32>
    %500 = arith.mulf %498, %14 : vector<8x16xf32>
    %501 = arith.addf %499, %500 : vector<8x16xf32>
    %cst_207 = arith.constant dense<0.000000e+00> : vector<8x8xf32>
    %502 = tpu.matmul %501, %495, %cst_207 {dimension_numbers = #tpu.dot_dimension_numbers<[1], [1], [0], [0], [0, 0, 1, 0], [], []>} : vector<8x16xf32>, vector<8x16xf32>, vector<8x8xf32> -> vector<8x8xf32>
    %cst_208 = arith.constant 2.500000e-01 : f32
    %503 = vector.broadcast %cst_208 : f32 to vector<8x8xf32>
    %504 = arith.mulf %502, %503 : vector<8x8xf32>
    %cst_209 = arith.constant dense<0xFF800000> : vector<8xf32>
    %505 = vector.multi_reduction <maximumf>, %504, %cst_209 [1] : vector<8x8xf32> to vector<8xf32>
    %506 = vector.shape_cast %505 : vector<8xf32> to vector<8x1xf32>
    %507 = vector.broadcast %506 : vector<8x1xf32> to vector<8x8xf32>
    %508 = arith.subf %504, %507 : vector<8x8xf32>
    %509 = math.exp %508 : vector<8x8xf32>
    %cst_210 = arith.constant dense<0.000000e+00> : vector<8xf32>
    %510 = vector.multi_reduction <add>, %509, %cst_210 [1] : vector<8x8xf32> to vector<8xf32>
    %511 = vector.shape_cast %510 : vector<8xf32> to vector<8x1xf32>
    %512 = tpu.reciprocal %511 {approx = true} : vector<8x1xf32> -> vector<8x1xf32>
    %513 = vector.broadcast %512 : vector<8x1xf32> to vector<8x8xf32>
    %514 = arith.mulf %509, %513 : vector<8x8xf32>
    %cst_211 = arith.constant dense<0.000000e+00> : vector<8x16xf32>
    %515 = tpu.matmul %514, %495, %cst_211 {dimension_numbers = #tpu.dot_dimension_numbers<[1], [0], [0], [1], [0, 0, 1, 1], [], []>} : vector<8x8xf32>, vector<8x16xf32>, vector<8x16xf32> -> vector<8x16xf32>
    %516 = vector.extract_strided_slice %442 {offsets = [0, 48], sizes = [8, 16], strides = [1, 1]} : vector<8x64xf32> to vector<8x16xf32>
    %517 = vector.extract_strided_slice %449 {offsets = [0, 48], sizes = [8, 16], strides = [1, 1]} : vector<8x64xf32> to vector<8x16xf32>
    %518 = vector.extract_strided_slice %516 {offsets = [0, 8], sizes = [8, 8], strides = [1, 1]} : vector<8x16xf32> to vector<8x8xf32>
    %519 = vector.extract_strided_slice %516 {offsets = [0, 0], sizes = [8, 8], strides = [1, 1]} : vector<8x16xf32> to vector<8x8xf32>
    %520 = tpu.concatenate %518, %519 in 1 : vector<8x8xf32>, vector<8x8xf32> -> vector<8x16xf32>
    %521 = arith.mulf %516, %13 : vector<8x16xf32>
    %522 = arith.mulf %520, %14 : vector<8x16xf32>
    %523 = arith.addf %521, %522 : vector<8x16xf32>
    %cst_212 = arith.constant dense<0.000000e+00> : vector<8x8xf32>
    %524 = tpu.matmul %523, %517, %cst_212 {dimension_numbers = #tpu.dot_dimension_numbers<[1], [1], [0], [0], [0, 0, 1, 0], [], []>} : vector<8x16xf32>, vector<8x16xf32>, vector<8x8xf32> -> vector<8x8xf32>
    %cst_213 = arith.constant 2.500000e-01 : f32
    %525 = vector.broadcast %cst_213 : f32 to vector<8x8xf32>
    %526 = arith.mulf %524, %525 : vector<8x8xf32>
    %cst_214 = arith.constant dense<0xFF800000> : vector<8xf32>
    %527 = vector.multi_reduction <maximumf>, %526, %cst_214 [1] : vector<8x8xf32> to vector<8xf32>
    %528 = vector.shape_cast %527 : vector<8xf32> to vector<8x1xf32>
    %529 = vector.broadcast %528 : vector<8x1xf32> to vector<8x8xf32>
    %530 = arith.subf %526, %529 : vector<8x8xf32>
    %531 = math.exp %530 : vector<8x8xf32>
    %cst_215 = arith.constant dense<0.000000e+00> : vector<8xf32>
    %532 = vector.multi_reduction <add>, %531, %cst_215 [1] : vector<8x8xf32> to vector<8xf32>
    %533 = vector.shape_cast %532 : vector<8xf32> to vector<8x1xf32>
    %534 = tpu.reciprocal %533 {approx = true} : vector<8x1xf32> -> vector<8x1xf32>
    %535 = vector.broadcast %534 : vector<8x1xf32> to vector<8x8xf32>
    %536 = arith.mulf %531, %535 : vector<8x8xf32>
    %cst_216 = arith.constant dense<0.000000e+00> : vector<8x16xf32>
    %537 = tpu.matmul %536, %517, %cst_216 {dimension_numbers = #tpu.dot_dimension_numbers<[1], [0], [0], [1], [0, 0, 1, 1], [], []>} : vector<8x8xf32>, vector<8x16xf32>, vector<8x16xf32> -> vector<8x16xf32>
    %538 = tpu.concatenate %471, %493, %515, %537 in 1 : vector<8x16xf32>, vector<8x16xf32>, vector<8x16xf32>, vector<8x16xf32> -> vector<8x64xf32>
    %c3_217 = arith.constant 3 : index
    %c0_218 = arith.constant 0 : index
    %c0_219 = arith.constant 0 : index
    %539 = vector.load %arg16[%c3_217, %c0_218, %c0_219] : memref<10x64x64xf32, #tpu.memory_space<vmem>>, vector<1x64x64xf32>
    %540 = vector.shape_cast %539 : vector<1x64x64xf32> to vector<64x64xf32>
    %cst_220 = arith.constant dense<0.000000e+00> : vector<8x64xf32>
    %541 = tpu.matmul %538, %540, %cst_220 {dimension_numbers = #tpu.dot_dimension_numbers<[1], [0], [0], [1], [0, 0, 1, 1], [], []>} : vector<8x64xf32>, vector<64x64xf32>, vector<8x64xf32> -> vector<8x64xf32>
    %c3_221 = arith.constant 3 : index
    %c0_222 = arith.constant 0 : index
    %c0_223 = arith.constant 0 : index
    %542 = vector.load %arg17[%c3_221, %c0_222, %c0_223] : memref<10x1x64xf32, #tpu.memory_space<vmem>>, vector<1x1x64xf32>
    %543 = vector.shape_cast %542 : vector<1x1x64xf32> to vector<1x64xf32>
    %544 = vector.broadcast %543 : vector<1x64xf32> to vector<8x64xf32>
    %545 = arith.addf %541, %544 : vector<8x64xf32>
    %546 = arith.addf %545, %435 : vector<8x64xf32>
    %cst_224 = arith.constant dense<0.000000e+00> : vector<8xf32>
    %547 = vector.multi_reduction <add>, %546, %cst_224 [1] : vector<8x64xf32> to vector<8xf32>
    %548 = vector.shape_cast %547 : vector<8xf32> to vector<8x1xf32>
    %cst_225 = arith.constant 6.400000e+01 : f32
    %549 = vector.broadcast %cst_225 : f32 to vector<8x1xf32>
    %550 = arith.divf %548, %549 : vector<8x1xf32>
    %551 = vector.broadcast %550 : vector<8x1xf32> to vector<8x64xf32>
    %552 = arith.subf %546, %551 : vector<8x64xf32>
    %553 = arith.mulf %552, %552 : vector<8x64xf32>
    %cst_226 = arith.constant dense<0.000000e+00> : vector<8xf32>
    %554 = vector.multi_reduction <add>, %553, %cst_226 [1] : vector<8x64xf32> to vector<8xf32>
    %555 = vector.shape_cast %554 : vector<8xf32> to vector<8x1xf32>
    %cst_227 = arith.constant 6.400000e+01 : f32
    %556 = vector.broadcast %cst_227 : f32 to vector<8x1xf32>
    %557 = arith.divf %555, %556 : vector<8x1xf32>
    %cst_228 = arith.constant 9.99999974E-6 : f32
    %558 = vector.broadcast %cst_228 : f32 to vector<8x1xf32>
    %559 = arith.addf %557, %558 : vector<8x1xf32>
    %560 = math.rsqrt %559 : vector<8x1xf32>
    %561 = vector.broadcast %560 : vector<8x1xf32> to vector<8x64xf32>
    %562 = arith.mulf %552, %561 : vector<8x64xf32>
    %c3_229 = arith.constant 3 : index
    %c0_230 = arith.constant 0 : index
    %c0_231 = arith.constant 0 : index
    %563 = vector.load %arg18[%c3_229, %c0_230, %c0_231] : memref<10x1x64xf32, #tpu.memory_space<vmem>>, vector<1x1x64xf32>
    %564 = vector.shape_cast %563 : vector<1x1x64xf32> to vector<1x64xf32>
    %565 = vector.broadcast %564 : vector<1x64xf32> to vector<8x64xf32>
    %566 = arith.mulf %562, %565 : vector<8x64xf32>
    %c3_232 = arith.constant 3 : index
    %c0_233 = arith.constant 0 : index
    %c0_234 = arith.constant 0 : index
    %567 = vector.load %arg19[%c3_232, %c0_233, %c0_234] : memref<10x1x64xf32, #tpu.memory_space<vmem>>, vector<1x1x64xf32>
    %568 = vector.shape_cast %567 : vector<1x1x64xf32> to vector<1x64xf32>
    %569 = vector.broadcast %568 : vector<1x64xf32> to vector<8x64xf32>
    %570 = arith.addf %566, %569 : vector<8x64xf32>
    %cst_235 = arith.constant 0.000000e+00 : f32
    %571 = vector.broadcast %cst_235 : f32 to vector<8x64xf32>
    %572 = arith.maximumf %570, %571 : vector<8x64xf32>
    %c4 = arith.constant 4 : index
    %c0_236 = arith.constant 0 : index
    %c0_237 = arith.constant 0 : index
    %573 = vector.load %arg12[%c4, %c0_236, %c0_237] : memref<10x64x64xf32, #tpu.memory_space<vmem>>, vector<1x64x64xf32>
    %574 = vector.shape_cast %573 : vector<1x64x64xf32> to vector<64x64xf32>
    %cst_238 = arith.constant dense<0.000000e+00> : vector<8x64xf32>
    %575 = tpu.matmul %11, %574, %cst_238 {dimension_numbers = #tpu.dot_dimension_numbers<[1], [0], [0], [1], [0, 0, 1, 1], [], []>} : vector<8x64xf32>, vector<64x64xf32>, vector<8x64xf32> -> vector<8x64xf32>
    %c4_239 = arith.constant 4 : index
    %c0_240 = arith.constant 0 : index
    %c0_241 = arith.constant 0 : index
    %576 = vector.load %arg13[%c4_239, %c0_240, %c0_241] : memref<10x1x64xf32, #tpu.memory_space<vmem>>, vector<1x1x64xf32>
    %577 = vector.shape_cast %576 : vector<1x1x64xf32> to vector<1x64xf32>
    %578 = vector.broadcast %577 : vector<1x64xf32> to vector<8x64xf32>
    %579 = arith.addf %575, %578 : vector<8x64xf32>
    %c4_242 = arith.constant 4 : index
    %c0_243 = arith.constant 0 : index
    %c0_244 = arith.constant 0 : index
    %580 = vector.load %arg14[%c4_242, %c0_243, %c0_244] : memref<10x64x64xf32, #tpu.memory_space<vmem>>, vector<1x64x64xf32>
    %581 = vector.shape_cast %580 : vector<1x64x64xf32> to vector<64x64xf32>
    %cst_245 = arith.constant dense<0.000000e+00> : vector<8x64xf32>
    %582 = tpu.matmul %572, %581, %cst_245 {dimension_numbers = #tpu.dot_dimension_numbers<[1], [0], [0], [1], [0, 0, 1, 1], [], []>} : vector<8x64xf32>, vector<64x64xf32>, vector<8x64xf32> -> vector<8x64xf32>
    %c4_246 = arith.constant 4 : index
    %c0_247 = arith.constant 0 : index
    %c0_248 = arith.constant 0 : index
    %583 = vector.load %arg15[%c4_246, %c0_247, %c0_248] : memref<10x1x64xf32, #tpu.memory_space<vmem>>, vector<1x1x64xf32>
    %584 = vector.shape_cast %583 : vector<1x1x64xf32> to vector<1x64xf32>
    %585 = vector.broadcast %584 : vector<1x64xf32> to vector<8x64xf32>
    %586 = arith.addf %582, %585 : vector<8x64xf32>
    %587 = vector.extract_strided_slice %579 {offsets = [0, 0], sizes = [8, 16], strides = [1, 1]} : vector<8x64xf32> to vector<8x16xf32>
    %588 = vector.extract_strided_slice %586 {offsets = [0, 0], sizes = [8, 16], strides = [1, 1]} : vector<8x64xf32> to vector<8x16xf32>
    %589 = vector.extract_strided_slice %587 {offsets = [0, 8], sizes = [8, 8], strides = [1, 1]} : vector<8x16xf32> to vector<8x8xf32>
    %590 = vector.extract_strided_slice %587 {offsets = [0, 0], sizes = [8, 8], strides = [1, 1]} : vector<8x16xf32> to vector<8x8xf32>
    %591 = tpu.concatenate %589, %590 in 1 : vector<8x8xf32>, vector<8x8xf32> -> vector<8x16xf32>
    %592 = arith.mulf %587, %13 : vector<8x16xf32>
    %593 = arith.mulf %591, %14 : vector<8x16xf32>
    %594 = arith.addf %592, %593 : vector<8x16xf32>
    %cst_249 = arith.constant dense<0.000000e+00> : vector<8x8xf32>
    %595 = tpu.matmul %594, %588, %cst_249 {dimension_numbers = #tpu.dot_dimension_numbers<[1], [1], [0], [0], [0, 0, 1, 0], [], []>} : vector<8x16xf32>, vector<8x16xf32>, vector<8x8xf32> -> vector<8x8xf32>
    %cst_250 = arith.constant 2.500000e-01 : f32
    %596 = vector.broadcast %cst_250 : f32 to vector<8x8xf32>
    %597 = arith.mulf %595, %596 : vector<8x8xf32>
    %cst_251 = arith.constant dense<0xFF800000> : vector<8xf32>
    %598 = vector.multi_reduction <maximumf>, %597, %cst_251 [1] : vector<8x8xf32> to vector<8xf32>
    %599 = vector.shape_cast %598 : vector<8xf32> to vector<8x1xf32>
    %600 = vector.broadcast %599 : vector<8x1xf32> to vector<8x8xf32>
    %601 = arith.subf %597, %600 : vector<8x8xf32>
    %602 = math.exp %601 : vector<8x8xf32>
    %cst_252 = arith.constant dense<0.000000e+00> : vector<8xf32>
    %603 = vector.multi_reduction <add>, %602, %cst_252 [1] : vector<8x8xf32> to vector<8xf32>
    %604 = vector.shape_cast %603 : vector<8xf32> to vector<8x1xf32>
    %605 = tpu.reciprocal %604 {approx = true} : vector<8x1xf32> -> vector<8x1xf32>
    %606 = vector.broadcast %605 : vector<8x1xf32> to vector<8x8xf32>
    %607 = arith.mulf %602, %606 : vector<8x8xf32>
    %cst_253 = arith.constant dense<0.000000e+00> : vector<8x16xf32>
    %608 = tpu.matmul %607, %588, %cst_253 {dimension_numbers = #tpu.dot_dimension_numbers<[1], [0], [0], [1], [0, 0, 1, 1], [], []>} : vector<8x8xf32>, vector<8x16xf32>, vector<8x16xf32> -> vector<8x16xf32>
    %609 = vector.extract_strided_slice %579 {offsets = [0, 16], sizes = [8, 16], strides = [1, 1]} : vector<8x64xf32> to vector<8x16xf32>
    %610 = vector.extract_strided_slice %586 {offsets = [0, 16], sizes = [8, 16], strides = [1, 1]} : vector<8x64xf32> to vector<8x16xf32>
    %611 = vector.extract_strided_slice %609 {offsets = [0, 8], sizes = [8, 8], strides = [1, 1]} : vector<8x16xf32> to vector<8x8xf32>
    %612 = vector.extract_strided_slice %609 {offsets = [0, 0], sizes = [8, 8], strides = [1, 1]} : vector<8x16xf32> to vector<8x8xf32>
    %613 = tpu.concatenate %611, %612 in 1 : vector<8x8xf32>, vector<8x8xf32> -> vector<8x16xf32>
    %614 = arith.mulf %609, %13 : vector<8x16xf32>
    %615 = arith.mulf %613, %14 : vector<8x16xf32>
    %616 = arith.addf %614, %615 : vector<8x16xf32>
    %cst_254 = arith.constant dense<0.000000e+00> : vector<8x8xf32>
    %617 = tpu.matmul %616, %610, %cst_254 {dimension_numbers = #tpu.dot_dimension_numbers<[1], [1], [0], [0], [0, 0, 1, 0], [], []>} : vector<8x16xf32>, vector<8x16xf32>, vector<8x8xf32> -> vector<8x8xf32>
    %cst_255 = arith.constant 2.500000e-01 : f32
    %618 = vector.broadcast %cst_255 : f32 to vector<8x8xf32>
    %619 = arith.mulf %617, %618 : vector<8x8xf32>
    %cst_256 = arith.constant dense<0xFF800000> : vector<8xf32>
    %620 = vector.multi_reduction <maximumf>, %619, %cst_256 [1] : vector<8x8xf32> to vector<8xf32>
    %621 = vector.shape_cast %620 : vector<8xf32> to vector<8x1xf32>
    %622 = vector.broadcast %621 : vector<8x1xf32> to vector<8x8xf32>
    %623 = arith.subf %619, %622 : vector<8x8xf32>
    %624 = math.exp %623 : vector<8x8xf32>
    %cst_257 = arith.constant dense<0.000000e+00> : vector<8xf32>
    %625 = vector.multi_reduction <add>, %624, %cst_257 [1] : vector<8x8xf32> to vector<8xf32>
    %626 = vector.shape_cast %625 : vector<8xf32> to vector<8x1xf32>
    %627 = tpu.reciprocal %626 {approx = true} : vector<8x1xf32> -> vector<8x1xf32>
    %628 = vector.broadcast %627 : vector<8x1xf32> to vector<8x8xf32>
    %629 = arith.mulf %624, %628 : vector<8x8xf32>
    %cst_258 = arith.constant dense<0.000000e+00> : vector<8x16xf32>
    %630 = tpu.matmul %629, %610, %cst_258 {dimension_numbers = #tpu.dot_dimension_numbers<[1], [0], [0], [1], [0, 0, 1, 1], [], []>} : vector<8x8xf32>, vector<8x16xf32>, vector<8x16xf32> -> vector<8x16xf32>
    %631 = vector.extract_strided_slice %579 {offsets = [0, 32], sizes = [8, 16], strides = [1, 1]} : vector<8x64xf32> to vector<8x16xf32>
    %632 = vector.extract_strided_slice %586 {offsets = [0, 32], sizes = [8, 16], strides = [1, 1]} : vector<8x64xf32> to vector<8x16xf32>
    %633 = vector.extract_strided_slice %631 {offsets = [0, 8], sizes = [8, 8], strides = [1, 1]} : vector<8x16xf32> to vector<8x8xf32>
    %634 = vector.extract_strided_slice %631 {offsets = [0, 0], sizes = [8, 8], strides = [1, 1]} : vector<8x16xf32> to vector<8x8xf32>
    %635 = tpu.concatenate %633, %634 in 1 : vector<8x8xf32>, vector<8x8xf32> -> vector<8x16xf32>
    %636 = arith.mulf %631, %13 : vector<8x16xf32>
    %637 = arith.mulf %635, %14 : vector<8x16xf32>
    %638 = arith.addf %636, %637 : vector<8x16xf32>
    %cst_259 = arith.constant dense<0.000000e+00> : vector<8x8xf32>
    %639 = tpu.matmul %638, %632, %cst_259 {dimension_numbers = #tpu.dot_dimension_numbers<[1], [1], [0], [0], [0, 0, 1, 0], [], []>} : vector<8x16xf32>, vector<8x16xf32>, vector<8x8xf32> -> vector<8x8xf32>
    %cst_260 = arith.constant 2.500000e-01 : f32
    %640 = vector.broadcast %cst_260 : f32 to vector<8x8xf32>
    %641 = arith.mulf %639, %640 : vector<8x8xf32>
    %cst_261 = arith.constant dense<0xFF800000> : vector<8xf32>
    %642 = vector.multi_reduction <maximumf>, %641, %cst_261 [1] : vector<8x8xf32> to vector<8xf32>
    %643 = vector.shape_cast %642 : vector<8xf32> to vector<8x1xf32>
    %644 = vector.broadcast %643 : vector<8x1xf32> to vector<8x8xf32>
    %645 = arith.subf %641, %644 : vector<8x8xf32>
    %646 = math.exp %645 : vector<8x8xf32>
    %cst_262 = arith.constant dense<0.000000e+00> : vector<8xf32>
    %647 = vector.multi_reduction <add>, %646, %cst_262 [1] : vector<8x8xf32> to vector<8xf32>
    %648 = vector.shape_cast %647 : vector<8xf32> to vector<8x1xf32>
    %649 = tpu.reciprocal %648 {approx = true} : vector<8x1xf32> -> vector<8x1xf32>
    %650 = vector.broadcast %649 : vector<8x1xf32> to vector<8x8xf32>
    %651 = arith.mulf %646, %650 : vector<8x8xf32>
    %cst_263 = arith.constant dense<0.000000e+00> : vector<8x16xf32>
    %652 = tpu.matmul %651, %632, %cst_263 {dimension_numbers = #tpu.dot_dimension_numbers<[1], [0], [0], [1], [0, 0, 1, 1], [], []>} : vector<8x8xf32>, vector<8x16xf32>, vector<8x16xf32> -> vector<8x16xf32>
    %653 = vector.extract_strided_slice %579 {offsets = [0, 48], sizes = [8, 16], strides = [1, 1]} : vector<8x64xf32> to vector<8x16xf32>
    %654 = vector.extract_strided_slice %586 {offsets = [0, 48], sizes = [8, 16], strides = [1, 1]} : vector<8x64xf32> to vector<8x16xf32>
    %655 = vector.extract_strided_slice %653 {offsets = [0, 8], sizes = [8, 8], strides = [1, 1]} : vector<8x16xf32> to vector<8x8xf32>
    %656 = vector.extract_strided_slice %653 {offsets = [0, 0], sizes = [8, 8], strides = [1, 1]} : vector<8x16xf32> to vector<8x8xf32>
    %657 = tpu.concatenate %655, %656 in 1 : vector<8x8xf32>, vector<8x8xf32> -> vector<8x16xf32>
    %658 = arith.mulf %653, %13 : vector<8x16xf32>
    %659 = arith.mulf %657, %14 : vector<8x16xf32>
    %660 = arith.addf %658, %659 : vector<8x16xf32>
    %cst_264 = arith.constant dense<0.000000e+00> : vector<8x8xf32>
    %661 = tpu.matmul %660, %654, %cst_264 {dimension_numbers = #tpu.dot_dimension_numbers<[1], [1], [0], [0], [0, 0, 1, 0], [], []>} : vector<8x16xf32>, vector<8x16xf32>, vector<8x8xf32> -> vector<8x8xf32>
    %cst_265 = arith.constant 2.500000e-01 : f32
    %662 = vector.broadcast %cst_265 : f32 to vector<8x8xf32>
    %663 = arith.mulf %661, %662 : vector<8x8xf32>
    %cst_266 = arith.constant dense<0xFF800000> : vector<8xf32>
    %664 = vector.multi_reduction <maximumf>, %663, %cst_266 [1] : vector<8x8xf32> to vector<8xf32>
    %665 = vector.shape_cast %664 : vector<8xf32> to vector<8x1xf32>
    %666 = vector.broadcast %665 : vector<8x1xf32> to vector<8x8xf32>
    %667 = arith.subf %663, %666 : vector<8x8xf32>
    %668 = math.exp %667 : vector<8x8xf32>
    %cst_267 = arith.constant dense<0.000000e+00> : vector<8xf32>
    %669 = vector.multi_reduction <add>, %668, %cst_267 [1] : vector<8x8xf32> to vector<8xf32>
    %670 = vector.shape_cast %669 : vector<8xf32> to vector<8x1xf32>
    %671 = tpu.reciprocal %670 {approx = true} : vector<8x1xf32> -> vector<8x1xf32>
    %672 = vector.broadcast %671 : vector<8x1xf32> to vector<8x8xf32>
    %673 = arith.mulf %668, %672 : vector<8x8xf32>
    %cst_268 = arith.constant dense<0.000000e+00> : vector<8x16xf32>
    %674 = tpu.matmul %673, %654, %cst_268 {dimension_numbers = #tpu.dot_dimension_numbers<[1], [0], [0], [1], [0, 0, 1, 1], [], []>} : vector<8x8xf32>, vector<8x16xf32>, vector<8x16xf32> -> vector<8x16xf32>
    %675 = tpu.concatenate %608, %630, %652, %674 in 1 : vector<8x16xf32>, vector<8x16xf32>, vector<8x16xf32>, vector<8x16xf32> -> vector<8x64xf32>
    %c4_269 = arith.constant 4 : index
    %c0_270 = arith.constant 0 : index
    %c0_271 = arith.constant 0 : index
    %676 = vector.load %arg16[%c4_269, %c0_270, %c0_271] : memref<10x64x64xf32, #tpu.memory_space<vmem>>, vector<1x64x64xf32>
    %677 = vector.shape_cast %676 : vector<1x64x64xf32> to vector<64x64xf32>
    %cst_272 = arith.constant dense<0.000000e+00> : vector<8x64xf32>
    %678 = tpu.matmul %675, %677, %cst_272 {dimension_numbers = #tpu.dot_dimension_numbers<[1], [0], [0], [1], [0, 0, 1, 1], [], []>} : vector<8x64xf32>, vector<64x64xf32>, vector<8x64xf32> -> vector<8x64xf32>
    %c4_273 = arith.constant 4 : index
    %c0_274 = arith.constant 0 : index
    %c0_275 = arith.constant 0 : index
    %679 = vector.load %arg17[%c4_273, %c0_274, %c0_275] : memref<10x1x64xf32, #tpu.memory_space<vmem>>, vector<1x1x64xf32>
    %680 = vector.shape_cast %679 : vector<1x1x64xf32> to vector<1x64xf32>
    %681 = vector.broadcast %680 : vector<1x64xf32> to vector<8x64xf32>
    %682 = arith.addf %678, %681 : vector<8x64xf32>
    %683 = arith.addf %682, %572 : vector<8x64xf32>
    %cst_276 = arith.constant dense<0.000000e+00> : vector<8xf32>
    %684 = vector.multi_reduction <add>, %683, %cst_276 [1] : vector<8x64xf32> to vector<8xf32>
    %685 = vector.shape_cast %684 : vector<8xf32> to vector<8x1xf32>
    %cst_277 = arith.constant 6.400000e+01 : f32
    %686 = vector.broadcast %cst_277 : f32 to vector<8x1xf32>
    %687 = arith.divf %685, %686 : vector<8x1xf32>
    %688 = vector.broadcast %687 : vector<8x1xf32> to vector<8x64xf32>
    %689 = arith.subf %683, %688 : vector<8x64xf32>
    %690 = arith.mulf %689, %689 : vector<8x64xf32>
    %cst_278 = arith.constant dense<0.000000e+00> : vector<8xf32>
    %691 = vector.multi_reduction <add>, %690, %cst_278 [1] : vector<8x64xf32> to vector<8xf32>
    %692 = vector.shape_cast %691 : vector<8xf32> to vector<8x1xf32>
    %cst_279 = arith.constant 6.400000e+01 : f32
    %693 = vector.broadcast %cst_279 : f32 to vector<8x1xf32>
    %694 = arith.divf %692, %693 : vector<8x1xf32>
    %cst_280 = arith.constant 9.99999974E-6 : f32
    %695 = vector.broadcast %cst_280 : f32 to vector<8x1xf32>
    %696 = arith.addf %694, %695 : vector<8x1xf32>
    %697 = math.rsqrt %696 : vector<8x1xf32>
    %698 = vector.broadcast %697 : vector<8x1xf32> to vector<8x64xf32>
    %699 = arith.mulf %689, %698 : vector<8x64xf32>
    %c4_281 = arith.constant 4 : index
    %c0_282 = arith.constant 0 : index
    %c0_283 = arith.constant 0 : index
    %700 = vector.load %arg18[%c4_281, %c0_282, %c0_283] : memref<10x1x64xf32, #tpu.memory_space<vmem>>, vector<1x1x64xf32>
    %701 = vector.shape_cast %700 : vector<1x1x64xf32> to vector<1x64xf32>
    %702 = vector.broadcast %701 : vector<1x64xf32> to vector<8x64xf32>
    %703 = arith.mulf %699, %702 : vector<8x64xf32>
    %c4_284 = arith.constant 4 : index
    %c0_285 = arith.constant 0 : index
    %c0_286 = arith.constant 0 : index
    %704 = vector.load %arg19[%c4_284, %c0_285, %c0_286] : memref<10x1x64xf32, #tpu.memory_space<vmem>>, vector<1x1x64xf32>
    %705 = vector.shape_cast %704 : vector<1x1x64xf32> to vector<1x64xf32>
    %706 = vector.broadcast %705 : vector<1x64xf32> to vector<8x64xf32>
    %707 = arith.addf %703, %706 : vector<8x64xf32>
    %cst_287 = arith.constant 0.000000e+00 : f32
    %708 = vector.broadcast %cst_287 : f32 to vector<8x64xf32>
    %709 = arith.maximumf %707, %708 : vector<8x64xf32>
    %c5 = arith.constant 5 : index
    %c0_288 = arith.constant 0 : index
    %c0_289 = arith.constant 0 : index
    %710 = vector.load %arg12[%c5, %c0_288, %c0_289] : memref<10x64x64xf32, #tpu.memory_space<vmem>>, vector<1x64x64xf32>
    %711 = vector.shape_cast %710 : vector<1x64x64xf32> to vector<64x64xf32>
    %cst_290 = arith.constant dense<0.000000e+00> : vector<8x64xf32>
    %712 = tpu.matmul %11, %711, %cst_290 {dimension_numbers = #tpu.dot_dimension_numbers<[1], [0], [0], [1], [0, 0, 1, 1], [], []>} : vector<8x64xf32>, vector<64x64xf32>, vector<8x64xf32> -> vector<8x64xf32>
    %c5_291 = arith.constant 5 : index
    %c0_292 = arith.constant 0 : index
    %c0_293 = arith.constant 0 : index
    %713 = vector.load %arg13[%c5_291, %c0_292, %c0_293] : memref<10x1x64xf32, #tpu.memory_space<vmem>>, vector<1x1x64xf32>
    %714 = vector.shape_cast %713 : vector<1x1x64xf32> to vector<1x64xf32>
    %715 = vector.broadcast %714 : vector<1x64xf32> to vector<8x64xf32>
    %716 = arith.addf %712, %715 : vector<8x64xf32>
    %c5_294 = arith.constant 5 : index
    %c0_295 = arith.constant 0 : index
    %c0_296 = arith.constant 0 : index
    %717 = vector.load %arg14[%c5_294, %c0_295, %c0_296] : memref<10x64x64xf32, #tpu.memory_space<vmem>>, vector<1x64x64xf32>
    %718 = vector.shape_cast %717 : vector<1x64x64xf32> to vector<64x64xf32>
    %cst_297 = arith.constant dense<0.000000e+00> : vector<8x64xf32>
    %719 = tpu.matmul %709, %718, %cst_297 {dimension_numbers = #tpu.dot_dimension_numbers<[1], [0], [0], [1], [0, 0, 1, 1], [], []>} : vector<8x64xf32>, vector<64x64xf32>, vector<8x64xf32> -> vector<8x64xf32>
    %c5_298 = arith.constant 5 : index
    %c0_299 = arith.constant 0 : index
    %c0_300 = arith.constant 0 : index
    %720 = vector.load %arg15[%c5_298, %c0_299, %c0_300] : memref<10x1x64xf32, #tpu.memory_space<vmem>>, vector<1x1x64xf32>
    %721 = vector.shape_cast %720 : vector<1x1x64xf32> to vector<1x64xf32>
    %722 = vector.broadcast %721 : vector<1x64xf32> to vector<8x64xf32>
    %723 = arith.addf %719, %722 : vector<8x64xf32>
    %724 = vector.extract_strided_slice %716 {offsets = [0, 0], sizes = [8, 16], strides = [1, 1]} : vector<8x64xf32> to vector<8x16xf32>
    %725 = vector.extract_strided_slice %723 {offsets = [0, 0], sizes = [8, 16], strides = [1, 1]} : vector<8x64xf32> to vector<8x16xf32>
    %726 = vector.extract_strided_slice %724 {offsets = [0, 8], sizes = [8, 8], strides = [1, 1]} : vector<8x16xf32> to vector<8x8xf32>
    %727 = vector.extract_strided_slice %724 {offsets = [0, 0], sizes = [8, 8], strides = [1, 1]} : vector<8x16xf32> to vector<8x8xf32>
    %728 = tpu.concatenate %726, %727 in 1 : vector<8x8xf32>, vector<8x8xf32> -> vector<8x16xf32>
    %729 = arith.mulf %724, %13 : vector<8x16xf32>
    %730 = arith.mulf %728, %14 : vector<8x16xf32>
    %731 = arith.addf %729, %730 : vector<8x16xf32>
    %cst_301 = arith.constant dense<0.000000e+00> : vector<8x8xf32>
    %732 = tpu.matmul %731, %725, %cst_301 {dimension_numbers = #tpu.dot_dimension_numbers<[1], [1], [0], [0], [0, 0, 1, 0], [], []>} : vector<8x16xf32>, vector<8x16xf32>, vector<8x8xf32> -> vector<8x8xf32>
    %cst_302 = arith.constant 2.500000e-01 : f32
    %733 = vector.broadcast %cst_302 : f32 to vector<8x8xf32>
    %734 = arith.mulf %732, %733 : vector<8x8xf32>
    %cst_303 = arith.constant dense<0xFF800000> : vector<8xf32>
    %735 = vector.multi_reduction <maximumf>, %734, %cst_303 [1] : vector<8x8xf32> to vector<8xf32>
    %736 = vector.shape_cast %735 : vector<8xf32> to vector<8x1xf32>
    %737 = vector.broadcast %736 : vector<8x1xf32> to vector<8x8xf32>
    %738 = arith.subf %734, %737 : vector<8x8xf32>
    %739 = math.exp %738 : vector<8x8xf32>
    %cst_304 = arith.constant dense<0.000000e+00> : vector<8xf32>
    %740 = vector.multi_reduction <add>, %739, %cst_304 [1] : vector<8x8xf32> to vector<8xf32>
    %741 = vector.shape_cast %740 : vector<8xf32> to vector<8x1xf32>
    %742 = tpu.reciprocal %741 {approx = true} : vector<8x1xf32> -> vector<8x1xf32>
    %743 = vector.broadcast %742 : vector<8x1xf32> to vector<8x8xf32>
    %744 = arith.mulf %739, %743 : vector<8x8xf32>
    %cst_305 = arith.constant dense<0.000000e+00> : vector<8x16xf32>
    %745 = tpu.matmul %744, %725, %cst_305 {dimension_numbers = #tpu.dot_dimension_numbers<[1], [0], [0], [1], [0, 0, 1, 1], [], []>} : vector<8x8xf32>, vector<8x16xf32>, vector<8x16xf32> -> vector<8x16xf32>
    %746 = vector.extract_strided_slice %716 {offsets = [0, 16], sizes = [8, 16], strides = [1, 1]} : vector<8x64xf32> to vector<8x16xf32>
    %747 = vector.extract_strided_slice %723 {offsets = [0, 16], sizes = [8, 16], strides = [1, 1]} : vector<8x64xf32> to vector<8x16xf32>
    %748 = vector.extract_strided_slice %746 {offsets = [0, 8], sizes = [8, 8], strides = [1, 1]} : vector<8x16xf32> to vector<8x8xf32>
    %749 = vector.extract_strided_slice %746 {offsets = [0, 0], sizes = [8, 8], strides = [1, 1]} : vector<8x16xf32> to vector<8x8xf32>
    %750 = tpu.concatenate %748, %749 in 1 : vector<8x8xf32>, vector<8x8xf32> -> vector<8x16xf32>
    %751 = arith.mulf %746, %13 : vector<8x16xf32>
    %752 = arith.mulf %750, %14 : vector<8x16xf32>
    %753 = arith.addf %751, %752 : vector<8x16xf32>
    %cst_306 = arith.constant dense<0.000000e+00> : vector<8x8xf32>
    %754 = tpu.matmul %753, %747, %cst_306 {dimension_numbers = #tpu.dot_dimension_numbers<[1], [1], [0], [0], [0, 0, 1, 0], [], []>} : vector<8x16xf32>, vector<8x16xf32>, vector<8x8xf32> -> vector<8x8xf32>
    %cst_307 = arith.constant 2.500000e-01 : f32
    %755 = vector.broadcast %cst_307 : f32 to vector<8x8xf32>
    %756 = arith.mulf %754, %755 : vector<8x8xf32>
    %cst_308 = arith.constant dense<0xFF800000> : vector<8xf32>
    %757 = vector.multi_reduction <maximumf>, %756, %cst_308 [1] : vector<8x8xf32> to vector<8xf32>
    %758 = vector.shape_cast %757 : vector<8xf32> to vector<8x1xf32>
    %759 = vector.broadcast %758 : vector<8x1xf32> to vector<8x8xf32>
    %760 = arith.subf %756, %759 : vector<8x8xf32>
    %761 = math.exp %760 : vector<8x8xf32>
    %cst_309 = arith.constant dense<0.000000e+00> : vector<8xf32>
    %762 = vector.multi_reduction <add>, %761, %cst_309 [1] : vector<8x8xf32> to vector<8xf32>
    %763 = vector.shape_cast %762 : vector<8xf32> to vector<8x1xf32>
    %764 = tpu.reciprocal %763 {approx = true} : vector<8x1xf32> -> vector<8x1xf32>
    %765 = vector.broadcast %764 : vector<8x1xf32> to vector<8x8xf32>
    %766 = arith.mulf %761, %765 : vector<8x8xf32>
    %cst_310 = arith.constant dense<0.000000e+00> : vector<8x16xf32>
    %767 = tpu.matmul %766, %747, %cst_310 {dimension_numbers = #tpu.dot_dimension_numbers<[1], [0], [0], [1], [0, 0, 1, 1], [], []>} : vector<8x8xf32>, vector<8x16xf32>, vector<8x16xf32> -> vector<8x16xf32>
    %768 = vector.extract_strided_slice %716 {offsets = [0, 32], sizes = [8, 16], strides = [1, 1]} : vector<8x64xf32> to vector<8x16xf32>
    %769 = vector.extract_strided_slice %723 {offsets = [0, 32], sizes = [8, 16], strides = [1, 1]} : vector<8x64xf32> to vector<8x16xf32>
    %770 = vector.extract_strided_slice %768 {offsets = [0, 8], sizes = [8, 8], strides = [1, 1]} : vector<8x16xf32> to vector<8x8xf32>
    %771 = vector.extract_strided_slice %768 {offsets = [0, 0], sizes = [8, 8], strides = [1, 1]} : vector<8x16xf32> to vector<8x8xf32>
    %772 = tpu.concatenate %770, %771 in 1 : vector<8x8xf32>, vector<8x8xf32> -> vector<8x16xf32>
    %773 = arith.mulf %768, %13 : vector<8x16xf32>
    %774 = arith.mulf %772, %14 : vector<8x16xf32>
    %775 = arith.addf %773, %774 : vector<8x16xf32>
    %cst_311 = arith.constant dense<0.000000e+00> : vector<8x8xf32>
    %776 = tpu.matmul %775, %769, %cst_311 {dimension_numbers = #tpu.dot_dimension_numbers<[1], [1], [0], [0], [0, 0, 1, 0], [], []>} : vector<8x16xf32>, vector<8x16xf32>, vector<8x8xf32> -> vector<8x8xf32>
    %cst_312 = arith.constant 2.500000e-01 : f32
    %777 = vector.broadcast %cst_312 : f32 to vector<8x8xf32>
    %778 = arith.mulf %776, %777 : vector<8x8xf32>
    %cst_313 = arith.constant dense<0xFF800000> : vector<8xf32>
    %779 = vector.multi_reduction <maximumf>, %778, %cst_313 [1] : vector<8x8xf32> to vector<8xf32>
    %780 = vector.shape_cast %779 : vector<8xf32> to vector<8x1xf32>
    %781 = vector.broadcast %780 : vector<8x1xf32> to vector<8x8xf32>
    %782 = arith.subf %778, %781 : vector<8x8xf32>
    %783 = math.exp %782 : vector<8x8xf32>
    %cst_314 = arith.constant dense<0.000000e+00> : vector<8xf32>
    %784 = vector.multi_reduction <add>, %783, %cst_314 [1] : vector<8x8xf32> to vector<8xf32>
    %785 = vector.shape_cast %784 : vector<8xf32> to vector<8x1xf32>
    %786 = tpu.reciprocal %785 {approx = true} : vector<8x1xf32> -> vector<8x1xf32>
    %787 = vector.broadcast %786 : vector<8x1xf32> to vector<8x8xf32>
    %788 = arith.mulf %783, %787 : vector<8x8xf32>
    %cst_315 = arith.constant dense<0.000000e+00> : vector<8x16xf32>
    %789 = tpu.matmul %788, %769, %cst_315 {dimension_numbers = #tpu.dot_dimension_numbers<[1], [0], [0], [1], [0, 0, 1, 1], [], []>} : vector<8x8xf32>, vector<8x16xf32>, vector<8x16xf32> -> vector<8x16xf32>
    %790 = vector.extract_strided_slice %716 {offsets = [0, 48], sizes = [8, 16], strides = [1, 1]} : vector<8x64xf32> to vector<8x16xf32>
    %791 = vector.extract_strided_slice %723 {offsets = [0, 48], sizes = [8, 16], strides = [1, 1]} : vector<8x64xf32> to vector<8x16xf32>
    %792 = vector.extract_strided_slice %790 {offsets = [0, 8], sizes = [8, 8], strides = [1, 1]} : vector<8x16xf32> to vector<8x8xf32>
    %793 = vector.extract_strided_slice %790 {offsets = [0, 0], sizes = [8, 8], strides = [1, 1]} : vector<8x16xf32> to vector<8x8xf32>
    %794 = tpu.concatenate %792, %793 in 1 : vector<8x8xf32>, vector<8x8xf32> -> vector<8x16xf32>
    %795 = arith.mulf %790, %13 : vector<8x16xf32>
    %796 = arith.mulf %794, %14 : vector<8x16xf32>
    %797 = arith.addf %795, %796 : vector<8x16xf32>
    %cst_316 = arith.constant dense<0.000000e+00> : vector<8x8xf32>
    %798 = tpu.matmul %797, %791, %cst_316 {dimension_numbers = #tpu.dot_dimension_numbers<[1], [1], [0], [0], [0, 0, 1, 0], [], []>} : vector<8x16xf32>, vector<8x16xf32>, vector<8x8xf32> -> vector<8x8xf32>
    %cst_317 = arith.constant 2.500000e-01 : f32
    %799 = vector.broadcast %cst_317 : f32 to vector<8x8xf32>
    %800 = arith.mulf %798, %799 : vector<8x8xf32>
    %cst_318 = arith.constant dense<0xFF800000> : vector<8xf32>
    %801 = vector.multi_reduction <maximumf>, %800, %cst_318 [1] : vector<8x8xf32> to vector<8xf32>
    %802 = vector.shape_cast %801 : vector<8xf32> to vector<8x1xf32>
    %803 = vector.broadcast %802 : vector<8x1xf32> to vector<8x8xf32>
    %804 = arith.subf %800, %803 : vector<8x8xf32>
    %805 = math.exp %804 : vector<8x8xf32>
    %cst_319 = arith.constant dense<0.000000e+00> : vector<8xf32>
    %806 = vector.multi_reduction <add>, %805, %cst_319 [1] : vector<8x8xf32> to vector<8xf32>
    %807 = vector.shape_cast %806 : vector<8xf32> to vector<8x1xf32>
    %808 = tpu.reciprocal %807 {approx = true} : vector<8x1xf32> -> vector<8x1xf32>
    %809 = vector.broadcast %808 : vector<8x1xf32> to vector<8x8xf32>
    %810 = arith.mulf %805, %809 : vector<8x8xf32>
    %cst_320 = arith.constant dense<0.000000e+00> : vector<8x16xf32>
    %811 = tpu.matmul %810, %791, %cst_320 {dimension_numbers = #tpu.dot_dimension_numbers<[1], [0], [0], [1], [0, 0, 1, 1], [], []>} : vector<8x8xf32>, vector<8x16xf32>, vector<8x16xf32> -> vector<8x16xf32>
    %812 = tpu.concatenate %745, %767, %789, %811 in 1 : vector<8x16xf32>, vector<8x16xf32>, vector<8x16xf32>, vector<8x16xf32> -> vector<8x64xf32>
    %c5_321 = arith.constant 5 : index
    %c0_322 = arith.constant 0 : index
    %c0_323 = arith.constant 0 : index
    %813 = vector.load %arg16[%c5_321, %c0_322, %c0_323] : memref<10x64x64xf32, #tpu.memory_space<vmem>>, vector<1x64x64xf32>
    %814 = vector.shape_cast %813 : vector<1x64x64xf32> to vector<64x64xf32>
    %cst_324 = arith.constant dense<0.000000e+00> : vector<8x64xf32>
    %815 = tpu.matmul %812, %814, %cst_324 {dimension_numbers = #tpu.dot_dimension_numbers<[1], [0], [0], [1], [0, 0, 1, 1], [], []>} : vector<8x64xf32>, vector<64x64xf32>, vector<8x64xf32> -> vector<8x64xf32>
    %c5_325 = arith.constant 5 : index
    %c0_326 = arith.constant 0 : index
    %c0_327 = arith.constant 0 : index
    %816 = vector.load %arg17[%c5_325, %c0_326, %c0_327] : memref<10x1x64xf32, #tpu.memory_space<vmem>>, vector<1x1x64xf32>
    %817 = vector.shape_cast %816 : vector<1x1x64xf32> to vector<1x64xf32>
    %818 = vector.broadcast %817 : vector<1x64xf32> to vector<8x64xf32>
    %819 = arith.addf %815, %818 : vector<8x64xf32>
    %820 = arith.addf %819, %709 : vector<8x64xf32>
    %cst_328 = arith.constant dense<0.000000e+00> : vector<8xf32>
    %821 = vector.multi_reduction <add>, %820, %cst_328 [1] : vector<8x64xf32> to vector<8xf32>
    %822 = vector.shape_cast %821 : vector<8xf32> to vector<8x1xf32>
    %cst_329 = arith.constant 6.400000e+01 : f32
    %823 = vector.broadcast %cst_329 : f32 to vector<8x1xf32>
    %824 = arith.divf %822, %823 : vector<8x1xf32>
    %825 = vector.broadcast %824 : vector<8x1xf32> to vector<8x64xf32>
    %826 = arith.subf %820, %825 : vector<8x64xf32>
    %827 = arith.mulf %826, %826 : vector<8x64xf32>
    %cst_330 = arith.constant dense<0.000000e+00> : vector<8xf32>
    %828 = vector.multi_reduction <add>, %827, %cst_330 [1] : vector<8x64xf32> to vector<8xf32>
    %829 = vector.shape_cast %828 : vector<8xf32> to vector<8x1xf32>
    %cst_331 = arith.constant 6.400000e+01 : f32
    %830 = vector.broadcast %cst_331 : f32 to vector<8x1xf32>
    %831 = arith.divf %829, %830 : vector<8x1xf32>
    %cst_332 = arith.constant 9.99999974E-6 : f32
    %832 = vector.broadcast %cst_332 : f32 to vector<8x1xf32>
    %833 = arith.addf %831, %832 : vector<8x1xf32>
    %834 = math.rsqrt %833 : vector<8x1xf32>
    %835 = vector.broadcast %834 : vector<8x1xf32> to vector<8x64xf32>
    %836 = arith.mulf %826, %835 : vector<8x64xf32>
    %c5_333 = arith.constant 5 : index
    %c0_334 = arith.constant 0 : index
    %c0_335 = arith.constant 0 : index
    %837 = vector.load %arg18[%c5_333, %c0_334, %c0_335] : memref<10x1x64xf32, #tpu.memory_space<vmem>>, vector<1x1x64xf32>
    %838 = vector.shape_cast %837 : vector<1x1x64xf32> to vector<1x64xf32>
    %839 = vector.broadcast %838 : vector<1x64xf32> to vector<8x64xf32>
    %840 = arith.mulf %836, %839 : vector<8x64xf32>
    %c5_336 = arith.constant 5 : index
    %c0_337 = arith.constant 0 : index
    %c0_338 = arith.constant 0 : index
    %841 = vector.load %arg19[%c5_336, %c0_337, %c0_338] : memref<10x1x64xf32, #tpu.memory_space<vmem>>, vector<1x1x64xf32>
    %842 = vector.shape_cast %841 : vector<1x1x64xf32> to vector<1x64xf32>
    %843 = vector.broadcast %842 : vector<1x64xf32> to vector<8x64xf32>
    %844 = arith.addf %840, %843 : vector<8x64xf32>
    %cst_339 = arith.constant 0.000000e+00 : f32
    %845 = vector.broadcast %cst_339 : f32 to vector<8x64xf32>
    %846 = arith.maximumf %844, %845 : vector<8x64xf32>
    %c6 = arith.constant 6 : index
    %c0_340 = arith.constant 0 : index
    %c0_341 = arith.constant 0 : index
    %847 = vector.load %arg12[%c6, %c0_340, %c0_341] : memref<10x64x64xf32, #tpu.memory_space<vmem>>, vector<1x64x64xf32>
    %848 = vector.shape_cast %847 : vector<1x64x64xf32> to vector<64x64xf32>
    %cst_342 = arith.constant dense<0.000000e+00> : vector<8x64xf32>
    %849 = tpu.matmul %11, %848, %cst_342 {dimension_numbers = #tpu.dot_dimension_numbers<[1], [0], [0], [1], [0, 0, 1, 1], [], []>} : vector<8x64xf32>, vector<64x64xf32>, vector<8x64xf32> -> vector<8x64xf32>
    %c6_343 = arith.constant 6 : index
    %c0_344 = arith.constant 0 : index
    %c0_345 = arith.constant 0 : index
    %850 = vector.load %arg13[%c6_343, %c0_344, %c0_345] : memref<10x1x64xf32, #tpu.memory_space<vmem>>, vector<1x1x64xf32>
    %851 = vector.shape_cast %850 : vector<1x1x64xf32> to vector<1x64xf32>
    %852 = vector.broadcast %851 : vector<1x64xf32> to vector<8x64xf32>
    %853 = arith.addf %849, %852 : vector<8x64xf32>
    %c6_346 = arith.constant 6 : index
    %c0_347 = arith.constant 0 : index
    %c0_348 = arith.constant 0 : index
    %854 = vector.load %arg14[%c6_346, %c0_347, %c0_348] : memref<10x64x64xf32, #tpu.memory_space<vmem>>, vector<1x64x64xf32>
    %855 = vector.shape_cast %854 : vector<1x64x64xf32> to vector<64x64xf32>
    %cst_349 = arith.constant dense<0.000000e+00> : vector<8x64xf32>
    %856 = tpu.matmul %846, %855, %cst_349 {dimension_numbers = #tpu.dot_dimension_numbers<[1], [0], [0], [1], [0, 0, 1, 1], [], []>} : vector<8x64xf32>, vector<64x64xf32>, vector<8x64xf32> -> vector<8x64xf32>
    %c6_350 = arith.constant 6 : index
    %c0_351 = arith.constant 0 : index
    %c0_352 = arith.constant 0 : index
    %857 = vector.load %arg15[%c6_350, %c0_351, %c0_352] : memref<10x1x64xf32, #tpu.memory_space<vmem>>, vector<1x1x64xf32>
    %858 = vector.shape_cast %857 : vector<1x1x64xf32> to vector<1x64xf32>
    %859 = vector.broadcast %858 : vector<1x64xf32> to vector<8x64xf32>
    %860 = arith.addf %856, %859 : vector<8x64xf32>
    %861 = vector.extract_strided_slice %853 {offsets = [0, 0], sizes = [8, 16], strides = [1, 1]} : vector<8x64xf32> to vector<8x16xf32>
    %862 = vector.extract_strided_slice %860 {offsets = [0, 0], sizes = [8, 16], strides = [1, 1]} : vector<8x64xf32> to vector<8x16xf32>
    %863 = vector.extract_strided_slice %861 {offsets = [0, 8], sizes = [8, 8], strides = [1, 1]} : vector<8x16xf32> to vector<8x8xf32>
    %864 = vector.extract_strided_slice %861 {offsets = [0, 0], sizes = [8, 8], strides = [1, 1]} : vector<8x16xf32> to vector<8x8xf32>
    %865 = tpu.concatenate %863, %864 in 1 : vector<8x8xf32>, vector<8x8xf32> -> vector<8x16xf32>
    %866 = arith.mulf %861, %13 : vector<8x16xf32>
    %867 = arith.mulf %865, %14 : vector<8x16xf32>
    %868 = arith.addf %866, %867 : vector<8x16xf32>
    %cst_353 = arith.constant dense<0.000000e+00> : vector<8x8xf32>
    %869 = tpu.matmul %868, %862, %cst_353 {dimension_numbers = #tpu.dot_dimension_numbers<[1], [1], [0], [0], [0, 0, 1, 0], [], []>} : vector<8x16xf32>, vector<8x16xf32>, vector<8x8xf32> -> vector<8x8xf32>
    %cst_354 = arith.constant 2.500000e-01 : f32
    %870 = vector.broadcast %cst_354 : f32 to vector<8x8xf32>
    %871 = arith.mulf %869, %870 : vector<8x8xf32>
    %cst_355 = arith.constant dense<0xFF800000> : vector<8xf32>
    %872 = vector.multi_reduction <maximumf>, %871, %cst_355 [1] : vector<8x8xf32> to vector<8xf32>
    %873 = vector.shape_cast %872 : vector<8xf32> to vector<8x1xf32>
    %874 = vector.broadcast %873 : vector<8x1xf32> to vector<8x8xf32>
    %875 = arith.subf %871, %874 : vector<8x8xf32>
    %876 = math.exp %875 : vector<8x8xf32>
    %cst_356 = arith.constant dense<0.000000e+00> : vector<8xf32>
    %877 = vector.multi_reduction <add>, %876, %cst_356 [1] : vector<8x8xf32> to vector<8xf32>
    %878 = vector.shape_cast %877 : vector<8xf32> to vector<8x1xf32>
    %879 = tpu.reciprocal %878 {approx = true} : vector<8x1xf32> -> vector<8x1xf32>
    %880 = vector.broadcast %879 : vector<8x1xf32> to vector<8x8xf32>
    %881 = arith.mulf %876, %880 : vector<8x8xf32>
    %cst_357 = arith.constant dense<0.000000e+00> : vector<8x16xf32>
    %882 = tpu.matmul %881, %862, %cst_357 {dimension_numbers = #tpu.dot_dimension_numbers<[1], [0], [0], [1], [0, 0, 1, 1], [], []>} : vector<8x8xf32>, vector<8x16xf32>, vector<8x16xf32> -> vector<8x16xf32>
    %883 = vector.extract_strided_slice %853 {offsets = [0, 16], sizes = [8, 16], strides = [1, 1]} : vector<8x64xf32> to vector<8x16xf32>
    %884 = vector.extract_strided_slice %860 {offsets = [0, 16], sizes = [8, 16], strides = [1, 1]} : vector<8x64xf32> to vector<8x16xf32>
    %885 = vector.extract_strided_slice %883 {offsets = [0, 8], sizes = [8, 8], strides = [1, 1]} : vector<8x16xf32> to vector<8x8xf32>
    %886 = vector.extract_strided_slice %883 {offsets = [0, 0], sizes = [8, 8], strides = [1, 1]} : vector<8x16xf32> to vector<8x8xf32>
    %887 = tpu.concatenate %885, %886 in 1 : vector<8x8xf32>, vector<8x8xf32> -> vector<8x16xf32>
    %888 = arith.mulf %883, %13 : vector<8x16xf32>
    %889 = arith.mulf %887, %14 : vector<8x16xf32>
    %890 = arith.addf %888, %889 : vector<8x16xf32>
    %cst_358 = arith.constant dense<0.000000e+00> : vector<8x8xf32>
    %891 = tpu.matmul %890, %884, %cst_358 {dimension_numbers = #tpu.dot_dimension_numbers<[1], [1], [0], [0], [0, 0, 1, 0], [], []>} : vector<8x16xf32>, vector<8x16xf32>, vector<8x8xf32> -> vector<8x8xf32>
    %cst_359 = arith.constant 2.500000e-01 : f32
    %892 = vector.broadcast %cst_359 : f32 to vector<8x8xf32>
    %893 = arith.mulf %891, %892 : vector<8x8xf32>
    %cst_360 = arith.constant dense<0xFF800000> : vector<8xf32>
    %894 = vector.multi_reduction <maximumf>, %893, %cst_360 [1] : vector<8x8xf32> to vector<8xf32>
    %895 = vector.shape_cast %894 : vector<8xf32> to vector<8x1xf32>
    %896 = vector.broadcast %895 : vector<8x1xf32> to vector<8x8xf32>
    %897 = arith.subf %893, %896 : vector<8x8xf32>
    %898 = math.exp %897 : vector<8x8xf32>
    %cst_361 = arith.constant dense<0.000000e+00> : vector<8xf32>
    %899 = vector.multi_reduction <add>, %898, %cst_361 [1] : vector<8x8xf32> to vector<8xf32>
    %900 = vector.shape_cast %899 : vector<8xf32> to vector<8x1xf32>
    %901 = tpu.reciprocal %900 {approx = true} : vector<8x1xf32> -> vector<8x1xf32>
    %902 = vector.broadcast %901 : vector<8x1xf32> to vector<8x8xf32>
    %903 = arith.mulf %898, %902 : vector<8x8xf32>
    %cst_362 = arith.constant dense<0.000000e+00> : vector<8x16xf32>
    %904 = tpu.matmul %903, %884, %cst_362 {dimension_numbers = #tpu.dot_dimension_numbers<[1], [0], [0], [1], [0, 0, 1, 1], [], []>} : vector<8x8xf32>, vector<8x16xf32>, vector<8x16xf32> -> vector<8x16xf32>
    %905 = vector.extract_strided_slice %853 {offsets = [0, 32], sizes = [8, 16], strides = [1, 1]} : vector<8x64xf32> to vector<8x16xf32>
    %906 = vector.extract_strided_slice %860 {offsets = [0, 32], sizes = [8, 16], strides = [1, 1]} : vector<8x64xf32> to vector<8x16xf32>
    %907 = vector.extract_strided_slice %905 {offsets = [0, 8], sizes = [8, 8], strides = [1, 1]} : vector<8x16xf32> to vector<8x8xf32>
    %908 = vector.extract_strided_slice %905 {offsets = [0, 0], sizes = [8, 8], strides = [1, 1]} : vector<8x16xf32> to vector<8x8xf32>
    %909 = tpu.concatenate %907, %908 in 1 : vector<8x8xf32>, vector<8x8xf32> -> vector<8x16xf32>
    %910 = arith.mulf %905, %13 : vector<8x16xf32>
    %911 = arith.mulf %909, %14 : vector<8x16xf32>
    %912 = arith.addf %910, %911 : vector<8x16xf32>
    %cst_363 = arith.constant dense<0.000000e+00> : vector<8x8xf32>
    %913 = tpu.matmul %912, %906, %cst_363 {dimension_numbers = #tpu.dot_dimension_numbers<[1], [1], [0], [0], [0, 0, 1, 0], [], []>} : vector<8x16xf32>, vector<8x16xf32>, vector<8x8xf32> -> vector<8x8xf32>
    %cst_364 = arith.constant 2.500000e-01 : f32
    %914 = vector.broadcast %cst_364 : f32 to vector<8x8xf32>
    %915 = arith.mulf %913, %914 : vector<8x8xf32>
    %cst_365 = arith.constant dense<0xFF800000> : vector<8xf32>
    %916 = vector.multi_reduction <maximumf>, %915, %cst_365 [1] : vector<8x8xf32> to vector<8xf32>
    %917 = vector.shape_cast %916 : vector<8xf32> to vector<8x1xf32>
    %918 = vector.broadcast %917 : vector<8x1xf32> to vector<8x8xf32>
    %919 = arith.subf %915, %918 : vector<8x8xf32>
    %920 = math.exp %919 : vector<8x8xf32>
    %cst_366 = arith.constant dense<0.000000e+00> : vector<8xf32>
    %921 = vector.multi_reduction <add>, %920, %cst_366 [1] : vector<8x8xf32> to vector<8xf32>
    %922 = vector.shape_cast %921 : vector<8xf32> to vector<8x1xf32>
    %923 = tpu.reciprocal %922 {approx = true} : vector<8x1xf32> -> vector<8x1xf32>
    %924 = vector.broadcast %923 : vector<8x1xf32> to vector<8x8xf32>
    %925 = arith.mulf %920, %924 : vector<8x8xf32>
    %cst_367 = arith.constant dense<0.000000e+00> : vector<8x16xf32>
    %926 = tpu.matmul %925, %906, %cst_367 {dimension_numbers = #tpu.dot_dimension_numbers<[1], [0], [0], [1], [0, 0, 1, 1], [], []>} : vector<8x8xf32>, vector<8x16xf32>, vector<8x16xf32> -> vector<8x16xf32>
    %927 = vector.extract_strided_slice %853 {offsets = [0, 48], sizes = [8, 16], strides = [1, 1]} : vector<8x64xf32> to vector<8x16xf32>
    %928 = vector.extract_strided_slice %860 {offsets = [0, 48], sizes = [8, 16], strides = [1, 1]} : vector<8x64xf32> to vector<8x16xf32>
    %929 = vector.extract_strided_slice %927 {offsets = [0, 8], sizes = [8, 8], strides = [1, 1]} : vector<8x16xf32> to vector<8x8xf32>
    %930 = vector.extract_strided_slice %927 {offsets = [0, 0], sizes = [8, 8], strides = [1, 1]} : vector<8x16xf32> to vector<8x8xf32>
    %931 = tpu.concatenate %929, %930 in 1 : vector<8x8xf32>, vector<8x8xf32> -> vector<8x16xf32>
    %932 = arith.mulf %927, %13 : vector<8x16xf32>
    %933 = arith.mulf %931, %14 : vector<8x16xf32>
    %934 = arith.addf %932, %933 : vector<8x16xf32>
    %cst_368 = arith.constant dense<0.000000e+00> : vector<8x8xf32>
    %935 = tpu.matmul %934, %928, %cst_368 {dimension_numbers = #tpu.dot_dimension_numbers<[1], [1], [0], [0], [0, 0, 1, 0], [], []>} : vector<8x16xf32>, vector<8x16xf32>, vector<8x8xf32> -> vector<8x8xf32>
    %cst_369 = arith.constant 2.500000e-01 : f32
    %936 = vector.broadcast %cst_369 : f32 to vector<8x8xf32>
    %937 = arith.mulf %935, %936 : vector<8x8xf32>
    %cst_370 = arith.constant dense<0xFF800000> : vector<8xf32>
    %938 = vector.multi_reduction <maximumf>, %937, %cst_370 [1] : vector<8x8xf32> to vector<8xf32>
    %939 = vector.shape_cast %938 : vector<8xf32> to vector<8x1xf32>
    %940 = vector.broadcast %939 : vector<8x1xf32> to vector<8x8xf32>
    %941 = arith.subf %937, %940 : vector<8x8xf32>
    %942 = math.exp %941 : vector<8x8xf32>
    %cst_371 = arith.constant dense<0.000000e+00> : vector<8xf32>
    %943 = vector.multi_reduction <add>, %942, %cst_371 [1] : vector<8x8xf32> to vector<8xf32>
    %944 = vector.shape_cast %943 : vector<8xf32> to vector<8x1xf32>
    %945 = tpu.reciprocal %944 {approx = true} : vector<8x1xf32> -> vector<8x1xf32>
    %946 = vector.broadcast %945 : vector<8x1xf32> to vector<8x8xf32>
    %947 = arith.mulf %942, %946 : vector<8x8xf32>
    %cst_372 = arith.constant dense<0.000000e+00> : vector<8x16xf32>
    %948 = tpu.matmul %947, %928, %cst_372 {dimension_numbers = #tpu.dot_dimension_numbers<[1], [0], [0], [1], [0, 0, 1, 1], [], []>} : vector<8x8xf32>, vector<8x16xf32>, vector<8x16xf32> -> vector<8x16xf32>
    %949 = tpu.concatenate %882, %904, %926, %948 in 1 : vector<8x16xf32>, vector<8x16xf32>, vector<8x16xf32>, vector<8x16xf32> -> vector<8x64xf32>
    %c6_373 = arith.constant 6 : index
    %c0_374 = arith.constant 0 : index
    %c0_375 = arith.constant 0 : index
    %950 = vector.load %arg16[%c6_373, %c0_374, %c0_375] : memref<10x64x64xf32, #tpu.memory_space<vmem>>, vector<1x64x64xf32>
    %951 = vector.shape_cast %950 : vector<1x64x64xf32> to vector<64x64xf32>
    %cst_376 = arith.constant dense<0.000000e+00> : vector<8x64xf32>
    %952 = tpu.matmul %949, %951, %cst_376 {dimension_numbers = #tpu.dot_dimension_numbers<[1], [0], [0], [1], [0, 0, 1, 1], [], []>} : vector<8x64xf32>, vector<64x64xf32>, vector<8x64xf32> -> vector<8x64xf32>
    %c6_377 = arith.constant 6 : index
    %c0_378 = arith.constant 0 : index
    %c0_379 = arith.constant 0 : index
    %953 = vector.load %arg17[%c6_377, %c0_378, %c0_379] : memref<10x1x64xf32, #tpu.memory_space<vmem>>, vector<1x1x64xf32>
    %954 = vector.shape_cast %953 : vector<1x1x64xf32> to vector<1x64xf32>
    %955 = vector.broadcast %954 : vector<1x64xf32> to vector<8x64xf32>
    %956 = arith.addf %952, %955 : vector<8x64xf32>
    %957 = arith.addf %956, %846 : vector<8x64xf32>
    %cst_380 = arith.constant dense<0.000000e+00> : vector<8xf32>
    %958 = vector.multi_reduction <add>, %957, %cst_380 [1] : vector<8x64xf32> to vector<8xf32>
    %959 = vector.shape_cast %958 : vector<8xf32> to vector<8x1xf32>
    %cst_381 = arith.constant 6.400000e+01 : f32
    %960 = vector.broadcast %cst_381 : f32 to vector<8x1xf32>
    %961 = arith.divf %959, %960 : vector<8x1xf32>
    %962 = vector.broadcast %961 : vector<8x1xf32> to vector<8x64xf32>
    %963 = arith.subf %957, %962 : vector<8x64xf32>
    %964 = arith.mulf %963, %963 : vector<8x64xf32>
    %cst_382 = arith.constant dense<0.000000e+00> : vector<8xf32>
    %965 = vector.multi_reduction <add>, %964, %cst_382 [1] : vector<8x64xf32> to vector<8xf32>
    %966 = vector.shape_cast %965 : vector<8xf32> to vector<8x1xf32>
    %cst_383 = arith.constant 6.400000e+01 : f32
    %967 = vector.broadcast %cst_383 : f32 to vector<8x1xf32>
    %968 = arith.divf %966, %967 : vector<8x1xf32>
    %cst_384 = arith.constant 9.99999974E-6 : f32
    %969 = vector.broadcast %cst_384 : f32 to vector<8x1xf32>
    %970 = arith.addf %968, %969 : vector<8x1xf32>
    %971 = math.rsqrt %970 : vector<8x1xf32>
    %972 = vector.broadcast %971 : vector<8x1xf32> to vector<8x64xf32>
    %973 = arith.mulf %963, %972 : vector<8x64xf32>
    %c6_385 = arith.constant 6 : index
    %c0_386 = arith.constant 0 : index
    %c0_387 = arith.constant 0 : index
    %974 = vector.load %arg18[%c6_385, %c0_386, %c0_387] : memref<10x1x64xf32, #tpu.memory_space<vmem>>, vector<1x1x64xf32>
    %975 = vector.shape_cast %974 : vector<1x1x64xf32> to vector<1x64xf32>
    %976 = vector.broadcast %975 : vector<1x64xf32> to vector<8x64xf32>
    %977 = arith.mulf %973, %976 : vector<8x64xf32>
    %c6_388 = arith.constant 6 : index
    %c0_389 = arith.constant 0 : index
    %c0_390 = arith.constant 0 : index
    %978 = vector.load %arg19[%c6_388, %c0_389, %c0_390] : memref<10x1x64xf32, #tpu.memory_space<vmem>>, vector<1x1x64xf32>
    %979 = vector.shape_cast %978 : vector<1x1x64xf32> to vector<1x64xf32>
    %980 = vector.broadcast %979 : vector<1x64xf32> to vector<8x64xf32>
    %981 = arith.addf %977, %980 : vector<8x64xf32>
    %cst_391 = arith.constant 0.000000e+00 : f32
    %982 = vector.broadcast %cst_391 : f32 to vector<8x64xf32>
    %983 = arith.maximumf %981, %982 : vector<8x64xf32>
    %c7 = arith.constant 7 : index
    %c0_392 = arith.constant 0 : index
    %c0_393 = arith.constant 0 : index
    %984 = vector.load %arg12[%c7, %c0_392, %c0_393] : memref<10x64x64xf32, #tpu.memory_space<vmem>>, vector<1x64x64xf32>
    %985 = vector.shape_cast %984 : vector<1x64x64xf32> to vector<64x64xf32>
    %cst_394 = arith.constant dense<0.000000e+00> : vector<8x64xf32>
    %986 = tpu.matmul %11, %985, %cst_394 {dimension_numbers = #tpu.dot_dimension_numbers<[1], [0], [0], [1], [0, 0, 1, 1], [], []>} : vector<8x64xf32>, vector<64x64xf32>, vector<8x64xf32> -> vector<8x64xf32>
    %c7_395 = arith.constant 7 : index
    %c0_396 = arith.constant 0 : index
    %c0_397 = arith.constant 0 : index
    %987 = vector.load %arg13[%c7_395, %c0_396, %c0_397] : memref<10x1x64xf32, #tpu.memory_space<vmem>>, vector<1x1x64xf32>
    %988 = vector.shape_cast %987 : vector<1x1x64xf32> to vector<1x64xf32>
    %989 = vector.broadcast %988 : vector<1x64xf32> to vector<8x64xf32>
    %990 = arith.addf %986, %989 : vector<8x64xf32>
    %c7_398 = arith.constant 7 : index
    %c0_399 = arith.constant 0 : index
    %c0_400 = arith.constant 0 : index
    %991 = vector.load %arg14[%c7_398, %c0_399, %c0_400] : memref<10x64x64xf32, #tpu.memory_space<vmem>>, vector<1x64x64xf32>
    %992 = vector.shape_cast %991 : vector<1x64x64xf32> to vector<64x64xf32>
    %cst_401 = arith.constant dense<0.000000e+00> : vector<8x64xf32>
    %993 = tpu.matmul %983, %992, %cst_401 {dimension_numbers = #tpu.dot_dimension_numbers<[1], [0], [0], [1], [0, 0, 1, 1], [], []>} : vector<8x64xf32>, vector<64x64xf32>, vector<8x64xf32> -> vector<8x64xf32>
    %c7_402 = arith.constant 7 : index
    %c0_403 = arith.constant 0 : index
    %c0_404 = arith.constant 0 : index
    %994 = vector.load %arg15[%c7_402, %c0_403, %c0_404] : memref<10x1x64xf32, #tpu.memory_space<vmem>>, vector<1x1x64xf32>
    %995 = vector.shape_cast %994 : vector<1x1x64xf32> to vector<1x64xf32>
    %996 = vector.broadcast %995 : vector<1x64xf32> to vector<8x64xf32>
    %997 = arith.addf %993, %996 : vector<8x64xf32>
    %998 = vector.extract_strided_slice %990 {offsets = [0, 0], sizes = [8, 16], strides = [1, 1]} : vector<8x64xf32> to vector<8x16xf32>
    %999 = vector.extract_strided_slice %997 {offsets = [0, 0], sizes = [8, 16], strides = [1, 1]} : vector<8x64xf32> to vector<8x16xf32>
    %1000 = vector.extract_strided_slice %998 {offsets = [0, 8], sizes = [8, 8], strides = [1, 1]} : vector<8x16xf32> to vector<8x8xf32>
    %1001 = vector.extract_strided_slice %998 {offsets = [0, 0], sizes = [8, 8], strides = [1, 1]} : vector<8x16xf32> to vector<8x8xf32>
    %1002 = tpu.concatenate %1000, %1001 in 1 : vector<8x8xf32>, vector<8x8xf32> -> vector<8x16xf32>
    %1003 = arith.mulf %998, %13 : vector<8x16xf32>
    %1004 = arith.mulf %1002, %14 : vector<8x16xf32>
    %1005 = arith.addf %1003, %1004 : vector<8x16xf32>
    %cst_405 = arith.constant dense<0.000000e+00> : vector<8x8xf32>
    %1006 = tpu.matmul %1005, %999, %cst_405 {dimension_numbers = #tpu.dot_dimension_numbers<[1], [1], [0], [0], [0, 0, 1, 0], [], []>} : vector<8x16xf32>, vector<8x16xf32>, vector<8x8xf32> -> vector<8x8xf32>
    %cst_406 = arith.constant 2.500000e-01 : f32
    %1007 = vector.broadcast %cst_406 : f32 to vector<8x8xf32>
    %1008 = arith.mulf %1006, %1007 : vector<8x8xf32>
    %cst_407 = arith.constant dense<0xFF800000> : vector<8xf32>
    %1009 = vector.multi_reduction <maximumf>, %1008, %cst_407 [1] : vector<8x8xf32> to vector<8xf32>
    %1010 = vector.shape_cast %1009 : vector<8xf32> to vector<8x1xf32>
    %1011 = vector.broadcast %1010 : vector<8x1xf32> to vector<8x8xf32>
    %1012 = arith.subf %1008, %1011 : vector<8x8xf32>
    %1013 = math.exp %1012 : vector<8x8xf32>
    %cst_408 = arith.constant dense<0.000000e+00> : vector<8xf32>
    %1014 = vector.multi_reduction <add>, %1013, %cst_408 [1] : vector<8x8xf32> to vector<8xf32>
    %1015 = vector.shape_cast %1014 : vector<8xf32> to vector<8x1xf32>
    %1016 = tpu.reciprocal %1015 {approx = true} : vector<8x1xf32> -> vector<8x1xf32>
    %1017 = vector.broadcast %1016 : vector<8x1xf32> to vector<8x8xf32>
    %1018 = arith.mulf %1013, %1017 : vector<8x8xf32>
    %cst_409 = arith.constant dense<0.000000e+00> : vector<8x16xf32>
    %1019 = tpu.matmul %1018, %999, %cst_409 {dimension_numbers = #tpu.dot_dimension_numbers<[1], [0], [0], [1], [0, 0, 1, 1], [], []>} : vector<8x8xf32>, vector<8x16xf32>, vector<8x16xf32> -> vector<8x16xf32>
    %1020 = vector.extract_strided_slice %990 {offsets = [0, 16], sizes = [8, 16], strides = [1, 1]} : vector<8x64xf32> to vector<8x16xf32>
    %1021 = vector.extract_strided_slice %997 {offsets = [0, 16], sizes = [8, 16], strides = [1, 1]} : vector<8x64xf32> to vector<8x16xf32>
    %1022 = vector.extract_strided_slice %1020 {offsets = [0, 8], sizes = [8, 8], strides = [1, 1]} : vector<8x16xf32> to vector<8x8xf32>
    %1023 = vector.extract_strided_slice %1020 {offsets = [0, 0], sizes = [8, 8], strides = [1, 1]} : vector<8x16xf32> to vector<8x8xf32>
    %1024 = tpu.concatenate %1022, %1023 in 1 : vector<8x8xf32>, vector<8x8xf32> -> vector<8x16xf32>
    %1025 = arith.mulf %1020, %13 : vector<8x16xf32>
    %1026 = arith.mulf %1024, %14 : vector<8x16xf32>
    %1027 = arith.addf %1025, %1026 : vector<8x16xf32>
    %cst_410 = arith.constant dense<0.000000e+00> : vector<8x8xf32>
    %1028 = tpu.matmul %1027, %1021, %cst_410 {dimension_numbers = #tpu.dot_dimension_numbers<[1], [1], [0], [0], [0, 0, 1, 0], [], []>} : vector<8x16xf32>, vector<8x16xf32>, vector<8x8xf32> -> vector<8x8xf32>
    %cst_411 = arith.constant 2.500000e-01 : f32
    %1029 = vector.broadcast %cst_411 : f32 to vector<8x8xf32>
    %1030 = arith.mulf %1028, %1029 : vector<8x8xf32>
    %cst_412 = arith.constant dense<0xFF800000> : vector<8xf32>
    %1031 = vector.multi_reduction <maximumf>, %1030, %cst_412 [1] : vector<8x8xf32> to vector<8xf32>
    %1032 = vector.shape_cast %1031 : vector<8xf32> to vector<8x1xf32>
    %1033 = vector.broadcast %1032 : vector<8x1xf32> to vector<8x8xf32>
    %1034 = arith.subf %1030, %1033 : vector<8x8xf32>
    %1035 = math.exp %1034 : vector<8x8xf32>
    %cst_413 = arith.constant dense<0.000000e+00> : vector<8xf32>
    %1036 = vector.multi_reduction <add>, %1035, %cst_413 [1] : vector<8x8xf32> to vector<8xf32>
    %1037 = vector.shape_cast %1036 : vector<8xf32> to vector<8x1xf32>
    %1038 = tpu.reciprocal %1037 {approx = true} : vector<8x1xf32> -> vector<8x1xf32>
    %1039 = vector.broadcast %1038 : vector<8x1xf32> to vector<8x8xf32>
    %1040 = arith.mulf %1035, %1039 : vector<8x8xf32>
    %cst_414 = arith.constant dense<0.000000e+00> : vector<8x16xf32>
    %1041 = tpu.matmul %1040, %1021, %cst_414 {dimension_numbers = #tpu.dot_dimension_numbers<[1], [0], [0], [1], [0, 0, 1, 1], [], []>} : vector<8x8xf32>, vector<8x16xf32>, vector<8x16xf32> -> vector<8x16xf32>
    %1042 = vector.extract_strided_slice %990 {offsets = [0, 32], sizes = [8, 16], strides = [1, 1]} : vector<8x64xf32> to vector<8x16xf32>
    %1043 = vector.extract_strided_slice %997 {offsets = [0, 32], sizes = [8, 16], strides = [1, 1]} : vector<8x64xf32> to vector<8x16xf32>
    %1044 = vector.extract_strided_slice %1042 {offsets = [0, 8], sizes = [8, 8], strides = [1, 1]} : vector<8x16xf32> to vector<8x8xf32>
    %1045 = vector.extract_strided_slice %1042 {offsets = [0, 0], sizes = [8, 8], strides = [1, 1]} : vector<8x16xf32> to vector<8x8xf32>
    %1046 = tpu.concatenate %1044, %1045 in 1 : vector<8x8xf32>, vector<8x8xf32> -> vector<8x16xf32>
    %1047 = arith.mulf %1042, %13 : vector<8x16xf32>
    %1048 = arith.mulf %1046, %14 : vector<8x16xf32>
    %1049 = arith.addf %1047, %1048 : vector<8x16xf32>
    %cst_415 = arith.constant dense<0.000000e+00> : vector<8x8xf32>
    %1050 = tpu.matmul %1049, %1043, %cst_415 {dimension_numbers = #tpu.dot_dimension_numbers<[1], [1], [0], [0], [0, 0, 1, 0], [], []>} : vector<8x16xf32>, vector<8x16xf32>, vector<8x8xf32> -> vector<8x8xf32>
    %cst_416 = arith.constant 2.500000e-01 : f32
    %1051 = vector.broadcast %cst_416 : f32 to vector<8x8xf32>
    %1052 = arith.mulf %1050, %1051 : vector<8x8xf32>
    %cst_417 = arith.constant dense<0xFF800000> : vector<8xf32>
    %1053 = vector.multi_reduction <maximumf>, %1052, %cst_417 [1] : vector<8x8xf32> to vector<8xf32>
    %1054 = vector.shape_cast %1053 : vector<8xf32> to vector<8x1xf32>
    %1055 = vector.broadcast %1054 : vector<8x1xf32> to vector<8x8xf32>
    %1056 = arith.subf %1052, %1055 : vector<8x8xf32>
    %1057 = math.exp %1056 : vector<8x8xf32>
    %cst_418 = arith.constant dense<0.000000e+00> : vector<8xf32>
    %1058 = vector.multi_reduction <add>, %1057, %cst_418 [1] : vector<8x8xf32> to vector<8xf32>
    %1059 = vector.shape_cast %1058 : vector<8xf32> to vector<8x1xf32>
    %1060 = tpu.reciprocal %1059 {approx = true} : vector<8x1xf32> -> vector<8x1xf32>
    %1061 = vector.broadcast %1060 : vector<8x1xf32> to vector<8x8xf32>
    %1062 = arith.mulf %1057, %1061 : vector<8x8xf32>
    %cst_419 = arith.constant dense<0.000000e+00> : vector<8x16xf32>
    %1063 = tpu.matmul %1062, %1043, %cst_419 {dimension_numbers = #tpu.dot_dimension_numbers<[1], [0], [0], [1], [0, 0, 1, 1], [], []>} : vector<8x8xf32>, vector<8x16xf32>, vector<8x16xf32> -> vector<8x16xf32>
    %1064 = vector.extract_strided_slice %990 {offsets = [0, 48], sizes = [8, 16], strides = [1, 1]} : vector<8x64xf32> to vector<8x16xf32>
    %1065 = vector.extract_strided_slice %997 {offsets = [0, 48], sizes = [8, 16], strides = [1, 1]} : vector<8x64xf32> to vector<8x16xf32>
    %1066 = vector.extract_strided_slice %1064 {offsets = [0, 8], sizes = [8, 8], strides = [1, 1]} : vector<8x16xf32> to vector<8x8xf32>
    %1067 = vector.extract_strided_slice %1064 {offsets = [0, 0], sizes = [8, 8], strides = [1, 1]} : vector<8x16xf32> to vector<8x8xf32>
    %1068 = tpu.concatenate %1066, %1067 in 1 : vector<8x8xf32>, vector<8x8xf32> -> vector<8x16xf32>
    %1069 = arith.mulf %1064, %13 : vector<8x16xf32>
    %1070 = arith.mulf %1068, %14 : vector<8x16xf32>
    %1071 = arith.addf %1069, %1070 : vector<8x16xf32>
    %cst_420 = arith.constant dense<0.000000e+00> : vector<8x8xf32>
    %1072 = tpu.matmul %1071, %1065, %cst_420 {dimension_numbers = #tpu.dot_dimension_numbers<[1], [1], [0], [0], [0, 0, 1, 0], [], []>} : vector<8x16xf32>, vector<8x16xf32>, vector<8x8xf32> -> vector<8x8xf32>
    %cst_421 = arith.constant 2.500000e-01 : f32
    %1073 = vector.broadcast %cst_421 : f32 to vector<8x8xf32>
    %1074 = arith.mulf %1072, %1073 : vector<8x8xf32>
    %cst_422 = arith.constant dense<0xFF800000> : vector<8xf32>
    %1075 = vector.multi_reduction <maximumf>, %1074, %cst_422 [1] : vector<8x8xf32> to vector<8xf32>
    %1076 = vector.shape_cast %1075 : vector<8xf32> to vector<8x1xf32>
    %1077 = vector.broadcast %1076 : vector<8x1xf32> to vector<8x8xf32>
    %1078 = arith.subf %1074, %1077 : vector<8x8xf32>
    %1079 = math.exp %1078 : vector<8x8xf32>
    %cst_423 = arith.constant dense<0.000000e+00> : vector<8xf32>
    %1080 = vector.multi_reduction <add>, %1079, %cst_423 [1] : vector<8x8xf32> to vector<8xf32>
    %1081 = vector.shape_cast %1080 : vector<8xf32> to vector<8x1xf32>
    %1082 = tpu.reciprocal %1081 {approx = true} : vector<8x1xf32> -> vector<8x1xf32>
    %1083 = vector.broadcast %1082 : vector<8x1xf32> to vector<8x8xf32>
    %1084 = arith.mulf %1079, %1083 : vector<8x8xf32>
    %cst_424 = arith.constant dense<0.000000e+00> : vector<8x16xf32>
    %1085 = tpu.matmul %1084, %1065, %cst_424 {dimension_numbers = #tpu.dot_dimension_numbers<[1], [0], [0], [1], [0, 0, 1, 1], [], []>} : vector<8x8xf32>, vector<8x16xf32>, vector<8x16xf32> -> vector<8x16xf32>
    %1086 = tpu.concatenate %1019, %1041, %1063, %1085 in 1 : vector<8x16xf32>, vector<8x16xf32>, vector<8x16xf32>, vector<8x16xf32> -> vector<8x64xf32>
    %c7_425 = arith.constant 7 : index
    %c0_426 = arith.constant 0 : index
    %c0_427 = arith.constant 0 : index
    %1087 = vector.load %arg16[%c7_425, %c0_426, %c0_427] : memref<10x64x64xf32, #tpu.memory_space<vmem>>, vector<1x64x64xf32>
    %1088 = vector.shape_cast %1087 : vector<1x64x64xf32> to vector<64x64xf32>
    %cst_428 = arith.constant dense<0.000000e+00> : vector<8x64xf32>
    %1089 = tpu.matmul %1086, %1088, %cst_428 {dimension_numbers = #tpu.dot_dimension_numbers<[1], [0], [0], [1], [0, 0, 1, 1], [], []>} : vector<8x64xf32>, vector<64x64xf32>, vector<8x64xf32> -> vector<8x64xf32>
    %c7_429 = arith.constant 7 : index
    %c0_430 = arith.constant 0 : index
    %c0_431 = arith.constant 0 : index
    %1090 = vector.load %arg17[%c7_429, %c0_430, %c0_431] : memref<10x1x64xf32, #tpu.memory_space<vmem>>, vector<1x1x64xf32>
    %1091 = vector.shape_cast %1090 : vector<1x1x64xf32> to vector<1x64xf32>
    %1092 = vector.broadcast %1091 : vector<1x64xf32> to vector<8x64xf32>
    %1093 = arith.addf %1089, %1092 : vector<8x64xf32>
    %1094 = arith.addf %1093, %983 : vector<8x64xf32>
    %cst_432 = arith.constant dense<0.000000e+00> : vector<8xf32>
    %1095 = vector.multi_reduction <add>, %1094, %cst_432 [1] : vector<8x64xf32> to vector<8xf32>
    %1096 = vector.shape_cast %1095 : vector<8xf32> to vector<8x1xf32>
    %cst_433 = arith.constant 6.400000e+01 : f32
    %1097 = vector.broadcast %cst_433 : f32 to vector<8x1xf32>
    %1098 = arith.divf %1096, %1097 : vector<8x1xf32>
    %1099 = vector.broadcast %1098 : vector<8x1xf32> to vector<8x64xf32>
    %1100 = arith.subf %1094, %1099 : vector<8x64xf32>
    %1101 = arith.mulf %1100, %1100 : vector<8x64xf32>
    %cst_434 = arith.constant dense<0.000000e+00> : vector<8xf32>
    %1102 = vector.multi_reduction <add>, %1101, %cst_434 [1] : vector<8x64xf32> to vector<8xf32>
    %1103 = vector.shape_cast %1102 : vector<8xf32> to vector<8x1xf32>
    %cst_435 = arith.constant 6.400000e+01 : f32
    %1104 = vector.broadcast %cst_435 : f32 to vector<8x1xf32>
    %1105 = arith.divf %1103, %1104 : vector<8x1xf32>
    %cst_436 = arith.constant 9.99999974E-6 : f32
    %1106 = vector.broadcast %cst_436 : f32 to vector<8x1xf32>
    %1107 = arith.addf %1105, %1106 : vector<8x1xf32>
    %1108 = math.rsqrt %1107 : vector<8x1xf32>
    %1109 = vector.broadcast %1108 : vector<8x1xf32> to vector<8x64xf32>
    %1110 = arith.mulf %1100, %1109 : vector<8x64xf32>
    %c7_437 = arith.constant 7 : index
    %c0_438 = arith.constant 0 : index
    %c0_439 = arith.constant 0 : index
    %1111 = vector.load %arg18[%c7_437, %c0_438, %c0_439] : memref<10x1x64xf32, #tpu.memory_space<vmem>>, vector<1x1x64xf32>
    %1112 = vector.shape_cast %1111 : vector<1x1x64xf32> to vector<1x64xf32>
    %1113 = vector.broadcast %1112 : vector<1x64xf32> to vector<8x64xf32>
    %1114 = arith.mulf %1110, %1113 : vector<8x64xf32>
    %c7_440 = arith.constant 7 : index
    %c0_441 = arith.constant 0 : index
    %c0_442 = arith.constant 0 : index
    %1115 = vector.load %arg19[%c7_440, %c0_441, %c0_442] : memref<10x1x64xf32, #tpu.memory_space<vmem>>, vector<1x1x64xf32>
    %1116 = vector.shape_cast %1115 : vector<1x1x64xf32> to vector<1x64xf32>
    %1117 = vector.broadcast %1116 : vector<1x64xf32> to vector<8x64xf32>
    %1118 = arith.addf %1114, %1117 : vector<8x64xf32>
    %cst_443 = arith.constant 0.000000e+00 : f32
    %1119 = vector.broadcast %cst_443 : f32 to vector<8x64xf32>
    %1120 = arith.maximumf %1118, %1119 : vector<8x64xf32>
    %c8 = arith.constant 8 : index
    %c0_444 = arith.constant 0 : index
    %c0_445 = arith.constant 0 : index
    %1121 = vector.load %arg12[%c8, %c0_444, %c0_445] : memref<10x64x64xf32, #tpu.memory_space<vmem>>, vector<1x64x64xf32>
    %1122 = vector.shape_cast %1121 : vector<1x64x64xf32> to vector<64x64xf32>
    %cst_446 = arith.constant dense<0.000000e+00> : vector<8x64xf32>
    %1123 = tpu.matmul %11, %1122, %cst_446 {dimension_numbers = #tpu.dot_dimension_numbers<[1], [0], [0], [1], [0, 0, 1, 1], [], []>} : vector<8x64xf32>, vector<64x64xf32>, vector<8x64xf32> -> vector<8x64xf32>
    %c8_447 = arith.constant 8 : index
    %c0_448 = arith.constant 0 : index
    %c0_449 = arith.constant 0 : index
    %1124 = vector.load %arg13[%c8_447, %c0_448, %c0_449] : memref<10x1x64xf32, #tpu.memory_space<vmem>>, vector<1x1x64xf32>
    %1125 = vector.shape_cast %1124 : vector<1x1x64xf32> to vector<1x64xf32>
    %1126 = vector.broadcast %1125 : vector<1x64xf32> to vector<8x64xf32>
    %1127 = arith.addf %1123, %1126 : vector<8x64xf32>
    %c8_450 = arith.constant 8 : index
    %c0_451 = arith.constant 0 : index
    %c0_452 = arith.constant 0 : index
    %1128 = vector.load %arg14[%c8_450, %c0_451, %c0_452] : memref<10x64x64xf32, #tpu.memory_space<vmem>>, vector<1x64x64xf32>
    %1129 = vector.shape_cast %1128 : vector<1x64x64xf32> to vector<64x64xf32>
    %cst_453 = arith.constant dense<0.000000e+00> : vector<8x64xf32>
    %1130 = tpu.matmul %1120, %1129, %cst_453 {dimension_numbers = #tpu.dot_dimension_numbers<[1], [0], [0], [1], [0, 0, 1, 1], [], []>} : vector<8x64xf32>, vector<64x64xf32>, vector<8x64xf32> -> vector<8x64xf32>
    %c8_454 = arith.constant 8 : index
    %c0_455 = arith.constant 0 : index
    %c0_456 = arith.constant 0 : index
    %1131 = vector.load %arg15[%c8_454, %c0_455, %c0_456] : memref<10x1x64xf32, #tpu.memory_space<vmem>>, vector<1x1x64xf32>
    %1132 = vector.shape_cast %1131 : vector<1x1x64xf32> to vector<1x64xf32>
    %1133 = vector.broadcast %1132 : vector<1x64xf32> to vector<8x64xf32>
    %1134 = arith.addf %1130, %1133 : vector<8x64xf32>
    %1135 = vector.extract_strided_slice %1127 {offsets = [0, 0], sizes = [8, 16], strides = [1, 1]} : vector<8x64xf32> to vector<8x16xf32>
    %1136 = vector.extract_strided_slice %1134 {offsets = [0, 0], sizes = [8, 16], strides = [1, 1]} : vector<8x64xf32> to vector<8x16xf32>
    %1137 = vector.extract_strided_slice %1135 {offsets = [0, 8], sizes = [8, 8], strides = [1, 1]} : vector<8x16xf32> to vector<8x8xf32>
    %1138 = vector.extract_strided_slice %1135 {offsets = [0, 0], sizes = [8, 8], strides = [1, 1]} : vector<8x16xf32> to vector<8x8xf32>
    %1139 = tpu.concatenate %1137, %1138 in 1 : vector<8x8xf32>, vector<8x8xf32> -> vector<8x16xf32>
    %1140 = arith.mulf %1135, %13 : vector<8x16xf32>
    %1141 = arith.mulf %1139, %14 : vector<8x16xf32>
    %1142 = arith.addf %1140, %1141 : vector<8x16xf32>
    %cst_457 = arith.constant dense<0.000000e+00> : vector<8x8xf32>
    %1143 = tpu.matmul %1142, %1136, %cst_457 {dimension_numbers = #tpu.dot_dimension_numbers<[1], [1], [0], [0], [0, 0, 1, 0], [], []>} : vector<8x16xf32>, vector<8x16xf32>, vector<8x8xf32> -> vector<8x8xf32>
    %cst_458 = arith.constant 2.500000e-01 : f32
    %1144 = vector.broadcast %cst_458 : f32 to vector<8x8xf32>
    %1145 = arith.mulf %1143, %1144 : vector<8x8xf32>
    %cst_459 = arith.constant dense<0xFF800000> : vector<8xf32>
    %1146 = vector.multi_reduction <maximumf>, %1145, %cst_459 [1] : vector<8x8xf32> to vector<8xf32>
    %1147 = vector.shape_cast %1146 : vector<8xf32> to vector<8x1xf32>
    %1148 = vector.broadcast %1147 : vector<8x1xf32> to vector<8x8xf32>
    %1149 = arith.subf %1145, %1148 : vector<8x8xf32>
    %1150 = math.exp %1149 : vector<8x8xf32>
    %cst_460 = arith.constant dense<0.000000e+00> : vector<8xf32>
    %1151 = vector.multi_reduction <add>, %1150, %cst_460 [1] : vector<8x8xf32> to vector<8xf32>
    %1152 = vector.shape_cast %1151 : vector<8xf32> to vector<8x1xf32>
    %1153 = tpu.reciprocal %1152 {approx = true} : vector<8x1xf32> -> vector<8x1xf32>
    %1154 = vector.broadcast %1153 : vector<8x1xf32> to vector<8x8xf32>
    %1155 = arith.mulf %1150, %1154 : vector<8x8xf32>
    %cst_461 = arith.constant dense<0.000000e+00> : vector<8x16xf32>
    %1156 = tpu.matmul %1155, %1136, %cst_461 {dimension_numbers = #tpu.dot_dimension_numbers<[1], [0], [0], [1], [0, 0, 1, 1], [], []>} : vector<8x8xf32>, vector<8x16xf32>, vector<8x16xf32> -> vector<8x16xf32>
    %1157 = vector.extract_strided_slice %1127 {offsets = [0, 16], sizes = [8, 16], strides = [1, 1]} : vector<8x64xf32> to vector<8x16xf32>
    %1158 = vector.extract_strided_slice %1134 {offsets = [0, 16], sizes = [8, 16], strides = [1, 1]} : vector<8x64xf32> to vector<8x16xf32>
    %1159 = vector.extract_strided_slice %1157 {offsets = [0, 8], sizes = [8, 8], strides = [1, 1]} : vector<8x16xf32> to vector<8x8xf32>
    %1160 = vector.extract_strided_slice %1157 {offsets = [0, 0], sizes = [8, 8], strides = [1, 1]} : vector<8x16xf32> to vector<8x8xf32>
    %1161 = tpu.concatenate %1159, %1160 in 1 : vector<8x8xf32>, vector<8x8xf32> -> vector<8x16xf32>
    %1162 = arith.mulf %1157, %13 : vector<8x16xf32>
    %1163 = arith.mulf %1161, %14 : vector<8x16xf32>
    %1164 = arith.addf %1162, %1163 : vector<8x16xf32>
    %cst_462 = arith.constant dense<0.000000e+00> : vector<8x8xf32>
    %1165 = tpu.matmul %1164, %1158, %cst_462 {dimension_numbers = #tpu.dot_dimension_numbers<[1], [1], [0], [0], [0, 0, 1, 0], [], []>} : vector<8x16xf32>, vector<8x16xf32>, vector<8x8xf32> -> vector<8x8xf32>
    %cst_463 = arith.constant 2.500000e-01 : f32
    %1166 = vector.broadcast %cst_463 : f32 to vector<8x8xf32>
    %1167 = arith.mulf %1165, %1166 : vector<8x8xf32>
    %cst_464 = arith.constant dense<0xFF800000> : vector<8xf32>
    %1168 = vector.multi_reduction <maximumf>, %1167, %cst_464 [1] : vector<8x8xf32> to vector<8xf32>
    %1169 = vector.shape_cast %1168 : vector<8xf32> to vector<8x1xf32>
    %1170 = vector.broadcast %1169 : vector<8x1xf32> to vector<8x8xf32>
    %1171 = arith.subf %1167, %1170 : vector<8x8xf32>
    %1172 = math.exp %1171 : vector<8x8xf32>
    %cst_465 = arith.constant dense<0.000000e+00> : vector<8xf32>
    %1173 = vector.multi_reduction <add>, %1172, %cst_465 [1] : vector<8x8xf32> to vector<8xf32>
    %1174 = vector.shape_cast %1173 : vector<8xf32> to vector<8x1xf32>
    %1175 = tpu.reciprocal %1174 {approx = true} : vector<8x1xf32> -> vector<8x1xf32>
    %1176 = vector.broadcast %1175 : vector<8x1xf32> to vector<8x8xf32>
    %1177 = arith.mulf %1172, %1176 : vector<8x8xf32>
    %cst_466 = arith.constant dense<0.000000e+00> : vector<8x16xf32>
    %1178 = tpu.matmul %1177, %1158, %cst_466 {dimension_numbers = #tpu.dot_dimension_numbers<[1], [0], [0], [1], [0, 0, 1, 1], [], []>} : vector<8x8xf32>, vector<8x16xf32>, vector<8x16xf32> -> vector<8x16xf32>
    %1179 = vector.extract_strided_slice %1127 {offsets = [0, 32], sizes = [8, 16], strides = [1, 1]} : vector<8x64xf32> to vector<8x16xf32>
    %1180 = vector.extract_strided_slice %1134 {offsets = [0, 32], sizes = [8, 16], strides = [1, 1]} : vector<8x64xf32> to vector<8x16xf32>
    %1181 = vector.extract_strided_slice %1179 {offsets = [0, 8], sizes = [8, 8], strides = [1, 1]} : vector<8x16xf32> to vector<8x8xf32>
    %1182 = vector.extract_strided_slice %1179 {offsets = [0, 0], sizes = [8, 8], strides = [1, 1]} : vector<8x16xf32> to vector<8x8xf32>
    %1183 = tpu.concatenate %1181, %1182 in 1 : vector<8x8xf32>, vector<8x8xf32> -> vector<8x16xf32>
    %1184 = arith.mulf %1179, %13 : vector<8x16xf32>
    %1185 = arith.mulf %1183, %14 : vector<8x16xf32>
    %1186 = arith.addf %1184, %1185 : vector<8x16xf32>
    %cst_467 = arith.constant dense<0.000000e+00> : vector<8x8xf32>
    %1187 = tpu.matmul %1186, %1180, %cst_467 {dimension_numbers = #tpu.dot_dimension_numbers<[1], [1], [0], [0], [0, 0, 1, 0], [], []>} : vector<8x16xf32>, vector<8x16xf32>, vector<8x8xf32> -> vector<8x8xf32>
    %cst_468 = arith.constant 2.500000e-01 : f32
    %1188 = vector.broadcast %cst_468 : f32 to vector<8x8xf32>
    %1189 = arith.mulf %1187, %1188 : vector<8x8xf32>
    %cst_469 = arith.constant dense<0xFF800000> : vector<8xf32>
    %1190 = vector.multi_reduction <maximumf>, %1189, %cst_469 [1] : vector<8x8xf32> to vector<8xf32>
    %1191 = vector.shape_cast %1190 : vector<8xf32> to vector<8x1xf32>
    %1192 = vector.broadcast %1191 : vector<8x1xf32> to vector<8x8xf32>
    %1193 = arith.subf %1189, %1192 : vector<8x8xf32>
    %1194 = math.exp %1193 : vector<8x8xf32>
    %cst_470 = arith.constant dense<0.000000e+00> : vector<8xf32>
    %1195 = vector.multi_reduction <add>, %1194, %cst_470 [1] : vector<8x8xf32> to vector<8xf32>
    %1196 = vector.shape_cast %1195 : vector<8xf32> to vector<8x1xf32>
    %1197 = tpu.reciprocal %1196 {approx = true} : vector<8x1xf32> -> vector<8x1xf32>
    %1198 = vector.broadcast %1197 : vector<8x1xf32> to vector<8x8xf32>
    %1199 = arith.mulf %1194, %1198 : vector<8x8xf32>
    %cst_471 = arith.constant dense<0.000000e+00> : vector<8x16xf32>
    %1200 = tpu.matmul %1199, %1180, %cst_471 {dimension_numbers = #tpu.dot_dimension_numbers<[1], [0], [0], [1], [0, 0, 1, 1], [], []>} : vector<8x8xf32>, vector<8x16xf32>, vector<8x16xf32> -> vector<8x16xf32>
    %1201 = vector.extract_strided_slice %1127 {offsets = [0, 48], sizes = [8, 16], strides = [1, 1]} : vector<8x64xf32> to vector<8x16xf32>
    %1202 = vector.extract_strided_slice %1134 {offsets = [0, 48], sizes = [8, 16], strides = [1, 1]} : vector<8x64xf32> to vector<8x16xf32>
    %1203 = vector.extract_strided_slice %1201 {offsets = [0, 8], sizes = [8, 8], strides = [1, 1]} : vector<8x16xf32> to vector<8x8xf32>
    %1204 = vector.extract_strided_slice %1201 {offsets = [0, 0], sizes = [8, 8], strides = [1, 1]} : vector<8x16xf32> to vector<8x8xf32>
    %1205 = tpu.concatenate %1203, %1204 in 1 : vector<8x8xf32>, vector<8x8xf32> -> vector<8x16xf32>
    %1206 = arith.mulf %1201, %13 : vector<8x16xf32>
    %1207 = arith.mulf %1205, %14 : vector<8x16xf32>
    %1208 = arith.addf %1206, %1207 : vector<8x16xf32>
    %cst_472 = arith.constant dense<0.000000e+00> : vector<8x8xf32>
    %1209 = tpu.matmul %1208, %1202, %cst_472 {dimension_numbers = #tpu.dot_dimension_numbers<[1], [1], [0], [0], [0, 0, 1, 0], [], []>} : vector<8x16xf32>, vector<8x16xf32>, vector<8x8xf32> -> vector<8x8xf32>
    %cst_473 = arith.constant 2.500000e-01 : f32
    %1210 = vector.broadcast %cst_473 : f32 to vector<8x8xf32>
    %1211 = arith.mulf %1209, %1210 : vector<8x8xf32>
    %cst_474 = arith.constant dense<0xFF800000> : vector<8xf32>
    %1212 = vector.multi_reduction <maximumf>, %1211, %cst_474 [1] : vector<8x8xf32> to vector<8xf32>
    %1213 = vector.shape_cast %1212 : vector<8xf32> to vector<8x1xf32>
    %1214 = vector.broadcast %1213 : vector<8x1xf32> to vector<8x8xf32>
    %1215 = arith.subf %1211, %1214 : vector<8x8xf32>
    %1216 = math.exp %1215 : vector<8x8xf32>
    %cst_475 = arith.constant dense<0.000000e+00> : vector<8xf32>
    %1217 = vector.multi_reduction <add>, %1216, %cst_475 [1] : vector<8x8xf32> to vector<8xf32>
    %1218 = vector.shape_cast %1217 : vector<8xf32> to vector<8x1xf32>
    %1219 = tpu.reciprocal %1218 {approx = true} : vector<8x1xf32> -> vector<8x1xf32>
    %1220 = vector.broadcast %1219 : vector<8x1xf32> to vector<8x8xf32>
    %1221 = arith.mulf %1216, %1220 : vector<8x8xf32>
    %cst_476 = arith.constant dense<0.000000e+00> : vector<8x16xf32>
    %1222 = tpu.matmul %1221, %1202, %cst_476 {dimension_numbers = #tpu.dot_dimension_numbers<[1], [0], [0], [1], [0, 0, 1, 1], [], []>} : vector<8x8xf32>, vector<8x16xf32>, vector<8x16xf32> -> vector<8x16xf32>
    %1223 = tpu.concatenate %1156, %1178, %1200, %1222 in 1 : vector<8x16xf32>, vector<8x16xf32>, vector<8x16xf32>, vector<8x16xf32> -> vector<8x64xf32>
    %c8_477 = arith.constant 8 : index
    %c0_478 = arith.constant 0 : index
    %c0_479 = arith.constant 0 : index
    %1224 = vector.load %arg16[%c8_477, %c0_478, %c0_479] : memref<10x64x64xf32, #tpu.memory_space<vmem>>, vector<1x64x64xf32>
    %1225 = vector.shape_cast %1224 : vector<1x64x64xf32> to vector<64x64xf32>
    %cst_480 = arith.constant dense<0.000000e+00> : vector<8x64xf32>
    %1226 = tpu.matmul %1223, %1225, %cst_480 {dimension_numbers = #tpu.dot_dimension_numbers<[1], [0], [0], [1], [0, 0, 1, 1], [], []>} : vector<8x64xf32>, vector<64x64xf32>, vector<8x64xf32> -> vector<8x64xf32>
    %c8_481 = arith.constant 8 : index
    %c0_482 = arith.constant 0 : index
    %c0_483 = arith.constant 0 : index
    %1227 = vector.load %arg17[%c8_481, %c0_482, %c0_483] : memref<10x1x64xf32, #tpu.memory_space<vmem>>, vector<1x1x64xf32>
    %1228 = vector.shape_cast %1227 : vector<1x1x64xf32> to vector<1x64xf32>
    %1229 = vector.broadcast %1228 : vector<1x64xf32> to vector<8x64xf32>
    %1230 = arith.addf %1226, %1229 : vector<8x64xf32>
    %1231 = arith.addf %1230, %1120 : vector<8x64xf32>
    %cst_484 = arith.constant dense<0.000000e+00> : vector<8xf32>
    %1232 = vector.multi_reduction <add>, %1231, %cst_484 [1] : vector<8x64xf32> to vector<8xf32>
    %1233 = vector.shape_cast %1232 : vector<8xf32> to vector<8x1xf32>
    %cst_485 = arith.constant 6.400000e+01 : f32
    %1234 = vector.broadcast %cst_485 : f32 to vector<8x1xf32>
    %1235 = arith.divf %1233, %1234 : vector<8x1xf32>
    %1236 = vector.broadcast %1235 : vector<8x1xf32> to vector<8x64xf32>
    %1237 = arith.subf %1231, %1236 : vector<8x64xf32>
    %1238 = arith.mulf %1237, %1237 : vector<8x64xf32>
    %cst_486 = arith.constant dense<0.000000e+00> : vector<8xf32>
    %1239 = vector.multi_reduction <add>, %1238, %cst_486 [1] : vector<8x64xf32> to vector<8xf32>
    %1240 = vector.shape_cast %1239 : vector<8xf32> to vector<8x1xf32>
    %cst_487 = arith.constant 6.400000e+01 : f32
    %1241 = vector.broadcast %cst_487 : f32 to vector<8x1xf32>
    %1242 = arith.divf %1240, %1241 : vector<8x1xf32>
    %cst_488 = arith.constant 9.99999974E-6 : f32
    %1243 = vector.broadcast %cst_488 : f32 to vector<8x1xf32>
    %1244 = arith.addf %1242, %1243 : vector<8x1xf32>
    %1245 = math.rsqrt %1244 : vector<8x1xf32>
    %1246 = vector.broadcast %1245 : vector<8x1xf32> to vector<8x64xf32>
    %1247 = arith.mulf %1237, %1246 : vector<8x64xf32>
    %c8_489 = arith.constant 8 : index
    %c0_490 = arith.constant 0 : index
    %c0_491 = arith.constant 0 : index
    %1248 = vector.load %arg18[%c8_489, %c0_490, %c0_491] : memref<10x1x64xf32, #tpu.memory_space<vmem>>, vector<1x1x64xf32>
    %1249 = vector.shape_cast %1248 : vector<1x1x64xf32> to vector<1x64xf32>
    %1250 = vector.broadcast %1249 : vector<1x64xf32> to vector<8x64xf32>
    %1251 = arith.mulf %1247, %1250 : vector<8x64xf32>
    %c8_492 = arith.constant 8 : index
    %c0_493 = arith.constant 0 : index
    %c0_494 = arith.constant 0 : index
    %1252 = vector.load %arg19[%c8_492, %c0_493, %c0_494] : memref<10x1x64xf32, #tpu.memory_space<vmem>>, vector<1x1x64xf32>
    %1253 = vector.shape_cast %1252 : vector<1x1x64xf32> to vector<1x64xf32>
    %1254 = vector.broadcast %1253 : vector<1x64xf32> to vector<8x64xf32>
    %1255 = arith.addf %1251, %1254 : vector<8x64xf32>
    %cst_495 = arith.constant 0.000000e+00 : f32
    %1256 = vector.broadcast %cst_495 : f32 to vector<8x64xf32>
    %1257 = arith.maximumf %1255, %1256 : vector<8x64xf32>
    %c9 = arith.constant 9 : index
    %c0_496 = arith.constant 0 : index
    %c0_497 = arith.constant 0 : index
    %1258 = vector.load %arg12[%c9, %c0_496, %c0_497] : memref<10x64x64xf32, #tpu.memory_space<vmem>>, vector<1x64x64xf32>
    %1259 = vector.shape_cast %1258 : vector<1x64x64xf32> to vector<64x64xf32>
    %cst_498 = arith.constant dense<0.000000e+00> : vector<8x64xf32>
    %1260 = tpu.matmul %11, %1259, %cst_498 {dimension_numbers = #tpu.dot_dimension_numbers<[1], [0], [0], [1], [0, 0, 1, 1], [], []>} : vector<8x64xf32>, vector<64x64xf32>, vector<8x64xf32> -> vector<8x64xf32>
    %c9_499 = arith.constant 9 : index
    %c0_500 = arith.constant 0 : index
    %c0_501 = arith.constant 0 : index
    %1261 = vector.load %arg13[%c9_499, %c0_500, %c0_501] : memref<10x1x64xf32, #tpu.memory_space<vmem>>, vector<1x1x64xf32>
    %1262 = vector.shape_cast %1261 : vector<1x1x64xf32> to vector<1x64xf32>
    %1263 = vector.broadcast %1262 : vector<1x64xf32> to vector<8x64xf32>
    %1264 = arith.addf %1260, %1263 : vector<8x64xf32>
    %c9_502 = arith.constant 9 : index
    %c0_503 = arith.constant 0 : index
    %c0_504 = arith.constant 0 : index
    %1265 = vector.load %arg14[%c9_502, %c0_503, %c0_504] : memref<10x64x64xf32, #tpu.memory_space<vmem>>, vector<1x64x64xf32>
    %1266 = vector.shape_cast %1265 : vector<1x64x64xf32> to vector<64x64xf32>
    %cst_505 = arith.constant dense<0.000000e+00> : vector<8x64xf32>
    %1267 = tpu.matmul %1257, %1266, %cst_505 {dimension_numbers = #tpu.dot_dimension_numbers<[1], [0], [0], [1], [0, 0, 1, 1], [], []>} : vector<8x64xf32>, vector<64x64xf32>, vector<8x64xf32> -> vector<8x64xf32>
    %c9_506 = arith.constant 9 : index
    %c0_507 = arith.constant 0 : index
    %c0_508 = arith.constant 0 : index
    %1268 = vector.load %arg15[%c9_506, %c0_507, %c0_508] : memref<10x1x64xf32, #tpu.memory_space<vmem>>, vector<1x1x64xf32>
    %1269 = vector.shape_cast %1268 : vector<1x1x64xf32> to vector<1x64xf32>
    %1270 = vector.broadcast %1269 : vector<1x64xf32> to vector<8x64xf32>
    %1271 = arith.addf %1267, %1270 : vector<8x64xf32>
    %1272 = vector.extract_strided_slice %1264 {offsets = [0, 0], sizes = [8, 16], strides = [1, 1]} : vector<8x64xf32> to vector<8x16xf32>
    %1273 = vector.extract_strided_slice %1271 {offsets = [0, 0], sizes = [8, 16], strides = [1, 1]} : vector<8x64xf32> to vector<8x16xf32>
    %1274 = vector.extract_strided_slice %1272 {offsets = [0, 8], sizes = [8, 8], strides = [1, 1]} : vector<8x16xf32> to vector<8x8xf32>
    %1275 = vector.extract_strided_slice %1272 {offsets = [0, 0], sizes = [8, 8], strides = [1, 1]} : vector<8x16xf32> to vector<8x8xf32>
    %1276 = tpu.concatenate %1274, %1275 in 1 : vector<8x8xf32>, vector<8x8xf32> -> vector<8x16xf32>
    %1277 = arith.mulf %1272, %13 : vector<8x16xf32>
    %1278 = arith.mulf %1276, %14 : vector<8x16xf32>
    %1279 = arith.addf %1277, %1278 : vector<8x16xf32>
    %cst_509 = arith.constant dense<0.000000e+00> : vector<8x8xf32>
    %1280 = tpu.matmul %1279, %1273, %cst_509 {dimension_numbers = #tpu.dot_dimension_numbers<[1], [1], [0], [0], [0, 0, 1, 0], [], []>} : vector<8x16xf32>, vector<8x16xf32>, vector<8x8xf32> -> vector<8x8xf32>
    %cst_510 = arith.constant 2.500000e-01 : f32
    %1281 = vector.broadcast %cst_510 : f32 to vector<8x8xf32>
    %1282 = arith.mulf %1280, %1281 : vector<8x8xf32>
    %cst_511 = arith.constant dense<0xFF800000> : vector<8xf32>
    %1283 = vector.multi_reduction <maximumf>, %1282, %cst_511 [1] : vector<8x8xf32> to vector<8xf32>
    %1284 = vector.shape_cast %1283 : vector<8xf32> to vector<8x1xf32>
    %1285 = vector.broadcast %1284 : vector<8x1xf32> to vector<8x8xf32>
    %1286 = arith.subf %1282, %1285 : vector<8x8xf32>
    %1287 = math.exp %1286 : vector<8x8xf32>
    %cst_512 = arith.constant dense<0.000000e+00> : vector<8xf32>
    %1288 = vector.multi_reduction <add>, %1287, %cst_512 [1] : vector<8x8xf32> to vector<8xf32>
    %1289 = vector.shape_cast %1288 : vector<8xf32> to vector<8x1xf32>
    %1290 = tpu.reciprocal %1289 {approx = true} : vector<8x1xf32> -> vector<8x1xf32>
    %1291 = vector.broadcast %1290 : vector<8x1xf32> to vector<8x8xf32>
    %1292 = arith.mulf %1287, %1291 : vector<8x8xf32>
    %cst_513 = arith.constant dense<0.000000e+00> : vector<8x16xf32>
    %1293 = tpu.matmul %1292, %1273, %cst_513 {dimension_numbers = #tpu.dot_dimension_numbers<[1], [0], [0], [1], [0, 0, 1, 1], [], []>} : vector<8x8xf32>, vector<8x16xf32>, vector<8x16xf32> -> vector<8x16xf32>
    %1294 = vector.extract_strided_slice %1264 {offsets = [0, 16], sizes = [8, 16], strides = [1, 1]} : vector<8x64xf32> to vector<8x16xf32>
    %1295 = vector.extract_strided_slice %1271 {offsets = [0, 16], sizes = [8, 16], strides = [1, 1]} : vector<8x64xf32> to vector<8x16xf32>
    %1296 = vector.extract_strided_slice %1294 {offsets = [0, 8], sizes = [8, 8], strides = [1, 1]} : vector<8x16xf32> to vector<8x8xf32>
    %1297 = vector.extract_strided_slice %1294 {offsets = [0, 0], sizes = [8, 8], strides = [1, 1]} : vector<8x16xf32> to vector<8x8xf32>
    %1298 = tpu.concatenate %1296, %1297 in 1 : vector<8x8xf32>, vector<8x8xf32> -> vector<8x16xf32>
    %1299 = arith.mulf %1294, %13 : vector<8x16xf32>
    %1300 = arith.mulf %1298, %14 : vector<8x16xf32>
    %1301 = arith.addf %1299, %1300 : vector<8x16xf32>
    %cst_514 = arith.constant dense<0.000000e+00> : vector<8x8xf32>
    %1302 = tpu.matmul %1301, %1295, %cst_514 {dimension_numbers = #tpu.dot_dimension_numbers<[1], [1], [0], [0], [0, 0, 1, 0], [], []>} : vector<8x16xf32>, vector<8x16xf32>, vector<8x8xf32> -> vector<8x8xf32>
    %cst_515 = arith.constant 2.500000e-01 : f32
    %1303 = vector.broadcast %cst_515 : f32 to vector<8x8xf32>
    %1304 = arith.mulf %1302, %1303 : vector<8x8xf32>
    %cst_516 = arith.constant dense<0xFF800000> : vector<8xf32>
    %1305 = vector.multi_reduction <maximumf>, %1304, %cst_516 [1] : vector<8x8xf32> to vector<8xf32>
    %1306 = vector.shape_cast %1305 : vector<8xf32> to vector<8x1xf32>
    %1307 = vector.broadcast %1306 : vector<8x1xf32> to vector<8x8xf32>
    %1308 = arith.subf %1304, %1307 : vector<8x8xf32>
    %1309 = math.exp %1308 : vector<8x8xf32>
    %cst_517 = arith.constant dense<0.000000e+00> : vector<8xf32>
    %1310 = vector.multi_reduction <add>, %1309, %cst_517 [1] : vector<8x8xf32> to vector<8xf32>
    %1311 = vector.shape_cast %1310 : vector<8xf32> to vector<8x1xf32>
    %1312 = tpu.reciprocal %1311 {approx = true} : vector<8x1xf32> -> vector<8x1xf32>
    %1313 = vector.broadcast %1312 : vector<8x1xf32> to vector<8x8xf32>
    %1314 = arith.mulf %1309, %1313 : vector<8x8xf32>
    %cst_518 = arith.constant dense<0.000000e+00> : vector<8x16xf32>
    %1315 = tpu.matmul %1314, %1295, %cst_518 {dimension_numbers = #tpu.dot_dimension_numbers<[1], [0], [0], [1], [0, 0, 1, 1], [], []>} : vector<8x8xf32>, vector<8x16xf32>, vector<8x16xf32> -> vector<8x16xf32>
    %1316 = vector.extract_strided_slice %1264 {offsets = [0, 32], sizes = [8, 16], strides = [1, 1]} : vector<8x64xf32> to vector<8x16xf32>
    %1317 = vector.extract_strided_slice %1271 {offsets = [0, 32], sizes = [8, 16], strides = [1, 1]} : vector<8x64xf32> to vector<8x16xf32>
    %1318 = vector.extract_strided_slice %1316 {offsets = [0, 8], sizes = [8, 8], strides = [1, 1]} : vector<8x16xf32> to vector<8x8xf32>
    %1319 = vector.extract_strided_slice %1316 {offsets = [0, 0], sizes = [8, 8], strides = [1, 1]} : vector<8x16xf32> to vector<8x8xf32>
    %1320 = tpu.concatenate %1318, %1319 in 1 : vector<8x8xf32>, vector<8x8xf32> -> vector<8x16xf32>
    %1321 = arith.mulf %1316, %13 : vector<8x16xf32>
    %1322 = arith.mulf %1320, %14 : vector<8x16xf32>
    %1323 = arith.addf %1321, %1322 : vector<8x16xf32>
    %cst_519 = arith.constant dense<0.000000e+00> : vector<8x8xf32>
    %1324 = tpu.matmul %1323, %1317, %cst_519 {dimension_numbers = #tpu.dot_dimension_numbers<[1], [1], [0], [0], [0, 0, 1, 0], [], []>} : vector<8x16xf32>, vector<8x16xf32>, vector<8x8xf32> -> vector<8x8xf32>
    %cst_520 = arith.constant 2.500000e-01 : f32
    %1325 = vector.broadcast %cst_520 : f32 to vector<8x8xf32>
    %1326 = arith.mulf %1324, %1325 : vector<8x8xf32>
    %cst_521 = arith.constant dense<0xFF800000> : vector<8xf32>
    %1327 = vector.multi_reduction <maximumf>, %1326, %cst_521 [1] : vector<8x8xf32> to vector<8xf32>
    %1328 = vector.shape_cast %1327 : vector<8xf32> to vector<8x1xf32>
    %1329 = vector.broadcast %1328 : vector<8x1xf32> to vector<8x8xf32>
    %1330 = arith.subf %1326, %1329 : vector<8x8xf32>
    %1331 = math.exp %1330 : vector<8x8xf32>
    %cst_522 = arith.constant dense<0.000000e+00> : vector<8xf32>
    %1332 = vector.multi_reduction <add>, %1331, %cst_522 [1] : vector<8x8xf32> to vector<8xf32>
    %1333 = vector.shape_cast %1332 : vector<8xf32> to vector<8x1xf32>
    %1334 = tpu.reciprocal %1333 {approx = true} : vector<8x1xf32> -> vector<8x1xf32>
    %1335 = vector.broadcast %1334 : vector<8x1xf32> to vector<8x8xf32>
    %1336 = arith.mulf %1331, %1335 : vector<8x8xf32>
    %cst_523 = arith.constant dense<0.000000e+00> : vector<8x16xf32>
    %1337 = tpu.matmul %1336, %1317, %cst_523 {dimension_numbers = #tpu.dot_dimension_numbers<[1], [0], [0], [1], [0, 0, 1, 1], [], []>} : vector<8x8xf32>, vector<8x16xf32>, vector<8x16xf32> -> vector<8x16xf32>
    %1338 = vector.extract_strided_slice %1264 {offsets = [0, 48], sizes = [8, 16], strides = [1, 1]} : vector<8x64xf32> to vector<8x16xf32>
    %1339 = vector.extract_strided_slice %1271 {offsets = [0, 48], sizes = [8, 16], strides = [1, 1]} : vector<8x64xf32> to vector<8x16xf32>
    %1340 = vector.extract_strided_slice %1338 {offsets = [0, 8], sizes = [8, 8], strides = [1, 1]} : vector<8x16xf32> to vector<8x8xf32>
    %1341 = vector.extract_strided_slice %1338 {offsets = [0, 0], sizes = [8, 8], strides = [1, 1]} : vector<8x16xf32> to vector<8x8xf32>
    %1342 = tpu.concatenate %1340, %1341 in 1 : vector<8x8xf32>, vector<8x8xf32> -> vector<8x16xf32>
    %1343 = arith.mulf %1338, %13 : vector<8x16xf32>
    %1344 = arith.mulf %1342, %14 : vector<8x16xf32>
    %1345 = arith.addf %1343, %1344 : vector<8x16xf32>
    %cst_524 = arith.constant dense<0.000000e+00> : vector<8x8xf32>
    %1346 = tpu.matmul %1345, %1339, %cst_524 {dimension_numbers = #tpu.dot_dimension_numbers<[1], [1], [0], [0], [0, 0, 1, 0], [], []>} : vector<8x16xf32>, vector<8x16xf32>, vector<8x8xf32> -> vector<8x8xf32>
    %cst_525 = arith.constant 2.500000e-01 : f32
    %1347 = vector.broadcast %cst_525 : f32 to vector<8x8xf32>
    %1348 = arith.mulf %1346, %1347 : vector<8x8xf32>
    %cst_526 = arith.constant dense<0xFF800000> : vector<8xf32>
    %1349 = vector.multi_reduction <maximumf>, %1348, %cst_526 [1] : vector<8x8xf32> to vector<8xf32>
    %1350 = vector.shape_cast %1349 : vector<8xf32> to vector<8x1xf32>
    %1351 = vector.broadcast %1350 : vector<8x1xf32> to vector<8x8xf32>
    %1352 = arith.subf %1348, %1351 : vector<8x8xf32>
    %1353 = math.exp %1352 : vector<8x8xf32>
    %cst_527 = arith.constant dense<0.000000e+00> : vector<8xf32>
    %1354 = vector.multi_reduction <add>, %1353, %cst_527 [1] : vector<8x8xf32> to vector<8xf32>
    %1355 = vector.shape_cast %1354 : vector<8xf32> to vector<8x1xf32>
    %1356 = tpu.reciprocal %1355 {approx = true} : vector<8x1xf32> -> vector<8x1xf32>
    %1357 = vector.broadcast %1356 : vector<8x1xf32> to vector<8x8xf32>
    %1358 = arith.mulf %1353, %1357 : vector<8x8xf32>
    %cst_528 = arith.constant dense<0.000000e+00> : vector<8x16xf32>
    %1359 = tpu.matmul %1358, %1339, %cst_528 {dimension_numbers = #tpu.dot_dimension_numbers<[1], [0], [0], [1], [0, 0, 1, 1], [], []>} : vector<8x8xf32>, vector<8x16xf32>, vector<8x16xf32> -> vector<8x16xf32>
    %1360 = tpu.concatenate %1293, %1315, %1337, %1359 in 1 : vector<8x16xf32>, vector<8x16xf32>, vector<8x16xf32>, vector<8x16xf32> -> vector<8x64xf32>
    %c9_529 = arith.constant 9 : index
    %c0_530 = arith.constant 0 : index
    %c0_531 = arith.constant 0 : index
    %1361 = vector.load %arg16[%c9_529, %c0_530, %c0_531] : memref<10x64x64xf32, #tpu.memory_space<vmem>>, vector<1x64x64xf32>
    %1362 = vector.shape_cast %1361 : vector<1x64x64xf32> to vector<64x64xf32>
    %cst_532 = arith.constant dense<0.000000e+00> : vector<8x64xf32>
    %1363 = tpu.matmul %1360, %1362, %cst_532 {dimension_numbers = #tpu.dot_dimension_numbers<[1], [0], [0], [1], [0, 0, 1, 1], [], []>} : vector<8x64xf32>, vector<64x64xf32>, vector<8x64xf32> -> vector<8x64xf32>
    %c9_533 = arith.constant 9 : index
    %c0_534 = arith.constant 0 : index
    %c0_535 = arith.constant 0 : index
    %1364 = vector.load %arg17[%c9_533, %c0_534, %c0_535] : memref<10x1x64xf32, #tpu.memory_space<vmem>>, vector<1x1x64xf32>
    %1365 = vector.shape_cast %1364 : vector<1x1x64xf32> to vector<1x64xf32>
    %1366 = vector.broadcast %1365 : vector<1x64xf32> to vector<8x64xf32>
    %1367 = arith.addf %1363, %1366 : vector<8x64xf32>
    %1368 = arith.addf %1367, %1257 : vector<8x64xf32>
    %cst_536 = arith.constant dense<0.000000e+00> : vector<8xf32>
    %1369 = vector.multi_reduction <add>, %1368, %cst_536 [1] : vector<8x64xf32> to vector<8xf32>
    %1370 = vector.shape_cast %1369 : vector<8xf32> to vector<8x1xf32>
    %cst_537 = arith.constant 6.400000e+01 : f32
    %1371 = vector.broadcast %cst_537 : f32 to vector<8x1xf32>
    %1372 = arith.divf %1370, %1371 : vector<8x1xf32>
    %1373 = vector.broadcast %1372 : vector<8x1xf32> to vector<8x64xf32>
    %1374 = arith.subf %1368, %1373 : vector<8x64xf32>
    %1375 = arith.mulf %1374, %1374 : vector<8x64xf32>
    %cst_538 = arith.constant dense<0.000000e+00> : vector<8xf32>
    %1376 = vector.multi_reduction <add>, %1375, %cst_538 [1] : vector<8x64xf32> to vector<8xf32>
    %1377 = vector.shape_cast %1376 : vector<8xf32> to vector<8x1xf32>
    %cst_539 = arith.constant 6.400000e+01 : f32
    %1378 = vector.broadcast %cst_539 : f32 to vector<8x1xf32>
    %1379 = arith.divf %1377, %1378 : vector<8x1xf32>
    %cst_540 = arith.constant 9.99999974E-6 : f32
    %1380 = vector.broadcast %cst_540 : f32 to vector<8x1xf32>
    %1381 = arith.addf %1379, %1380 : vector<8x1xf32>
    %1382 = math.rsqrt %1381 : vector<8x1xf32>
    %1383 = vector.broadcast %1382 : vector<8x1xf32> to vector<8x64xf32>
    %1384 = arith.mulf %1374, %1383 : vector<8x64xf32>
    %c9_541 = arith.constant 9 : index
    %c0_542 = arith.constant 0 : index
    %c0_543 = arith.constant 0 : index
    %1385 = vector.load %arg18[%c9_541, %c0_542, %c0_543] : memref<10x1x64xf32, #tpu.memory_space<vmem>>, vector<1x1x64xf32>
    %1386 = vector.shape_cast %1385 : vector<1x1x64xf32> to vector<1x64xf32>
    %1387 = vector.broadcast %1386 : vector<1x64xf32> to vector<8x64xf32>
    %1388 = arith.mulf %1384, %1387 : vector<8x64xf32>
    %c9_544 = arith.constant 9 : index
    %c0_545 = arith.constant 0 : index
    %c0_546 = arith.constant 0 : index
    %1389 = vector.load %arg19[%c9_544, %c0_545, %c0_546] : memref<10x1x64xf32, #tpu.memory_space<vmem>>, vector<1x1x64xf32>
    %1390 = vector.shape_cast %1389 : vector<1x1x64xf32> to vector<1x64xf32>
    %1391 = vector.broadcast %1390 : vector<1x64xf32> to vector<8x64xf32>
    %1392 = arith.addf %1388, %1391 : vector<8x64xf32>
    %cst_547 = arith.constant 0.000000e+00 : f32
    %1393 = vector.broadcast %cst_547 : f32 to vector<8x64xf32>
    %1394 = arith.maximumf %1392, %1393 : vector<8x64xf32>
    %c0_548 = arith.constant 0 : index
    %c0_549 = arith.constant 0 : index
    %1395 = vector.load %arg20[%c0_548, %c0_549] : memref<64x32xf32, #tpu.memory_space<vmem>>, vector<64x32xf32>
    %cst_550 = arith.constant dense<0.000000e+00> : vector<8x32xf32>
    %1396 = tpu.matmul %1394, %1395, %cst_550 {dimension_numbers = #tpu.dot_dimension_numbers<[1], [0], [0], [1], [0, 0, 1, 1], [], []>} : vector<8x64xf32>, vector<64x32xf32>, vector<8x32xf32> -> vector<8x32xf32>
    %c0_551 = arith.constant 0 : index
    %c0_552 = arith.constant 0 : index
    %1397 = vector.load %arg21[%c0_551, %c0_552] : memref<1x32xf32, #tpu.memory_space<vmem>>, vector<1x32xf32>
    %1398 = vector.broadcast %1397 : vector<1x32xf32> to vector<8x32xf32>
    %1399 = arith.addf %1396, %1398 : vector<8x32xf32>
    %c0_553 = arith.constant 0 : index
    %c0_554 = arith.constant 0 : index
    %1400 = vector.load %arg22[%c0_553, %c0_554] : memref<32x10xf32, #tpu.memory_space<vmem>>, vector<32x10xf32>
    %cst_555 = arith.constant dense<0.000000e+00> : vector<8x10xf32>
    %1401 = tpu.matmul %1399, %1400, %cst_555 {dimension_numbers = #tpu.dot_dimension_numbers<[1], [0], [0], [1], [0, 0, 1, 1], [], []>} : vector<8x32xf32>, vector<32x10xf32>, vector<8x10xf32> -> vector<8x10xf32>
    %c0_556 = arith.constant 0 : index
    %c0_557 = arith.constant 0 : index
    %1402 = vector.load %arg23[%c0_556, %c0_557] : memref<1x10xf32, #tpu.memory_space<vmem>>, vector<1x10xf32>
    %1403 = vector.broadcast %1402 : vector<1x10xf32> to vector<8x10xf32>
    %1404 = arith.addf %1401, %1403 : vector<8x10xf32>
    %c0_558 = arith.constant 0 : index
    %c0_559 = arith.constant 0 : index
    %c0_560 = arith.constant 0 : index
    %1405 = vector.load %arg24[%c0_558, %c0_559, %c0_560] : memref<1x8x10xf32, #tpu.memory_space<vmem>>, vector<1x8x10xf32>
    %1406 = vector.shape_cast %1405 : vector<1x8x10xf32> to vector<8x10xf32>
    %1407 = vector.shape_cast %1404 : vector<8x10xf32> to vector<1x8x10xf32>
    tpu.vector_store %arg24[%c0_558, %c0_559, %c0_560], %1407 {strides = array<i32>} : memref<1x8x10xf32, #tpu.memory_space<vmem>>, vector<1x8x10xf32>,
    return
  }
  func.func @transform_0(%arg0: i32) -> (i32, i32, i32) {
    %c0_i32 = arith.constant 0 : i32
    %c0_i32_0 = arith.constant 0 : i32
    %c0_i32_1 = arith.constant 0 : i32
    return %arg0, %c0_i32, %c0_i32_0 : i32, i32, i32
  }
  func.func @transform_1(%arg0: i32) -> (i32, i32, i32) {
    %c0_i32 = arith.constant 0 : i32
    %c0_i32_0 = arith.constant 0 : i32
    %c0_i32_1 = arith.constant 0 : i32
    return %arg0, %c0_i32, %c0_i32_0 : i32, i32, i32
  }
  func.func @transform_2(%arg0: i32) -> (i32, i32, i32) {
    %c0_i32 = arith.constant 0 : i32
    %c0_i32_0 = arith.constant 0 : i32
    %c0_i32_1 = arith.constant 0 : i32
    return %arg0, %c0_i32, %c0_i32_0 : i32, i32, i32
  }
  func.func @transform_3(%arg0: i32) -> (i32, i32, i32) {
    %c0_i32 = arith.constant 0 : i32
    %c0_i32_0 = arith.constant 0 : i32
    %c0_i32_1 = arith.constant 0 : i32
    return %arg0, %c0_i32, %c0_i32_0 : i32, i32, i32
  }
  func.func @transform_4(%arg0: i32) -> (i32, i32, i32) {
    %c0_i32 = arith.constant 0 : i32
    %c0_i32_0 = arith.constant 0 : i32
    %c0_i32_1 = arith.constant 0 : i32
    return %arg0, %c0_i32, %c0_i32_0 : i32, i32, i32
  }
  func.func @transform_5(%arg0: i32) -> (i32, i32) {
    %c0_i32 = arith.constant 0 : i32
    %c0_i32_0 = arith.constant 0 : i32
    %c0_i32_1 = arith.constant 0 : i32
    return %c0_i32, %c0_i32_0 : i32, i32
  }
  func.func @transform_6(%arg0: i32) -> (i32, i32) {
    %c0_i32 = arith.constant 0 : i32
    %c0_i32_0 = arith.constant 0 : i32
    %c0_i32_1 = arith.constant 0 : i32
    return %c0_i32, %c0_i32_0 : i32, i32
  }
  func.func @transform_7(%arg0: i32) -> (i32, i32) {
    %c0_i32 = arith.constant 0 : i32
    %c0_i32_0 = arith.constant 0 : i32
    %c0_i32_1 = arith.constant 0 : i32
    return %c0_i32, %c0_i32_0 : i32, i32
  }
  func.func @transform_8(%arg0: i32) -> (i32, i32) {
    %c0_i32 = arith.constant 0 : i32
    %c0_i32_0 = arith.constant 0 : i32
    %c0_i32_1 = arith.constant 0 : i32
    return %c0_i32, %c0_i32_0 : i32, i32
  }
  func.func @transform_9(%arg0: i32) -> (i32, i32) {
    %c0_i32 = arith.constant 0 : i32
    %c0_i32_0 = arith.constant 0 : i32
    %c0_i32_1 = arith.constant 0 : i32
    return %c0_i32, %c0_i32_0 : i32, i32
  }
  func.func @transform_10(%arg0: i32) -> (i32, i32) {
    %c0_i32 = arith.constant 0 : i32
    %c0_i32_0 = arith.constant 0 : i32
    %c0_i32_1 = arith.constant 0 : i32
    return %c0_i32, %c0_i32_0 : i32, i32
  }
  func.func @transform_11(%arg0: i32) -> (i32, i32, i32) {
    %c0_i32 = arith.constant 0 : i32
    %c0_i32_0 = arith.constant 0 : i32
    %c0_i32_1 = arith.constant 0 : i32
    %c0_i32_2 = arith.constant 0 : i32
    return %c0_i32, %c0_i32_0, %c0_i32_1 : i32, i32, i32
  }
  func.func @transform_12(%arg0: i32) -> (i32, i32, i32) {
    %c0_i32 = arith.constant 0 : i32
    %c0_i32_0 = arith.constant 0 : i32
    %c0_i32_1 = arith.constant 0 : i32
    %c0_i32_2 = arith.constant 0 : i32
    return %c0_i32, %c0_i32_0, %c0_i32_1 : i32, i32, i32
  }
  func.func @transform_13(%arg0: i32) -> (i32, i32, i32) {
    %c0_i32 = arith.constant 0 : i32
    %c0_i32_0 = arith.constant 0 : i32
    %c0_i32_1 = arith.constant 0 : i32
    %c0_i32_2 = arith.constant 0 : i32
    return %c0_i32, %c0_i32_0, %c0_i32_1 : i32, i32, i32
  }
  func.func @transform_14(%arg0: i32) -> (i32, i32, i32) {
    %c0_i32 = arith.constant 0 : i32
    %c0_i32_0 = arith.constant 0 : i32
    %c0_i32_1 = arith.constant 0 : i32
    %c0_i32_2 = arith.constant 0 : i32
    return %c0_i32, %c0_i32_0, %c0_i32_1 : i32, i32, i32
  }
  func.func @transform_15(%arg0: i32) -> (i32, i32, i32) {
    %c0_i32 = arith.constant 0 : i32
    %c0_i32_0 = arith.constant 0 : i32
    %c0_i32_1 = arith.constant 0 : i32
    %c0_i32_2 = arith.constant 0 : i32
    return %c0_i32, %c0_i32_0, %c0_i32_1 : i32, i32, i32
  }
  func.func @transform_16(%arg0: i32) -> (i32, i32, i32) {
    %c0_i32 = arith.constant 0 : i32
    %c0_i32_0 = arith.constant 0 : i32
    %c0_i32_1 = arith.constant 0 : i32
    %c0_i32_2 = arith.constant 0 : i32
    return %c0_i32, %c0_i32_0, %c0_i32_1 : i32, i32, i32
  }
  func.func @transform_17(%arg0: i32) -> (i32, i32, i32) {
    %c0_i32 = arith.constant 0 : i32
    %c0_i32_0 = arith.constant 0 : i32
    %c0_i32_1 = arith.constant 0 : i32
    %c0_i32_2 = arith.constant 0 : i32
    return %c0_i32, %c0_i32_0, %c0_i32_1 : i32, i32, i32
  }
  func.func @transform_18(%arg0: i32) -> (i32, i32, i32) {
    %c0_i32 = arith.constant 0 : i32
    %c0_i32_0 = arith.constant 0 : i32
    %c0_i32_1 = arith.constant 0 : i32
    %c0_i32_2 = arith.constant 0 : i32
    return %c0_i32, %c0_i32_0, %c0_i32_1 : i32, i32, i32
  }
  func.func @transform_19(%arg0: i32) -> (i32, i32) {
    %c0_i32 = arith.constant 0 : i32
    %c0_i32_0 = arith.constant 0 : i32
    %c0_i32_1 = arith.constant 0 : i32
    return %c0_i32, %c0_i32_0 : i32, i32
  }
  func.func @transform_20(%arg0: i32) -> (i32, i32) {
    %c0_i32 = arith.constant 0 : i32
    %c0_i32_0 = arith.constant 0 : i32
    %c0_i32_1 = arith.constant 0 : i32
    return %c0_i32, %c0_i32_0 : i32, i32
  }
  func.func @transform_21(%arg0: i32) -> (i32, i32) {
    %c0_i32 = arith.constant 0 : i32
    %c0_i32_0 = arith.constant 0 : i32
    %c0_i32_1 = arith.constant 0 : i32
    return %c0_i32, %c0_i32_0 : i32, i32
  }
  func.func @transform_22(%arg0: i32) -> (i32, i32) {
    %c0_i32 = arith.constant 0 : i32
    %c0_i32_0 = arith.constant 0 : i32
    %c0_i32_1 = arith.constant 0 : i32
    return %c0_i32, %c0_i32_0 : i32, i32
  }
  func.func @transform_23(%arg0: i32) -> (i32, i32, i32) {
    %c0_i32 = arith.constant 0 : i32
    %c0_i32_0 = arith.constant 0 : i32
    %c0_i32_1 = arith.constant 0 : i32
    return %arg0, %c0_i32, %c0_i32_0 : i32, i32, i32
  }
}

</mosaic_0001>

<llo_original>
// kernel: diffusion_forward.21
$region0: #{diffusion_forward.21}
  #allocation0 [shape = 'u32[]', space=smem, size = 0x4, offset = 0x4, fixed_abs, tag = 'smem constant byte address 0x4 - core index']
  #allocation1 [shape = 'u32[72,128]{1,0:T(1,128)}', space=vmem, size = 0x9000, scoped, tag = 'internal scratch']
  %s0 = inlined_call_operand.vmem [shape: f32[2,1,1], index: 0, kind: input, shape index: {}]
  %s1 = inlined_call_operand.vmem [shape: f32[2,1,1], index: 1, kind: input, shape index: {}]
  %s2 = inlined_call_operand.vmem [shape: f32[2,8,10], index: 2, kind: input, shape index: {}]
  %s3 = inlined_call_operand.vmem [shape: f32[2,8,10], index: 3, kind: input, shape index: {}]
  %s4 = inlined_call_operand.vmem [shape: f32[2,8,64], index: 4, kind: input, shape index: {}]
  %s5 = inlined_call_operand.vmem [shape: f32[1,128], index: 5, kind: input, shape index: {}]
  %s6 = inlined_call_operand.vmem [shape: f32[8,16], index: 6, kind: input, shape index: {}]
  %s7 = inlined_call_operand.vmem [shape: f32[8,16], index: 7, kind: input, shape index: {}]
  %s8 = inlined_call_operand.vmem [shape: f32[10,64], index: 8, kind: input, shape index: {}]
  %s9 = inlined_call_operand.vmem [shape: f32[128,64], index: 9, kind: input, shape index: {}]
  %s10 = inlined_call_operand.vmem [shape: f32[1,64], index: 10, kind: input, shape index: {}]
  %s11 = inlined_call_operand.vmem [shape: f32[10,64,64], index: 11, kind: input, shape index: {}]
  %s12 = inlined_call_operand.vmem [shape: f32[10,1,64], index: 12, kind: input, shape index: {}]
  %s13 = inlined_call_operand.vmem [shape: f32[10,64,64], index: 13, kind: input, shape index: {}]
  %s14 = inlined_call_operand.vmem [shape: f32[10,1,64], index: 14, kind: input, shape index: {}]
  %s15 = inlined_call_operand.vmem [shape: f32[10,64,64], index: 15, kind: input, shape index: {}]
  %s16 = inlined_call_operand.vmem [shape: f32[10,1,64], index: 16, kind: input, shape index: {}]
  %s17 = inlined_call_operand.vmem [shape: f32[10,1,64], index: 17, kind: input, shape index: {}]
  %s18 = inlined_call_operand.vmem [shape: f32[10,1,64], index: 18, kind: input, shape index: {}]
  %s19 = inlined_call_operand.vmem [shape: f32[64,32], index: 19, kind: input, shape index: {}]
  %s20 = inlined_call_operand.vmem [shape: f32[1,32], index: 20, kind: input, shape index: {}]
  %s21 = inlined_call_operand.vmem [shape: f32[32,10], index: 21, kind: input, shape index: {}]
  %s22 = inlined_call_operand.vmem [shape: f32[1,10], index: 22, kind: input, shape index: {}]
  %s23 = inlined_call_operand.vmem [shape: f32[2,8,10], index: 23, kind: output, shape index: {}]
  %s24 = sld [smem:[#allocation0]]
  $region125: #{diffusion_forward.21} parent=0
    _
  %s26 = ssub.s32 1, %s24
  %s27 = scalar_select 0, %s26, %s24
  loop: start=0, step=1, limit=4
  $region2: #{diffusion_forward.21} parent=0 // loop_pre_header
    _
  $region3: #{diffusion_forward.21} parent=0 // loop_header
    %s29 = sphi 0, %s33
    %p30 = scmp.ge.s32.totalorder %s29, 4
    %s39 = sphi 0, %s41
    %s42 = sphi 0, %s39
    %s43 = sphi 0, %s42
    %s59 = sphi 0, %s43
    %s65 = sphi 0, %s67
    %s68 = sphi 0, %s65
    %s69 = sphi 0, %s68
    %s85 = sphi 0, %s69
    %s91 = sphi 0, %s93
    %s94 = sphi 0, %s91
    %s95 = sphi 0, %s94
    %s111 = sphi 0, %s95
    %s117 = sphi 0, %s119
    %s120 = sphi 0, %s117
    %s121 = sphi 0, %s120
    %s137 = sphi 0, %s121
    %s143 = sphi 0, %s145
    %s146 = sphi 0, %s143
    %s147 = sphi 0, %s146
    %s163 = sphi 0, %s147
    %s167 = sphi 0, %s167
    %s169 = sphi 0, %s167
    %s170 = sphi 0, %s169
    %s184 = sphi 0, %s170
    %s188 = sphi 0, %s188
    %s190 = sphi 0, %s188
    %s191 = sphi 0, %s190
    %s205 = sphi 0, %s191
    %s209 = sphi 0, %s209
    %s211 = sphi 0, %s209
    %s212 = sphi 0, %s211
    %s226 = sphi 0, %s212
    %s230 = sphi 0, %s230
    %s232 = sphi 0, %s230
    %s233 = sphi 0, %s232
    %s247 = sphi 0, %s233
    %s251 = sphi 0, %s251
    %s253 = sphi 0, %s251
    %s254 = sphi 0, %s253
    %s268 = sphi 0, %s254
    %s272 = sphi 0, %s272
    %s274 = sphi 0, %s272
    %s275 = sphi 0, %s274
    %s289 = sphi 0, %s275
    %s293 = sphi 0, %s293
    %s295 = sphi 0, %s293
    %s296 = sphi 0, %s295
    %s310 = sphi 0, %s296
    %s314 = sphi 0, %s314
    %s316 = sphi 0, %s314
    %s317 = sphi 0, %s316
    %s331 = sphi 0, %s317
    %s335 = sphi 0, %s335
    %s337 = sphi 0, %s335
    %s338 = sphi 0, %s337
    %s352 = sphi 0, %s338
    %s356 = sphi 0, %s356
    %s358 = sphi 0, %s356
    %s359 = sphi 0, %s358
    %s373 = sphi 0, %s359
    %s377 = sphi 0, %s377
    %s379 = sphi 0, %s377
    %s380 = sphi 0, %s379
    %s394 = sphi 0, %s380
    %s398 = sphi 0, %s398
    %s400 = sphi 0, %s398
    %s401 = sphi 0, %s400
    %s415 = sphi 0, %s401
    %s419 = sphi 0, %s419
    %s421 = sphi 0, %s419
    %s422 = sphi 0, %s421
    %s436 = sphi 0, %s422
    %s440 = sphi 0, %s440
    %s442 = sphi 0, %s440
    %s443 = sphi 0, %s442
    %s457 = sphi 0, %s443
    %s461 = sphi 0, %s461
    %s463 = sphi 0, %s461
    %s464 = sphi 0, %s463
    %s478 = sphi 0, %s464
    %s482 = sphi 0, %s482
    %s484 = sphi 0, %s482
    %s485 = sphi 0, %s484
    %s499 = sphi 0, %s485
    %s503 = sphi 0, %s503
    %s505 = sphi 0, %s503
    %s506 = sphi 0, %s505
    %s520 = sphi 0, %s506
    %s524 = sphi 0, %s524
    %s526 = sphi 0, %s524
    %s527 = sphi 0, %s526
    %s541 = sphi 0, %s527
    %s547 = sphi 0, %s549
    %s550 = sphi 0, %s547
    %s551 = sphi 0, %s550
    %s567 = sphi 0, %s551
  $region4: #{diffusion_forward.21} parent=0 // loop_header_branch
    %32 = sbr.rel (%p30) target = $region8
  $region5: #{diffusion_forward.21} parent=0 // loop_body
    %s34 = ssub.s32 %s29, 1
    %s35 = ssub.s32 %s29, 2
    %s36 = sadd.s32 %s29, 1
    %s37 = ssub.s32 %s29, %s36
    %p38 = scmp.eq.s32.totalorder %s37, 0
    %s40 = sadd.s32 %s39, 1
    %s41 = scalar_select %p38, %s39, %s40
    %p44 = pneg %p38
    %p45 = scmp.eq.s32.totalorder %s29, 1
    %p46 = por %p44, %p45
    %p47 = scmp.ne.s32.totalorder %s39, %s42
    %p48 = scmp.eq.s32.totalorder %s29, 0
    %p49 = por %p47, %p48
    %p50 = scmp.ne.s32.totalorder %s39, %s42
    %p51 = scmp.eq.s32.totalorder %s34, 1
    %p52 = por %p50, %p51
    %p53 = scmp.ne.s32.totalorder %s42, %s43
    %p54 = scmp.eq.s32.totalorder %s34, 0
    %p55 = por %p53, %p54
    %p56 = scmp.ne.s32.totalorder %s42, %s43
    %p57 = scmp.eq.s32.totalorder %s35, 1
    %p58 = por %p56, %p57
    %p60 = scmp.ne.s32.totalorder %s43, %s59
    %p61 = scmp.eq.s32.totalorder %s35, 0
    %p62 = por %p60, %p61
    %s63 = ssub.s32 %s29, %s36
    %p64 = scmp.eq.s32.totalorder %s63, 0
    %s66 = sadd.s32 %s65, 1
    %s67 = scalar_select %p64, %s65, %s66
    %p70 = pneg %p64
    %p71 = scmp.eq.s32.totalorder %s29, 1
    %p72 = por %p70, %p71
    %p73 = scmp.ne.s32.totalorder %s65, %s68
    %p74 = scmp.eq.s32.totalorder %s29, 0
    %p75 = por %p73, %p74
    %p76 = scmp.ne.s32.totalorder %s65, %s68
    %p77 = scmp.eq.s32.totalorder %s34, 1
    %p78 = por %p76, %p77
    %p79 = scmp.ne.s32.totalorder %s68, %s69
    %p80 = scmp.eq.s32.totalorder %s34, 0
    %p81 = por %p79, %p80
    %p82 = scmp.ne.s32.totalorder %s68, %s69
    %p83 = scmp.eq.s32.totalorder %s35, 1
    %p84 = por %p82, %p83
    %p86 = scmp.ne.s32.totalorder %s69, %s85
    %p87 = scmp.eq.s32.totalorder %s35, 0
    %p88 = por %p86, %p87
    %s89 = ssub.s32 %s29, %s36
    %p90 = scmp.eq.s32.totalorder %s89, 0
    %s92 = sadd.s32 %s91, 1
    %s93 = scalar_select %p90, %s91, %s92
    %p96 = pneg %p90
    %p97 = scmp.eq.s32.totalorder %s29, 1
    %p98 = por %p96, %p97
    %p99 = scmp.ne.s32.totalorder %s91, %s94
    %p100 = scmp.eq.s32.totalorder %s29, 0
    %p101 = por %p99, %p100
    %p102 = scmp.ne.s32.totalorder %s91, %s94
    %p103 = scmp.eq.s32.totalorder %s34, 1
    %p104 = por %p102, %p103
    %p105 = scmp.ne.s32.totalorder %s94, %s95
    %p106 = scmp.eq.s32.totalorder %s34, 0
    %p107 = por %p105, %p106
    %p108 = scmp.ne.s32.totalorder %s94, %s95
    %p109 = scmp.eq.s32.totalorder %s35, 1
    %p110 = por %p108, %p109
    %p112 = scmp.ne.s32.totalorder %s95, %s111
    %p113 = scmp.eq.s32.totalorder %s35, 0
    %p114 = por %p112, %p113
    %s115 = ssub.s32 %s29, %s36
    %p116 = scmp.eq.s32.totalorder %s115, 0
    %s118 = sadd.s32 %s117, 1
    %s119 = scalar_select %p116, %s117, %s118
    %p122 = pneg %p116
    %p123 = scmp.eq.s32.totalorder %s29, 1
    %p124 = por %p122, %p123
    %p125 = scmp.ne.s32.totalorder %s117, %s120
    %p126 = scmp.eq.s32.totalorder %s29, 0
    %p127 = por %p125, %p126
    %p128 = scmp.ne.s32.totalorder %s117, %s120
    %p129 = scmp.eq.s32.totalorder %s34, 1
    %p130 = por %p128, %p129
    %p131 = scmp.ne.s32.totalorder %s120, %s121
    %p132 = scmp.eq.s32.totalorder %s34, 0
    %p133 = por %p131, %p132
    %p134 = scmp.ne.s32.totalorder %s120, %s121
    %p135 = scmp.eq.s32.totalorder %s35, 1
    %p136 = por %p134, %p135
    %p138 = scmp.ne.s32.totalorder %s121, %s137
    %p139 = scmp.eq.s32.totalorder %s35, 0
    %p140 = por %p138, %p139
    %s141 = ssub.s32 %s29, %s36
    %p142 = scmp.eq.s32.totalorder %s141, 0
    %s144 = sadd.s32 %s143, 1
    %s145 = scalar_select %p142, %s143, %s144
    %p148 = pneg %p142
    %p149 = scmp.eq.s32.totalorder %s29, 1
    %p150 = por %p148, %p149
    %p151 = scmp.ne.s32.totalorder %s143, %s146
    %p152 = scmp.eq.s32.totalorder %s29, 0
    %p153 = por %p151, %p152
    %p154 = scmp.ne.s32.totalorder %s143, %s146
    %p155 = scmp.eq.s32.totalorder %s34, 1
    %p156 = por %p154, %p155
    %p157 = scmp.ne.s32.totalorder %s146, %s147
    %p158 = scmp.eq.s32.totalorder %s34, 0
    %p159 = por %p157, %p158
    %p160 = scmp.ne.s32.totalorder %s146, %s147
    %p161 = scmp.eq.s32.totalorder %s35, 1
    %p162 = por %p160, %p161
    %p164 = scmp.ne.s32.totalorder %s147, %s163
    %p165 = scmp.eq.s32.totalorder %s35, 0
    %p166 = por %p164, %p165
    %s168 = sadd.s32 %s167, 1
    %p171 = scmp.eq.s32.totalorder %s29, 1
    %p172 = scmp.ne.s32.totalorder %s167, %s169
    %p173 = scmp.eq.s32.totalorder %s29, 0
    %p174 = por %p172, %p173
    %p175 = scmp.ne.s32.totalorder %s167, %s169
    %p176 = scmp.eq.s32.totalorder %s34, 1
    %p177 = por %p175, %p176
    %p178 = scmp.ne.s32.totalorder %s169, %s170
    %p179 = scmp.eq.s32.totalorder %s34, 0
    %p180 = por %p178, %p179
    %p181 = scmp.ne.s32.totalorder %s169, %s170
    %p182 = scmp.eq.s32.totalorder %s35, 1
    %p183 = por %p181, %p182
    %p185 = scmp.ne.s32.totalorder %s170, %s184
    %p186 = scmp.eq.s32.totalorder %s35, 0
    %p187 = por %p185, %p186
    %s189 = sadd.s32 %s188, 1
    %p192 = scmp.eq.s32.totalorder %s29, 1
    %p193 = scmp.ne.s32.totalorder %s188, %s190
    %p194 = scmp.eq.s32.totalorder %s29, 0
    %p195 = por %p193, %p194
    %p196 = scmp.ne.s32.totalorder %s188, %s190
    %p197 = scmp.eq.s32.totalorder %s34, 1
    %p198 = por %p196, %p197
    %p199 = scmp.ne.s32.totalorder %s190, %s191
    %p200 = scmp.eq.s32.totalorder %s34, 0
    %p201 = por %p199, %p200
    %p202 = scmp.ne.s32.totalorder %s190, %s191
    %p203 = scmp.eq.s32.totalorder %s35, 1
    %p204 = por %p202, %p203
    %p206 = scmp.ne.s32.totalorder %s191, %s205
    %p207 = scmp.eq.s32.totalorder %s35, 0
    %p208 = por %p206, %p207
    %s210 = sadd.s32 %s209, 1
    %p213 = scmp.eq.s32.totalorder %s29, 1
    %p214 = scmp.ne.s32.totalorder %s209, %s211
    %p215 = scmp.eq.s32.totalorder %s29, 0
    %p216 = por %p214, %p215
    %p217 = scmp.ne.s32.totalorder %s209, %s211
    %p218 = scmp.eq.s32.totalorder %s34, 1
    %p219 = por %p217, %p218
    %p220 = scmp.ne.s32.totalorder %s211, %s212
    %p221 = scmp.eq.s32.totalorder %s34, 0
    %p222 = por %p220, %p221
    %p223 = scmp.ne.s32.totalorder %s211, %s212
    %p224 = scmp.eq.s32.totalorder %s35, 1
    %p225 = por %p223, %p224
    %p227 = scmp.ne.s32.totalorder %s212, %s226
    %p228 = scmp.eq.s32.totalorder %s35, 0
    %p229 = por %p227, %p228
    %s231 = sadd.s32 %s230, 1
    %p234 = scmp.eq.s32.totalorder %s29, 1
    %p235 = scmp.ne.s32.totalorder %s230, %s232
    %p236 = scmp.eq.s32.totalorder %s29, 0
    %p237 = por %p235, %p236
    %p238 = scmp.ne.s32.totalorder %s230, %s232
    %p239 = scmp.eq.s32.totalorder %s34, 1
    %p240 = por %p238, %p239
    %p241 = scmp.ne.s32.totalorder %s232, %s233
    %p242 = scmp.eq.s32.totalorder %s34, 0
    %p243 = por %p241, %p242
    %p244 = scmp.ne.s32.totalorder %s232, %s233
    %p245 = scmp.eq.s32.totalorder %s35, 1
    %p246 = por %p244, %p245
    %p248 = scmp.ne.s32.totalorder %s233, %s247
    %p249 = scmp.eq.s32.totalorder %s35, 0
    %p250 = por %p248, %p249
    %s252 = sadd.s32 %s251, 1
    %p255 = scmp.eq.s32.totalorder %s29, 1
    %p256 = scmp.ne.s32.totalorder %s251, %s253
    %p257 = scmp.eq.s32.totalorder %s29, 0
    %p258 = por %p256, %p257
    %p259 = scmp.ne.s32.totalorder %s251, %s253
    %p260 = scmp.eq.s32.totalorder %s34, 1
    %p261 = por %p259, %p260
    %p262 = scmp.ne.s32.totalorder %s253, %s254
    %p263 = scmp.eq.s32.totalorder %s34, 0
    %p264 = por %p262, %p263
    %p265 = scmp.ne.s32.totalorder %s253, %s254
    %p266 = scmp.eq.s32.totalorder %s35, 1
    %p267 = por %p265, %p266
    %p269 = scmp.ne.s32.totalorder %s254, %s268
    %p270 = scmp.eq.s32.totalorder %s35, 0
    %p271 = por %p269, %p270
    %s273 = sadd.s32 %s272, 1
    %p276 = scmp.eq.s32.totalorder %s29, 1
    %p277 = scmp.ne.s32.totalorder %s272, %s274
    %p278 = scmp.eq.s32.totalorder %s29, 0
    %p279 = por %p277, %p278
    %p280 = scmp.ne.s32.totalorder %s272, %s274
    %p281 = scmp.eq.s32.totalorder %s34, 1
    %p282 = por %p280, %p281
    %p283 = scmp.ne.s32.totalorder %s274, %s275
    %p284 = scmp.eq.s32.totalorder %s34, 0
    %p285 = por %p283, %p284
    %p286 = scmp.ne.s32.totalorder %s274, %s275
    %p287 = scmp.eq.s32.totalorder %s35, 1
    %p288 = por %p286, %p287
    %p290 = scmp.ne.s32.totalorder %s275, %s289
    %p291 = scmp.eq.s32.totalorder %s35, 0
    %p292 = por %p290, %p291
    %s294 = sadd.s32 %s293, 1
    %p297 = scmp.eq.s32.totalorder %s29, 1
    %p298 = scmp.ne.s32.totalorder %s293, %s295
    %p299 = scmp.eq.s32.totalorder %s29, 0
    %p300 = por %p298, %p299
    %p301 = scmp.ne.s32.totalorder %s293, %s295
    %p302 = scmp.eq.s32.totalorder %s34, 1
    %p303 = por %p301, %p302
    %p304 = scmp.ne.s32.totalorder %s295, %s296
    %p305 = scmp.eq.s32.totalorder %s34, 0
    %p306 = por %p304, %p305
    %p307 = scmp.ne.s32.totalorder %s295, %s296
    %p308 = scmp.eq.s32.totalorder %s35, 1
    %p309 = por %p307, %p308
    %p311 = scmp.ne.s32.totalorder %s296, %s310
    %p312 = scmp.eq.s32.totalorder %s35, 0
    %p313 = por %p311, %p312
    %s315 = sadd.s32 %s314, 1
    %p318 = scmp.eq.s32.totalorder %s29, 1
    %p319 = scmp.ne.s32.totalorder %s314, %s316
    %p320 = scmp.eq.s32.totalorder %s29, 0
    %p321 = por %p319, %p320
    %p322 = scmp.ne.s32.totalorder %s314, %s316
    %p323 = scmp.eq.s32.totalorder %s34, 1
    %p324 = por %p322, %p323
    %p325 = scmp.ne.s32.totalorder %s316, %s317
    %p326 = scmp.eq.s32.totalorder %s34, 0
    %p327 = por %p325, %p326
    %p328 = scmp.ne.s32.totalorder %s316, %s317
    %p329 = scmp.eq.s32.totalorder %s35, 1
    %p330 = por %p328, %p329
    %p332 = scmp.ne.s32.totalorder %s317, %s331
    %p333 = scmp.eq.s32.totalorder %s35, 0
    %p334 = por %p332, %p333
    %s336 = sadd.s32 %s335, 1
    %p339 = scmp.eq.s32.totalorder %s29, 1
    %p340 = scmp.ne.s32.totalorder %s335, %s337
    %p341 = scmp.eq.s32.totalorder %s29, 0
    %p342 = por %p340, %p341
    %p343 = scmp.ne.s32.totalorder %s335, %s337
    %p344 = scmp.eq.s32.totalorder %s34, 1
    %p345 = por %p343, %p344
    %p346 = scmp.ne.s32.totalorder %s337, %s338
    %p347 = scmp.eq.s32.totalorder %s34, 0
    %p348 = por %p346, %p347
    %p349 = scmp.ne.s32.totalorder %s337, %s338
    %p350 = scmp.eq.s32.totalorder %s35, 1
    %p351 = por %p349, %p350
    %p353 = scmp.ne.s32.totalorder %s338, %s352
    %p354 = scmp.eq.s32.totalorder %s35, 0
    %p355 = por %p353, %p354
    %s357 = sadd.s32 %s356, 1
    %p360 = scmp.eq.s32.totalorder %s29, 1
    %p361 = scmp.ne.s32.totalorder %s356, %s358
    %p362 = scmp.eq.s32.totalorder %s29, 0
    %p363 = por %p361, %p362
    %p364 = scmp.ne.s32.totalorder %s356, %s358
    %p365 = scmp.eq.s32.totalorder %s34, 1
    %p366 = por %p364, %p365
    %p367 = scmp.ne.s32.totalorder %s358, %s359
    %p368 = scmp.eq.s32.totalorder %s34, 0
    %p369 = por %p367, %p368
    %p370 = scmp.ne.s32.totalorder %s358, %s359
    %p371 = scmp.eq.s32.totalorder %s35, 1
    %p372 = por %p370, %p371
    %p374 = scmp.ne.s32.totalorder %s359, %s373
    %p375 = scmp.eq.s32.totalorder %s35, 0
    %p376 = por %p374, %p375
    %s378 = sadd.s32 %s377, 1
    %p381 = scmp.eq.s32.totalorder %s29, 1
    %p382 = scmp.ne.s32.totalorder %s377, %s379
    %p383 = scmp.eq.s32.totalorder %s29, 0
    %p384 = por %p382, %p383
    %p385 = scmp.ne.s32.totalorder %s377, %s379
    %p386 = scmp.eq.s32.totalorder %s34, 1
    %p387 = por %p385, %p386
    %p388 = scmp.ne.s32.totalorder %s379, %s380
    %p389 = scmp.eq.s32.totalorder %s34, 0
    %p390 = por %p388, %p389
    %p391 = scmp.ne.s32.totalorder %s379, %s380
    %p392 = scmp.eq.s32.totalorder %s35, 1
    %p393 = por %p391, %p392
    %p395 = scmp.ne.s32.totalorder %s380, %s394
    %p396 = scmp.eq.s32.totalorder %s35, 0
    %p397 = por %p395, %p396
    %s399 = sadd.s32 %s398, 1
    %p402 = scmp.eq.s32.totalorder %s29, 1
    %p403 = scmp.ne.s32.totalorder %s398, %s400
    %p404 = scmp.eq.s32.totalorder %s29, 0
    %p405 = por %p403, %p404
    %p406 = scmp.ne.s32.totalorder %s398, %s400
    %p407 = scmp.eq.s32.totalorder %s34, 1
    %p408 = por %p406, %p407
    %p409 = scmp.ne.s32.totalorder %s400, %s401
    %p410 = scmp.eq.s32.totalorder %s34, 0
    %p411 = por %p409, %p410
    %p412 = scmp.ne.s32.totalorder %s400, %s401
    %p413 = scmp.eq.s32.totalorder %s35, 1
    %p414 = por %p412, %p413
    %p416 = scmp.ne.s32.totalorder %s401, %s415
    %p417 = scmp.eq.s32.totalorder %s35, 0
    %p418 = por %p416, %p417
    %s420 = sadd.s32 %s419, 1
    %p423 = scmp.eq.s32.totalorder %s29, 1
    %p424 = scmp.ne.s32.totalorder %s419, %s421
    %p425 = scmp.eq.s32.totalorder %s29, 0
    %p426 = por %p424, %p425
    %p427 = scmp.ne.s32.totalorder %s419, %s421
    %p428 = scmp.eq.s32.totalorder %s34, 1
    %p429 = por %p427, %p428
    %p430 = scmp.ne.s32.totalorder %s421, %s422
    %p431 = scmp.eq.s32.totalorder %s34, 0
    %p432 = por %p430, %p431
    %p433 = scmp.ne.s32.totalorder %s421, %s422
    %p434 = scmp.eq.s32.totalorder %s35, 1
    %p435 = por %p433, %p434
    %p437 = scmp.ne.s32.totalorder %s422, %s436
    %p438 = scmp.eq.s32.totalorder %s35, 0
    %p439 = por %p437, %p438
    %s441 = sadd.s32 %s440, 1
    %p444 = scmp.eq.s32.totalorder %s29, 1
    %p445 = scmp.ne.s32.totalorder %s440, %s442
    %p446 = scmp.eq.s32.totalorder %s29, 0
    %p447 = por %p445, %p446
    %p448 = scmp.ne.s32.totalorder %s440, %s442
    %p449 = scmp.eq.s32.totalorder %s34, 1
    %p450 = por %p448, %p449
    %p451 = scmp.ne.s32.totalorder %s442, %s443
    %p452 = scmp.eq.s32.totalorder %s34, 0
    %p453 = por %p451, %p452
    %p454 = scmp.ne.s32.totalorder %s442, %s443
    %p455 = scmp.eq.s32.totalorder %s35, 1
    %p456 = por %p454, %p455
    %p458 = scmp.ne.s32.totalorder %s443, %s457
    %p459 = scmp.eq.s32.totalorder %s35, 0
    %p460 = por %p458, %p459
    %s462 = sadd.s32 %s461, 1
    %p465 = scmp.eq.s32.totalorder %s29, 1
    %p466 = scmp.ne.s32.totalorder %s461, %s463
    %p467 = scmp.eq.s32.totalorder %s29, 0
    %p468 = por %p466, %p467
    %p469 = scmp.ne.s32.totalorder %s461, %s463
    %p470 = scmp.eq.s32.totalorder %s34, 1
    %p471 = por %p469, %p470
    %p472 = scmp.ne.s32.totalorder %s463, %s464
    %p473 = scmp.eq.s32.totalorder %s34, 0
    %p474 = por %p472, %p473
    %p475 = scmp.ne.s32.totalorder %s463, %s464
    %p476 = scmp.eq.s32.totalorder %s35, 1
    %p477 = por %p475, %p476
    %p479 = scmp.ne.s32.totalorder %s464, %s478
    %p480 = scmp.eq.s32.totalorder %s35, 0
    %p481 = por %p479, %p480
    %s483 = sadd.s32 %s482, 1
    %p486 = scmp.eq.s32.totalorder %s29, 1
    %p487 = scmp.ne.s32.totalorder %s482, %s484
    %p488 = scmp.eq.s32.totalorder %s29, 0
    %p489 = por %p487, %p488
    %p490 = scmp.ne.s32.totalorder %s482, %s484
    %p491 = scmp.eq.s32.totalorder %s34, 1
    %p492 = por %p490, %p491
    %p493 = scmp.ne.s32.totalorder %s484, %s485
    %p494 = scmp.eq.s32.totalorder %s34, 0
    %p495 = por %p493, %p494
    %p496 = scmp.ne.s32.totalorder %s484, %s485
    %p497 = scmp.eq.s32.totalorder %s35, 1
    %p498 = por %p496, %p497
    %p500 = scmp.ne.s32.totalorder %s485, %s499
    %p501 = scmp.eq.s32.totalorder %s35, 0
    %p502 = por %p500, %p501
    %s504 = sadd.s32 %s503, 1
    %p507 = scmp.eq.s32.totalorder %s29, 1
    %p508 = scmp.ne.s32.totalorder %s503, %s505
    %p509 = scmp.eq.s32.totalorder %s29, 0
    %p510 = por %p508, %p509
    %p511 = scmp.ne.s32.totalorder %s503, %s505
    %p512 = scmp.eq.s32.totalorder %s34, 1
    %p513 = por %p511, %p512
    %p514 = scmp.ne.s32.totalorder %s505, %s506
    %p515 = scmp.eq.s32.totalorder %s34, 0
    %p516 = por %p514, %p515
    %p517 = scmp.ne.s32.totalorder %s505, %s506
    %p518 = scmp.eq.s32.totalorder %s35, 1
    %p519 = por %p517, %p518
    %p521 = scmp.ne.s32.totalorder %s506, %s520
    %p522 = scmp.eq.s32.totalorder %s35, 0
    %p523 = por %p521, %p522
    %s525 = sadd.s32 %s524, 1
    %p528 = scmp.eq.s32.totalorder %s29, 1
    %p529 = scmp.ne.s32.totalorder %s524, %s526
    %p530 = scmp.eq.s32.totalorder %s29, 0
    %p531 = por %p529, %p530
    %p532 = scmp.ne.s32.totalorder %s524, %s526
    %p533 = scmp.eq.s32.totalorder %s34, 1
    %p534 = por %p532, %p533
    %p535 = scmp.ne.s32.totalorder %s526, %s527
    %p536 = scmp.eq.s32.totalorder %s34, 0
    %p537 = por %p535, %p536
    %p538 = scmp.ne.s32.totalorder %s526, %s527
    %p539 = scmp.eq.s32.totalorder %s35, 1
    %p540 = por %p538, %p539
    %p542 = scmp.ne.s32.totalorder %s527, %s541
    %p543 = scmp.eq.s32.totalorder %s35, 0
    %p544 = por %p542, %p543
    %s545 = ssub.s32 %s29, %s36
    %p546 = scmp.eq.s32.totalorder %s545, 0
    %s548 = sadd.s32 %s547, 1
    %s549 = scalar_select %p546, %s547, %s548
    %p552 = pneg %p546
    %p553 = scmp.eq.s32.totalorder %s29, 1
    %p554 = por %p552, %p553
    %p555 = scmp.ne.s32.totalorder %s547, %s550
    %p556 = scmp.eq.s32.totalorder %s29, 0
    %p557 = por %p555, %p556
    %p558 = scmp.ne.s32.totalorder %s547, %s550
    %p559 = scmp.eq.s32.totalorder %s34, 1
    %p560 = por %p558, %p559
    %p561 = scmp.ne.s32.totalorder %s550, %s551
    %p562 = scmp.eq.s32.totalorder %s34, 0
    %p563 = por %p561, %p562
    %p564 = scmp.ne.s32.totalorder %s550, %s551
    %p565 = scmp.eq.s32.totalorder %s35, 1
    %p566 = por %p564, %p565
    %p568 = scmp.ne.s32.totalorder %s551, %s567
    %p569 = scmp.eq.s32.totalorder %s35, 0
    %p570 = por %p568, %p569
    %p571 = scmp.le.s32.totalorder 1, %s29
    %p572 = scmp.lt.s32.totalorder %s29, 3
    %p573 = pnand %p571, %p572
    %p574 = pneg %p573
    // Predicated region
    $region9: #{diffusion_forward.21} parent=5 // pred_check
      _
    $region10: #{diffusion_forward.21} parent=5 // pred_check_branch
      %576 = sbr.rel (%p573) target = $region12
    $region11: #{diffusion_forward.21} parent=5 // pred_region
      %s577 = ssub.s32 %s29, 1
      // Predicated region
      $region13: #{diffusion_forward.21} parent=11 // pred_check
        %p578 = pneg %p180
      $region14: #{diffusion_forward.21} parent=11 // pred_check_branch
        %580 = sbr.rel (%p578) target = $region16
      $region15: #{diffusion_forward.21} parent=11 // pred_region
        _
      $region16: #{diffusion_forward.21} parent=11 // pred_fallthru
        _
      // Predicated region
      $region17: #{diffusion_forward.21} parent=11 // pred_check
        %p581 = pneg %p201
      $region18: #{diffusion_forward.21} parent=11 // pred_check_branch
        %583 = sbr.rel (%p581) target = $region20
      $region19: #{diffusion_forward.21} parent=11 // pred_region
        _
      $region20: #{diffusion_forward.21} parent=11 // pred_fallthru
        _
      // Predicated region
      $region21: #{diffusion_forward.21} parent=11 // pred_check
        %p584 = pneg %p222
      $region22: #{diffusion_forward.21} parent=11 // pred_check_branch
        %586 = sbr.rel (%p584) target = $region24
      $region23: #{diffusion_forward.21} parent=11 // pred_region
        _
      $region24: #{diffusion_forward.21} parent=11 // pred_fallthru
        _
      // Predicated region
      $region25: #{diffusion_forward.21} parent=11 // pred_check
        %p587 = pneg %p243
      $region26: #{diffusion_forward.21} parent=11 // pred_check_branch
        %589 = sbr.rel (%p587) target = $region28
      $region27: #{diffusion_forward.21} parent=11 // pred_region
        _
      $region28: #{diffusion_forward.21} parent=11 // pred_fallthru
        _
      // Predicated region
      $region29: #{diffusion_forward.21} parent=11 // pred_check
        %p590 = pneg %p264
      $region30: #{diffusion_forward.21} parent=11 // pred_check_branch
        %592 = sbr.rel (%p590) target = $region32
      $region31: #{diffusion_forward.21} parent=11 // pred_region
        _
      $region32: #{diffusion_forward.21} parent=11 // pred_fallthru
        _
      // Predicated region
      $region33: #{diffusion_forward.21} parent=11 // pred_check
        %p593 = pneg %p285
      $region34: #{diffusion_forward.21} parent=11 // pred_check_branch
        %595 = sbr.rel (%p593) target = $region36
      $region35: #{diffusion_forward.21} parent=11 // pred_region
        _
      $region36: #{diffusion_forward.21} parent=11 // pred_fallthru
        _
      // Predicated region
      $region37: #{diffusion_forward.21} parent=11 // pred_check
        %p596 = pneg %p306
      $region38: #{diffusion_forward.21} parent=11 // pred_check_branch
        %598 = sbr.rel (%p596) target = $region40
      $region39: #{diffusion_forward.21} parent=11 // pred_region
        _
      $region40: #{diffusion_forward.21} parent=11 // pred_fallthru
        _
      // Predicated region
      $region41: #{diffusion_forward.21} parent=11 // pred_check
        %p599 = pneg %p327
      $region42: #{diffusion_forward.21} parent=11 // pred_check_branch
        %601 = sbr.rel (%p599) target = $region44
      $region43: #{diffusion_forward.21} parent=11 // pred_region
        _
      $region44: #{diffusion_forward.21} parent=11 // pred_fallthru
        _
      // Predicated region
      $region45: #{diffusion_forward.21} parent=11 // pred_check
        %p602 = pneg %p348
      $region46: #{diffusion_forward.21} parent=11 // pred_check_branch
        %604 = sbr.rel (%p602) target = $region48
      $region47: #{diffusion_forward.21} parent=11 // pred_region
        _
      $region48: #{diffusion_forward.21} parent=11 // pred_fallthru
        _
      // Predicated region
      $region49: #{diffusion_forward.21} parent=11 // pred_check
        %p605 = pneg %p369
      $region50: #{diffusion_forward.21} parent=11 // pred_check_branch
        %607 = sbr.rel (%p605) target = $region52
      $region51: #{diffusion_forward.21} parent=11 // pred_region
        _
      $region52: #{diffusion_forward.21} parent=11 // pred_fallthru
        _
      // Predicated region
      $region53: #{diffusion_forward.21} parent=11 // pred_check
        %p608 = pneg %p390
      $region54: #{diffusion_forward.21} parent=11 // pred_check_branch
        %610 = sbr.rel (%p608) target = $region56
      $region55: #{diffusion_forward.21} parent=11 // pred_region
        _
      $region56: #{diffusion_forward.21} parent=11 // pred_fallthru
        _
      // Predicated region
      $region57: #{diffusion_forward.21} parent=11 // pred_check
        %p611 = pneg %p411
      $region58: #{diffusion_forward.21} parent=11 // pred_check_branch
        %613 = sbr.rel (%p611) target = $region60
      $region59: #{diffusion_forward.21} parent=11 // pred_region
        _
      $region60: #{diffusion_forward.21} parent=11 // pred_fallthru
        _
      // Predicated region
      $region61: #{diffusion_forward.21} parent=11 // pred_check
        %p614 = pneg %p432
      $region62: #{diffusion_forward.21} parent=11 // pred_check_branch
        %616 = sbr.rel (%p614) target = $region64
      $region63: #{diffusion_forward.21} parent=11 // pred_region
        _
      $region64: #{diffusion_forward.21} parent=11 // pred_fallthru
        _
      // Predicated region
      $region65: #{diffusion_forward.21} parent=11 // pred_check
        %p617 = pneg %p453
      $region66: #{diffusion_forward.21} parent=11 // pred_check_branch
        %619 = sbr.rel (%p617) target = $region68
      $region67: #{diffusion_forward.21} parent=11 // pred_region
        _
      $region68: #{diffusion_forward.21} parent=11 // pred_fallthru
        _
      // Predicated region
      $region69: #{diffusion_forward.21} parent=11 // pred_check
        %p620 = pneg %p474
      $region70: #{diffusion_forward.21} parent=11 // pred_check_branch
        %622 = sbr.rel (%p620) target = $region72
      $region71: #{diffusion_forward.21} parent=11 // pred_region
        _
      $region72: #{diffusion_forward.21} parent=11 // pred_fallthru
        _
      // Predicated region
      $region73: #{diffusion_forward.21} parent=11 // pred_check
        %p623 = pneg %p495
      $region74: #{diffusion_forward.21} parent=11 // pred_check_branch
        %625 = sbr.rel (%p623) target = $region76
      $region75: #{diffusion_forward.21} parent=11 // pred_region
        _
      $region76: #{diffusion_forward.21} parent=11 // pred_fallthru
        _
      // Predicated region
      $region77: #{diffusion_forward.21} parent=11 // pred_check
        %p626 = pneg %p516
      $region78: #{diffusion_forward.21} parent=11 // pred_check_branch
        %628 = sbr.rel (%p626) target = $region80
      $region79: #{diffusion_forward.21} parent=11 // pred_region
        _
      $region80: #{diffusion_forward.21} parent=11 // pred_fallthru
        _
      // Predicated region
      $region81: #{diffusion_forward.21} parent=11 // pred_check
        %p629 = pneg %p537
      $region82: #{diffusion_forward.21} parent=11 // pred_check_branch
        %631 = sbr.rel (%p629) target = $region84
      $region83: #{diffusion_forward.21} parent=11 // pred_region
        _
      $region84: #{diffusion_forward.21} parent=11 // pred_fallthru
        _
    $region12: #{diffusion_forward.21} parent=5 // pred_fallthru
      _
    %p632 = scmp.lt.s32.totalorder %s29, 2
    // Predicated region
    $region85: #{diffusion_forward.21} parent=5 // pred_check
      %p633 = pneg %p632
    $region86: #{diffusion_forward.21} parent=5 // pred_check_branch
      %635 = sbr.rel (%p633) target = $region88
    $region87: #{diffusion_forward.21} parent=5 // pred_region
      // Predicated region
      $region89: #{diffusion_forward.21} parent=87 // pred_check
        %p636 = pneg %p49
      $region90: #{diffusion_forward.21} parent=87 // pred_check_branch
        %638 = sbr.rel (%p636) target = $region92
      $region91: #{diffusion_forward.21} parent=87 // pred_region
        %p639 = scmp.lt.s32.totalorder %s29, 1
        %s640 = scalar_select %p639, %s29, 1
        %s641 = scalar_lea.vmem %s0, %s640
      $region92: #{diffusion_forward.21} parent=87 // pred_fallthru
        _
      // Predicated region
      $region93: #{diffusion_forward.21} parent=87 // pred_check
        %p642 = pneg %p75
      $region94: #{diffusion_forward.21} parent=87 // pred_check_branch
        %644 = sbr.rel (%p642) target = $region96
      $region95: #{diffusion_forward.21} parent=87 // pred_region
        %p645 = scmp.lt.s32.totalorder %s29, 1
        %s646 = scalar_select %p645, %s29, 1
        %s647 = scalar_lea.vmem %s1, %s646
      $region96: #{diffusion_forward.21} parent=87 // pred_fallthru
        _
      // Predicated region
      $region97: #{diffusion_forward.21} parent=87 // pred_check
        %p648 = pneg %p101
      $region98: #{diffusion_forward.21} parent=87 // pred_check_branch
        %650 = sbr.rel (%p648) target = $region100
      $region99: #{diffusion_forward.21} parent=87 // pred_region
        %p651 = scmp.lt.s32.totalorder %s29, 1
        %s652 = scalar_select %p651, %s29, 1
        %s653 = smul.addr %s652, 8
        %s654 = scalar_lea.vmem %s2, %s653
      $region100: #{diffusion_forward.21} parent=87 // pred_fallthru
        _
      // Predicated region
      $region101: #{diffusion_forward.21} parent=87 // pred_check
        %p655 = pneg %p127
      $region102: #{diffusion_forward.21} parent=87 // pred_check_branch
        %657 = sbr.rel (%p655) target = $region104
      $region103: #{diffusion_forward.21} parent=87 // pred_region
        %p658 = scmp.lt.s32.totalorder %s29, 1
        %s659 = scalar_select %p658, %s29, 1
        %s660 = smul.addr %s659, 8
        %s661 = scalar_lea.vmem %s3, %s660
      $region104: #{diffusion_forward.21} parent=87 // pred_fallthru
        _
      // Predicated region
      $region105: #{diffusion_forward.21} parent=87 // pred_check
        %p662 = pneg %p153
      $region106: #{diffusion_forward.21} parent=87 // pred_check_branch
        %664 = sbr.rel (%p662) target = $region108
      $region107: #{diffusion_forward.21} parent=87 // pred_region
        %p665 = scmp.lt.s32.totalorder %s29, 1
        %s666 = scalar_select %p665, %s29, 1
        %s667 = smul.addr %s666, 8
        %s668 = scalar_lea.vmem %s4, %s667
      $region108: #{diffusion_forward.21} parent=87 // pred_fallthru
        _
    $region88: #{diffusion_forward.21} parent=5 // pred_fallthru
      _
    %p669 = scmp.le.s32.totalorder 1, %s29
    %p670 = scmp.lt.s32.totalorder %s29, 3
    %p671 = pnand %p669, %p670
    %p672 = pneg %p671
    // Predicated region
    $region109: #{diffusion_forward.21} parent=5 // pred_check
      _
    $region110: #{diffusion_forward.21} parent=5 // pred_check_branch
      %674 = sbr.rel (%p671) target = $region112
    $region111: #{diffusion_forward.21} parent=5 // pred_region
      %s675 = ssub.s32 %s29, 1
      %p676 = scmp.lt.s32.totalorder %s34, 1
      %s677 = scalar_select %p676, %s34, 1
      %s678 = scalar_lea.vmem %s0, %s677
      %p679 = pneg %p55
      %p680 = pneg %p52
      %p681 = scmp.lt.s32.totalorder %s34, 1
      %s682 = scalar_select %p681, %s34, 1
      %s683 = scalar_lea.vmem %s1, %s682
      %p684 = pneg %p81
      %p685 = pneg %p78
      %p686 = scmp.lt.s32.totalorder %s34, 1
      %s687 = scalar_select %p686, %s34, 1
      %s688 = smul.addr %s687, 8
      %s689 = scalar_lea.vmem %s2, %s688
      %p690 = pneg %p107
      %p691 = pneg %p104
      %p692 = scmp.lt.s32.totalorder %s34, 1
      %s693 = scalar_select %p692, %s34, 1
      %s694 = smul.addr %s693, 8
      %s695 = scalar_lea.vmem %s3, %s694
      %p696 = pneg %p133
      %p697 = pneg %p130
      %p698 = scmp.lt.s32.totalorder %s34, 1
      %s699 = scalar_select %p698, %s34, 1
      %s700 = smul.addr %s699, 8
      %s701 = scalar_lea.vmem %s4, %s700
      %p702 = pneg %p159
      %p703 = pneg %p156
      %p704 = pneg %p180
      %p705 = pneg %p177
      %p706 = pneg %p201
      %p707 = pneg %p198
      %p708 = pneg %p222
      %p709 = pneg %p219
      %p710 = pneg %p243
      %p711 = pneg %p240
      %p712 = pneg %p264
      %p713 = pneg %p261
      %p714 = pneg %p285
      %p715 = pneg %p282
      %p716 = pneg %p306
      %p717 = pneg %p303
      %p718 = pneg %p327
      %p719 = pneg %p324
      %p720 = pneg %p348
      %p721 = pneg %p345
      %p722 = pneg %p369
      %p723 = pneg %p366
      %p724 = pneg %p390
      %p725 = pneg %p387
      %p726 = pneg %p411
      %p727 = pneg %p408
      %p728 = pneg %p432
      %p729 = pneg %p429
      %p730 = pneg %p453
      %p731 = pneg %p450
      %p732 = pneg %p474
      %p733 = pneg %p471
      %p734 = pneg %p495
      %p735 = pneg %p492
      %p736 = pneg %p516
      %p737 = pneg %p513
      %p738 = pneg %p537
      %p739 = pneg %p534
      %p740 = pneg %p563
      %p741 = pneg %p560
      %p742 = scmp.lt.s32.totalorder %s34, 1
      %s743 = scalar_select %p742, %s34, 1
      %s744 = smul.addr %s743, 8
      %s745 = scalar_lea.vmem %s23, %s744
      %p746 = scmp.lt.s32.totalorder %s34, 1
      %s747 = scalar_select %p746, %s34, 1
      %s748 = scalar_lea.vmem %s0, %s747
      %p749 = scmp.lt.s32.totalorder %s34, 1
      %s750 = scalar_select %p749, %s34, 1
      %s751 = scalar_lea.vmem %s1, %s750
      %p752 = scmp.lt.s32.totalorder %s34, 1
      %s753 = scalar_select %p752, %s34, 1
      %s754 = smul.addr %s753, 8
      %s755 = scalar_lea.vmem %s2, %s754
      %p756 = scmp.lt.s32.totalorder %s34, 1
      %s757 = scalar_select %p756, %s34, 1
      %s758 = smul.addr %s757, 8
      %s759 = scalar_lea.vmem %s3, %s758
      %p760 = scmp.lt.s32.totalorder %s34, 1
      %s761 = scalar_select %p760, %s34, 1
      %s762 = smul.addr %s761, 8
      %s763 = scalar_lea.vmem %s4, %s762
      %p764 = scmp.lt.s32.totalorder %s34, 1
      %s765 = scalar_select %p764, %s34, 1
      %s766 = smul.addr %s765, 8
      %s767 = scalar_lea.vmem %s23, %s766
      %v768 = vld [vmem:[%s748] sm:$0x1]
      %v769 = vld [vmem:[%s755] sm:$0xff]
      %v771 = vperm.slane %v768, 0
      %772 = vset.pattern.permute.xlu0 0
      %773 = vperm.xlu0 %772, %v771
      %v774 = vpop.permute.xlu0 %773
      %v776 = vmul.f32 %v774, %v769
      %v777 = vld [vmem:[%s751] sm:$0x1]
      %v778 = vld [vmem:[%s759] sm:$0xff]
      %v780 = vperm.slane %v777, 0
      %781 = vset.pattern.permute.xlu0 0
      %782 = vperm.xlu0 %781, %v780
      %v783 = vpop.permute.xlu0 %782
      %v785 = vmul.f32 %v783, %v778
      %v786 = vadd.f32 %v776, %v785
      %v787 = vld [vmem:[%s763] sm:$0xff]
      %v788 = vld [vmem:[%s5] sm:$0x1]
      %v789 = vld [vmem:[%s6] sm:$0xff]
      %v790 = vld [vmem:[%s7] sm:$0xff]
      %v792 = vperm.slane %v788, 0
      %v794 = vld [vmem:[%s8] sm:$0xff]
      %v795 = vld [vmem:[%s8 + $0x8] sm:$0x3]
      %v796 = vld [vmem:[%s9] sm:$0xff]
      %v797 = vld [vmem:[%s9 + $0x8] sm:$0xff]
      %v798 = vld [vmem:[%s9 + $0x10] sm:$0xff]
      %v799 = vld [vmem:[%s9 + $0x18] sm:$0xff]
      %v800 = vld [vmem:[%s9 + $0x20] sm:$0xff]
      %v801 = vld [vmem:[%s9 + $0x28] sm:$0xff]
      %v802 = vld [vmem:[%s9 + $0x30] sm:$0xff]
      %v803 = vld [vmem:[%s9 + $0x38] sm:$0xff]
      %v804 = vld [vmem:[%s9 + $0x40] sm:$0xff]
      %v805 = vld [vmem:[%s9 + $0x48] sm:$0xff]
      %v806 = vld [vmem:[%s9 + $0x50] sm:$0xff]
      %v807 = vld [vmem:[%s9 + $0x58] sm:$0xff]
      %v808 = vld [vmem:[%s9 + $0x60] sm:$0xff]
      %v809 = vld [vmem:[%s9 + $0x68] sm:$0xff]
      %v810 = vld [vmem:[%s9 + $0x70] sm:$0xff]
      %v811 = vld [vmem:[%s9 + $0x78] sm:$0xff]
      %812 = vmatpush.msra.mxu0 %v811
      %813 = vmatpush.msra.mxu0 %v810
      %814 = vmatpush.msra.mxu0 %v809
      %815 = vmatpush.msra.mxu0 %v808
      %816 = vmatpush.msra.mxu0 %v807
      %817 = vmatpush.msra.mxu0 %v806
      %818 = vmatpush.msra.mxu0 %v805
      %819 = vmatpush.msra.mxu0 %v804
      %820 = vmatpush.msra.mxu0 %v803
      %821 = vmatpush.msra.mxu0 %v802
      %822 = vmatpush.msra.mxu0 %v801
      %823 = vmatpush.msra.mxu0 %v800
      %824 = vmatpush.msra.mxu0 %v799
      %825 = vmatpush.msra.mxu0 %v798
      %826 = vmatpush.msra.mxu0 %v797
      %827 = vmatpush.msra.mxu0 %v796
      %828 = vmatmul.f32.gmra.mxu0 %v792
      %v829 = vpop.f32.mrf.mxu0
      %v830 = vadd.f32 0.0, %v829
      %831 = vdwg.mxu0
      %vm832 = vcmask 80896
      %v834 = vsel %vm832, %v786, 0
      %vm836 = vcmask 1041408
      %v838 = vsel %vm836, %v795, 0
      %840 = vmatpush.msra.mxu0 0.0
      %841 = vmatpush.msra.mxu0 0.0
      %842 = vmatpush.msra.mxu0 0.0
      %843 = vmatpush.msra.mxu0 0.0
      %844 = vmatpush.msra.mxu0 0.0
      %845 = vmatpush.msra.mxu0 0.0
      %846 = vmatpush.msra.mxu0 0.0
      %847 = vmatpush.msra.mxu0 0.0
      %848 = vmatpush.msra.mxu0 0.0
      %849 = vmatpush.msra.mxu0 0.0
      %850 = vmatpush.msra.mxu0 0.0
      %851 = vmatpush.msra.mxu0 0.0
      %852 = vmatpush.msra.mxu0 0.0
      %853 = vmatpush.msra.mxu0 0.0
      %854 = vmatpush.msra.mxu0 %v838
      %855 = vmatpush.msra.mxu0 %v794
      %856 = vmatmul.f32.gmra.mxu0 %v834
      %v857 = vpop.f32.mrf.mxu0
      %v858 = vadd.f32 %v830, %v857
      %859 = vdwg.mxu0
      %v860 = vld [vmem:[%s10] sm:$0x1]
      %v862 = vperm.slane %v860, 0
      %v864 = vadd.f32 %v858, %v862
      %v865 = vld [vmem:[%s11] sm:$0xff]
      %v866 = vld [vmem:[%s11 + $0x8] sm:$0xff]
      %v867 = vld [vmem:[%s11 + $0x10] sm:$0xff]
      %v868 = vld [vmem:[%s11 + $0x18] sm:$0xff]
      %v869 = vld [vmem:[%s11 + $0x20] sm:$0xff]
      %v870 = vld [vmem:[%s11 + $0x28] sm:$0xff]
      %v871 = vld [vmem:[%s11 + $0x30] sm:$0xff]
      %v872 = vld [vmem:[%s11 + $0x38] sm:$0xff]
      %v873 = vld [vmem:[%s12] sm:$0x1]
      %v875 = vperm.slane %v873, 0
      %vm877 = vcmask 523264
      %v879 = vsel %vm877, %v787, 0
      %881 = vmatpush.msra.mxu0 0.0
      %882 = vmatpush.msra.mxu0 0.0
      %883 = vmatpush.msra.mxu0 0.0
      %884 = vmatpush.msra.mxu0 0.0
      %885 = vmatpush.msra.mxu0 0.0
      %886 = vmatpush.msra.mxu0 0.0
      %887 = vmatpush.msra.mxu0 0.0
      %888 = vmatpush.msra.mxu0 0.0
      %889 = vmatpush.msra.mxu0 %v872
      %890 = vmatpush.msra.mxu0 %v871
      %891 = vmatpush.msra.mxu0 %v870
      %892 = vmatpush.msra.mxu0 %v869
      %893 = vmatpush.msra.mxu0 %v868
      %894 = vmatpush.msra.mxu0 %v867
      %895 = vmatpush.msra.mxu0 %v866
      %896 = vmatpush.msra.mxu0 %v865
      %897 = vmatmul.f32.gmra.mxu0 %v879
      %v898 = vpop.f32.mrf.mxu0
      %v899 = vadd.f32 %v875, %v898
      %900 = vdwg.mxu0
      %v901 = vld [vmem:[%s13] sm:$0xff]
      %v902 = vld [vmem:[%s13 + $0x8] sm:$0xff]
      %v903 = vld [vmem:[%s13 + $0x10] sm:$0xff]
      %v904 = vld [vmem:[%s13 + $0x18] sm:$0xff]
      %v905 = vld [vmem:[%s13 + $0x20] sm:$0xff]
      %v906 = vld [vmem:[%s13 + $0x28] sm:$0xff]
      %v907 = vld [vmem:[%s13 + $0x30] sm:$0xff]
      %v908 = vld [vmem:[%s13 + $0x38] sm:$0xff]
      %v909 = vld [vmem:[%s14] sm:$0x1]
      %v911 = vperm.slane %v909, 0
      %v914 = vsel %vm877, %v864, 0
      %916 = vmatpush.msra.mxu0 0.0
      %917 = vmatpush.msra.mxu0 0.0
      %918 = vmatpush.msra.mxu0 0.0
      %919 = vmatpush.msra.mxu0 0.0
      %920 = vmatpush.msra.mxu0 0.0
      %921 = vmatpush.msra.mxu0 0.0
      %922 = vmatpush.msra.mxu0 0.0
      %923 = vmatpush.msra.mxu0 0.0
      %924 = vmatpush.msra.mxu0 %v908
      %925 = vmatpush.msra.mxu0 %v907
      %926 = vmatpush.msra.mxu0 %v906
      %927 = vmatpush.msra.mxu0 %v905
      %928 = vmatpush.msra.mxu0 %v904
      %929 = vmatpush.msra.mxu0 %v903
      %930 = vmatpush.msra.mxu0 %v902
      %931 = vmatpush.msra.mxu0 %v901
      %932 = vmatmul.f32.gmra.mxu0 %v914
      %v933 = vpop.f32.mrf.mxu0
      %v934 = vadd.f32 %v911, %v933
      %935 = vdwg.mxu0
      %937 = vrot.lane.b32.xlu0 %v899, 120
      %v938 = vpop.permute.xlu0 %937
      %940 = vrot.lane.b32.xlu0 %v899, 8
      %v941 = vpop.permute.xlu0 %940
      %vm943 = vcmask 64512
      %v944 = vsel %vm943, %v938, %v941
      %v945 = vmul.f32 %v899, %v789
      %v946 = vmul.f32 %v944, %v790
      %v947 = vadd.f32 %v945, %v946
      %vm948 = vcmask 130048
      %v950 = vsel %vm948, %v947, 0
      %v953 = vsel %vm948, %v934, 0
      %955 = vmatpush.xpose.msra.mxu0 0.0
      %956 = vmatpush.xpose.msra.mxu0 0.0
      %957 = vmatpush.xpose.msra.mxu0 0.0
      %958 = vmatpush.xpose.msra.mxu0 0.0
      %959 = vmatpush.xpose.msra.mxu0 0.0
      %960 = vmatpush.xpose.msra.mxu0 0.0
      %961 = vmatpush.xpose.msra.mxu0 0.0
      %962 = vmatpush.xpose.msra.mxu0 0.0
      %963 = vmatpush.xpose.msra.mxu0 0.0
      %964 = vmatpush.xpose.msra.mxu0 0.0
      %965 = vmatpush.xpose.msra.mxu0 0.0
      %966 = vmatpush.xpose.msra.mxu0 0.0
      %967 = vmatpush.xpose.msra.mxu0 0.0
      %968 = vmatpush.xpose.msra.mxu0 0.0
      %969 = vmatpush.xpose.msra.mxu0 0.0
      %970 = vmatpush.xpose.msra.mxu0 %v953
      %971 = vmatmul.f32.gmra.mxu0 %v950
      %v972 = vpop.f32.mrf.mxu0
      %v973 = vadd.f32 0.0, %v972
      %974 = vdwg.mxu0
      %v975 = vmul.f32 %v973, 0.25
      %v976 = vsel %vm943, %v975, -inf
      %977 = vmax.xlane.f32.xlu0 %v976
      %v978 = vpop.xlane.xlu0 %977
      %v979 = vsub.f32 %v975, %v978
      %v980 = vmul.f32 %v979, 1.442695
      %v981 = vpow.pop %v980
      %v982 = vsel %vm943, %v981, 0.0
      %983 = vadd.xlane.f32.xlu0 %v982
      %v984 = vpop.xlane.xlu0 %983
      %v985 = vrcp.pop %v984
      %v986 = vmul.f32 %v981, %v985
      %v988 = vsel %vm943, %v986, 0
      %990 = vmatpush.msra.mxu0 0.0
      %991 = vmatpush.msra.mxu0 0.0
      %992 = vmatpush.msra.mxu0 0.0
      %993 = vmatpush.msra.mxu0 0.0
      %994 = vmatpush.msra.mxu0 0.0
      %995 = vmatpush.msra.mxu0 0.0
      %996 = vmatpush.msra.mxu0 0.0
      %997 = vmatpush.msra.mxu0 0.0
      %998 = vmatpush.msra.mxu0 0.0
      %999 = vmatpush.msra.mxu0 0.0
      %1000 = vmatpush.msra.mxu0 0.0
      %1001 = vmatpush.msra.mxu0 0.0
      %1002 = vmatpush.msra.mxu0 0.0
      %1003 = vmatpush.msra.mxu0 0.0
      %1004 = vmatpush.msra.mxu0 0.0
      %1005 = vmatpush.msra.mxu0 %v934
      %1006 = vmatmul.f32.gmra.mxu0 %v988
      %v1007 = vpop.f32.mrf.mxu0
      %v1008 = vadd.f32 0.0, %v1007
      %1009 = vdwg.mxu0
      %1010 = vrot.lane.b32.xlu0 %v899, 104
      %v1011 = vpop.permute.xlu0 %1010
      %v1013 = vsel %vm943, %v1011, %v938
      %1015 = vrot.lane.b32.xlu0 %v789, 16
      %v1016 = vpop.permute.xlu0 %1015
      %v1018 = vmul.f32 %v899, %v1016
      %v1019 = vmul.f32 %v1013, %v790
      %1021 = vrot.lane.b32.xlu0 %v1019, 16
      %v1022 = vpop.permute.xlu0 %1021
      %v1024 = vadd.f32 %v1018, %v1022
      %1026 = vrot.lane.b32.xlu0 %v1024, 112
      %v1027 = vpop.permute.xlu0 %1026
      %1028 = vrot.lane.b32.xlu0 %v934, 112
      %v1029 = vpop.permute.xlu0 %1028
      %v1030 = vsel %vm948, %v1027, 0
      %v1032 = vsel %vm948, %v1029, 0
      %1034 = vmatpush.xpose.msra.mxu0 0.0
      %1035 = vmatpush.xpose.msra.mxu0 0.0
      %1036 = vmatpush.xpose.msra.mxu0 0.0
      %1037 = vmatpush.xpose.msra.mxu0 0.0
      %1038 = vmatpush.xpose.msra.mxu0 0.0
      %1039 = vmatpush.xpose.msra.mxu0 0.0
      %1040 = vmatpush.xpose.msra.mxu0 0.0
      %1041 = vmatpush.xpose.msra.mxu0 0.0
      %1042 = vmatpush.xpose.msra.mxu0 0.0
      %1043 = vmatpush.xpose.msra.mxu0 0.0
      %1044 = vmatpush.xpose.msra.mxu0 0.0
      %1045 = vmatpush.xpose.msra.mxu0 0.0
      %1046 = vmatpush.xpose.msra.mxu0 0.0
      %1047 = vmatpush.xpose.msra.mxu0 0.0
      %1048 = vmatpush.xpose.msra.mxu0 0.0
      %1049 = vmatpush.xpose.msra.mxu0 %v1032
      %1050 = vmatmul.f32.gmra.mxu0 %v1030
      %v1051 = vpop.f32.mrf.mxu0
      %v1052 = vadd.f32 0.0, %v1051
      %1053 = vdwg.mxu0
      %v1054 = vmul.f32 %v1052, 0.25
      %v1055 = vsel %vm943, %v1054, -inf
      %1056 = vmax.xlane.f32.xlu0 %v1055
      %v1057 = vpop.xlane.xlu0 %1056
      %v1058 = vsub.f32 %v1054, %v1057
      %v1059 = vmul.f32 %v1058, 1.442695
      %v1060 = vpow.pop %v1059
      %v1061 = vsel %vm943, %v1060, 0.0
      %1062 = vadd.xlane.f32.xlu0 %v1061
      %v1063 = vpop.xlane.xlu0 %1062
      %v1064 = vrcp.pop %v1063
      %v1065 = vmul.f32 %v1060, %v1064
      %v1068 = vsel %vm943, %v1065, 0
      %1070 = vmatpush.msra.mxu0 0.0
      %1071 = vmatpush.msra.mxu0 0.0
      %1072 = vmatpush.msra.mxu0 0.0
      %1073 = vmatpush.msra.mxu0 0.0
      %1074 = vmatpush.msra.mxu0 0.0
      %1075 = vmatpush.msra.mxu0 0.0
      %1076 = vmatpush.msra.mxu0 0.0
      %1077 = vmatpush.msra.mxu0 0.0
      %1078 = vmatpush.msra.mxu0 0.0
      %1079 = vmatpush.msra.mxu0 0.0
      %1080 = vmatpush.msra.mxu0 0.0
      %1081 = vmatpush.msra.mxu0 0.0
      %1082 = vmatpush.msra.mxu0 0.0
      %1083 = vmatpush.msra.mxu0 0.0
      %1084 = vmatpush.msra.mxu0 0.0
      %1085 = vmatpush.msra.mxu0 %v1029
      %1086 = vmatmul.f32.gmra.mxu0 %v1068
      %v1087 = vpop.f32.mrf.mxu0
      %v1088 = vadd.f32 0.0, %v1087
      %1089 = vdwg.mxu0
      %1090 = vrot.lane.b32.xlu0 %v899, 88
      %v1091 = vpop.permute.xlu0 %1090
      %v1093 = vsel %vm943, %v1091, %v1011
      %1094 = vrot.lane.b32.xlu0 %v789, 32
      %v1095 = vpop.permute.xlu0 %1094
      %v1097 = vmul.f32 %v899, %v1095
      %v1098 = vmul.f32 %v1093, %v790
      %1100 = vrot.lane.b32.xlu0 %v1098, 32
      %v1101 = vpop.permute.xlu0 %1100
      %v1103 = vadd.f32 %v1097, %v1101
      %1105 = vrot.lane.b32.xlu0 %v1103, 96
      %v1106 = vpop.permute.xlu0 %1105
      %1107 = vrot.lane.b32.xlu0 %v934, 96
      %v1108 = vpop.permute.xlu0 %1107
      %v1109 = vsel %vm948, %v1106, 0
      %v1111 = vsel %vm948, %v1108, 0
      %1113 = vmatpush.xpose.msra.mxu0 0.0
      %1114 = vmatpush.xpose.msra.mxu0 0.0
      %1115 = vmatpush.xpose.msra.mxu0 0.0
      %1116 = vmatpush.xpose.msra.mxu0 0.0
      %1117 = vmatpush.xpose.msra.mxu0 0.0
      %1118 = vmatpush.xpose.msra.mxu0 0.0
      %1119 = vmatpush.xpose.msra.mxu0 0.0
      %1120 = vmatpush.xpose.msra.mxu0 0.0
      %1121 = vmatpush.xpose.msra.mxu0 0.0
      %1122 = vmatpush.xpose.msra.mxu0 0.0
      %1123 = vmatpush.xpose.msra.mxu0 0.0
      %1124 = vmatpush.xpose.msra.mxu0 0.0
      %1125 = vmatpush.xpose.msra.mxu0 0.0
      %1126 = vmatpush.xpose.msra.mxu0 0.0
      %1127 = vmatpush.xpose.msra.mxu0 0.0
      %1128 = vmatpush.xpose.msra.mxu0 %v1111
      %1129 = vmatmul.f32.gmra.mxu0 %v1109
      %v1130 = vpop.f32.mrf.mxu0
      %v1131 = vadd.f32 0.0, %v1130
      %1132 = vdwg.mxu0
      %v1133 = vmul.f32 %v1131, 0.25
      %v1134 = vsel %vm943, %v1133, -inf
      %1135 = vmax.xlane.f32.xlu0 %v1134
      %v1136 = vpop.xlane.xlu0 %1135
      %v1137 = vsub.f32 %v1133, %v1136
      %v1138 = vmul.f32 %v1137, 1.442695
      %v1139 = vpow.pop %v1138
      %v1140 = vsel %vm943, %v1139, 0.0
      %1141 = vadd.xlane.f32.xlu0 %v1140
      %v1142 = vpop.xlane.xlu0 %1141
      %v1143 = vrcp.pop %v1142
      %v1144 = vmul.f32 %v1139, %v1143
      %v1147 = vsel %vm943, %v1144, 0
      %1149 = vmatpush.msra.mxu0 0.0
      %1150 = vmatpush.msra.mxu0 0.0
      %1151 = vmatpush.msra.mxu0 0.0
      %1152 = vmatpush.msra.mxu0 0.0
      %1153 = vmatpush.msra.mxu0 0.0
      %1154 = vmatpush.msra.mxu0 0.0
      %1155 = vmatpush.msra.mxu0 0.0
      %1156 = vmatpush.msra.mxu0 0.0
      %1157 = vmatpush.msra.mxu0 0.0
      %1158 = vmatpush.msra.mxu0 0.0
      %1159 = vmatpush.msra.mxu0 0.0
      %1160 = vmatpush.msra.mxu0 0.0
      %1161 = vmatpush.msra.mxu0 0.0
      %1162 = vmatpush.msra.mxu0 0.0
      %1163 = vmatpush.msra.mxu0 0.0
      %1164 = vmatpush.msra.mxu0 %v1108
      %1165 = vmatmul.f32.gmra.mxu0 %v1147
      %v1166 = vpop.f32.mrf.mxu0
      %v1167 = vadd.f32 0.0, %v1166
      %1168 = vdwg.mxu0
      %1169 = vrot.lane.b32.xlu0 %v899, 72
      %v1170 = vpop.permute.xlu0 %1169
      %v1172 = vsel %vm943, %v1170, %v1091
      %1173 = vrot.lane.b32.xlu0 %v789, 48
      %v1174 = vpop.permute.xlu0 %1173
      %v1176 = vmul.f32 %v899, %v1174
      %v1177 = vmul.f32 %v1172, %v790
      %1179 = vrot.lane.b32.xlu0 %v1177, 48
      %v1180 = vpop.permute.xlu0 %1179
      %v1182 = vadd.f32 %v1176, %v1180
      %1184 = vrot.lane.b32.xlu0 %v1182, 80
      %v1185 = vpop.permute.xlu0 %1184
      %1186 = vrot.lane.b32.xlu0 %v934, 80
      %v1187 = vpop.permute.xlu0 %1186
      %v1188 = vsel %vm948, %v1185, 0
      %v1190 = vsel %vm948, %v1187, 0
      %1192 = vmatpush.xpose.msra.mxu0 0.0
      %1193 = vmatpush.xpose.msra.mxu0 0.0
      %1194 = vmatpush.xpose.msra.mxu0 0.0
      %1195 = vmatpush.xpose.msra.mxu0 0.0
      %1196 = vmatpush.xpose.msra.mxu0 0.0
      %1197 = vmatpush.xpose.msra.mxu0 0.0
      %1198 = vmatpush.xpose.msra.mxu0 0.0
      %1199 = vmatpush.xpose.msra.mxu0 0.0
      %1200 = vmatpush.xpose.msra.mxu0 0.0
      %1201 = vmatpush.xpose.msra.mxu0 0.0
      %1202 = vmatpush.xpose.msra.mxu0 0.0
      %1203 = vmatpush.xpose.msra.mxu0 0.0
      %1204 = vmatpush.xpose.msra.mxu0 0.0
      %1205 = vmatpush.xpose.msra.mxu0 0.0
      %1206 = vmatpush.xpose.msra.mxu0 0.0
      %1207 = vmatpush.xpose.msra.mxu0 %v1190
      %1208 = vmatmul.f32.gmra.mxu0 %v1188
      %v1209 = vpop.f32.mrf.mxu0
      %v1210 = vadd.f32 0.0, %v1209
      %1211 = vdwg.mxu0
      %v1212 = vmul.f32 %v1210, 0.25
      %v1213 = vsel %vm943, %v1212, -inf
      %1214 = vmax.xlane.f32.xlu0 %v1213
      %v1215 = vpop.xlane.xlu0 %1214
      %v1216 = vsub.f32 %v1212, %v1215
      %v1217 = vmul.f32 %v1216, 1.442695
      %v1218 = vpow.pop %v1217
      %v1219 = vsel %vm943, %v1218, 0.0
      %1220 = vadd.xlane.f32.xlu0 %v1219
      %v1221 = vpop.xlane.xlu0 %1220
      %v1222 = vrcp.pop %v1221
      %v1223 = vmul.f32 %v1218, %v1222
      %v1226 = vsel %vm943, %v1223, 0
      %1228 = vmatpush.msra.mxu0 0.0
      %1229 = vmatpush.msra.mxu0 0.0
      %1230 = vmatpush.msra.mxu0 0.0
      %1231 = vmatpush.msra.mxu0 0.0
      %1232 = vmatpush.msra.mxu0 0.0
      %1233 = vmatpush.msra.mxu0 0.0
      %1234 = vmatpush.msra.mxu0 0.0
      %1235 = vmatpush.msra.mxu0 0.0
      %1236 = vmatpush.msra.mxu0 0.0
      %1237 = vmatpush.msra.mxu0 0.0
      %1238 = vmatpush.msra.mxu0 0.0
      %1239 = vmatpush.msra.mxu0 0.0
      %1240 = vmatpush.msra.mxu0 0.0
      %1241 = vmatpush.msra.mxu0 0.0
      %1242 = vmatpush.msra.mxu0 0.0
      %1243 = vmatpush.msra.mxu0 %v1187
      %1244 = vmatmul.f32.gmra.mxu0 %v1226
      %v1245 = vpop.f32.mrf.mxu0
      %v1246 = vadd.f32 0.0, %v1245
      %1247 = vdwg.mxu0
      %1249 = vrot.lane.b32.xlu0 %v1088, 16
      %v1250 = vpop.permute.xlu0 %1249
      %1253 = vrot.lane.b32.xlu0 %v1167, 32
      %v1254 = vpop.permute.xlu0 %1253
      %1257 = vrot.lane.b32.xlu0 %v1246, 48
      %v1258 = vpop.permute.xlu0 %1257
      %v1260 = vsel %vm948, %v1008, %v1250
      %vm1261 = vcmask 261120
      %v1262 = vsel %vm1261, %v1260, %v1254
      %vm1263 = vcmask 392192
      %v1264 = vsel %vm1263, %v1262, %v1258
      %v1265 = vld [vmem:[%s15] sm:$0xff]
      %v1266 = vld [vmem:[%s15 + $0x8] sm:$0xff]
      %v1267 = vld [vmem:[%s15 + $0x10] sm:$0xff]
      %v1268 = vld [vmem:[%s15 + $0x18] sm:$0xff]
      %v1269 = vld [vmem:[%s15 + $0x20] sm:$0xff]
      %v1270 = vld [vmem:[%s15 + $0x28] sm:$0xff]
      %v1271 = vld [vmem:[%s15 + $0x30] sm:$0xff]
      %v1272 = vld [vmem:[%s15 + $0x38] sm:$0xff]
      %v1273 = vld [vmem:[%s16] sm:$0x1]
      %v1275 = vperm.slane %v1273, 0
      %v1278 = vsel %vm877, %v1264, 0
      %1280 = vmatpush.msra.mxu0 0.0
      %1281 = vmatpush.msra.mxu0 0.0
      %1282 = vmatpush.msra.mxu0 0.0
      %1283 = vmatpush.msra.mxu0 0.0
      %1284 = vmatpush.msra.mxu0 0.0
      %1285 = vmatpush.msra.mxu0 0.0
      %1286 = vmatpush.msra.mxu0 0.0
      %1287 = vmatpush.msra.mxu0 0.0
      %1288 = vmatpush.msra.mxu0 %v1272
      %1289 = vmatpush.msra.mxu0 %v1271
      %1290 = vmatpush.msra.mxu0 %v1270
      %1291 = vmatpush.msra.mxu0 %v1269
      %1292 = vmatpush.msra.mxu0 %v1268
      %1293 = vmatpush.msra.mxu0 %v1267
      %1294 = vmatpush.msra.mxu0 %v1266
      %1295 = vmatpush.msra.mxu0 %v1265
      %1296 = vmatmul.f32.gmra.mxu0 %v1278
      %v1297 = vpop.f32.mrf.mxu0
      %v1298 = vadd.f32 %v1275, %v1297
      %1299 = vdwg.mxu0
      %v1300 = vadd.f32 %v1298, %v864
      %v1301 = vsel %vm877, %v1300, 0.0
      %1302 = vadd.xlane.f32.xlu0 %v1301
      %v1303 = vpop.xlane.xlu0 %1302
      %v1304 = vrcp.pop 64.0
      %v1305 = vmul.f32 64.0, %v1304
      %v1306 = vsub.f32 1.0, %v1305
      %v1307 = vmul.f32 %v1304, %v1306
      %v1308 = vadd.f32 %v1304, %v1307
      %vm1309 = vweird.f32 %v1304
      %v1310 = vsel %vm1309, %v1304, %v1308
      %v1311 = vmul.f32 %v1303, %v1310
      %v1312 = vsub.f32 %v1300, %v1311
      %v1313 = vmul.f32 %v1312, %v1312
      %v1314 = vsel %vm877, %v1313, 0.0
      %1315 = vadd.xlane.f32.xlu0 %v1314
      %v1316 = vpop.xlane.xlu0 %1315
      %v1317 = vmul.f32 %v1316, %v1310
      %v1318 = vadd.f32 %v1317, 1e-05
      %v1319 = vrsqrt.pop %v1318
      %v1320 = vmul.f32 %v1319, %v1318
      %v1321 = vmul.f32 %v1320, %v1319
      %v1322 = vmul.f32 0.5, %v1321
      %v1323 = vsub.f32 1.5, %v1322
      %v1324 = vmul.f32 %v1319, %v1323
      %vm1325 = vweird.f32 %v1318
      %vm1326 = vweird.f32 %v1319
      %vm1327 = vmor %vm1325, %vm1326
      %v1328 = vsel %vm1327, %v1319, %v1324
      %v1329 = vmul.f32 %v1312, %v1328
      %v1330 = vld [vmem:[%s17] sm:$0x1]
      %v1332 = vperm.slane %v1330, 0
      %v1334 = vmul.f32 %v1329, %v1332
      %v1335 = vld [vmem:[%s18] sm:$0x1]
      %v1337 = vperm.slane %v1335, 0
      %v1339 = vadd.f32 %v1334, %v1337
      %v1340 = vmax.f32 %v1339, 0.0
      %s1341 = scalar_lea.vmem %s11, 64
      %v1342 = vld [vmem:[%s1341] sm:$0xff]
      %v1343 = vld [vmem:[%s1341 + $0x8] sm:$0xff]
      %v1344 = vld [vmem:[%s1341 + $0x10] sm:$0xff]
      %v1345 = vld [vmem:[%s1341 + $0x18] sm:$0xff]
      %v1346 = vld [vmem:[%s1341 + $0x20] sm:$0xff]
      %v1347 = vld [vmem:[%s1341 + $0x28] sm:$0xff]
      %v1348 = vld [vmem:[%s1341 + $0x30] sm:$0xff]
      %v1349 = vld [vmem:[%s1341 + $0x38] sm:$0xff]
      %s1350 = scalar_lea.vmem %s12, 1
      %v1351 = vld [vmem:[%s1350] sm:$0x1]
      %v1353 = vperm.slane %v1351, 0
      %1355 = vmatpush.msra.mxu0 0.0
      %1356 = vmatpush.msra.mxu0 0.0
      %1357 = vmatpush.msra.mxu0 0.0
      %1358 = vmatpush.msra.mxu0 0.0
      %1359 = vmatpush.msra.mxu0 0.0
      %1360 = vmatpush.msra.mxu0 0.0
      %1361 = vmatpush.msra.mxu0 0.0
      %1362 = vmatpush.msra.mxu0 0.0
      %1363 = vmatpush.msra.mxu0 %v1349
      %1364 = vmatpush.msra.mxu0 %v1348
      %1365 = vmatpush.msra.mxu0 %v1347
      %1366 = vmatpush.msra.mxu0 %v1346
      %1367 = vmatpush.msra.mxu0 %v1345
      %1368 = vmatpush.msra.mxu0 %v1344
      %1369 = vmatpush.msra.mxu0 %v1343
      %1370 = vmatpush.msra.mxu0 %v1342
      %1371 = vmatmul.f32.gmra.mxu0 %v879
      %v1372 = vpop.f32.mrf.mxu0
      %v1373 = vadd.f32 %v1353, %v1372
      %1374 = vdwg.mxu0
      %s1375 = scalar_lea.vmem %s13, 64
      %v1376 = vld [vmem:[%s1375] sm:$0xff]
      %v1377 = vld [vmem:[%s1375 + $0x8] sm:$0xff]
      %v1378 = vld [vmem:[%s1375 + $0x10] sm:$0xff]
      %v1379 = vld [vmem:[%s1375 + $0x18] sm:$0xff]
      %v1380 = vld [vmem:[%s1375 + $0x20] sm:$0xff]
      %v1381 = vld [vmem:[%s1375 + $0x28] sm:$0xff]
      %v1382 = vld [vmem:[%s1375 + $0x30] sm:$0xff]
      %v1383 = vld [vmem:[%s1375 + $0x38] sm:$0xff]
      %s1384 = scalar_lea.vmem %s14, 1
      %v1385 = vld [vmem:[%s1384] sm:$0x1]
      %v1387 = vperm.slane %v1385, 0
      %v1390 = vsel %vm877, %v1340, 0
      %1392 = vmatpush.msra.mxu0 0.0
      %1393 = vmatpush.msra.mxu0 0.0
      %1394 = vmatpush.msra.mxu0 0.0
      %1395 = vmatpush.msra.mxu0 0.0
      %1396 = vmatpush.msra.mxu0 0.0
      %1397 = vmatpush.msra.mxu0 0.0
      %1398 = vmatpush.msra.mxu0 0.0
      %1399 = vmatpush.msra.mxu0 0.0
      %1400 = vmatpush.msra.mxu0 %v1383
      %1401 = vmatpush.msra.mxu0 %v1382
      %1402 = vmatpush.msra.mxu0 %v1381
      %1403 = vmatpush.msra.mxu0 %v1380
      %1404 = vmatpush.msra.mxu0 %v1379
      %1405 = vmatpush.msra.mxu0 %v1378
      %1406 = vmatpush.msra.mxu0 %v1377
      %1407 = vmatpush.msra.mxu0 %v1376
      %1408 = vmatmul.f32.gmra.mxu0 %v1390
      %v1409 = vpop.f32.mrf.mxu0
      %v1410 = vadd.f32 %v1387, %v1409
      %1411 = vdwg.mxu0
      %1413 = vrot.lane.b32.xlu0 %v1373, 120
      %v1414 = vpop.permute.xlu0 %1413
      %1416 = vrot.lane.b32.xlu0 %v1373, 8
      %v1417 = vpop.permute.xlu0 %1416
      %v1419 = vsel %vm943, %v1414, %v1417
      %v1420 = vmul.f32 %v1373, %v789
      %v1421 = vmul.f32 %v1419, %v790
      %v1422 = vadd.f32 %v1420, %v1421
      %v1424 = vsel %vm948, %v1422, 0
      %v1427 = vsel %vm948, %v1410, 0
      %1429 = vmatpush.xpose.msra.mxu0 0.0
      %1430 = vmatpush.xpose.msra.mxu0 0.0
      %1431 = vmatpush.xpose.msra.mxu0 0.0
      %1432 = vmatpush.xpose.msra.mxu0 0.0
      %1433 = vmatpush.xpose.msra.mxu0 0.0
      %1434 = vmatpush.xpose.msra.mxu0 0.0
      %1435 = vmatpush.xpose.msra.mxu0 0.0
      %1436 = vmatpush.xpose.msra.mxu0 0.0
      %1437 = vmatpush.xpose.msra.mxu0 0.0
      %1438 = vmatpush.xpose.msra.mxu0 0.0
      %1439 = vmatpush.xpose.msra.mxu0 0.0
      %1440 = vmatpush.xpose.msra.mxu0 0.0
      %1441 = vmatpush.xpose.msra.mxu0 0.0
      %1442 = vmatpush.xpose.msra.mxu0 0.0
      %1443 = vmatpush.xpose.msra.mxu0 0.0
      %1444 = vmatpush.xpose.msra.mxu0 %v1427
      %1445 = vmatmul.f32.gmra.mxu0 %v1424
      %v1446 = vpop.f32.mrf.mxu0
      %v1447 = vadd.f32 0.0, %v1446
      %1448 = vdwg.mxu0
      %v1449 = vmul.f32 %v1447, 0.25
      %v1450 = vsel %vm943, %v1449, -inf
      %1451 = vmax.xlane.f32.xlu0 %v1450
      %v1452 = vpop.xlane.xlu0 %1451
      %v1453 = vsub.f32 %v1449, %v1452
      %v1454 = vmul.f32 %v1453, 1.442695
      %v1455 = vpow.pop %v1454
      %v1456 = vsel %vm943, %v1455, 0.0
      %1457 = vadd.xlane.f32.xlu0 %v1456
      %v1458 = vpop.xlane.xlu0 %1457
      %v1459 = vrcp.pop %v1458
      %v1460 = vmul.f32 %v1455, %v1459
      %v1462 = vsel %vm943, %v1460, 0
      %1464 = vmatpush.msra.mxu0 0.0
      %1465 = vmatpush.msra.mxu0 0.0
      %1466 = vmatpush.msra.mxu0 0.0
      %1467 = vmatpush.msra.mxu0 0.0
      %1468 = vmatpush.msra.mxu0 0.0
      %1469 = vmatpush.msra.mxu0 0.0
      %1470 = vmatpush.msra.mxu0 0.0
      %1471 = vmatpush.msra.mxu0 0.0
      %1472 = vmatpush.msra.mxu0 0.0
      %1473 = vmatpush.msra.mxu0 0.0
      %1474 = vmatpush.msra.mxu0 0.0
      %1475 = vmatpush.msra.mxu0 0.0
      %1476 = vmatpush.msra.mxu0 0.0
      %1477 = vmatpush.msra.mxu0 0.0
      %1478 = vmatpush.msra.mxu0 0.0
      %1479 = vmatpush.msra.mxu0 %v1410
      %1480 = vmatmul.f32.gmra.mxu0 %v1462
      %v1481 = vpop.f32.mrf.mxu0
      %v1482 = vadd.f32 0.0, %v1481
      %1483 = vdwg.mxu0
      %1484 = vrot.lane.b32.xlu0 %v1373, 104
      %v1485 = vpop.permute.xlu0 %1484
      %v1487 = vsel %vm943, %v1485, %v1414
      %v1488 = vmul.f32 %v1373, %v1016
      %v1489 = vmul.f32 %v1487, %v790
      %1491 = vrot.lane.b32.xlu0 %v1489, 16
      %v1492 = vpop.permute.xlu0 %1491
      %v1494 = vadd.f32 %v1488, %v1492
      %1496 = vrot.lane.b32.xlu0 %v1494, 112
      %v1497 = vpop.permute.xlu0 %1496
      %1498 = vrot.lane.b32.xlu0 %v1410, 112
      %v1499 = vpop.permute.xlu0 %1498
      %v1500 = vsel %vm948, %v1497, 0
      %v1502 = vsel %vm948, %v1499, 0
      %1504 = vmatpush.xpose.msra.mxu0 0.0
      %1505 = vmatpush.xpose.msra.mxu0 0.0
      %1506 = vmatpush.xpose.msra.mxu0 0.0
      %1507 = vmatpush.xpose.msra.mxu0 0.0
      %1508 = vmatpush.xpose.msra.mxu0 0.0
      %1509 = vmatpush.xpose.msra.mxu0 0.0
      %1510 = vmatpush.xpose.msra.mxu0 0.0
      %1511 = vmatpush.xpose.msra.mxu0 0.0
      %1512 = vmatpush.xpose.msra.mxu0 0.0
      %1513 = vmatpush.xpose.msra.mxu0 0.0
      %1514 = vmatpush.xpose.msra.mxu0 0.0
      %1515 = vmatpush.xpose.msra.mxu0 0.0
      %1516 = vmatpush.xpose.msra.mxu0 0.0
      %1517 = vmatpush.xpose.msra.mxu0 0.0
      %1518 = vmatpush.xpose.msra.mxu0 0.0
      %1519 = vmatpush.xpose.msra.mxu0 %v1502
      %1520 = vmatmul.f32.gmra.mxu0 %v1500
      %v1521 = vpop.f32.mrf.mxu0
      %v1522 = vadd.f32 0.0, %v1521
      %1523 = vdwg.mxu0
      %v1524 = vmul.f32 %v1522, 0.25
      %v1525 = vsel %vm943, %v1524, -inf
      %1526 = vmax.xlane.f32.xlu0 %v1525
      %v1527 = vpop.xlane.xlu0 %1526
      %v1528 = vsub.f32 %v1524, %v1527
      %v1529 = vmul.f32 %v1528, 1.442695
      %v1530 = vpow.pop %v1529
      %v1531 = vsel %vm943, %v1530, 0.0
      %1532 = vadd.xlane.f32.xlu0 %v1531
      %v1533 = vpop.xlane.xlu0 %1532
      %v1534 = vrcp.pop %v1533
      %v1535 = vmul.f32 %v1530, %v1534
      %v1538 = vsel %vm943, %v1535, 0
      %1540 = vmatpush.msra.mxu0 0.0
      %1541 = vmatpush.msra.mxu0 0.0
      %1542 = vmatpush.msra.mxu0 0.0
      %1543 = vmatpush.msra.mxu0 0.0
      %1544 = vmatpush.msra.mxu0 0.0
      %1545 = vmatpush.msra.mxu0 0.0
      %1546 = vmatpush.msra.mxu0 0.0
      %1547 = vmatpush.msra.mxu0 0.0
      %1548 = vmatpush.msra.mxu0 0.0
      %1549 = vmatpush.msra.mxu0 0.0
      %1550 = vmatpush.msra.mxu0 0.0
      %1551 = vmatpush.msra.mxu0 0.0
      %1552 = vmatpush.msra.mxu0 0.0
      %1553 = vmatpush.msra.mxu0 0.0
      %1554 = vmatpush.msra.mxu0 0.0
      %1555 = vmatpush.msra.mxu0 %v1499
      %1556 = vmatmul.f32.gmra.mxu0 %v1538
      %v1557 = vpop.f32.mrf.mxu0
      %v1558 = vadd.f32 0.0, %v1557
      %1559 = vdwg.mxu0
      %1560 = vrot.lane.b32.xlu0 %v1373, 88
      %v1561 = vpop.permute.xlu0 %1560
      %v1563 = vsel %vm943, %v1561, %v1485
      %v1564 = vmul.f32 %v1373, %v1095
      %v1565 = vmul.f32 %v1563, %v790
      %1567 = vrot.lane.b32.xlu0 %v1565, 32
      %v1568 = vpop.permute.xlu0 %1567
      %v1570 = vadd.f32 %v1564, %v1568
      %1572 = vrot.lane.b32.xlu0 %v1570, 96
      %v1573 = vpop.permute.xlu0 %1572
      %1574 = vrot.lane.b32.xlu0 %v1410, 96
      %v1575 = vpop.permute.xlu0 %1574
      %v1576 = vsel %vm948, %v1573, 0
      %v1578 = vsel %vm948, %v1575, 0
      %1580 = vmatpush.xpose.msra.mxu0 0.0
      %1581 = vmatpush.xpose.msra.mxu0 0.0
      %1582 = vmatpush.xpose.msra.mxu0 0.0
      %1583 = vmatpush.xpose.msra.mxu0 0.0
      %1584 = vmatpush.xpose.msra.mxu0 0.0
      %1585 = vmatpush.xpose.msra.mxu0 0.0
      %1586 = vmatpush.xpose.msra.mxu0 0.0
      %1587 = vmatpush.xpose.msra.mxu0 0.0
      %1588 = vmatpush.xpose.msra.mxu0 0.0
      %1589 = vmatpush.xpose.msra.mxu0 0.0
      %1590 = vmatpush.xpose.msra.mxu0 0.0
      %1591 = vmatpush.xpose.msra.mxu0 0.0
      %1592 = vmatpush.xpose.msra.mxu0 0.0
      %1593 = vmatpush.xpose.msra.mxu0 0.0
      %1594 = vmatpush.xpose.msra.mxu0 0.0
      %1595 = vmatpush.xpose.msra.mxu0 %v1578
      %1596 = vmatmul.f32.gmra.mxu0 %v1576
      %v1597 = vpop.f32.mrf.mxu0
      %v1598 = vadd.f32 0.0, %v1597
      %1599 = vdwg.mxu0
      %v1600 = vmul.f32 %v1598, 0.25
      %v1601 = vsel %vm943, %v1600, -inf
      %1602 = vmax.xlane.f32.xlu0 %v1601
      %v1603 = vpop.xlane.xlu0 %1602
      %v1604 = vsub.f32 %v1600, %v1603
      %v1605 = vmul.f32 %v1604, 1.442695
      %v1606 = vpow.pop %v1605
      %v1607 = vsel %vm943, %v1606, 0.0
      %1608 = vadd.xlane.f32.xlu0 %v1607
      %v1609 = vpop.xlane.xlu0 %1608
      %v1610 = vrcp.pop %v1609
      %v1611 = vmul.f32 %v1606, %v1610
      %v1614 = vsel %vm943, %v1611, 0
      %1616 = vmatpush.msra.mxu0 0.0
      %1617 = vmatpush.msra.mxu0 0.0
      %1618 = vmatpush.msra.mxu0 0.0
      %1619 = vmatpush.msra.mxu0 0.0
      %1620 = vmatpush.msra.mxu0 0.0
      %1621 = vmatpush.msra.mxu0 0.0
      %1622 = vmatpush.msra.mxu0 0.0
      %1623 = vmatpush.msra.mxu0 0.0
      %1624 = vmatpush.msra.mxu0 0.0
      %1625 = vmatpush.msra.mxu0 0.0
      %1626 = vmatpush.msra.mxu0 0.0
      %1627 = vmatpush.msra.mxu0 0.0
      %1628 = vmatpush.msra.mxu0 0.0
      %1629 = vmatpush.msra.mxu0 0.0
      %1630 = vmatpush.msra.mxu0 0.0
      %1631 = vmatpush.msra.mxu0 %v1575
      %1632 = vmatmul.f32.gmra.mxu0 %v1614
      %v1633 = vpop.f32.mrf.mxu0
      %v1634 = vadd.f32 0.0, %v1633
      %1635 = vdwg.mxu0
      %1636 = vrot.lane.b32.xlu0 %v1373, 72
      %v1637 = vpop.permute.xlu0 %1636
      %v1639 = vsel %vm943, %v1637, %v1561
      %v1640 = vmul.f32 %v1373, %v1174
      %v1641 = vmul.f32 %v1639, %v790
      %1643 = vrot.lane.b32.xlu0 %v1641, 48
      %v1644 = vpop.permute.xlu0 %1643
      %v1646 = vadd.f32 %v1640, %v1644
      %1648 = vrot.lane.b32.xlu0 %v1646, 80
      %v1649 = vpop.permute.xlu0 %1648
      %1650 = vrot.lane.b32.xlu0 %v1410, 80
      %v1651 = vpop.permute.xlu0 %1650
      %v1652 = vsel %vm948, %v1649, 0
      %v1654 = vsel %vm948, %v1651, 0
      %1656 = vmatpush.xpose.msra.mxu0 0.0
      %1657 = vmatpush.xpose.msra.mxu0 0.0
      %1658 = vmatpush.xpose.msra.mxu0 0.0
      %1659 = vmatpush.xpose.msra.mxu0 0.0
      %1660 = vmatpush.xpose.msra.mxu0 0.0
      %1661 = vmatpush.xpose.msra.mxu0 0.0
      %1662 = vmatpush.xpose.msra.mxu0 0.0
      %1663 = vmatpush.xpose.msra.mxu0 0.0
      %1664 = vmatpush.xpose.msra.mxu0 0.0
      %1665 = vmatpush.xpose.msra.mxu0 0.0
      %1666 = vmatpush.xpose.msra.mxu0 0.0
      %1667 = vmatpush.xpose.msra.mxu0 0.0
      %1668 = vmatpush.xpose.msra.mxu0 0.0
      %1669 = vmatpush.xpose.msra.mxu0 0.0
      %1670 = vmatpush.xpose.msra.mxu0 0.0
      %1671 = vmatpush.xpose.msra.mxu0 %v1654
      %1672 = vmatmul.f32.gmra.mxu0 %v1652
      %v1673 = vpop.f32.mrf.mxu0
      %v1674 = vadd.f32 0.0, %v1673
      %1675 = vdwg.mxu0
      %v1676 = vmul.f32 %v1674, 0.25
      %v1677 = vsel %vm943, %v1676, -inf
      %1678 = vmax.xlane.f32.xlu0 %v1677
      %v1679 = vpop.xlane.xlu0 %1678
      %v1680 = vsub.f32 %v1676, %v1679
      %v1681 = vmul.f32 %v1680, 1.442695
      %v1682 = vpow.pop %v1681
      %v1683 = vsel %vm943, %v1682, 0.0
      %1684 = vadd.xlane.f32.xlu0 %v1683
      %v1685 = vpop.xlane.xlu0 %1684
      %v1686 = vrcp.pop %v1685
      %v1687 = vmul.f32 %v1682, %v1686
      %v1690 = vsel %vm943, %v1687, 0
      %1692 = vmatpush.msra.mxu0 0.0
      %1693 = vmatpush.msra.mxu0 0.0
      %1694 = vmatpush.msra.mxu0 0.0
      %1695 = vmatpush.msra.mxu0 0.0
      %1696 = vmatpush.msra.mxu0 0.0
      %1697 = vmatpush.msra.mxu0 0.0
      %1698 = vmatpush.msra.mxu0 0.0
      %1699 = vmatpush.msra.mxu0 0.0
      %1700 = vmatpush.msra.mxu0 0.0
      %1701 = vmatpush.msra.mxu0 0.0
      %1702 = vmatpush.msra.mxu0 0.0
      %1703 = vmatpush.msra.mxu0 0.0
      %1704 = vmatpush.msra.mxu0 0.0
      %1705 = vmatpush.msra.mxu0 0.0
      %1706 = vmatpush.msra.mxu0 0.0
      %1707 = vmatpush.msra.mxu0 %v1651
      %1708 = vmatmul.f32.gmra.mxu0 %v1690
      %v1709 = vpop.f32.mrf.mxu0
      %v1710 = vadd.f32 0.0, %v1709
      %1711 = vdwg.mxu0
      %1713 = vrot.lane.b32.xlu0 %v1558, 16
      %v1714 = vpop.permute.xlu0 %1713
      %1717 = vrot.lane.b32.xlu0 %v1634, 32
      %v1718 = vpop.permute.xlu0 %1717
      %1721 = vrot.lane.b32.xlu0 %v1710, 48
      %v1722 = vpop.permute.xlu0 %1721
      %v1724 = vsel %vm948, %v1482, %v1714
      %v1725 = vsel %vm1261, %v1724, %v1718
      %v1726 = vsel %vm1263, %v1725, %v1722
      %s1727 = scalar_lea.vmem %s15, 64
      %v1728 = vld [vmem:[%s1727] sm:$0xff]
      %v1729 = vld [vmem:[%s1727 + $0x8] sm:$0xff]
      %v1730 = vld [vmem:[%s1727 + $0x10] sm:$0xff]
      %v1731 = vld [vmem:[%s1727 + $0x18] sm:$0xff]
      %v1732 = vld [vmem:[%s1727 + $0x20] sm:$0xff]
      %v1733 = vld [vmem:[%s1727 + $0x28] sm:$0xff]
      %v1734 = vld [vmem:[%s1727 + $0x30] sm:$0xff]
      %v1735 = vld [vmem:[%s1727 + $0x38] sm:$0xff]
      %s1736 = scalar_lea.vmem %s16, 1
      %v1737 = vld [vmem:[%s1736] sm:$0x1]
      %v1739 = vperm.slane %v1737, 0
      %v1742 = vsel %vm877, %v1726, 0
      %1744 = vmatpush.msra.mxu0 0.0
      %1745 = vmatpush.msra.mxu0 0.0
      %1746 = vmatpush.msra.mxu0 0.0
      %1747 = vmatpush.msra.mxu0 0.0
      %1748 = vmatpush.msra.mxu0 0.0
      %1749 = vmatpush.msra.mxu0 0.0
      %1750 = vmatpush.msra.mxu0 0.0
      %1751 = vmatpush.msra.mxu0 0.0
      %1752 = vmatpush.msra.mxu0 %v1735
      %1753 = vmatpush.msra.mxu0 %v1734
      %1754 = vmatpush.msra.mxu0 %v1733
      %1755 = vmatpush.msra.mxu0 %v1732
      %1756 = vmatpush.msra.mxu0 %v1731
      %1757 = vmatpush.msra.mxu0 %v1730
      %1758 = vmatpush.msra.mxu0 %v1729
      %1759 = vmatpush.msra.mxu0 %v1728
      %1760 = vmatmul.f32.gmra.mxu0 %v1742
      %v1761 = vpop.f32.mrf.mxu0
      %v1762 = vadd.f32 %v1739, %v1761
      %1763 = vdwg.mxu0
      %v1764 = vadd.f32 %v1762, %v1340
      %v1765 = vsel %vm877, %v1764, 0.0
      %1766 = vadd.xlane.f32.xlu0 %v1765
      %v1767 = vpop.xlane.xlu0 %1766
      %v1768 = vmul.f32 %v1767, %v1310
      %v1769 = vsub.f32 %v1764, %v1768
      %v1770 = vmul.f32 %v1769, %v1769
      %v1771 = vsel %vm877, %v1770, 0.0
      %1772 = vadd.xlane.f32.xlu0 %v1771
      %v1773 = vpop.xlane.xlu0 %1772
      %v1774 = vmul.f32 %v1773, %v1310
      %v1775 = vadd.f32 %v1774, 1e-05
      %v1776 = vrsqrt.pop %v1775
      %v1777 = vmul.f32 %v1776, %v1775
      %v1778 = vmul.f32 %v1777, %v1776
      %v1779 = vmul.f32 0.5, %v1778
      %v1780 = vsub.f32 1.5, %v1779
      %v1781 = vmul.f32 %v1776, %v1780
      %vm1782 = vweird.f32 %v1775
      %vm1783 = vweird.f32 %v1776
      %vm1784 = vmor %vm1782, %vm1783
      %v1785 = vsel %vm1784, %v1776, %v1781
      %v1786 = vmul.f32 %v1769, %v1785
      %s1787 = scalar_lea.vmem %s17, 1
      %v1788 = vld [vmem:[%s1787] sm:$0x1]
      %v1790 = vperm.slane %v1788, 0
      %v1792 = vmul.f32 %v1786, %v1790
      %s1793 = scalar_lea.vmem %s18, 1
      %v1794 = vld [vmem:[%s1793] sm:$0x1]
      %v1796 = vperm.slane %v1794, 0
      %v1798 = vadd.f32 %v1792, %v1796
      %v1799 = vmax.f32 %v1798, 0.0
      %s1800 = scalar_lea.vmem %s11, 128
      %v1801 = vld [vmem:[%s1800] sm:$0xff]
      %v1802 = vld [vmem:[%s1800 + $0x8] sm:$0xff]
      %v1803 = vld [vmem:[%s1800 + $0x10] sm:$0xff]
      %v1804 = vld [vmem:[%s1800 + $0x18] sm:$0xff]
      %v1805 = vld [vmem:[%s1800 + $0x20] sm:$0xff]
      %v1806 = vld [vmem:[%s1800 + $0x28] sm:$0xff]
      %v1807 = vld [vmem:[%s1800 + $0x30] sm:$0xff]
      %v1808 = vld [vmem:[%s1800 + $0x38] sm:$0xff]
      %s1809 = scalar_lea.vmem %s12, 2
      %v1810 = vld [vmem:[%s1809] sm:$0x1]
      %v1812 = vperm.slane %v1810, 0
      %1814 = vmatpush.msra.mxu0 0.0
      %1815 = vmatpush.msra.mxu0 0.0
      %1816 = vmatpush.msra.mxu0 0.0
      %1817 = vmatpush.msra.mxu0 0.0
      %1818 = vmatpush.msra.mxu0 0.0
      %1819 = vmatpush.msra.mxu0 0.0
      %1820 = vmatpush.msra.mxu0 0.0
      %1821 = vmatpush.msra.mxu0 0.0
      %1822 = vmatpush.msra.mxu0 %v1808
      %1823 = vmatpush.msra.mxu0 %v1807
      %1824 = vmatpush.msra.mxu0 %v1806
      %1825 = vmatpush.msra.mxu0 %v1805
      %1826 = vmatpush.msra.mxu0 %v1804
      %1827 = vmatpush.msra.mxu0 %v1803
      %1828 = vmatpush.msra.mxu0 %v1802
      %1829 = vmatpush.msra.mxu0 %v1801
      %1830 = vmatmul.f32.gmra.mxu0 %v879
      %v1831 = vpop.f32.mrf.mxu0
      %v1832 = vadd.f32 %v1812, %v1831
      %1833 = vdwg.mxu0
      %s1834 = scalar_lea.vmem %s13, 128
      %v1835 = vld [vmem:[%s1834] sm:$0xff]
      %v1836 = vld [vmem:[%s1834 + $0x8] sm:$0xff]
      %v1837 = vld [vmem:[%s1834 + $0x10] sm:$0xff]
      %v1838 = vld [vmem:[%s1834 + $0x18] sm:$0xff]
      %v1839 = vld [vmem:[%s1834 + $0x20] sm:$0xff]
      %v1840 = vld [vmem:[%s1834 + $0x28] sm:$0xff]
      %v1841 = vld [vmem:[%s1834 + $0x30] sm:$0xff]
      %v1842 = vld [vmem:[%s1834 + $0x38] sm:$0xff]
      %s1843 = scalar_lea.vmem %s14, 2
      %v1844 = vld [vmem:[%s1843] sm:$0x1]
      %v1846 = vperm.slane %v1844, 0
      %v1849 = vsel %vm877, %v1799, 0
      %1851 = vmatpush.msra.mxu0 0.0
      %1852 = vmatpush.msra.mxu0 0.0
      %1853 = vmatpush.msra.mxu0 0.0
      %1854 = vmatpush.msra.mxu0 0.0
      %1855 = vmatpush.msra.mxu0 0.0
      %1856 = vmatpush.msra.mxu0 0.0
      %1857 = vmatpush.msra.mxu0 0.0
      %1858 = vmatpush.msra.mxu0 0.0
      %1859 = vmatpush.msra.mxu0 %v1842
      %1860 = vmatpush.msra.mxu0 %v1841
      %1861 = vmatpush.msra.mxu0 %v1840
      %1862 = vmatpush.msra.mxu0 %v1839
      %1863 = vmatpush.msra.mxu0 %v1838
      %1864 = vmatpush.msra.mxu0 %v1837
      %1865 = vmatpush.msra.mxu0 %v1836
      %1866 = vmatpush.msra.mxu0 %v1835
      %1867 = vmatmul.f32.gmra.mxu0 %v1849
      %v1868 = vpop.f32.mrf.mxu0
      %v1869 = vadd.f32 %v1846, %v1868
      %1870 = vdwg.mxu0
      %1872 = vrot.lane.b32.xlu0 %v1832, 120
      %v1873 = vpop.permute.xlu0 %1872
      %1875 = vrot.lane.b32.xlu0 %v1832, 8
      %v1876 = vpop.permute.xlu0 %1875
      %v1878 = vsel %vm943, %v1873, %v1876
      %v1879 = vmul.f32 %v1832, %v789
      %v1880 = vmul.f32 %v1878, %v790
      %v1881 = vadd.f32 %v1879, %v1880
      %v1883 = vsel %vm948, %v1881, 0
      %v1886 = vsel %vm948, %v1869, 0
      %1888 = vmatpush.xpose.msra.mxu0 0.0
      %1889 = vmatpush.xpose.msra.mxu0 0.0
      %1890 = vmatpush.xpose.msra.mxu0 0.0
      %1891 = vmatpush.xpose.msra.mxu0 0.0
      %1892 = vmatpush.xpose.msra.mxu0 0.0
      %1893 = vmatpush.xpose.msra.mxu0 0.0
      %1894 = vmatpush.xpose.msra.mxu0 0.0
      %1895 = vmatpush.xpose.msra.mxu0 0.0
      %1896 = vmatpush.xpose.msra.mxu0 0.0
      %1897 = vmatpush.xpose.msra.mxu0 0.0
      %1898 = vmatpush.xpose.msra.mxu0 0.0
      %1899 = vmatpush.xpose.msra.mxu0 0.0
      %1900 = vmatpush.xpose.msra.mxu0 0.0
      %1901 = vmatpush.xpose.msra.mxu0 0.0
      %1902 = vmatpush.xpose.msra.mxu0 0.0
      %1903 = vmatpush.xpose.msra.mxu0 %v1886
      %1904 = vmatmul.f32.gmra.mxu0 %v1883
      %v1905 = vpop.f32.mrf.mxu0
      %v1906 = vadd.f32 0.0, %v1905
      %1907 = vdwg.mxu0
      %v1908 = vmul.f32 %v1906, 0.25
      %v1909 = vsel %vm943, %v1908, -inf
      %1910 = vmax.xlane.f32.xlu0 %v1909
      %v1911 = vpop.xlane.xlu0 %1910
      %v1912 = vsub.f32 %v1908, %v1911
      %v1913 = vmul.f32 %v1912, 1.442695
      %v1914 = vpow.pop %v1913
      %v1915 = vsel %vm943, %v1914, 0.0
      %1916 = vadd.xlane.f32.xlu0 %v1915
      %v1917 = vpop.xlane.xlu0 %1916
      %v1918 = vrcp.pop %v1917
      %v1919 = vmul.f32 %v1914, %v1918
      %v1921 = vsel %vm943, %v1919, 0
      %1923 = vmatpush.msra.mxu0 0.0
      %1924 = vmatpush.msra.mxu0 0.0
      %1925 = vmatpush.msra.mxu0 0.0
      %1926 = vmatpush.msra.mxu0 0.0
      %1927 = vmatpush.msra.mxu0 0.0
      %1928 = vmatpush.msra.mxu0 0.0
      %1929 = vmatpush.msra.mxu0 0.0
      %1930 = vmatpush.msra.mxu0 0.0
      %1931 = vmatpush.msra.mxu0 0.0
      %1932 = vmatpush.msra.mxu0 0.0
      %1933 = vmatpush.msra.mxu0 0.0
      %1934 = vmatpush.msra.mxu0 0.0
      %1935 = vmatpush.msra.mxu0 0.0
      %1936 = vmatpush.msra.mxu0 0.0
      %1937 = vmatpush.msra.mxu0 0.0
      %1938 = vmatpush.msra.mxu0 %v1869
      %1939 = vmatmul.f32.gmra.mxu0 %v1921
      %v1940 = vpop.f32.mrf.mxu0
      %v1941 = vadd.f32 0.0, %v1940
      %1942 = vdwg.mxu0
      %1943 = vrot.lane.b32.xlu0 %v1832, 104
      %v1944 = vpop.permute.xlu0 %1943
      %v1946 = vsel %vm943, %v1944, %v1873
      %v1947 = vmul.f32 %v1832, %v1016
      %v1948 = vmul.f32 %v1946, %v790
      %1950 = vrot.lane.b32.xlu0 %v1948, 16
      %v1951 = vpop.permute.xlu0 %1950
      %v1953 = vadd.f32 %v1947, %v1951
      %1955 = vrot.lane.b32.xlu0 %v1953, 112
      %v1956 = vpop.permute.xlu0 %1955
      %1957 = vrot.lane.b32.xlu0 %v1869, 112
      %v1958 = vpop.permute.xlu0 %1957
      %v1959 = vsel %vm948, %v1956, 0
      %v1961 = vsel %vm948, %v1958, 0
      %1963 = vmatpush.xpose.msra.mxu0 0.0
      %1964 = vmatpush.xpose.msra.mxu0 0.0
      %1965 = vmatpush.xpose.msra.mxu0 0.0
      %1966 = vmatpush.xpose.msra.mxu0 0.0
      %1967 = vmatpush.xpose.msra.mxu0 0.0
      %1968 = vmatpush.xpose.msra.mxu0 0.0
      %1969 = vmatpush.xpose.msra.mxu0 0.0
      %1970 = vmatpush.xpose.msra.mxu0 0.0
      %1971 = vmatpush.xpose.msra.mxu0 0.0
      %1972 = vmatpush.xpose.msra.mxu0 0.0
      %1973 = vmatpush.xpose.msra.mxu0 0.0
      %1974 = vmatpush.xpose.msra.mxu0 0.0
      %1975 = vmatpush.xpose.msra.mxu0 0.0
      %1976 = vmatpush.xpose.msra.mxu0 0.0
      %1977 = vmatpush.xpose.msra.mxu0 0.0
      %1978 = vmatpush.xpose.msra.mxu0 %v1961
      %1979 = vmatmul.f32.gmra.mxu0 %v1959
      %v1980 = vpop.f32.mrf.mxu0
      %v1981 = vadd.f32 0.0, %v1980
      %1982 = vdwg.mxu0
      %v1983 = vmul.f32 %v1981, 0.25
      %v1984 = vsel %vm943, %v1983, -inf
      %1985 = vmax.xlane.f32.xlu0 %v1984
      %v1986 = vpop.xlane.xlu0 %1985
      %v1987 = vsub.f32 %v1983, %v1986
      %v1988 = vmul.f32 %v1987, 1.442695
      %v1989 = vpow.pop %v1988
      %v1990 = vsel %vm943, %v1989, 0.0
      %1991 = vadd.xlane.f32.xlu0 %v1990
      %v1992 = vpop.xlane.xlu0 %1991
      %v1993 = vrcp.pop %v1992
      %v1994 = vmul.f32 %v1989, %v1993
      %v1997 = vsel %vm943, %v1994, 0
      %1999 = vmatpush.msra.mxu0 0.0
      %2000 = vmatpush.msra.mxu0 0.0
      %2001 = vmatpush.msra.mxu0 0.0
      %2002 = vmatpush.msra.mxu0 0.0
      %2003 = vmatpush.msra.mxu0 0.0
      %2004 = vmatpush.msra.mxu0 0.0
      %2005 = vmatpush.msra.mxu0 0.0
      %2006 = vmatpush.msra.mxu0 0.0
      %2007 = vmatpush.msra.mxu0 0.0
      %2008 = vmatpush.msra.mxu0 0.0
      %2009 = vmatpush.msra.mxu0 0.0
      %2010 = vmatpush.msra.mxu0 0.0
      %2011 = vmatpush.msra.mxu0 0.0
      %2012 = vmatpush.msra.mxu0 0.0
      %2013 = vmatpush.msra.mxu0 0.0
      %2014 = vmatpush.msra.mxu0 %v1958
      %2015 = vmatmul.f32.gmra.mxu0 %v1997
      %v2016 = vpop.f32.mrf.mxu0
      %v2017 = vadd.f32 0.0, %v2016
      %2018 = vdwg.mxu0
      %2019 = vrot.lane.b32.xlu0 %v1832, 88
      %v2020 = vpop.permute.xlu0 %2019
      %v2022 = vsel %vm943, %v2020, %v1944
      %v2023 = vmul.f32 %v1832, %v1095
      %v2024 = vmul.f32 %v2022, %v790
      %2026 = vrot.lane.b32.xlu0 %v2024, 32
      %v2027 = vpop.permute.xlu0 %2026
      %v2029 = vadd.f32 %v2023, %v2027
      %2031 = vrot.lane.b32.xlu0 %v2029, 96
      %v2032 = vpop.permute.xlu0 %2031
      %2033 = vrot.lane.b32.xlu0 %v1869, 96
      %v2034 = vpop.permute.xlu0 %2033
      %v2035 = vsel %vm948, %v2032, 0
      %v2037 = vsel %vm948, %v2034, 0
      %2039 = vmatpush.xpose.msra.mxu0 0.0
      %2040 = vmatpush.xpose.msra.mxu0 0.0
      %2041 = vmatpush.xpose.msra.mxu0 0.0
      %2042 = vmatpush.xpose.msra.mxu0 0.0
      %2043 = vmatpush.xpose.msra.mxu0 0.0
      %2044 = vmatpush.xpose.msra.mxu0 0.0
      %2045 = vmatpush.xpose.msra.mxu0 0.0
      %2046 = vmatpush.xpose.msra.mxu0 0.0
      %2047 = vmatpush.xpose.msra.mxu0 0.0
      %2048 = vmatpush.xpose.msra.mxu0 0.0
      %2049 = vmatpush.xpose.msra.mxu0 0.0
      %2050 = vmatpush.xpose.msra.mxu0 0.0
      %2051 = vmatpush.xpose.msra.mxu0 0.0
      %2052 = vmatpush.xpose.msra.mxu0 0.0
      %2053 = vmatpush.xpose.msra.mxu0 0.0
      %2054 = vmatpush.xpose.msra.mxu0 %v2037
      %2055 = vmatmul.f32.gmra.mxu0 %v2035
      %v2056 = vpop.f32.mrf.mxu0
      %v2057 = vadd.f32 0.0, %v2056
      %2058 = vdwg.mxu0
      %v2059 = vmul.f32 %v2057, 0.25
      %v2060 = vsel %vm943, %v2059, -inf
      %2061 = vmax.xlane.f32.xlu0 %v2060
      %v2062 = vpop.xlane.xlu0 %2061
      %v2063 = vsub.f32 %v2059, %v2062
      %v2064 = vmul.f32 %v2063, 1.442695
      %v2065 = vpow.pop %v2064
      %v2066 = vsel %vm943, %v2065, 0.0
      %2067 = vadd.xlane.f32.xlu0 %v2066
      %v2068 = vpop.xlane.xlu0 %2067
      %v2069 = vrcp.pop %v2068
      %v2070 = vmul.f32 %v2065, %v2069
      %v2073 = vsel %vm943, %v2070, 0
      %2075 = vmatpush.msra.mxu0 0.0
      %2076 = vmatpush.msra.mxu0 0.0
      %2077 = vmatpush.msra.mxu0 0.0
      %2078 = vmatpush.msra.mxu0 0.0
      %2079 = vmatpush.msra.mxu0 0.0
      %2080 = vmatpush.msra.mxu0 0.0
      %2081 = vmatpush.msra.mxu0 0.0
      %2082 = vmatpush.msra.mxu0 0.0
      %2083 = vmatpush.msra.mxu0 0.0
      %2084 = vmatpush.msra.mxu0 0.0
      %2085 = vmatpush.msra.mxu0 0.0
      %2086 = vmatpush.msra.mxu0 0.0
      %2087 = vmatpush.msra.mxu0 0.0
      %2088 = vmatpush.msra.mxu0 0.0
      %2089 = vmatpush.msra.mxu0 0.0
      %2090 = vmatpush.msra.mxu0 %v2034
      %2091 = vmatmul.f32.gmra.mxu0 %v2073
      %v2092 = vpop.f32.mrf.mxu0
      %v2093 = vadd.f32 0.0, %v2092
      %2094 = vdwg.mxu0
      %2095 = vrot.lane.b32.xlu0 %v1832, 72
      %v2096 = vpop.permute.xlu0 %2095
      %v2098 = vsel %vm943, %v2096, %v2020
      %v2099 = vmul.f32 %v1832, %v1174
      %v2100 = vmul.f32 %v2098, %v790
      %2102 = vrot.lane.b32.xlu0 %v2100, 48
      %v2103 = vpop.permute.xlu0 %2102
      %v2105 = vadd.f32 %v2099, %v2103
      %2107 = vrot.lane.b32.xlu0 %v2105, 80
      %v2108 = vpop.permute.xlu0 %2107
      %2109 = vrot.lane.b32.xlu0 %v1869, 80
      %v2110 = vpop.permute.xlu0 %2109
      %v2111 = vsel %vm948, %v2108, 0
      %v2113 = vsel %vm948, %v2110, 0
      %2115 = vmatpush.xpose.msra.mxu0 0.0
      %2116 = vmatpush.xpose.msra.mxu0 0.0
      %2117 = vmatpush.xpose.msra.mxu0 0.0
      %2118 = vmatpush.xpose.msra.mxu0 0.0
      %2119 = vmatpush.xpose.msra.mxu0 0.0
      %2120 = vmatpush.xpose.msra.mxu0 0.0
      %2121 = vmatpush.xpose.msra.mxu0 0.0
      %2122 = vmatpush.xpose.msra.mxu0 0.0
      %2123 = vmatpush.xpose.msra.mxu0 0.0
      %2124 = vmatpush.xpose.msra.mxu0 0.0
      %2125 = vmatpush.xpose.msra.mxu0 0.0
      %2126 = vmatpush.xpose.msra.mxu0 0.0
      %2127 = vmatpush.xpose.msra.mxu0 0.0
      %2128 = vmatpush.xpose.msra.mxu0 0.0
      %2129 = vmatpush.xpose.msra.mxu0 0.0
      %2130 = vmatpush.xpose.msra.mxu0 %v2113
      %2131 = vmatmul.f32.gmra.mxu0 %v2111
      %v2132 = vpop.f32.mrf.mxu0
      %v2133 = vadd.f32 0.0, %v2132
      %2134 = vdwg.mxu0
      %v2135 = vmul.f32 %v2133, 0.25
      %v2136 = vsel %vm943, %v2135, -inf
      %2137 = vmax.xlane.f32.xlu0 %v2136
      %v2138 = vpop.xlane.xlu0 %2137
      %v2139 = vsub.f32 %v2135, %v2138
      %v2140 = vmul.f32 %v2139, 1.442695
      %v2141 = vpow.pop %v2140
      %v2142 = vsel %vm943, %v2141, 0.0
      %2143 = vadd.xlane.f32.xlu0 %v2142
      %v2144 = vpop.xlane.xlu0 %2143
      %v2145 = vrcp.pop %v2144
      %v2146 = vmul.f32 %v2141, %v2145
      %v2149 = vsel %vm943, %v2146, 0
      %2151 = vmatpush.msra.mxu0 0.0
      %2152 = vmatpush.msra.mxu0 0.0
      %2153 = vmatpush.msra.mxu0 0.0
      %2154 = vmatpush.msra.mxu0 0.0
      %2155 = vmatpush.msra.mxu0 0.0
      %2156 = vmatpush.msra.mxu0 0.0
      %2157 = vmatpush.msra.mxu0 0.0
      %2158 = vmatpush.msra.mxu0 0.0
      %2159 = vmatpush.msra.mxu0 0.0
      %2160 = vmatpush.msra.mxu0 0.0
      %2161 = vmatpush.msra.mxu0 0.0
      %2162 = vmatpush.msra.mxu0 0.0
      %2163 = vmatpush.msra.mxu0 0.0
      %2164 = vmatpush.msra.mxu0 0.0
      %2165 = vmatpush.msra.mxu0 0.0
      %2166 = vmatpush.msra.mxu0 %v2110
      %2167 = vmatmul.f32.gmra.mxu0 %v2149
      %v2168 = vpop.f32.mrf.mxu0
      %v2169 = vadd.f32 0.0, %v2168
      %2170 = vdwg.mxu0
      %2172 = vrot.lane.b32.xlu0 %v2017, 16
      %v2173 = vpop.permute.xlu0 %2172
      %2176 = vrot.lane.b32.xlu0 %v2093, 32
      %v2177 = vpop.permute.xlu0 %2176
      %2180 = vrot.lane.b32.xlu0 %v2169, 48
      %v2181 = vpop.permute.xlu0 %2180
      %v2183 = vsel %vm948, %v1941, %v2173
      %v2184 = vsel %vm1261, %v2183, %v2177
      %v2185 = vsel %vm1263, %v2184, %v2181
      %s2186 = scalar_lea.vmem %s15, 128
      %v2187 = vld [vmem:[%s2186] sm:$0xff]
      %v2188 = vld [vmem:[%s2186 + $0x8] sm:$0xff]
      %v2189 = vld [vmem:[%s2186 + $0x10] sm:$0xff]
      %v2190 = vld [vmem:[%s2186 + $0x18] sm:$0xff]
      %v2191 = vld [vmem:[%s2186 + $0x20] sm:$0xff]
      %v2192 = vld [vmem:[%s2186 + $0x28] sm:$0xff]
      %v2193 = vld [vmem:[%s2186 + $0x30] sm:$0xff]
      %v2194 = vld [vmem:[%s2186 + $0x38] sm:$0xff]
      %s2195 = scalar_lea.vmem %s16, 2
      %v2196 = vld [vmem:[%s2195] sm:$0x1]
      %v2198 = vperm.slane %v2196, 0
      %v2201 = vsel %vm877, %v2185, 0
      %2203 = vmatpush.msra.mxu0 0.0
      %2204 = vmatpush.msra.mxu0 0.0
      %2205 = vmatpush.msra.mxu0 0.0
      %2206 = vmatpush.msra.mxu0 0.0
      %2207 = vmatpush.msra.mxu0 0.0
      %2208 = vmatpush.msra.mxu0 0.0
      %2209 = vmatpush.msra.mxu0 0.0
      %2210 = vmatpush.msra.mxu0 0.0
      %2211 = vmatpush.msra.mxu0 %v2194
      %2212 = vmatpush.msra.mxu0 %v2193
      %2213 = vmatpush.msra.mxu0 %v2192
      %2214 = vmatpush.msra.mxu0 %v2191
      %2215 = vmatpush.msra.mxu0 %v2190
      %2216 = vmatpush.msra.mxu0 %v2189
      %2217 = vmatpush.msra.mxu0 %v2188
      %2218 = vmatpush.msra.mxu0 %v2187
      %2219 = vmatmul.f32.gmra.mxu0 %v2201
      %v2220 = vpop.f32.mrf.mxu0
      %v2221 = vadd.f32 %v2198, %v2220
      %2222 = vdwg.mxu0
      %v2223 = vadd.f32 %v2221, %v1799
      %v2224 = vsel %vm877, %v2223, 0.0
      %2225 = vadd.xlane.f32.xlu0 %v2224
      %v2226 = vpop.xlane.xlu0 %2225
      %v2227 = vmul.f32 %v2226, %v1310
      %v2228 = vsub.f32 %v2223, %v2227
      %v2229 = vmul.f32 %v2228, %v2228
      %v2230 = vsel %vm877, %v2229, 0.0
      %2231 = vadd.xlane.f32.xlu0 %v2230
      %v2232 = vpop.xlane.xlu0 %2231
      %v2233 = vmul.f32 %v2232, %v1310
      %v2234 = vadd.f32 %v2233, 1e-05
      %v2235 = vrsqrt.pop %v2234
      %v2236 = vmul.f32 %v2235, %v2234
      %v2237 = vmul.f32 %v2236, %v2235
      %v2238 = vmul.f32 0.5, %v2237
      %v2239 = vsub.f32 1.5, %v2238
      %v2240 = vmul.f32 %v2235, %v2239
      %vm2241 = vweird.f32 %v2234
      %vm2242 = vweird.f32 %v2235
      %vm2243 = vmor %vm2241, %vm2242
      %v2244 = vsel %vm2243, %v2235, %v2240
      %v2245 = vmul.f32 %v2228, %v2244
      %s2246 = scalar_lea.vmem %s17, 2
      %v2247 = vld [vmem:[%s2246] sm:$0x1]
      %v2249 = vperm.slane %v2247, 0
      %v2251 = vmul.f32 %v2245, %v2249
      %s2252 = scalar_lea.vmem %s18, 2
      %v2253 = vld [vmem:[%s2252] sm:$0x1]
      %v2255 = vperm.slane %v2253, 0
      %v2257 = vadd.f32 %v2251, %v2255
      %v2258 = vmax.f32 %v2257, 0.0
      %s2259 = scalar_lea.vmem %s11, 192
      %v2260 = vld [vmem:[%s2259] sm:$0xff]
      %v2261 = vld [vmem:[%s2259 + $0x8] sm:$0xff]
      %v2262 = vld [vmem:[%s2259 + $0x10] sm:$0xff]
      %v2263 = vld [vmem:[%s2259 + $0x18] sm:$0xff]
      %v2264 = vld [vmem:[%s2259 + $0x20] sm:$0xff]
      %v2265 = vld [vmem:[%s2259 + $0x28] sm:$0xff]
      %v2266 = vld [vmem:[%s2259 + $0x30] sm:$0xff]
      %v2267 = vld [vmem:[%s2259 + $0x38] sm:$0xff]
      %s2268 = scalar_lea.vmem %s12, 3
      %v2269 = vld [vmem:[%s2268] sm:$0x1]
      %v2271 = vperm.slane %v2269, 0
      %2273 = vmatpush.msra.mxu0 0.0
      %2274 = vmatpush.msra.mxu0 0.0
      %2275 = vmatpush.msra.mxu0 0.0
      %2276 = vmatpush.msra.mxu0 0.0
      %2277 = vmatpush.msra.mxu0 0.0
      %2278 = vmatpush.msra.mxu0 0.0
      %2279 = vmatpush.msra.mxu0 0.0
      %2280 = vmatpush.msra.mxu0 0.0
      %2281 = vmatpush.msra.mxu0 %v2267
      %2282 = vmatpush.msra.mxu0 %v2266
      %2283 = vmatpush.msra.mxu0 %v2265
      %2284 = vmatpush.msra.mxu0 %v2264
      %2285 = vmatpush.msra.mxu0 %v2263
      %2286 = vmatpush.msra.mxu0 %v2262
      %2287 = vmatpush.msra.mxu0 %v2261
      %2288 = vmatpush.msra.mxu0 %v2260
      %2289 = vmatmul.f32.gmra.mxu0 %v879
      %v2290 = vpop.f32.mrf.mxu0
      %v2291 = vadd.f32 %v2271, %v2290
      %2292 = vdwg.mxu0
      %s2293 = scalar_lea.vmem %s13, 192
      %v2294 = vld [vmem:[%s2293] sm:$0xff]
      %v2295 = vld [vmem:[%s2293 + $0x8] sm:$0xff]
      %v2296 = vld [vmem:[%s2293 + $0x10] sm:$0xff]
      %v2297 = vld [vmem:[%s2293 + $0x18] sm:$0xff]
      %v2298 = vld [vmem:[%s2293 + $0x20] sm:$0xff]
      %v2299 = vld [vmem:[%s2293 + $0x28] sm:$0xff]
      %v2300 = vld [vmem:[%s2293 + $0x30] sm:$0xff]
      %v2301 = vld [vmem:[%s2293 + $0x38] sm:$0xff]
      %s2302 = scalar_lea.vmem %s14, 3
      %v2303 = vld [vmem:[%s2302] sm:$0x1]
      %v2305 = vperm.slane %v2303, 0
      %v2308 = vsel %vm877, %v2258, 0
      %2310 = vmatpush.msra.mxu0 0.0
      %2311 = vmatpush.msra.mxu0 0.0
      %2312 = vmatpush.msra.mxu0 0.0
      %2313 = vmatpush.msra.mxu0 0.0
      %2314 = vmatpush.msra.mxu0 0.0
      %2315 = vmatpush.msra.mxu0 0.0
      %2316 = vmatpush.msra.mxu0 0.0
      %2317 = vmatpush.msra.mxu0 0.0
      %2318 = vmatpush.msra.mxu0 %v2301
      %2319 = vmatpush.msra.mxu0 %v2300
      %2320 = vmatpush.msra.mxu0 %v2299
      %2321 = vmatpush.msra.mxu0 %v2298
      %2322 = vmatpush.msra.mxu0 %v2297
      %2323 = vmatpush.msra.mxu0 %v2296
      %2324 = vmatpush.msra.mxu0 %v2295
      %2325 = vmatpush.msra.mxu0 %v2294
      %2326 = vmatmul.f32.gmra.mxu0 %v2308
      %v2327 = vpop.f32.mrf.mxu0
      %v2328 = vadd.f32 %v2305, %v2327
      %2329 = vdwg.mxu0
      %2331 = vrot.lane.b32.xlu0 %v2291, 120
      %v2332 = vpop.permute.xlu0 %2331
      %2334 = vrot.lane.b32.xlu0 %v2291, 8
      %v2335 = vpop.permute.xlu0 %2334
      %v2337 = vsel %vm943, %v2332, %v2335
      %v2338 = vmul.f32 %v2291, %v789
      %v2339 = vmul.f32 %v2337, %v790
      %v2340 = vadd.f32 %v2338, %v2339
      %v2342 = vsel %vm948, %v2340, 0
      %v2345 = vsel %vm948, %v2328, 0
      %2347 = vmatpush.xpose.msra.mxu0 0.0
      %2348 = vmatpush.xpose.msra.mxu0 0.0
      %2349 = vmatpush.xpose.msra.mxu0 0.0
      %2350 = vmatpush.xpose.msra.mxu0 0.0
      %2351 = vmatpush.xpose.msra.mxu0 0.0
      %2352 = vmatpush.xpose.msra.mxu0 0.0
      %2353 = vmatpush.xpose.msra.mxu0 0.0
      %2354 = vmatpush.xpose.msra.mxu0 0.0
      %2355 = vmatpush.xpose.msra.mxu0 0.0
      %2356 = vmatpush.xpose.msra.mxu0 0.0
      %2357 = vmatpush.xpose.msra.mxu0 0.0
      %2358 = vmatpush.xpose.msra.mxu0 0.0
      %2359 = vmatpush.xpose.msra.mxu0 0.0
      %2360 = vmatpush.xpose.msra.mxu0 0.0
      %2361 = vmatpush.xpose.msra.mxu0 0.0
      %2362 = vmatpush.xpose.msra.mxu0 %v2345
      %2363 = vmatmul.f32.gmra.mxu0 %v2342
      %v2364 = vpop.f32.mrf.mxu0
      %v2365 = vadd.f32 0.0, %v2364
      %2366 = vdwg.mxu0
      %v2367 = vmul.f32 %v2365, 0.25
      %v2368 = vsel %vm943, %v2367, -inf
      %2369 = vmax.xlane.f32.xlu0 %v2368
      %v2370 = vpop.xlane.xlu0 %2369
      %v2371 = vsub.f32 %v2367, %v2370
      %v2372 = vmul.f32 %v2371, 1.442695
      %v2373 = vpow.pop %v2372
      %v2374 = vsel %vm943, %v2373, 0.0
      %2375 = vadd.xlane.f32.xlu0 %v2374
      %v2376 = vpop.xlane.xlu0 %2375
      %v2377 = vrcp.pop %v2376
      %v2378 = vmul.f32 %v2373, %v2377
      %v2380 = vsel %vm943, %v2378, 0
      %2382 = vmatpush.msra.mxu0 0.0
      %2383 = vmatpush.msra.mxu0 0.0
      %2384 = vmatpush.msra.mxu0 0.0
      %2385 = vmatpush.msra.mxu0 0.0
      %2386 = vmatpush.msra.mxu0 0.0
      %2387 = vmatpush.msra.mxu0 0.0
      %2388 = vmatpush.msra.mxu0 0.0
      %2389 = vmatpush.msra.mxu0 0.0
      %2390 = vmatpush.msra.mxu0 0.0
      %2391 = vmatpush.msra.mxu0 0.0
      %2392 = vmatpush.msra.mxu0 0.0
      %2393 = vmatpush.msra.mxu0 0.0
      %2394 = vmatpush.msra.mxu0 0.0
      %2395 = vmatpush.msra.mxu0 0.0
      %2396 = vmatpush.msra.mxu0 0.0
      %2397 = vmatpush.msra.mxu0 %v2328
      %2398 = vmatmul.f32.gmra.mxu0 %v2380
      %v2399 = vpop.f32.mrf.mxu0
      %v2400 = vadd.f32 0.0, %v2399
      %2401 = vdwg.mxu0
      %2402 = vrot.lane.b32.xlu0 %v2291, 104
      %v2403 = vpop.permute.xlu0 %2402
      %v2405 = vsel %vm943, %v2403, %v2332
      %v2406 = vmul.f32 %v2291, %v1016
      %v2407 = vmul.f32 %v2405, %v790
      %2409 = vrot.lane.b32.xlu0 %v2407, 16
      %v2410 = vpop.permute.xlu0 %2409
      %v2412 = vadd.f32 %v2406, %v2410
      %2414 = vrot.lane.b32.xlu0 %v2412, 112
      %v2415 = vpop.permute.xlu0 %2414
      %2416 = vrot.lane.b32.xlu0 %v2328, 112
      %v2417 = vpop.permute.xlu0 %2416
      %v2418 = vsel %vm948, %v2415, 0
      %v2420 = vsel %vm948, %v2417, 0
      %2422 = vmatpush.xpose.msra.mxu0 0.0
      %2423 = vmatpush.xpose.msra.mxu0 0.0
      %2424 = vmatpush.xpose.msra.mxu0 0.0
      %2425 = vmatpush.xpose.msra.mxu0 0.0
      %2426 = vmatpush.xpose.msra.mxu0 0.0
      %2427 = vmatpush.xpose.msra.mxu0 0.0
      %2428 = vmatpush.xpose.msra.mxu0 0.0
      %2429 = vmatpush.xpose.msra.mxu0 0.0
      %2430 = vmatpush.xpose.msra.mxu0 0.0
      %2431 = vmatpush.xpose.msra.mxu0 0.0
      %2432 = vmatpush.xpose.msra.mxu0 0.0
      %2433 = vmatpush.xpose.msra.mxu0 0.0
      %2434 = vmatpush.xpose.msra.mxu0 0.0
      %2435 = vmatpush.xpose.msra.mxu0 0.0
      %2436 = vmatpush.xpose.msra.mxu0 0.0
      %2437 = vmatpush.xpose.msra.mxu0 %v2420
      %2438 = vmatmul.f32.gmra.mxu0 %v2418
      %v2439 = vpop.f32.mrf.mxu0
      %v2440 = vadd.f32 0.0, %v2439
      %2441 = vdwg.mxu0
      %v2442 = vmul.f32 %v2440, 0.25
      %v2443 = vsel %vm943, %v2442, -inf
      %2444 = vmax.xlane.f32.xlu0 %v2443
      %v2445 = vpop.xlane.xlu0 %2444
      %v2446 = vsub.f32 %v2442, %v2445
      %v2447 = vmul.f32 %v2446, 1.442695
      %v2448 = vpow.pop %v2447
      %v2449 = vsel %vm943, %v2448, 0.0
      %2450 = vadd.xlane.f32.xlu0 %v2449
      %v2451 = vpop.xlane.xlu0 %2450
      %v2452 = vrcp.pop %v2451
      %v2453 = vmul.f32 %v2448, %v2452
      %v2456 = vsel %vm943, %v2453, 0
      %2458 = vmatpush.msra.mxu0 0.0
      %2459 = vmatpush.msra.mxu0 0.0
      %2460 = vmatpush.msra.mxu0 0.0
      %2461 = vmatpush.msra.mxu0 0.0
      %2462 = vmatpush.msra.mxu0 0.0
      %2463 = vmatpush.msra.mxu0 0.0
      %2464 = vmatpush.msra.mxu0 0.0
      %2465 = vmatpush.msra.mxu0 0.0
      %2466 = vmatpush.msra.mxu0 0.0
      %2467 = vmatpush.msra.mxu0 0.0
      %2468 = vmatpush.msra.mxu0 0.0
      %2469 = vmatpush.msra.mxu0 0.0
      %2470 = vmatpush.msra.mxu0 0.0
      %2471 = vmatpush.msra.mxu0 0.0
      %2472 = vmatpush.msra.mxu0 0.0
      %2473 = vmatpush.msra.mxu0 %v2417
      %2474 = vmatmul.f32.gmra.mxu0 %v2456
      %v2475 = vpop.f32.mrf.mxu0
      %v2476 = vadd.f32 0.0, %v2475
      %2477 = vdwg.mxu0
      %2478 = vrot.lane.b32.xlu0 %v2291, 88
      %v2479 = vpop.permute.xlu0 %2478
      %v2481 = vsel %vm943, %v2479, %v2403
      %v2482 = vmul.f32 %v2291, %v1095
      %v2483 = vmul.f32 %v2481, %v790
      %2485 = vrot.lane.b32.xlu0 %v2483, 32
      %v2486 = vpop.permute.xlu0 %2485
      %v2488 = vadd.f32 %v2482, %v2486
      %2490 = vrot.lane.b32.xlu0 %v2488, 96
      %v2491 = vpop.permute.xlu0 %2490
      %2492 = vrot.lane.b32.xlu0 %v2328, 96
      %v2493 = vpop.permute.xlu0 %2492
      %v2494 = vsel %vm948, %v2491, 0
      %v2496 = vsel %vm948, %v2493, 0
      %2498 = vmatpush.xpose.msra.mxu0 0.0
      %2499 = vmatpush.xpose.msra.mxu0 0.0
      %2500 = vmatpush.xpose.msra.mxu0 0.0
      %2501 = vmatpush.xpose.msra.mxu0 0.0
      %2502 = vmatpush.xpose.msra.mxu0 0.0
      %2503 = vmatpush.xpose.msra.mxu0 0.0
      %2504 = vmatpush.xpose.msra.mxu0 0.0
      %2505 = vmatpush.xpose.msra.mxu0 0.0
      %2506 = vmatpush.xpose.msra.mxu0 0.0
      %2507 = vmatpush.xpose.msra.mxu0 0.0
      %2508 = vmatpush.xpose.msra.mxu0 0.0
      %2509 = vmatpush.xpose.msra.mxu0 0.0
      %2510 = vmatpush.xpose.msra.mxu0 0.0
      %2511 = vmatpush.xpose.msra.mxu0 0.0
      %2512 = vmatpush.xpose.msra.mxu0 0.0
      %2513 = vmatpush.xpose.msra.mxu0 %v2496
      %2514 = vmatmul.f32.gmra.mxu0 %v2494
      %v2515 = vpop.f32.mrf.mxu0
      %v2516 = vadd.f32 0.0, %v2515
      %2517 = vdwg.mxu0
      %v2518 = vmul.f32 %v2516, 0.25
      %v2519 = vsel %vm943, %v2518, -inf
      %2520 = vmax.xlane.f32.xlu0 %v2519
      %v2521 = vpop.xlane.xlu0 %2520
      %v2522 = vsub.f32 %v2518, %v2521
      %v2523 = vmul.f32 %v2522, 1.442695
      %v2524 = vpow.pop %v2523
      %v2525 = vsel %vm943, %v2524, 0.0
      %2526 = vadd.xlane.f32.xlu0 %v2525
      %v2527 = vpop.xlane.xlu0 %2526
      %v2528 = vrcp.pop %v2527
      %v2529 = vmul.f32 %v2524, %v2528
      %v2532 = vsel %vm943, %v2529, 0
      %2534 = vmatpush.msra.mxu0 0.0
      %2535 = vmatpush.msra.mxu0 0.0
      %2536 = vmatpush.msra.mxu0 0.0
      %2537 = vmatpush.msra.mxu0 0.0
      %2538 = vmatpush.msra.mxu0 0.0
      %2539 = vmatpush.msra.mxu0 0.0
      %2540 = vmatpush.msra.mxu0 0.0
      %2541 = vmatpush.msra.mxu0 0.0
      %2542 = vmatpush.msra.mxu0 0.0
      %2543 = vmatpush.msra.mxu0 0.0
      %2544 = vmatpush.msra.mxu0 0.0
      %2545 = vmatpush.msra.mxu0 0.0
      %2546 = vmatpush.msra.mxu0 0.0
      %2547 = vmatpush.msra.mxu0 0.0
      %2548 = vmatpush.msra.mxu0 0.0
      %2549 = vmatpush.msra.mxu0 %v2493
      %2550 = vmatmul.f32.gmra.mxu0 %v2532
      %v2551 = vpop.f32.mrf.mxu0
      %v2552 = vadd.f32 0.0, %v2551
      %2553 = vdwg.mxu0
      %2554 = vrot.lane.b32.xlu0 %v2291, 72
      %v2555 = vpop.permute.xlu0 %2554
      %v2557 = vsel %vm943, %v2555, %v2479
      %v2558 = vmul.f32 %v2291, %v1174
      %v2559 = vmul.f32 %v2557, %v790
      %2561 = vrot.lane.b32.xlu0 %v2559, 48
      %v2562 = vpop.permute.xlu0 %2561
      %v2564 = vadd.f32 %v2558, %v2562
      %2566 = vrot.lane.b32.xlu0 %v2564, 80
      %v2567 = vpop.permute.xlu0 %2566
      %2568 = vrot.lane.b32.xlu0 %v2328, 80
      %v2569 = vpop.permute.xlu0 %2568
      %v2570 = vsel %vm948, %v2567, 0
      %v2572 = vsel %vm948, %v2569, 0
      %2574 = vmatpush.xpose.msra.mxu0 0.0
      %2575 = vmatpush.xpose.msra.mxu0 0.0
      %2576 = vmatpush.xpose.msra.mxu0 0.0
      %2577 = vmatpush.xpose.msra.mxu0 0.0
      %2578 = vmatpush.xpose.msra.mxu0 0.0
      %2579 = vmatpush.xpose.msra.mxu0 0.0
      %2580 = vmatpush.xpose.msra.mxu0 0.0
      %2581 = vmatpush.xpose.msra.mxu0 0.0
      %2582 = vmatpush.xpose.msra.mxu0 0.0
      %2583 = vmatpush.xpose.msra.mxu0 0.0
      %2584 = vmatpush.xpose.msra.mxu0 0.0
      %2585 = vmatpush.xpose.msra.mxu0 0.0
      %2586 = vmatpush.xpose.msra.mxu0 0.0
      %2587 = vmatpush.xpose.msra.mxu0 0.0
      %2588 = vmatpush.xpose.msra.mxu0 0.0
      %2589 = vmatpush.xpose.msra.mxu0 %v2572
      %2590 = vmatmul.f32.gmra.mxu0 %v2570
      %v2591 = vpop.f32.mrf.mxu0
      %v2592 = vadd.f32 0.0, %v2591
      %2593 = vdwg.mxu0
      %v2594 = vmul.f32 %v2592, 0.25
      %v2595 = vsel %vm943, %v2594, -inf
      %2596 = vmax.xlane.f32.xlu0 %v2595
      %v2597 = vpop.xlane.xlu0 %2596
      %v2598 = vsub.f32 %v2594, %v2597
      %v2599 = vmul.f32 %v2598, 1.442695
      %v2600 = vpow.pop %v2599
      %v2601 = vsel %vm943, %v2600, 0.0
      %2602 = vadd.xlane.f32.xlu0 %v2601
      %v2603 = vpop.xlane.xlu0 %2602
      %v2604 = vrcp.pop %v2603
      %v2605 = vmul.f32 %v2600, %v2604
      %v2608 = vsel %vm943, %v2605, 0
      %2610 = vmatpush.msra.mxu0 0.0
      %2611 = vmatpush.msra.mxu0 0.0
      %2612 = vmatpush.msra.mxu0 0.0
      %2613 = vmatpush.msra.mxu0 0.0
      %2614 = vmatpush.msra.mxu0 0.0
      %2615 = vmatpush.msra.mxu0 0.0
      %2616 = vmatpush.msra.mxu0 0.0
      %2617 = vmatpush.msra.mxu0 0.0
      %2618 = vmatpush.msra.mxu0 0.0
      %2619 = vmatpush.msra.mxu0 0.0
      %2620 = vmatpush.msra.mxu0 0.0
      %2621 = vmatpush.msra.mxu0 0.0
      %2622 = vmatpush.msra.mxu0 0.0
      %2623 = vmatpush.msra.mxu0 0.0
      %2624 = vmatpush.msra.mxu0 0.0
      %2625 = vmatpush.msra.mxu0 %v2569
      %2626 = vmatmul.f32.gmra.mxu0 %v2608
      %v2627 = vpop.f32.mrf.mxu0
      %v2628 = vadd.f32 0.0, %v2627
      %2629 = vdwg.mxu0
      %2631 = vrot.lane.b32.xlu0 %v2476, 16
      %v2632 = vpop.permute.xlu0 %2631
      %2635 = vrot.lane.b32.xlu0 %v2552, 32
      %v2636 = vpop.permute.xlu0 %2635
      %2639 = vrot.lane.b32.xlu0 %v2628, 48
      %v2640 = vpop.permute.xlu0 %2639
      %v2642 = vsel %vm948, %v2400, %v2632
      %v2643 = vsel %vm1261, %v2642, %v2636
      %v2644 = vsel %vm1263, %v2643, %v2640
      %s2645 = scalar_lea.vmem %s15, 192
      %v2646 = vld [vmem:[%s2645] sm:$0xff]
      %v2647 = vld [vmem:[%s2645 + $0x8] sm:$0xff]
      %v2648 = vld [vmem:[%s2645 + $0x10] sm:$0xff]
      %v2649 = vld [vmem:[%s2645 + $0x18] sm:$0xff]
      %v2650 = vld [vmem:[%s2645 + $0x20] sm:$0xff]
      %v2651 = vld [vmem:[%s2645 + $0x28] sm:$0xff]
      %v2652 = vld [vmem:[%s2645 + $0x30] sm:$0xff]
      %v2653 = vld [vmem:[%s2645 + $0x38] sm:$0xff]
      %s2654 = scalar_lea.vmem %s16, 3
      %v2655 = vld [vmem:[%s2654] sm:$0x1]
      %v2657 = vperm.slane %v2655, 0
      %v2660 = vsel %vm877, %v2644, 0
      %2662 = vmatpush.msra.mxu0 0.0
      %2663 = vmatpush.msra.mxu0 0.0
      %2664 = vmatpush.msra.mxu0 0.0
      %2665 = vmatpush.msra.mxu0 0.0
      %2666 = vmatpush.msra.mxu0 0.0
      %2667 = vmatpush.msra.mxu0 0.0
      %2668 = vmatpush.msra.mxu0 0.0
      %2669 = vmatpush.msra.mxu0 0.0
      %2670 = vmatpush.msra.mxu0 %v2653
      %2671 = vmatpush.msra.mxu0 %v2652
      %2672 = vmatpush.msra.mxu0 %v2651
      %2673 = vmatpush.msra.mxu0 %v2650
      %2674 = vmatpush.msra.mxu0 %v2649
      %2675 = vmatpush.msra.mxu0 %v2648
      %2676 = vmatpush.msra.mxu0 %v2647
      %2677 = vmatpush.msra.mxu0 %v2646
      %2678 = vmatmul.f32.gmra.mxu0 %v2660
      %v2679 = vpop.f32.mrf.mxu0
      %v2680 = vadd.f32 %v2657, %v2679
      %2681 = vdwg.mxu0
      %v2682 = vadd.f32 %v2680, %v2258
      %v2683 = vsel %vm877, %v2682, 0.0
      %2684 = vadd.xlane.f32.xlu0 %v2683
      %v2685 = vpop.xlane.xlu0 %2684
      %v2686 = vmul.f32 %v2685, %v1310
      %v2687 = vsub.f32 %v2682, %v2686
      %v2688 = vmul.f32 %v2687, %v2687
      %v2689 = vsel %vm877, %v2688, 0.0
      %2690 = vadd.xlane.f32.xlu0 %v2689
      %v2691 = vpop.xlane.xlu0 %2690
      %v2692 = vmul.f32 %v2691, %v1310
      %v2693 = vadd.f32 %v2692, 1e-05
      %v2694 = vrsqrt.pop %v2693
      %v2695 = vmul.f32 %v2694, %v2693
      %v2696 = vmul.f32 %v2695, %v2694
      %v2697 = vmul.f32 0.5, %v2696
      %v2698 = vsub.f32 1.5, %v2697
      %v2699 = vmul.f32 %v2694, %v2698
      %vm2700 = vweird.f32 %v2693
      %vm2701 = vweird.f32 %v2694
      %vm2702 = vmor %vm2700, %vm2701
      %v2703 = vsel %vm2702, %v2694, %v2699
      %v2704 = vmul.f32 %v2687, %v2703
      %s2705 = scalar_lea.vmem %s17, 3
      %v2706 = vld [vmem:[%s2705] sm:$0x1]
      %v2708 = vperm.slane %v2706, 0
      %v2710 = vmul.f32 %v2704, %v2708
      %s2711 = scalar_lea.vmem %s18, 3
      %v2712 = vld [vmem:[%s2711] sm:$0x1]
      %v2714 = vperm.slane %v2712, 0
      %v2716 = vadd.f32 %v2710, %v2714
      %v2717 = vmax.f32 %v2716, 0.0
      %s2718 = scalar_lea.vmem %s11, 256
      %v2719 = vld [vmem:[%s2718] sm:$0xff]
      %v2720 = vld [vmem:[%s2718 + $0x8] sm:$0xff]
      %v2721 = vld [vmem:[%s2718 + $0x10] sm:$0xff]
      %v2722 = vld [vmem:[%s2718 + $0x18] sm:$0xff]
      %v2723 = vld [vmem:[%s2718 + $0x20] sm:$0xff]
      %v2724 = vld [vmem:[%s2718 + $0x28] sm:$0xff]
      %v2725 = vld [vmem:[%s2718 + $0x30] sm:$0xff]
      %v2726 = vld [vmem:[%s2718 + $0x38] sm:$0xff]
      %s2727 = scalar_lea.vmem %s12, 4
      %v2728 = vld [vmem:[%s2727] sm:$0x1]
      %v2730 = vperm.slane %v2728, 0
      %2732 = vmatpush.msra.mxu0 0.0
      %2733 = vmatpush.msra.mxu0 0.0
      %2734 = vmatpush.msra.mxu0 0.0
      %2735 = vmatpush.msra.mxu0 0.0
      %2736 = vmatpush.msra.mxu0 0.0
      %2737 = vmatpush.msra.mxu0 0.0
      %2738 = vmatpush.msra.mxu0 0.0
      %2739 = vmatpush.msra.mxu0 0.0
      %2740 = vmatpush.msra.mxu0 %v2726
      %2741 = vmatpush.msra.mxu0 %v2725
      %2742 = vmatpush.msra.mxu0 %v2724
      %2743 = vmatpush.msra.mxu0 %v2723
      %2744 = vmatpush.msra.mxu0 %v2722
      %2745 = vmatpush.msra.mxu0 %v2721
      %2746 = vmatpush.msra.mxu0 %v2720
      %2747 = vmatpush.msra.mxu0 %v2719
      %2748 = vmatmul.f32.gmra.mxu0 %v879
      %v2749 = vpop.f32.mrf.mxu0
      %v2750 = vadd.f32 %v2730, %v2749
      %2751 = vdwg.mxu0
      %s2752 = scalar_lea.vmem %s13, 256
      %v2753 = vld [vmem:[%s2752] sm:$0xff]
      %v2754 = vld [vmem:[%s2752 + $0x8] sm:$0xff]
      %v2755 = vld [vmem:[%s2752 + $0x10] sm:$0xff]
      %v2756 = vld [vmem:[%s2752 + $0x18] sm:$0xff]
      %v2757 = vld [vmem:[%s2752 + $0x20] sm:$0xff]
      %v2758 = vld [vmem:[%s2752 + $0x28] sm:$0xff]
      %v2759 = vld [vmem:[%s2752 + $0x30] sm:$0xff]
      %v2760 = vld [vmem:[%s2752 + $0x38] sm:$0xff]
      %s2761 = scalar_lea.vmem %s14, 4
      %v2762 = vld [vmem:[%s2761] sm:$0x1]
      %v2764 = vperm.slane %v2762, 0
      %v2767 = vsel %vm877, %v2717, 0
      %2769 = vmatpush.msra.mxu0 0.0
      %2770 = vmatpush.msra.mxu0 0.0
      %2771 = vmatpush.msra.mxu0 0.0
      %2772 = vmatpush.msra.mxu0 0.0
      %2773 = vmatpush.msra.mxu0 0.0
      %2774 = vmatpush.msra.mxu0 0.0
      %2775 = vmatpush.msra.mxu0 0.0
      %2776 = vmatpush.msra.mxu0 0.0
      %2777 = vmatpush.msra.mxu0 %v2760
      %2778 = vmatpush.msra.mxu0 %v2759
      %2779 = vmatpush.msra.mxu0 %v2758
      %2780 = vmatpush.msra.mxu0 %v2757
      %2781 = vmatpush.msra.mxu0 %v2756
      %2782 = vmatpush.msra.mxu0 %v2755
      %2783 = vmatpush.msra.mxu0 %v2754
      %2784 = vmatpush.msra.mxu0 %v2753
      %2785 = vmatmul.f32.gmra.mxu0 %v2767
      %v2786 = vpop.f32.mrf.mxu0
      %v2787 = vadd.f32 %v2764, %v2786
      %2788 = vdwg.mxu0
      %2790 = vrot.lane.b32.xlu0 %v2750, 120
      %v2791 = vpop.permute.xlu0 %2790
      %2793 = vrot.lane.b32.xlu0 %v2750, 8
      %v2794 = vpop.permute.xlu0 %2793
      %v2796 = vsel %vm943, %v2791, %v2794
      %v2797 = vmul.f32 %v2750, %v789
      %v2798 = vmul.f32 %v2796, %v790
      %v2799 = vadd.f32 %v2797, %v2798
      %v2801 = vsel %vm948, %v2799, 0
      %v2804 = vsel %vm948, %v2787, 0
      %2806 = vmatpush.xpose.msra.mxu0 0.0
      %2807 = vmatpush.xpose.msra.mxu0 0.0
      %2808 = vmatpush.xpose.msra.mxu0 0.0
      %2809 = vmatpush.xpose.msra.mxu0 0.0
      %2810 = vmatpush.xpose.msra.mxu0 0.0
      %2811 = vmatpush.xpose.msra.mxu0 0.0
      %2812 = vmatpush.xpose.msra.mxu0 0.0
      %2813 = vmatpush.xpose.msra.mxu0 0.0
      %2814 = vmatpush.xpose.msra.mxu0 0.0
      %2815 = vmatpush.xpose.msra.mxu0 0.0
      %2816 = vmatpush.xpose.msra.mxu0 0.0
      %2817 = vmatpush.xpose.msra.mxu0 0.0
      %2818 = vmatpush.xpose.msra.mxu0 0.0
      %2819 = vmatpush.xpose.msra.mxu0 0.0
      %2820 = vmatpush.xpose.msra.mxu0 0.0
      %2821 = vmatpush.xpose.msra.mxu0 %v2804
      %2822 = vmatmul.f32.gmra.mxu0 %v2801
      %v2823 = vpop.f32.mrf.mxu0
      %v2824 = vadd.f32 0.0, %v2823
      %2825 = vdwg.mxu0
      %v2826 = vmul.f32 %v2824, 0.25
      %v2827 = vsel %vm943, %v2826, -inf
      %2828 = vmax.xlane.f32.xlu0 %v2827
      %v2829 = vpop.xlane.xlu0 %2828
      %v2830 = vsub.f32 %v2826, %v2829
      %v2831 = vmul.f32 %v2830, 1.442695
      %v2832 = vpow.pop %v2831
      %v2833 = vsel %vm943, %v2832, 0.0
      %2834 = vadd.xlane.f32.xlu0 %v2833
      %v2835 = vpop.xlane.xlu0 %2834
      %v2836 = vrcp.pop %v2835
      %v2837 = vmul.f32 %v2832, %v2836
      %v2839 = vsel %vm943, %v2837, 0
      %2841 = vmatpush.msra.mxu0 0.0
      %2842 = vmatpush.msra.mxu0 0.0
      %2843 = vmatpush.msra.mxu0 0.0
      %2844 = vmatpush.msra.mxu0 0.0
      %2845 = vmatpush.msra.mxu0 0.0
      %2846 = vmatpush.msra.mxu0 0.0
      %2847 = vmatpush.msra.mxu0 0.0
      %2848 = vmatpush.msra.mxu0 0.0
      %2849 = vmatpush.msra.mxu0 0.0
      %2850 = vmatpush.msra.mxu0 0.0
      %2851 = vmatpush.msra.mxu0 0.0
      %2852 = vmatpush.msra.mxu0 0.0
      %2853 = vmatpush.msra.mxu0 0.0
      %2854 = vmatpush.msra.mxu0 0.0
      %2855 = vmatpush.msra.mxu0 0.0
      %2856 = vmatpush.msra.mxu0 %v2787
      %2857 = vmatmul.f32.gmra.mxu0 %v2839
      %v2858 = vpop.f32.mrf.mxu0
      %v2859 = vadd.f32 0.0, %v2858
      %2860 = vdwg.mxu0
      %2861 = vrot.lane.b32.xlu0 %v2750, 104
      %v2862 = vpop.permute.xlu0 %2861
      %v2864 = vsel %vm943, %v2862, %v2791
      %v2865 = vmul.f32 %v2750, %v1016
      %v2866 = vmul.f32 %v2864, %v790
      %2868 = vrot.lane.b32.xlu0 %v2866, 16
      %v2869 = vpop.permute.xlu0 %2868
      %v2871 = vadd.f32 %v2865, %v2869
      %2873 = vrot.lane.b32.xlu0 %v2871, 112
      %v2874 = vpop.permute.xlu0 %2873
      %2875 = vrot.lane.b32.xlu0 %v2787, 112
      %v2876 = vpop.permute.xlu0 %2875
      %v2877 = vsel %vm948, %v2874, 0
      %v2879 = vsel %vm948, %v2876, 0
      %2881 = vmatpush.xpose.msra.mxu0 0.0
      %2882 = vmatpush.xpose.msra.mxu0 0.0
      %2883 = vmatpush.xpose.msra.mxu0 0.0
      %2884 = vmatpush.xpose.msra.mxu0 0.0
      %2885 = vmatpush.xpose.msra.mxu0 0.0
      %2886 = vmatpush.xpose.msra.mxu0 0.0
      %2887 = vmatpush.xpose.msra.mxu0 0.0
      %2888 = vmatpush.xpose.msra.mxu0 0.0
      %2889 = vmatpush.xpose.msra.mxu0 0.0
      %2890 = vmatpush.xpose.msra.mxu0 0.0
      %2891 = vmatpush.xpose.msra.mxu0 0.0
      %2892 = vmatpush.xpose.msra.mxu0 0.0
      %2893 = vmatpush.xpose.msra.mxu0 0.0
      %2894 = vmatpush.xpose.msra.mxu0 0.0
      %2895 = vmatpush.xpose.msra.mxu0 0.0
      %2896 = vmatpush.xpose.msra.mxu0 %v2879
      %2897 = vmatmul.f32.gmra.mxu0 %v2877
      %v2898 = vpop.f32.mrf.mxu0
      %v2899 = vadd.f32 0.0, %v2898
      %2900 = vdwg.mxu0
      %v2901 = vmul.f32 %v2899, 0.25
      %v2902 = vsel %vm943, %v2901, -inf
      %2903 = vmax.xlane.f32.xlu0 %v2902
      %v2904 = vpop.xlane.xlu0 %2903
      %v2905 = vsub.f32 %v2901, %v2904
      %v2906 = vmul.f32 %v2905, 1.442695
      %v2907 = vpow.pop %v2906
      %v2908 = vsel %vm943, %v2907, 0.0
      %2909 = vadd.xlane.f32.xlu0 %v2908
      %v2910 = vpop.xlane.xlu0 %2909
      %v2911 = vrcp.pop %v2910
      %v2912 = vmul.f32 %v2907, %v2911
      %v2915 = vsel %vm943, %v2912, 0
      %2917 = vmatpush.msra.mxu0 0.0
      %2918 = vmatpush.msra.mxu0 0.0
      %2919 = vmatpush.msra.mxu0 0.0
      %2920 = vmatpush.msra.mxu0 0.0
      %2921 = vmatpush.msra.mxu0 0.0
      %2922 = vmatpush.msra.mxu0 0.0
      %2923 = vmatpush.msra.mxu0 0.0
      %2924 = vmatpush.msra.mxu0 0.0
      %2925 = vmatpush.msra.mxu0 0.0
      %2926 = vmatpush.msra.mxu0 0.0
      %2927 = vmatpush.msra.mxu0 0.0
      %2928 = vmatpush.msra.mxu0 0.0
      %2929 = vmatpush.msra.mxu0 0.0
      %2930 = vmatpush.msra.mxu0 0.0
      %2931 = vmatpush.msra.mxu0 0.0
      %2932 = vmatpush.msra.mxu0 %v2876
      %2933 = vmatmul.f32.gmra.mxu0 %v2915
      %v2934 = vpop.f32.mrf.mxu0
      %v2935 = vadd.f32 0.0, %v2934
      %2936 = vdwg.mxu0
      %2937 = vrot.lane.b32.xlu0 %v2750, 88
      %v2938 = vpop.permute.xlu0 %2937
      %v2940 = vsel %vm943, %v2938, %v2862
      %v2941 = vmul.f32 %v2750, %v1095
      %v2942 = vmul.f32 %v2940, %v790
      %2944 = vrot.lane.b32.xlu0 %v2942, 32
      %v2945 = vpop.permute.xlu0 %2944
      %v2947 = vadd.f32 %v2941, %v2945
      %2949 = vrot.lane.b32.xlu0 %v2947, 96
      %v2950 = vpop.permute.xlu0 %2949
      %2951 = vrot.lane.b32.xlu0 %v2787, 96
      %v2952 = vpop.permute.xlu0 %2951
      %v2953 = vsel %vm948, %v2950, 0
      %v2955 = vsel %vm948, %v2952, 0
      %2957 = vmatpush.xpose.msra.mxu0 0.0
      %2958 = vmatpush.xpose.msra.mxu0 0.0
      %2959 = vmatpush.xpose.msra.mxu0 0.0
      %2960 = vmatpush.xpose.msra.mxu0 0.0
      %2961 = vmatpush.xpose.msra.mxu0 0.0
      %2962 = vmatpush.xpose.msra.mxu0 0.0
      %2963 = vmatpush.xpose.msra.mxu0 0.0
      %2964 = vmatpush.xpose.msra.mxu0 0.0
      %2965 = vmatpush.xpose.msra.mxu0 0.0
      %2966 = vmatpush.xpose.msra.mxu0 0.0
      %2967 = vmatpush.xpose.msra.mxu0 0.0
      %2968 = vmatpush.xpose.msra.mxu0 0.0
      %2969 = vmatpush.xpose.msra.mxu0 0.0
      %2970 = vmatpush.xpose.msra.mxu0 0.0
      %2971 = vmatpush.xpose.msra.mxu0 0.0
      %2972 = vmatpush.xpose.msra.mxu0 %v2955
      %2973 = vmatmul.f32.gmra.mxu0 %v2953
      %v2974 = vpop.f32.mrf.mxu0
      %v2975 = vadd.f32 0.0, %v2974
      %2976 = vdwg.mxu0
      %v2977 = vmul.f32 %v2975, 0.25
      %v2978 = vsel %vm943, %v2977, -inf
      %2979 = vmax.xlane.f32.xlu0 %v2978
      %v2980 = vpop.xlane.xlu0 %2979
      %v2981 = vsub.f32 %v2977, %v2980
      %v2982 = vmul.f32 %v2981, 1.442695
      %v2983 = vpow.pop %v2982
      %v2984 = vsel %vm943, %v2983, 0.0
      %2985 = vadd.xlane.f32.xlu0 %v2984
      %v2986 = vpop.xlane.xlu0 %2985
      %v2987 = vrcp.pop %v2986
      %v2988 = vmul.f32 %v2983, %v2987
      %v2991 = vsel %vm943, %v2988, 0
      %2993 = vmatpush.msra.mxu0 0.0
      %2994 = vmatpush.msra.mxu0 0.0
      %2995 = vmatpush.msra.mxu0 0.0
      %2996 = vmatpush.msra.mxu0 0.0
      %2997 = vmatpush.msra.mxu0 0.0
      %2998 = vmatpush.msra.mxu0 0.0
      %2999 = vmatpush.msra.mxu0 0.0
      %3000 = vmatpush.msra.mxu0 0.0
      %3001 = vmatpush.msra.mxu0 0.0
      %3002 = vmatpush.msra.mxu0 0.0
      %3003 = vmatpush.msra.mxu0 0.0
      %3004 = vmatpush.msra.mxu0 0.0
      %3005 = vmatpush.msra.mxu0 0.0
      %3006 = vmatpush.msra.mxu0 0.0
      %3007 = vmatpush.msra.mxu0 0.0
      %3008 = vmatpush.msra.mxu0 %v2952
      %3009 = vmatmul.f32.gmra.mxu0 %v2991
      %v3010 = vpop.f32.mrf.mxu0
      %v3011 = vadd.f32 0.0, %v3010
      %3012 = vdwg.mxu0
      %3013 = vrot.lane.b32.xlu0 %v2750, 72
      %v3014 = vpop.permute.xlu0 %3013
      %v3016 = vsel %vm943, %v3014, %v2938
      %v3017 = vmul.f32 %v2750, %v1174
      %v3018 = vmul.f32 %v3016, %v790
      %3020 = vrot.lane.b32.xlu0 %v3018, 48
      %v3021 = vpop.permute.xlu0 %3020
      %v3023 = vadd.f32 %v3017, %v3021
      %3025 = vrot.lane.b32.xlu0 %v3023, 80
      %v3026 = vpop.permute.xlu0 %3025
      %3027 = vrot.lane.b32.xlu0 %v2787, 80
      %v3028 = vpop.permute.xlu0 %3027
      %v3029 = vsel %vm948, %v3026, 0
      %v3031 = vsel %vm948, %v3028, 0
      %3033 = vmatpush.xpose.msra.mxu0 0.0
      %3034 = vmatpush.xpose.msra.mxu0 0.0
      %3035 = vmatpush.xpose.msra.mxu0 0.0
      %3036 = vmatpush.xpose.msra.mxu0 0.0
      %3037 = vmatpush.xpose.msra.mxu0 0.0
      %3038 = vmatpush.xpose.msra.mxu0 0.0
      %3039 = vmatpush.xpose.msra.mxu0 0.0
      %3040 = vmatpush.xpose.msra.mxu0 0.0
      %3041 = vmatpush.xpose.msra.mxu0 0.0
      %3042 = vmatpush.xpose.msra.mxu0 0.0
      %3043 = vmatpush.xpose.msra.mxu0 0.0
      %3044 = vmatpush.xpose.msra.mxu0 0.0
      %3045 = vmatpush.xpose.msra.mxu0 0.0
      %3046 = vmatpush.xpose.msra.mxu0 0.0
      %3047 = vmatpush.xpose.msra.mxu0 0.0
      %3048 = vmatpush.xpose.msra.mxu0 %v3031
      %3049 = vmatmul.f32.gmra.mxu0 %v3029
      %v3050 = vpop.f32.mrf.mxu0
      %v3051 = vadd.f32 0.0, %v3050
      %3052 = vdwg.mxu0
      %v3053 = vmul.f32 %v3051, 0.25
      %v3054 = vsel %vm943, %v3053, -inf
      %3055 = vmax.xlane.f32.xlu0 %v3054
      %v3056 = vpop.xlane.xlu0 %3055
      %v3057 = vsub.f32 %v3053, %v3056
      %v3058 = vmul.f32 %v3057, 1.442695
      %v3059 = vpow.pop %v3058
      %v3060 = vsel %vm943, %v3059, 0.0
      %3061 = vadd.xlane.f32.xlu0 %v3060
      %v3062 = vpop.xlane.xlu0 %3061
      %v3063 = vrcp.pop %v3062
      %v3064 = vmul.f32 %v3059, %v3063
      %v3067 = vsel %vm943, %v3064, 0
      %3069 = vmatpush.msra.mxu0 0.0
      %3070 = vmatpush.msra.mxu0 0.0
      %3071 = vmatpush.msra.mxu0 0.0
      %3072 = vmatpush.msra.mxu0 0.0
      %3073 = vmatpush.msra.mxu0 0.0
      %3074 = vmatpush.msra.mxu0 0.0
      %3075 = vmatpush.msra.mxu0 0.0
      %3076 = vmatpush.msra.mxu0 0.0
      %3077 = vmatpush.msra.mxu0 0.0
      %3078 = vmatpush.msra.mxu0 0.0
      %3079 = vmatpush.msra.mxu0 0.0
      %3080 = vmatpush.msra.mxu0 0.0
      %3081 = vmatpush.msra.mxu0 0.0
      %3082 = vmatpush.msra.mxu0 0.0
      %3083 = vmatpush.msra.mxu0 0.0
      %3084 = vmatpush.msra.mxu0 %v3028
      %3085 = vmatmul.f32.gmra.mxu0 %v3067
      %v3086 = vpop.f32.mrf.mxu0
      %v3087 = vadd.f32 0.0, %v3086
      %3088 = vdwg.mxu0
      %3090 = vrot.lane.b32.xlu0 %v2935, 16
      %v3091 = vpop.permute.xlu0 %3090
      %3094 = vrot.lane.b32.xlu0 %v3011, 32
      %v3095 = vpop.permute.xlu0 %3094
      %3098 = vrot.lane.b32.xlu0 %v3087, 48
      %v3099 = vpop.permute.xlu0 %3098
      %v3101 = vsel %vm948, %v2859, %v3091
      %v3102 = vsel %vm1261, %v3101, %v3095
      %v3103 = vsel %vm1263, %v3102, %v3099
      %s3104 = scalar_lea.vmem %s15, 256
      %v3105 = vld [vmem:[%s3104] sm:$0xff]
      %v3106 = vld [vmem:[%s3104 + $0x8] sm:$0xff]
      %v3107 = vld [vmem:[%s3104 + $0x10] sm:$0xff]
      %v3108 = vld [vmem:[%s3104 + $0x18] sm:$0xff]
      %v3109 = vld [vmem:[%s3104 + $0x20] sm:$0xff]
      %v3110 = vld [vmem:[%s3104 + $0x28] sm:$0xff]
      %v3111 = vld [vmem:[%s3104 + $0x30] sm:$0xff]
      %v3112 = vld [vmem:[%s3104 + $0x38] sm:$0xff]
      %s3113 = scalar_lea.vmem %s16, 4
      %v3114 = vld [vmem:[%s3113] sm:$0x1]
      %v3116 = vperm.slane %v3114, 0
      %v3119 = vsel %vm877, %v3103, 0
      %3121 = vmatpush.msra.mxu0 0.0
      %3122 = vmatpush.msra.mxu0 0.0
      %3123 = vmatpush.msra.mxu0 0.0
      %3124 = vmatpush.msra.mxu0 0.0
      %3125 = vmatpush.msra.mxu0 0.0
      %3126 = vmatpush.msra.mxu0 0.0
      %3127 = vmatpush.msra.mxu0 0.0
      %3128 = vmatpush.msra.mxu0 0.0
      %3129 = vmatpush.msra.mxu0 %v3112
      %3130 = vmatpush.msra.mxu0 %v3111
      %3131 = vmatpush.msra.mxu0 %v3110
      %3132 = vmatpush.msra.mxu0 %v3109
      %3133 = vmatpush.msra.mxu0 %v3108
      %3134 = vmatpush.msra.mxu0 %v3107
      %3135 = vmatpush.msra.mxu0 %v3106
      %3136 = vmatpush.msra.mxu0 %v3105
      %3137 = vmatmul.f32.gmra.mxu0 %v3119
      %v3138 = vpop.f32.mrf.mxu0
      %v3139 = vadd.f32 %v3116, %v3138
      %3140 = vdwg.mxu0
      %v3141 = vadd.f32 %v3139, %v2717
      %v3142 = vsel %vm877, %v3141, 0.0
      %3143 = vadd.xlane.f32.xlu0 %v3142
      %v3144 = vpop.xlane.xlu0 %3143
      %v3145 = vmul.f32 %v3144, %v1310
      %v3146 = vsub.f32 %v3141, %v3145
      %v3147 = vmul.f32 %v3146, %v3146
      %v3148 = vsel %vm877, %v3147, 0.0
      %3149 = vadd.xlane.f32.xlu0 %v3148
      %v3150 = vpop.xlane.xlu0 %3149
      %v3151 = vmul.f32 %v3150, %v1310
      %v3152 = vadd.f32 %v3151, 1e-05
      %v3153 = vrsqrt.pop %v3152
      %v3154 = vmul.f32 %v3153, %v3152
      %v3155 = vmul.f32 %v3154, %v3153
      %v3156 = vmul.f32 0.5, %v3155
      %v3157 = vsub.f32 1.5, %v3156
      %v3158 = vmul.f32 %v3153, %v3157
      %vm3159 = vweird.f32 %v3152
      %vm3160 = vweird.f32 %v3153
      %vm3161 = vmor %vm3159, %vm3160
      %v3162 = vsel %vm3161, %v3153, %v3158
      %v3163 = vmul.f32 %v3146, %v3162
      %s3164 = scalar_lea.vmem %s17, 4
      %v3165 = vld [vmem:[%s3164] sm:$0x1]
      %v3167 = vperm.slane %v3165, 0
      %v3169 = vmul.f32 %v3163, %v3167
      %s3170 = scalar_lea.vmem %s18, 4
      %v3171 = vld [vmem:[%s3170] sm:$0x1]
      %v3173 = vperm.slane %v3171, 0
      %v3175 = vadd.f32 %v3169, %v3173
      %v3176 = vmax.f32 %v3175, 0.0
      %s3177 = scalar_lea.vmem %s11, 320
      %v3178 = vld [vmem:[%s3177] sm:$0xff]
      %v3179 = vld [vmem:[%s3177 + $0x8] sm:$0xff]
      %v3180 = vld [vmem:[%s3177 + $0x10] sm:$0xff]
      %v3181 = vld [vmem:[%s3177 + $0x18] sm:$0xff]
      %v3182 = vld [vmem:[%s3177 + $0x20] sm:$0xff]
      %v3183 = vld [vmem:[%s3177 + $0x28] sm:$0xff]
      %v3184 = vld [vmem:[%s3177 + $0x30] sm:$0xff]
      %v3185 = vld [vmem:[%s3177 + $0x38] sm:$0xff]
      %s3186 = scalar_lea.vmem %s12, 5
      %v3187 = vld [vmem:[%s3186] sm:$0x1]
      %v3189 = vperm.slane %v3187, 0
      %3191 = vmatpush.msra.mxu0 0.0
      %3192 = vmatpush.msra.mxu0 0.0
      %3193 = vmatpush.msra.mxu0 0.0
      %3194 = vmatpush.msra.mxu0 0.0
      %3195 = vmatpush.msra.mxu0 0.0
      %3196 = vmatpush.msra.mxu0 0.0
      %3197 = vmatpush.msra.mxu0 0.0
      %3198 = vmatpush.msra.mxu0 0.0
      %3199 = vmatpush.msra.mxu0 %v3185
      %3200 = vmatpush.msra.mxu0 %v3184
      %3201 = vmatpush.msra.mxu0 %v3183
      %3202 = vmatpush.msra.mxu0 %v3182
      %3203 = vmatpush.msra.mxu0 %v3181
      %3204 = vmatpush.msra.mxu0 %v3180
      %3205 = vmatpush.msra.mxu0 %v3179
      %3206 = vmatpush.msra.mxu0 %v3178
      %3207 = vmatmul.f32.gmra.mxu0 %v879
      %v3208 = vpop.f32.mrf.mxu0
      %v3209 = vadd.f32 %v3189, %v3208
      %3210 = vdwg.mxu0
      %s3211 = scalar_lea.vmem %s13, 320
      %v3212 = vld [vmem:[%s3211] sm:$0xff]
      %v3213 = vld [vmem:[%s3211 + $0x8] sm:$0xff]
      %v3214 = vld [vmem:[%s3211 + $0x10] sm:$0xff]
      %v3215 = vld [vmem:[%s3211 + $0x18] sm:$0xff]
      %v3216 = vld [vmem:[%s3211 + $0x20] sm:$0xff]
      %v3217 = vld [vmem:[%s3211 + $0x28] sm:$0xff]
      %v3218 = vld [vmem:[%s3211 + $0x30] sm:$0xff]
      %v3219 = vld [vmem:[%s3211 + $0x38] sm:$0xff]
      %s3220 = scalar_lea.vmem %s14, 5
      %v3221 = vld [vmem:[%s3220] sm:$0x1]
      %v3223 = vperm.slane %v3221, 0
      %v3226 = vsel %vm877, %v3176, 0
      %3228 = vmatpush.msra.mxu0 0.0
      %3229 = vmatpush.msra.mxu0 0.0
      %3230 = vmatpush.msra.mxu0 0.0
      %3231 = vmatpush.msra.mxu0 0.0
      %3232 = vmatpush.msra.mxu0 0.0
      %3233 = vmatpush.msra.mxu0 0.0
      %3234 = vmatpush.msra.mxu0 0.0
      %3235 = vmatpush.msra.mxu0 0.0
      %3236 = vmatpush.msra.mxu0 %v3219
      %3237 = vmatpush.msra.mxu0 %v3218
      %3238 = vmatpush.msra.mxu0 %v3217
      %3239 = vmatpush.msra.mxu0 %v3216
      %3240 = vmatpush.msra.mxu0 %v3215
      %3241 = vmatpush.msra.mxu0 %v3214
      %3242 = vmatpush.msra.mxu0 %v3213
      %3243 = vmatpush.msra.mxu0 %v3212
      %3244 = vmatmul.f32.gmra.mxu0 %v3226
      %v3245 = vpop.f32.mrf.mxu0
      %v3246 = vadd.f32 %v3223, %v3245
      %3247 = vdwg.mxu0
      %3249 = vrot.lane.b32.xlu0 %v3209, 120
      %v3250 = vpop.permute.xlu0 %3249
      %3252 = vrot.lane.b32.xlu0 %v3209, 8
      %v3253 = vpop.permute.xlu0 %3252
      %v3255 = vsel %vm943, %v3250, %v3253
      %v3256 = vmul.f32 %v3209, %v789
      %v3257 = vmul.f32 %v3255, %v790
      %v3258 = vadd.f32 %v3256, %v3257
      %v3260 = vsel %vm948, %v3258, 0
      %v3263 = vsel %vm948, %v3246, 0
      %3265 = vmatpush.xpose.msra.mxu0 0.0
      %3266 = vmatpush.xpose.msra.mxu0 0.0
      %3267 = vmatpush.xpose.msra.mxu0 0.0
      %3268 = vmatpush.xpose.msra.mxu0 0.0
      %3269 = vmatpush.xpose.msra.mxu0 0.0
      %3270 = vmatpush.xpose.msra.mxu0 0.0
      %3271 = vmatpush.xpose.msra.mxu0 0.0
      %3272 = vmatpush.xpose.msra.mxu0 0.0
      %3273 = vmatpush.xpose.msra.mxu0 0.0
      %3274 = vmatpush.xpose.msra.mxu0 0.0
      %3275 = vmatpush.xpose.msra.mxu0 0.0
      %3276 = vmatpush.xpose.msra.mxu0 0.0
      %3277 = vmatpush.xpose.msra.mxu0 0.0
      %3278 = vmatpush.xpose.msra.mxu0 0.0
      %3279 = vmatpush.xpose.msra.mxu0 0.0
      %3280 = vmatpush.xpose.msra.mxu0 %v3263
      %3281 = vmatmul.f32.gmra.mxu0 %v3260
      %v3282 = vpop.f32.mrf.mxu0
      %v3283 = vadd.f32 0.0, %v3282
      %3284 = vdwg.mxu0
      %v3285 = vmul.f32 %v3283, 0.25
      %v3286 = vsel %vm943, %v3285, -inf
      %3287 = vmax.xlane.f32.xlu0 %v3286
      %v3288 = vpop.xlane.xlu0 %3287
      %v3289 = vsub.f32 %v3285, %v3288
      %v3290 = vmul.f32 %v3289, 1.442695
      %v3291 = vpow.pop %v3290
      %v3292 = vsel %vm943, %v3291, 0.0
      %3293 = vadd.xlane.f32.xlu0 %v3292
      %v3294 = vpop.xlane.xlu0 %3293
      %v3295 = vrcp.pop %v3294
      %v3296 = vmul.f32 %v3291, %v3295
      %v3298 = vsel %vm943, %v3296, 0
      %3300 = vmatpush.msra.mxu0 0.0
      %3301 = vmatpush.msra.mxu0 0.0
      %3302 = vmatpush.msra.mxu0 0.0
      %3303 = vmatpush.msra.mxu0 0.0
      %3304 = vmatpush.msra.mxu0 0.0
      %3305 = vmatpush.msra.mxu0 0.0
      %3306 = vmatpush.msra.mxu0 0.0
      %3307 = vmatpush.msra.mxu0 0.0
      %3308 = vmatpush.msra.mxu0 0.0
      %3309 = vmatpush.msra.mxu0 0.0
      %3310 = vmatpush.msra.mxu0 0.0
      %3311 = vmatpush.msra.mxu0 0.0
      %3312 = vmatpush.msra.mxu0 0.0
      %3313 = vmatpush.msra.mxu0 0.0
      %3314 = vmatpush.msra.mxu0 0.0
      %3315 = vmatpush.msra.mxu0 %v3246
      %3316 = vmatmul.f32.gmra.mxu0 %v3298
      %v3317 = vpop.f32.mrf.mxu0
      %v3318 = vadd.f32 0.0, %v3317
      %3319 = vdwg.mxu0
      %3320 = vrot.lane.b32.xlu0 %v3209, 104
      %v3321 = vpop.permute.xlu0 %3320
      %v3323 = vsel %vm943, %v3321, %v3250
      %v3324 = vmul.f32 %v3209, %v1016
      %v3325 = vmul.f32 %v3323, %v790
      %3327 = vrot.lane.b32.xlu0 %v3325, 16
      %v3328 = vpop.permute.xlu0 %3327
      %v3330 = vadd.f32 %v3324, %v3328
      %3332 = vrot.lane.b32.xlu0 %v3330, 112
      %v3333 = vpop.permute.xlu0 %3332
      %3334 = vrot.lane.b32.xlu0 %v3246, 112
      %v3335 = vpop.permute.xlu0 %3334
      %v3336 = vsel %vm948, %v3333, 0
      %v3338 = vsel %vm948, %v3335, 0
      %3340 = vmatpush.xpose.msra.mxu0 0.0
      %3341 = vmatpush.xpose.msra.mxu0 0.0
      %3342 = vmatpush.xpose.msra.mxu0 0.0
      %3343 = vmatpush.xpose.msra.mxu0 0.0
      %3344 = vmatpush.xpose.msra.mxu0 0.0
      %3345 = vmatpush.xpose.msra.mxu0 0.0
      %3346 = vmatpush.xpose.msra.mxu0 0.0
      %3347 = vmatpush.xpose.msra.mxu0 0.0
      %3348 = vmatpush.xpose.msra.mxu0 0.0
      %3349 = vmatpush.xpose.msra.mxu0 0.0
      %3350 = vmatpush.xpose.msra.mxu0 0.0
      %3351 = vmatpush.xpose.msra.mxu0 0.0
      %3352 = vmatpush.xpose.msra.mxu0 0.0
      %3353 = vmatpush.xpose.msra.mxu0 0.0
      %3354 = vmatpush.xpose.msra.mxu0 0.0
      %3355 = vmatpush.xpose.msra.mxu0 %v3338
      %3356 = vmatmul.f32.gmra.mxu0 %v3336
      %v3357 = vpop.f32.mrf.mxu0
      %v3358 = vadd.f32 0.0, %v3357
      %3359 = vdwg.mxu0
      %v3360 = vmul.f32 %v3358, 0.25
      %v3361 = vsel %vm943, %v3360, -inf
      %3362 = vmax.xlane.f32.xlu0 %v3361
      %v3363 = vpop.xlane.xlu0 %3362
      %v3364 = vsub.f32 %v3360, %v3363
      %v3365 = vmul.f32 %v3364, 1.442695
      %v3366 = vpow.pop %v3365
      %v3367 = vsel %vm943, %v3366, 0.0
      %3368 = vadd.xlane.f32.xlu0 %v3367
      %v3369 = vpop.xlane.xlu0 %3368
      %v3370 = vrcp.pop %v3369
      %v3371 = vmul.f32 %v3366, %v3370
      %v3374 = vsel %vm943, %v3371, 0
      %3376 = vmatpush.msra.mxu0 0.0
      %3377 = vmatpush.msra.mxu0 0.0
      %3378 = vmatpush.msra.mxu0 0.0
      %3379 = vmatpush.msra.mxu0 0.0
      %3380 = vmatpush.msra.mxu0 0.0
      %3381 = vmatpush.msra.mxu0 0.0
      %3382 = vmatpush.msra.mxu0 0.0
      %3383 = vmatpush.msra.mxu0 0.0
      %3384 = vmatpush.msra.mxu0 0.0
      %3385 = vmatpush.msra.mxu0 0.0
      %3386 = vmatpush.msra.mxu0 0.0
      %3387 = vmatpush.msra.mxu0 0.0
      %3388 = vmatpush.msra.mxu0 0.0
      %3389 = vmatpush.msra.mxu0 0.0
      %3390 = vmatpush.msra.mxu0 0.0
      %3391 = vmatpush.msra.mxu0 %v3335
      %3392 = vmatmul.f32.gmra.mxu0 %v3374
      %v3393 = vpop.f32.mrf.mxu0
      %v3394 = vadd.f32 0.0, %v3393
      %3395 = vdwg.mxu0
      %3396 = vrot.lane.b32.xlu0 %v3209, 88
      %v3397 = vpop.permute.xlu0 %3396
      %v3399 = vsel %vm943, %v3397, %v3321
      %v3400 = vmul.f32 %v3209, %v1095
      %v3401 = vmul.f32 %v3399, %v790
      %3403 = vrot.lane.b32.xlu0 %v3401, 32
      %v3404 = vpop.permute.xlu0 %3403
      %v3406 = vadd.f32 %v3400, %v3404
      %3408 = vrot.lane.b32.xlu0 %v3406, 96
      %v3409 = vpop.permute.xlu0 %3408
      %3410 = vrot.lane.b32.xlu0 %v3246, 96
      %v3411 = vpop.permute.xlu0 %3410
      %v3412 = vsel %vm948, %v3409, 0
      %v3414 = vsel %vm948, %v3411, 0
      %3416 = vmatpush.xpose.msra.mxu0 0.0
      %3417 = vmatpush.xpose.msra.mxu0 0.0
      %3418 = vmatpush.xpose.msra.mxu0 0.0
      %3419 = vmatpush.xpose.msra.mxu0 0.0
      %3420 = vmatpush.xpose.msra.mxu0 0.0
      %3421 = vmatpush.xpose.msra.mxu0 0.0
      %3422 = vmatpush.xpose.msra.mxu0 0.0
      %3423 = vmatpush.xpose.msra.mxu0 0.0
      %3424 = vmatpush.xpose.msra.mxu0 0.0
      %3425 = vmatpush.xpose.msra.mxu0 0.0
      %3426 = vmatpush.xpose.msra.mxu0 0.0
      %3427 = vmatpush.xpose.msra.mxu0 0.0
      %3428 = vmatpush.xpose.msra.mxu0 0.0
      %3429 = vmatpush.xpose.msra.mxu0 0.0
      %3430 = vmatpush.xpose.msra.mxu0 0.0
      %3431 = vmatpush.xpose.msra.mxu0 %v3414
      %3432 = vmatmul.f32.gmra.mxu0 %v3412
      %v3433 = vpop.f32.mrf.mxu0
      %v3434 = vadd.f32 0.0, %v3433
      %3435 = vdwg.mxu0
      %v3436 = vmul.f32 %v3434, 0.25
      %v3437 = vsel %vm943, %v3436, -inf
      %3438 = vmax.xlane.f32.xlu0 %v3437
      %v3439 = vpop.xlane.xlu0 %3438
      %v3440 = vsub.f32 %v3436, %v3439
      %v3441 = vmul.f32 %v3440, 1.442695
      %v3442 = vpow.pop %v3441
      %v3443 = vsel %vm943, %v3442, 0.0
      %3444 = vadd.xlane.f32.xlu0 %v3443
      %v3445 = vpop.xlane.xlu0 %3444
      %v3446 = vrcp.pop %v3445
      %v3447 = vmul.f32 %v3442, %v3446
      %v3450 = vsel %vm943, %v3447, 0
      %3452 = vmatpush.msra.mxu0 0.0
      %3453 = vmatpush.msra.mxu0 0.0
      %3454 = vmatpush.msra.mxu0 0.0
      %3455 = vmatpush.msra.mxu0 0.0
      %3456 = vmatpush.msra.mxu0 0.0
      %3457 = vmatpush.msra.mxu0 0.0
      %3458 = vmatpush.msra.mxu0 0.0
      %3459 = vmatpush.msra.mxu0 0.0
      %3460 = vmatpush.msra.mxu0 0.0
      %3461 = vmatpush.msra.mxu0 0.0
      %3462 = vmatpush.msra.mxu0 0.0
      %3463 = vmatpush.msra.mxu0 0.0
      %3464 = vmatpush.msra.mxu0 0.0
      %3465 = vmatpush.msra.mxu0 0.0
      %3466 = vmatpush.msra.mxu0 0.0
      %3467 = vmatpush.msra.mxu0 %v3411
      %3468 = vmatmul.f32.gmra.mxu0 %v3450
      %v3469 = vpop.f32.mrf.mxu0
      %v3470 = vadd.f32 0.0, %v3469
      %3471 = vdwg.mxu0
      %3472 = vrot.lane.b32.xlu0 %v3209, 72
      %v3473 = vpop.permute.xlu0 %3472
      %v3475 = vsel %vm943, %v3473, %v3397
      %v3476 = vmul.f32 %v3209, %v1174
      %v3477 = vmul.f32 %v3475, %v790
      %3479 = vrot.lane.b32.xlu0 %v3477, 48
      %v3480 = vpop.permute.xlu0 %3479
      %v3482 = vadd.f32 %v3476, %v3480
      %3484 = vrot.lane.b32.xlu0 %v3482, 80
      %v3485 = vpop.permute.xlu0 %3484
      %3486 = vrot.lane.b32.xlu0 %v3246, 80
      %v3487 = vpop.permute.xlu0 %3486
      %v3488 = vsel %vm948, %v3485, 0
      %v3490 = vsel %vm948, %v3487, 0
      %3492 = vmatpush.xpose.msra.mxu0 0.0
      %3493 = vmatpush.xpose.msra.mxu0 0.0
      %3494 = vmatpush.xpose.msra.mxu0 0.0
      %3495 = vmatpush.xpose.msra.mxu0 0.0
      %3496 = vmatpush.xpose.msra.mxu0 0.0
      %3497 = vmatpush.xpose.msra.mxu0 0.0
      %3498 = vmatpush.xpose.msra.mxu0 0.0
      %3499 = vmatpush.xpose.msra.mxu0 0.0
      %3500 = vmatpush.xpose.msra.mxu0 0.0
      %3501 = vmatpush.xpose.msra.mxu0 0.0
      %3502 = vmatpush.xpose.msra.mxu0 0.0
      %3503 = vmatpush.xpose.msra.mxu0 0.0
      %3504 = vmatpush.xpose.msra.mxu0 0.0
      %3505 = vmatpush.xpose.msra.mxu0 0.0
      %3506 = vmatpush.xpose.msra.mxu0 0.0
      %3507 = vmatpush.xpose.msra.mxu0 %v3490
      %3508 = vmatmul.f32.gmra.mxu0 %v3488
      %v3509 = vpop.f32.mrf.mxu0
      %v3510 = vadd.f32 0.0, %v3509
      %3511 = vdwg.mxu0
      %v3512 = vmul.f32 %v3510, 0.25
      %v3513 = vsel %vm943, %v3512, -inf
      %3514 = vmax.xlane.f32.xlu0 %v3513
      %v3515 = vpop.xlane.xlu0 %3514
      %v3516 = vsub.f32 %v3512, %v3515
      %v3517 = vmul.f32 %v3516, 1.442695
      %v3518 = vpow.pop %v3517
      %v3519 = vsel %vm943, %v3518, 0.0
      %3520 = vadd.xlane.f32.xlu0 %v3519
      %v3521 = vpop.xlane.xlu0 %3520
      %v3522 = vrcp.pop %v3521
      %v3523 = vmul.f32 %v3518, %v3522
      %v3526 = vsel %vm943, %v3523, 0
      %3528 = vmatpush.msra.mxu0 0.0
      %3529 = vmatpush.msra.mxu0 0.0
      %3530 = vmatpush.msra.mxu0 0.0
      %3531 = vmatpush.msra.mxu0 0.0
      %3532 = vmatpush.msra.mxu0 0.0
      %3533 = vmatpush.msra.mxu0 0.0
      %3534 = vmatpush.msra.mxu0 0.0
      %3535 = vmatpush.msra.mxu0 0.0
      %3536 = vmatpush.msra.mxu0 0.0
      %3537 = vmatpush.msra.mxu0 0.0
      %3538 = vmatpush.msra.mxu0 0.0
      %3539 = vmatpush.msra.mxu0 0.0
      %3540 = vmatpush.msra.mxu0 0.0
      %3541 = vmatpush.msra.mxu0 0.0
      %3542 = vmatpush.msra.mxu0 0.0
      %3543 = vmatpush.msra.mxu0 %v3487
      %3544 = vmatmul.f32.gmra.mxu0 %v3526
      %v3545 = vpop.f32.mrf.mxu0
      %v3546 = vadd.f32 0.0, %v3545
      %3547 = vdwg.mxu0
      %3549 = vrot.lane.b32.xlu0 %v3394, 16
      %v3550 = vpop.permute.xlu0 %3549
      %3553 = vrot.lane.b32.xlu0 %v3470, 32
      %v3554 = vpop.permute.xlu0 %3553
      %3557 = vrot.lane.b32.xlu0 %v3546, 48
      %v3558 = vpop.permute.xlu0 %3557
      %v3560 = vsel %vm948, %v3318, %v3550
      %v3561 = vsel %vm1261, %v3560, %v3554
      %v3562 = vsel %vm1263, %v3561, %v3558
      %s3563 = scalar_lea.vmem %s15, 320
      %v3564 = vld [vmem:[%s3563] sm:$0xff]
      %v3565 = vld [vmem:[%s3563 + $0x8] sm:$0xff]
      %v3566 = vld [vmem:[%s3563 + $0x10] sm:$0xff]
      %v3567 = vld [vmem:[%s3563 + $0x18] sm:$0xff]
      %v3568 = vld [vmem:[%s3563 + $0x20] sm:$0xff]
      %v3569 = vld [vmem:[%s3563 + $0x28] sm:$0xff]
      %v3570 = vld [vmem:[%s3563 + $0x30] sm:$0xff]
      %v3571 = vld [vmem:[%s3563 + $0x38] sm:$0xff]
      %s3572 = scalar_lea.vmem %s16, 5
      %v3573 = vld [vmem:[%s3572] sm:$0x1]
      %v3575 = vperm.slane %v3573, 0
      %v3578 = vsel %vm877, %v3562, 0
      %3580 = vmatpush.msra.mxu0 0.0
      %3581 = vmatpush.msra.mxu0 0.0
      %3582 = vmatpush.msra.mxu0 0.0
      %3583 = vmatpush.msra.mxu0 0.0
      %3584 = vmatpush.msra.mxu0 0.0
      %3585 = vmatpush.msra.mxu0 0.0
      %3586 = vmatpush.msra.mxu0 0.0
      %3587 = vmatpush.msra.mxu0 0.0
      %3588 = vmatpush.msra.mxu0 %v3571
      %3589 = vmatpush.msra.mxu0 %v3570
      %3590 = vmatpush.msra.mxu0 %v3569
      %3591 = vmatpush.msra.mxu0 %v3568
      %3592 = vmatpush.msra.mxu0 %v3567
      %3593 = vmatpush.msra.mxu0 %v3566
      %3594 = vmatpush.msra.mxu0 %v3565
      %3595 = vmatpush.msra.mxu0 %v3564
      %3596 = vmatmul.f32.gmra.mxu0 %v3578
      %v3597 = vpop.f32.mrf.mxu0
      %v3598 = vadd.f32 %v3575, %v3597
      %3599 = vdwg.mxu0
      %v3600 = vadd.f32 %v3598, %v3176
      %v3601 = vsel %vm877, %v3600, 0.0
      %3602 = vadd.xlane.f32.xlu0 %v3601
      %v3603 = vpop.xlane.xlu0 %3602
      %v3604 = vmul.f32 %v3603, %v1310
      %v3605 = vsub.f32 %v3600, %v3604
      %v3606 = vmul.f32 %v3605, %v3605
      %v3607 = vsel %vm877, %v3606, 0.0
      %3608 = vadd.xlane.f32.xlu0 %v3607
      %v3609 = vpop.xlane.xlu0 %3608
      %v3610 = vmul.f32 %v3609, %v1310
      %v3611 = vadd.f32 %v3610, 1e-05
      %v3612 = vrsqrt.pop %v3611
      %v3613 = vmul.f32 %v3612, %v3611
      %v3614 = vmul.f32 %v3613, %v3612
      %v3615 = vmul.f32 0.5, %v3614
      %v3616 = vsub.f32 1.5, %v3615
      %v3617 = vmul.f32 %v3612, %v3616
      %vm3618 = vweird.f32 %v3611
      %vm3619 = vweird.f32 %v3612
      %vm3620 = vmor %vm3618, %vm3619
      %v3621 = vsel %vm3620, %v3612, %v3617
      %v3622 = vmul.f32 %v3605, %v3621
      %s3623 = scalar_lea.vmem %s17, 5
      %v3624 = vld [vmem:[%s3623] sm:$0x1]
      %v3626 = vperm.slane %v3624, 0
      %v3628 = vmul.f32 %v3622, %v3626
      %s3629 = scalar_lea.vmem %s18, 5
      %v3630 = vld [vmem:[%s3629] sm:$0x1]
      %v3632 = vperm.slane %v3630, 0
      %v3634 = vadd.f32 %v3628, %v3632
      %v3635 = vmax.f32 %v3634, 0.0
      %s3636 = scalar_lea.vmem %s11, 384
      %v3637 = vld [vmem:[%s3636] sm:$0xff]
      %v3638 = vld [vmem:[%s3636 + $0x8] sm:$0xff]
      %v3639 = vld [vmem:[%s3636 + $0x10] sm:$0xff]
      %v3640 = vld [vmem:[%s3636 + $0x18] sm:$0xff]
      %v3641 = vld [vmem:[%s3636 + $0x20] sm:$0xff]
      %v3642 = vld [vmem:[%s3636 + $0x28] sm:$0xff]
      %v3643 = vld [vmem:[%s3636 + $0x30] sm:$0xff]
      %v3644 = vld [vmem:[%s3636 + $0x38] sm:$0xff]
      %s3645 = scalar_lea.vmem %s12, 6
      %v3646 = vld [vmem:[%s3645] sm:$0x1]
      %v3648 = vperm.slane %v3646, 0
      %3650 = vmatpush.msra.mxu0 0.0
      %3651 = vmatpush.msra.mxu0 0.0
      %3652 = vmatpush.msra.mxu0 0.0
      %3653 = vmatpush.msra.mxu0 0.0
      %3654 = vmatpush.msra.mxu0 0.0
      %3655 = vmatpush.msra.mxu0 0.0
      %3656 = vmatpush.msra.mxu0 0.0
      %3657 = vmatpush.msra.mxu0 0.0
      %3658 = vmatpush.msra.mxu0 %v3644
      %3659 = vmatpush.msra.mxu0 %v3643
      %3660 = vmatpush.msra.mxu0 %v3642
      %3661 = vmatpush.msra.mxu0 %v3641
      %3662 = vmatpush.msra.mxu0 %v3640
      %3663 = vmatpush.msra.mxu0 %v3639
      %3664 = vmatpush.msra.mxu0 %v3638
      %3665 = vmatpush.msra.mxu0 %v3637
      %3666 = vmatmul.f32.gmra.mxu0 %v879
      %v3667 = vpop.f32.mrf.mxu0
      %v3668 = vadd.f32 %v3648, %v3667
      %3669 = vdwg.mxu0
      %s3670 = scalar_lea.vmem %s13, 384
      %v3671 = vld [vmem:[%s3670] sm:$0xff]
      %v3672 = vld [vmem:[%s3670 + $0x8] sm:$0xff]
      %v3673 = vld [vmem:[%s3670 + $0x10] sm:$0xff]
      %v3674 = vld [vmem:[%s3670 + $0x18] sm:$0xff]
      %v3675 = vld [vmem:[%s3670 + $0x20] sm:$0xff]
      %v3676 = vld [vmem:[%s3670 + $0x28] sm:$0xff]
      %v3677 = vld [vmem:[%s3670 + $0x30] sm:$0xff]
      %v3678 = vld [vmem:[%s3670 + $0x38] sm:$0xff]
      %s3679 = scalar_lea.vmem %s14, 6
      %v3680 = vld [vmem:[%s3679] sm:$0x1]
      %v3682 = vperm.slane %v3680, 0
      %v3685 = vsel %vm877, %v3635, 0
      %3687 = vmatpush.msra.mxu0 0.0
      %3688 = vmatpush.msra.mxu0 0.0
      %3689 = vmatpush.msra.mxu0 0.0
      %3690 = vmatpush.msra.mxu0 0.0
      %3691 = vmatpush.msra.mxu0 0.0
      %3692 = vmatpush.msra.mxu0 0.0
      %3693 = vmatpush.msra.mxu0 0.0
      %3694 = vmatpush.msra.mxu0 0.0
      %3695 = vmatpush.msra.mxu0 %v3678
      %3696 = vmatpush.msra.mxu0 %v3677
      %3697 = vmatpush.msra.mxu0 %v3676
      %3698 = vmatpush.msra.mxu0 %v3675
      %3699 = vmatpush.msra.mxu0 %v3674
      %3700 = vmatpush.msra.mxu0 %v3673
      %3701 = vmatpush.msra.mxu0 %v3672
      %3702 = vmatpush.msra.mxu0 %v3671
      %3703 = vmatmul.f32.gmra.mxu0 %v3685
      %v3704 = vpop.f32.mrf.mxu0
      %v3705 = vadd.f32 %v3682, %v3704
      %3706 = vdwg.mxu0
      %3708 = vrot.lane.b32.xlu0 %v3668, 120
      %v3709 = vpop.permute.xlu0 %3708
      %3711 = vrot.lane.b32.xlu0 %v3668, 8
      %v3712 = vpop.permute.xlu0 %3711
      %v3714 = vsel %vm943, %v3709, %v3712
      %v3715 = vmul.f32 %v3668, %v789
      %v3716 = vmul.f32 %v3714, %v790
      %v3717 = vadd.f32 %v3715, %v3716
      %v3719 = vsel %vm948, %v3717, 0
      %v3722 = vsel %vm948, %v3705, 0
      %3724 = vmatpush.xpose.msra.mxu0 0.0
      %3725 = vmatpush.xpose.msra.mxu0 0.0
      %3726 = vmatpush.xpose.msra.mxu0 0.0
      %3727 = vmatpush.xpose.msra.mxu0 0.0
      %3728 = vmatpush.xpose.msra.mxu0 0.0
      %3729 = vmatpush.xpose.msra.mxu0 0.0
      %3730 = vmatpush.xpose.msra.mxu0 0.0
      %3731 = vmatpush.xpose.msra.mxu0 0.0
      %3732 = vmatpush.xpose.msra.mxu0 0.0
      %3733 = vmatpush.xpose.msra.mxu0 0.0
      %3734 = vmatpush.xpose.msra.mxu0 0.0
      %3735 = vmatpush.xpose.msra.mxu0 0.0
      %3736 = vmatpush.xpose.msra.mxu0 0.0
      %3737 = vmatpush.xpose.msra.mxu0 0.0
      %3738 = vmatpush.xpose.msra.mxu0 0.0
      %3739 = vmatpush.xpose.msra.mxu0 %v3722
      %3740 = vmatmul.f32.gmra.mxu0 %v3719
      %v3741 = vpop.f32.mrf.mxu0
      %v3742 = vadd.f32 0.0, %v3741
      %3743 = vdwg.mxu0
      %v3744 = vmul.f32 %v3742, 0.25
      %v3745 = vsel %vm943, %v3744, -inf
      %3746 = vmax.xlane.f32.xlu0 %v3745
      %v3747 = vpop.xlane.xlu0 %3746
      %v3748 = vsub.f32 %v3744, %v3747
      %v3749 = vmul.f32 %v3748, 1.442695
      %v3750 = vpow.pop %v3749
      %v3751 = vsel %vm943, %v3750, 0.0
      %3752 = vadd.xlane.f32.xlu0 %v3751
      %v3753 = vpop.xlane.xlu0 %3752
      %v3754 = vrcp.pop %v3753
      %v3755 = vmul.f32 %v3750, %v3754
      %v3757 = vsel %vm943, %v3755, 0
      %3759 = vmatpush.msra.mxu0 0.0
      %3760 = vmatpush.msra.mxu0 0.0
      %3761 = vmatpush.msra.mxu0 0.0
      %3762 = vmatpush.msra.mxu0 0.0
      %3763 = vmatpush.msra.mxu0 0.0
      %3764 = vmatpush.msra.mxu0 0.0
      %3765 = vmatpush.msra.mxu0 0.0
      %3766 = vmatpush.msra.mxu0 0.0
      %3767 = vmatpush.msra.mxu0 0.0
      %3768 = vmatpush.msra.mxu0 0.0
      %3769 = vmatpush.msra.mxu0 0.0
      %3770 = vmatpush.msra.mxu0 0.0
      %3771 = vmatpush.msra.mxu0 0.0
      %3772 = vmatpush.msra.mxu0 0.0
      %3773 = vmatpush.msra.mxu0 0.0
      %3774 = vmatpush.msra.mxu0 %v3705
      %3775 = vmatmul.f32.gmra.mxu0 %v3757
      %v3776 = vpop.f32.mrf.mxu0
      %v3777 = vadd.f32 0.0, %v3776
      %3778 = vdwg.mxu0
      %3779 = vrot.lane.b32.xlu0 %v3668, 104
      %v3780 = vpop.permute.xlu0 %3779
      %v3782 = vsel %vm943, %v3780, %v3709
      %v3783 = vmul.f32 %v3668, %v1016
      %v3784 = vmul.f32 %v3782, %v790
      %3786 = vrot.lane.b32.xlu0 %v3784, 16
      %v3787 = vpop.permute.xlu0 %3786
      %v3789 = vadd.f32 %v3783, %v3787
      %3791 = vrot.lane.b32.xlu0 %v3789, 112
      %v3792 = vpop.permute.xlu0 %3791
      %3793 = vrot.lane.b32.xlu0 %v3705, 112
      %v3794 = vpop.permute.xlu0 %3793
      %v3795 = vsel %vm948, %v3792, 0
      %v3797 = vsel %vm948, %v3794, 0
      %3799 = vmatpush.xpose.msra.mxu0 0.0
      %3800 = vmatpush.xpose.msra.mxu0 0.0
      %3801 = vmatpush.xpose.msra.mxu0 0.0
      %3802 = vmatpush.xpose.msra.mxu0 0.0
      %3803 = vmatpush.xpose.msra.mxu0 0.0
      %3804 = vmatpush.xpose.msra.mxu0 0.0
      %3805 = vmatpush.xpose.msra.mxu0 0.0
      %3806 = vmatpush.xpose.msra.mxu0 0.0
      %3807 = vmatpush.xpose.msra.mxu0 0.0
      %3808 = vmatpush.xpose.msra.mxu0 0.0
      %3809 = vmatpush.xpose.msra.mxu0 0.0
      %3810 = vmatpush.xpose.msra.mxu0 0.0
      %3811 = vmatpush.xpose.msra.mxu0 0.0
      %3812 = vmatpush.xpose.msra.mxu0 0.0
      %3813 = vmatpush.xpose.msra.mxu0 0.0
      %3814 = vmatpush.xpose.msra.mxu0 %v3797
      %3815 = vmatmul.f32.gmra.mxu0 %v3795
      %v3816 = vpop.f32.mrf.mxu0
      %v3817 = vadd.f32 0.0, %v3816
      %3818 = vdwg.mxu0
      %v3819 = vmul.f32 %v3817, 0.25
      %v3820 = vsel %vm943, %v3819, -inf
      %3821 = vmax.xlane.f32.xlu0 %v3820
      %v3822 = vpop.xlane.xlu0 %3821
      %v3823 = vsub.f32 %v3819, %v3822
      %v3824 = vmul.f32 %v3823, 1.442695
      %v3825 = vpow.pop %v3824
      %v3826 = vsel %vm943, %v3825, 0.0
      %3827 = vadd.xlane.f32.xlu0 %v3826
      %v3828 = vpop.xlane.xlu0 %3827
      %v3829 = vrcp.pop %v3828
      %v3830 = vmul.f32 %v3825, %v3829
      %v3833 = vsel %vm943, %v3830, 0
      %3835 = vmatpush.msra.mxu0 0.0
      %3836 = vmatpush.msra.mxu0 0.0
      %3837 = vmatpush.msra.mxu0 0.0
      %3838 = vmatpush.msra.mxu0 0.0
      %3839 = vmatpush.msra.mxu0 0.0
      %3840 = vmatpush.msra.mxu0 0.0
      %3841 = vmatpush.msra.mxu0 0.0
      %3842 = vmatpush.msra.mxu0 0.0
      %3843 = vmatpush.msra.mxu0 0.0
      %3844 = vmatpush.msra.mxu0 0.0
      %3845 = vmatpush.msra.mxu0 0.0
      %3846 = vmatpush.msra.mxu0 0.0
      %3847 = vmatpush.msra.mxu0 0.0
      %3848 = vmatpush.msra.mxu0 0.0
      %3849 = vmatpush.msra.mxu0 0.0
      %3850 = vmatpush.msra.mxu0 %v3794
      %3851 = vmatmul.f32.gmra.mxu0 %v3833
      %v3852 = vpop.f32.mrf.mxu0
      %v3853 = vadd.f32 0.0, %v3852
      %3854 = vdwg.mxu0
      %3855 = vrot.lane.b32.xlu0 %v3668, 88
      %v3856 = vpop.permute.xlu0 %3855
      %v3858 = vsel %vm943, %v3856, %v3780
      %v3859 = vmul.f32 %v3668, %v1095
      %v3860 = vmul.f32 %v3858, %v790
      %3862 = vrot.lane.b32.xlu0 %v3860, 32
      %v3863 = vpop.permute.xlu0 %3862
      %v3865 = vadd.f32 %v3859, %v3863
      %3867 = vrot.lane.b32.xlu0 %v3865, 96
      %v3868 = vpop.permute.xlu0 %3867
      %3869 = vrot.lane.b32.xlu0 %v3705, 96
      %v3870 = vpop.permute.xlu0 %3869
      %v3871 = vsel %vm948, %v3868, 0
      %v3873 = vsel %vm948, %v3870, 0
      %3875 = vmatpush.xpose.msra.mxu0 0.0
      %3876 = vmatpush.xpose.msra.mxu0 0.0
      %3877 = vmatpush.xpose.msra.mxu0 0.0
      %3878 = vmatpush.xpose.msra.mxu0 0.0
      %3879 = vmatpush.xpose.msra.mxu0 0.0
      %3880 = vmatpush.xpose.msra.mxu0 0.0
      %3881 = vmatpush.xpose.msra.mxu0 0.0
      %3882 = vmatpush.xpose.msra.mxu0 0.0
      %3883 = vmatpush.xpose.msra.mxu0 0.0
      %3884 = vmatpush.xpose.msra.mxu0 0.0
      %3885 = vmatpush.xpose.msra.mxu0 0.0
      %3886 = vmatpush.xpose.msra.mxu0 0.0
      %3887 = vmatpush.xpose.msra.mxu0 0.0
      %3888 = vmatpush.xpose.msra.mxu0 0.0
      %3889 = vmatpush.xpose.msra.mxu0 0.0
      %3890 = vmatpush.xpose.msra.mxu0 %v3873
      %3891 = vmatmul.f32.gmra.mxu0 %v3871
      %v3892 = vpop.f32.mrf.mxu0
      %v3893 = vadd.f32 0.0, %v3892
      %3894 = vdwg.mxu0
      %v3895 = vmul.f32 %v3893, 0.25
      %v3896 = vsel %vm943, %v3895, -inf
      %3897 = vmax.xlane.f32.xlu0 %v3896
      %v3898 = vpop.xlane.xlu0 %3897
      %v3899 = vsub.f32 %v3895, %v3898
      %v3900 = vmul.f32 %v3899, 1.442695
      %v3901 = vpow.pop %v3900
      %v3902 = vsel %vm943, %v3901, 0.0
      %3903 = vadd.xlane.f32.xlu0 %v3902
      %v3904 = vpop.xlane.xlu0 %3903
      %v3905 = vrcp.pop %v3904
      %v3906 = vmul.f32 %v3901, %v3905
      %v3909 = vsel %vm943, %v3906, 0
      %3911 = vmatpush.msra.mxu0 0.0
      %3912 = vmatpush.msra.mxu0 0.0
      %3913 = vmatpush.msra.mxu0 0.0
      %3914 = vmatpush.msra.mxu0 0.0
      %3915 = vmatpush.msra.mxu0 0.0
      %3916 = vmatpush.msra.mxu0 0.0
      %3917 = vmatpush.msra.mxu0 0.0
      %3918 = vmatpush.msra.mxu0 0.0
      %3919 = vmatpush.msra.mxu0 0.0
      %3920 = vmatpush.msra.mxu0 0.0
      %3921 = vmatpush.msra.mxu0 0.0
      %3922 = vmatpush.msra.mxu0 0.0
      %3923 = vmatpush.msra.mxu0 0.0
      %3924 = vmatpush.msra.mxu0 0.0
      %3925 = vmatpush.msra.mxu0 0.0
      %3926 = vmatpush.msra.mxu0 %v3870
      %3927 = vmatmul.f32.gmra.mxu0 %v3909
      %v3928 = vpop.f32.mrf.mxu0
      %v3929 = vadd.f32 0.0, %v3928
      %3930 = vdwg.mxu0
      %3931 = vrot.lane.b32.xlu0 %v3668, 72
      %v3932 = vpop.permute.xlu0 %3931
      %v3934 = vsel %vm943, %v3932, %v3856
      %v3935 = vmul.f32 %v3668, %v1174
      %v3936 = vmul.f32 %v3934, %v790
      %3938 = vrot.lane.b32.xlu0 %v3936, 48
      %v3939 = vpop.permute.xlu0 %3938
      %v3941 = vadd.f32 %v3935, %v3939
      %3943 = vrot.lane.b32.xlu0 %v3941, 80
      %v3944 = vpop.permute.xlu0 %3943
      %3945 = vrot.lane.b32.xlu0 %v3705, 80
      %v3946 = vpop.permute.xlu0 %3945
      %v3947 = vsel %vm948, %v3944, 0
      %v3949 = vsel %vm948, %v3946, 0
      %3951 = vmatpush.xpose.msra.mxu0 0.0
      %3952 = vmatpush.xpose.msra.mxu0 0.0
      %3953 = vmatpush.xpose.msra.mxu0 0.0
      %3954 = vmatpush.xpose.msra.mxu0 0.0
      %3955 = vmatpush.xpose.msra.mxu0 0.0
      %3956 = vmatpush.xpose.msra.mxu0 0.0
      %3957 = vmatpush.xpose.msra.mxu0 0.0
      %3958 = vmatpush.xpose.msra.mxu0 0.0
      %3959 = vmatpush.xpose.msra.mxu0 0.0
      %3960 = vmatpush.xpose.msra.mxu0 0.0
      %3961 = vmatpush.xpose.msra.mxu0 0.0
      %3962 = vmatpush.xpose.msra.mxu0 0.0
      %3963 = vmatpush.xpose.msra.mxu0 0.0
      %3964 = vmatpush.xpose.msra.mxu0 0.0
      %3965 = vmatpush.xpose.msra.mxu0 0.0
      %3966 = vmatpush.xpose.msra.mxu0 %v3949
      %3967 = vmatmul.f32.gmra.mxu0 %v3947
      %v3968 = vpop.f32.mrf.mxu0
      %v3969 = vadd.f32 0.0, %v3968
      %3970 = vdwg.mxu0
      %v3971 = vmul.f32 %v3969, 0.25
      %v3972 = vsel %vm943, %v3971, -inf
      %3973 = vmax.xlane.f32.xlu0 %v3972
      %v3974 = vpop.xlane.xlu0 %3973
      %v3975 = vsub.f32 %v3971, %v3974
      %v3976 = vmul.f32 %v3975, 1.442695
      %v3977 = vpow.pop %v3976
      %v3978 = vsel %vm943, %v3977, 0.0
      %3979 = vadd.xlane.f32.xlu0 %v3978
      %v3980 = vpop.xlane.xlu0 %3979
      %v3981 = vrcp.pop %v3980
      %v3982 = vmul.f32 %v3977, %v3981
      %v3985 = vsel %vm943, %v3982, 0
      %3987 = vmatpush.msra.mxu0 0.0
      %3988 = vmatpush.msra.mxu0 0.0
      %3989 = vmatpush.msra.mxu0 0.0
      %3990 = vmatpush.msra.mxu0 0.0
      %3991 = vmatpush.msra.mxu0 0.0
      %3992 = vmatpush.msra.mxu0 0.0
      %3993 = vmatpush.msra.mxu0 0.0
      %3994 = vmatpush.msra.mxu0 0.0
      %3995 = vmatpush.msra.mxu0 0.0
      %3996 = vmatpush.msra.mxu0 0.0
      %3997 = vmatpush.msra.mxu0 0.0
      %3998 = vmatpush.msra.mxu0 0.0
      %3999 = vmatpush.msra.mxu0 0.0
      %4000 = vmatpush.msra.mxu0 0.0
      %4001 = vmatpush.msra.mxu0 0.0
      %4002 = vmatpush.msra.mxu0 %v3946
      %4003 = vmatmul.f32.gmra.mxu0 %v3985
      %v4004 = vpop.f32.mrf.mxu0
      %v4005 = vadd.f32 0.0, %v4004
      %4006 = vdwg.mxu0
      %4008 = vrot.lane.b32.xlu0 %v3853, 16
      %v4009 = vpop.permute.xlu0 %4008
      %4012 = vrot.lane.b32.xlu0 %v3929, 32
      %v4013 = vpop.permute.xlu0 %4012
      %4016 = vrot.lane.b32.xlu0 %v4005, 48
      %v4017 = vpop.permute.xlu0 %4016
      %v4019 = vsel %vm948, %v3777, %v4009
      %v4020 = vsel %vm1261, %v4019, %v4013
      %v4021 = vsel %vm1263, %v4020, %v4017
      %s4022 = scalar_lea.vmem %s15, 384
      %v4023 = vld [vmem:[%s4022] sm:$0xff]
      %v4024 = vld [vmem:[%s4022 + $0x8] sm:$0xff]
      %v4025 = vld [vmem:[%s4022 + $0x10] sm:$0xff]
      %v4026 = vld [vmem:[%s4022 + $0x18] sm:$0xff]
      %v4027 = vld [vmem:[%s4022 + $0x20] sm:$0xff]
      %v4028 = vld [vmem:[%s4022 + $0x28] sm:$0xff]
      %v4029 = vld [vmem:[%s4022 + $0x30] sm:$0xff]
      %v4030 = vld [vmem:[%s4022 + $0x38] sm:$0xff]
      %s4031 = scalar_lea.vmem %s16, 6
      %v4032 = vld [vmem:[%s4031] sm:$0x1]
      %v4034 = vperm.slane %v4032, 0
      %v4037 = vsel %vm877, %v4021, 0
      %4039 = vmatpush.msra.mxu0 0.0
      %4040 = vmatpush.msra.mxu0 0.0
      %4041 = vmatpush.msra.mxu0 0.0
      %4042 = vmatpush.msra.mxu0 0.0
      %4043 = vmatpush.msra.mxu0 0.0
      %4044 = vmatpush.msra.mxu0 0.0
      %4045 = vmatpush.msra.mxu0 0.0
      %4046 = vmatpush.msra.mxu0 0.0
      %4047 = vmatpush.msra.mxu0 %v4030
      %4048 = vmatpush.msra.mxu0 %v4029
      %4049 = vmatpush.msra.mxu0 %v4028
      %4050 = vmatpush.msra.mxu0 %v4027
      %4051 = vmatpush.msra.mxu0 %v4026
      %4052 = vmatpush.msra.mxu0 %v4025
      %4053 = vmatpush.msra.mxu0 %v4024
      %4054 = vmatpush.msra.mxu0 %v4023
      %4055 = vmatmul.f32.gmra.mxu0 %v4037
      %v4056 = vpop.f32.mrf.mxu0
      %v4057 = vadd.f32 %v4034, %v4056
      %4058 = vdwg.mxu0
      %v4059 = vadd.f32 %v4057, %v3635
      %v4060 = vsel %vm877, %v4059, 0.0
      %4061 = vadd.xlane.f32.xlu0 %v4060
      %v4062 = vpop.xlane.xlu0 %4061
      %v4063 = vmul.f32 %v4062, %v1310
      %v4064 = vsub.f32 %v4059, %v4063
      %v4065 = vmul.f32 %v4064, %v4064
      %v4066 = vsel %vm877, %v4065, 0.0
      %4067 = vadd.xlane.f32.xlu0 %v4066
      %v4068 = vpop.xlane.xlu0 %4067
      %v4069 = vmul.f32 %v4068, %v1310
      %v4070 = vadd.f32 %v4069, 1e-05
      %v4071 = vrsqrt.pop %v4070
      %v4072 = vmul.f32 %v4071, %v4070
      %v4073 = vmul.f32 %v4072, %v4071
      %v4074 = vmul.f32 0.5, %v4073
      %v4075 = vsub.f32 1.5, %v4074
      %v4076 = vmul.f32 %v4071, %v4075
      %vm4077 = vweird.f32 %v4070
      %vm4078 = vweird.f32 %v4071
      %vm4079 = vmor %vm4077, %vm4078
      %v4080 = vsel %vm4079, %v4071, %v4076
      %v4081 = vmul.f32 %v4064, %v4080
      %s4082 = scalar_lea.vmem %s17, 6
      %v4083 = vld [vmem:[%s4082] sm:$0x1]
      %v4085 = vperm.slane %v4083, 0
      %v4087 = vmul.f32 %v4081, %v4085
      %s4088 = scalar_lea.vmem %s18, 6
      %v4089 = vld [vmem:[%s4088] sm:$0x1]
      %v4091 = vperm.slane %v4089, 0
      %v4093 = vadd.f32 %v4087, %v4091
      %v4094 = vmax.f32 %v4093, 0.0
      %s4095 = scalar_lea.vmem %s11, 448
      %v4096 = vld [vmem:[%s4095] sm:$0xff]
      %v4097 = vld [vmem:[%s4095 + $0x8] sm:$0xff]
      %v4098 = vld [vmem:[%s4095 + $0x10] sm:$0xff]
      %v4099 = vld [vmem:[%s4095 + $0x18] sm:$0xff]
      %v4100 = vld [vmem:[%s4095 + $0x20] sm:$0xff]
      %v4101 = vld [vmem:[%s4095 + $0x28] sm:$0xff]
      %v4102 = vld [vmem:[%s4095 + $0x30] sm:$0xff]
      %v4103 = vld [vmem:[%s4095 + $0x38] sm:$0xff]
      %s4104 = scalar_lea.vmem %s12, 7
      %v4105 = vld [vmem:[%s4104] sm:$0x1]
      %v4107 = vperm.slane %v4105, 0
      %4109 = vmatpush.msra.mxu0 0.0
      %4110 = vmatpush.msra.mxu0 0.0
      %4111 = vmatpush.msra.mxu0 0.0
      %4112 = vmatpush.msra.mxu0 0.0
      %4113 = vmatpush.msra.mxu0 0.0
      %4114 = vmatpush.msra.mxu0 0.0
      %4115 = vmatpush.msra.mxu0 0.0
      %4116 = vmatpush.msra.mxu0 0.0
      %4117 = vmatpush.msra.mxu0 %v4103
      %4118 = vmatpush.msra.mxu0 %v4102
      %4119 = vmatpush.msra.mxu0 %v4101
      %4120 = vmatpush.msra.mxu0 %v4100
      %4121 = vmatpush.msra.mxu0 %v4099
      %4122 = vmatpush.msra.mxu0 %v4098
      %4123 = vmatpush.msra.mxu0 %v4097
      %4124 = vmatpush.msra.mxu0 %v4096
      %4125 = vmatmul.f32.gmra.mxu0 %v879
      %v4126 = vpop.f32.mrf.mxu0
      %v4127 = vadd.f32 %v4107, %v4126
      %4128 = vdwg.mxu0
      %s4129 = scalar_lea.vmem %s13, 448
      %v4130 = vld [vmem:[%s4129] sm:$0xff]
      %v4131 = vld [vmem:[%s4129 + $0x8] sm:$0xff]
      %v4132 = vld [vmem:[%s4129 + $0x10] sm:$0xff]
      %v4133 = vld [vmem:[%s4129 + $0x18] sm:$0xff]
      %v4134 = vld [vmem:[%s4129 + $0x20] sm:$0xff]
      %v4135 = vld [vmem:[%s4129 + $0x28] sm:$0xff]
      %v4136 = vld [vmem:[%s4129 + $0x30] sm:$0xff]
      %v4137 = vld [vmem:[%s4129 + $0x38] sm:$0xff]
      %s4138 = scalar_lea.vmem %s14, 7
      %v4139 = vld [vmem:[%s4138] sm:$0x1]
      %v4141 = vperm.slane %v4139, 0
      %v4144 = vsel %vm877, %v4094, 0
      %4146 = vmatpush.msra.mxu0 0.0
      %4147 = vmatpush.msra.mxu0 0.0
      %4148 = vmatpush.msra.mxu0 0.0
      %4149 = vmatpush.msra.mxu0 0.0
      %4150 = vmatpush.msra.mxu0 0.0
      %4151 = vmatpush.msra.mxu0 0.0
      %4152 = vmatpush.msra.mxu0 0.0
      %4153 = vmatpush.msra.mxu0 0.0
      %4154 = vmatpush.msra.mxu0 %v4137
      %4155 = vmatpush.msra.mxu0 %v4136
      %4156 = vmatpush.msra.mxu0 %v4135
      %4157 = vmatpush.msra.mxu0 %v4134
      %4158 = vmatpush.msra.mxu0 %v4133
      %4159 = vmatpush.msra.mxu0 %v4132
      %4160 = vmatpush.msra.mxu0 %v4131
      %4161 = vmatpush.msra.mxu0 %v4130
      %4162 = vmatmul.f32.gmra.mxu0 %v4144
      %v4163 = vpop.f32.mrf.mxu0
      %v4164 = vadd.f32 %v4141, %v4163
      %4165 = vdwg.mxu0
      %4167 = vrot.lane.b32.xlu0 %v4127, 120
      %v4168 = vpop.permute.xlu0 %4167
      %4170 = vrot.lane.b32.xlu0 %v4127, 8
      %v4171 = vpop.permute.xlu0 %4170
      %v4173 = vsel %vm943, %v4168, %v4171
      %v4174 = vmul.f32 %v4127, %v789
      %v4175 = vmul.f32 %v4173, %v790
      %v4176 = vadd.f32 %v4174, %v4175
      %v4178 = vsel %vm948, %v4176, 0
      %v4181 = vsel %vm948, %v4164, 0
      %4183 = vmatpush.xpose.msra.mxu0 0.0
      %4184 = vmatpush.xpose.msra.mxu0 0.0
      %4185 = vmatpush.xpose.msra.mxu0 0.0
      %4186 = vmatpush.xpose.msra.mxu0 0.0
      %4187 = vmatpush.xpose.msra.mxu0 0.0
      %4188 = vmatpush.xpose.msra.mxu0 0.0
      %4189 = vmatpush.xpose.msra.mxu0 0.0
      %4190 = vmatpush.xpose.msra.mxu0 0.0
      %4191 = vmatpush.xpose.msra.mxu0 0.0
      %4192 = vmatpush.xpose.msra.mxu0 0.0
      %4193 = vmatpush.xpose.msra.mxu0 0.0
      %4194 = vmatpush.xpose.msra.mxu0 0.0
      %4195 = vmatpush.xpose.msra.mxu0 0.0
      %4196 = vmatpush.xpose.msra.mxu0 0.0
      %4197 = vmatpush.xpose.msra.mxu0 0.0
      %4198 = vmatpush.xpose.msra.mxu0 %v4181
      %4199 = vmatmul.f32.gmra.mxu0 %v4178
      %v4200 = vpop.f32.mrf.mxu0
      %v4201 = vadd.f32 0.0, %v4200
      %4202 = vdwg.mxu0
      %v4203 = vmul.f32 %v4201, 0.25
      %v4204 = vsel %vm943, %v4203, -inf
      %4205 = vmax.xlane.f32.xlu0 %v4204
      %v4206 = vpop.xlane.xlu0 %4205
      %v4207 = vsub.f32 %v4203, %v4206
      %v4208 = vmul.f32 %v4207, 1.442695
      %v4209 = vpow.pop %v4208
      %v4210 = vsel %vm943, %v4209, 0.0
      %4211 = vadd.xlane.f32.xlu0 %v4210
      %v4212 = vpop.xlane.xlu0 %4211
      %v4213 = vrcp.pop %v4212
      %v4214 = vmul.f32 %v4209, %v4213
      %v4216 = vsel %vm943, %v4214, 0
      %4218 = vmatpush.msra.mxu0 0.0
      %4219 = vmatpush.msra.mxu0 0.0
      %4220 = vmatpush.msra.mxu0 0.0
      %4221 = vmatpush.msra.mxu0 0.0
      %4222 = vmatpush.msra.mxu0 0.0
      %4223 = vmatpush.msra.mxu0 0.0
      %4224 = vmatpush.msra.mxu0 0.0
      %4225 = vmatpush.msra.mxu0 0.0
      %4226 = vmatpush.msra.mxu0 0.0
      %4227 = vmatpush.msra.mxu0 0.0
      %4228 = vmatpush.msra.mxu0 0.0
      %4229 = vmatpush.msra.mxu0 0.0
      %4230 = vmatpush.msra.mxu0 0.0
      %4231 = vmatpush.msra.mxu0 0.0
      %4232 = vmatpush.msra.mxu0 0.0
      %4233 = vmatpush.msra.mxu0 %v4164
      %4234 = vmatmul.f32.gmra.mxu0 %v4216
      %v4235 = vpop.f32.mrf.mxu0
      %v4236 = vadd.f32 0.0, %v4235
      %4237 = vdwg.mxu0
      %4238 = vrot.lane.b32.xlu0 %v4127, 104
      %v4239 = vpop.permute.xlu0 %4238
      %v4241 = vsel %vm943, %v4239, %v4168
      %v4242 = vmul.f32 %v4127, %v1016
      %v4243 = vmul.f32 %v4241, %v790
      %4245 = vrot.lane.b32.xlu0 %v4243, 16
      %v4246 = vpop.permute.xlu0 %4245
      %v4248 = vadd.f32 %v4242, %v4246
      %4250 = vrot.lane.b32.xlu0 %v4248, 112
      %v4251 = vpop.permute.xlu0 %4250
      %4252 = vrot.lane.b32.xlu0 %v4164, 112
      %v4253 = vpop.permute.xlu0 %4252
      %v4254 = vsel %vm948, %v4251, 0
      %v4256 = vsel %vm948, %v4253, 0
      %4258 = vmatpush.xpose.msra.mxu0 0.0
      %4259 = vmatpush.xpose.msra.mxu0 0.0
      %4260 = vmatpush.xpose.msra.mxu0 0.0
      %4261 = vmatpush.xpose.msra.mxu0 0.0
      %4262 = vmatpush.xpose.msra.mxu0 0.0
      %4263 = vmatpush.xpose.msra.mxu0 0.0
      %4264 = vmatpush.xpose.msra.mxu0 0.0
      %4265 = vmatpush.xpose.msra.mxu0 0.0
      %4266 = vmatpush.xpose.msra.mxu0 0.0
      %4267 = vmatpush.xpose.msra.mxu0 0.0
      %4268 = vmatpush.xpose.msra.mxu0 0.0
      %4269 = vmatpush.xpose.msra.mxu0 0.0
      %4270 = vmatpush.xpose.msra.mxu0 0.0
      %4271 = vmatpush.xpose.msra.mxu0 0.0
      %4272 = vmatpush.xpose.msra.mxu0 0.0
      %4273 = vmatpush.xpose.msra.mxu0 %v4256
      %4274 = vmatmul.f32.gmra.mxu0 %v4254
      %v4275 = vpop.f32.mrf.mxu0
      %v4276 = vadd.f32 0.0, %v4275
      %4277 = vdwg.mxu0
      %v4278 = vmul.f32 %v4276, 0.25
      %v4279 = vsel %vm943, %v4278, -inf
      %4280 = vmax.xlane.f32.xlu0 %v4279
      %v4281 = vpop.xlane.xlu0 %4280
      %v4282 = vsub.f32 %v4278, %v4281
      %v4283 = vmul.f32 %v4282, 1.442695
      %v4284 = vpow.pop %v4283
      %v4285 = vsel %vm943, %v4284, 0.0
      %4286 = vadd.xlane.f32.xlu0 %v4285
      %v4287 = vpop.xlane.xlu0 %4286
      %v4288 = vrcp.pop %v4287
      %v4289 = vmul.f32 %v4284, %v4288
      %v4292 = vsel %vm943, %v4289, 0
      %4294 = vmatpush.msra.mxu0 0.0
      %4295 = vmatpush.msra.mxu0 0.0
      %4296 = vmatpush.msra.mxu0 0.0
      %4297 = vmatpush.msra.mxu0 0.0
      %4298 = vmatpush.msra.mxu0 0.0
      %4299 = vmatpush.msra.mxu0 0.0
      %4300 = vmatpush.msra.mxu0 0.0
      %4301 = vmatpush.msra.mxu0 0.0
      %4302 = vmatpush.msra.mxu0 0.0
      %4303 = vmatpush.msra.mxu0 0.0
      %4304 = vmatpush.msra.mxu0 0.0
      %4305 = vmatpush.msra.mxu0 0.0
      %4306 = vmatpush.msra.mxu0 0.0
      %4307 = vmatpush.msra.mxu0 0.0
      %4308 = vmatpush.msra.mxu0 0.0
      %4309 = vmatpush.msra.mxu0 %v4253
      %4310 = vmatmul.f32.gmra.mxu0 %v4292
      %v4311 = vpop.f32.mrf.mxu0
      %v4312 = vadd.f32 0.0, %v4311
      %4313 = vdwg.mxu0
      %4314 = vrot.lane.b32.xlu0 %v4127, 88
      %v4315 = vpop.permute.xlu0 %4314
      %v4317 = vsel %vm943, %v4315, %v4239
      %v4318 = vmul.f32 %v4127, %v1095
      %v4319 = vmul.f32 %v4317, %v790
      %4321 = vrot.lane.b32.xlu0 %v4319, 32
      %v4322 = vpop.permute.xlu0 %4321
      %v4324 = vadd.f32 %v4318, %v4322
      %4326 = vrot.lane.b32.xlu0 %v4324, 96
      %v4327 = vpop.permute.xlu0 %4326
      %4328 = vrot.lane.b32.xlu0 %v4164, 96
      %v4329 = vpop.permute.xlu0 %4328
      %v4330 = vsel %vm948, %v4327, 0
      %v4332 = vsel %vm948, %v4329, 0
      %4334 = vmatpush.xpose.msra.mxu0 0.0
      %4335 = vmatpush.xpose.msra.mxu0 0.0
      %4336 = vmatpush.xpose.msra.mxu0 0.0
      %4337 = vmatpush.xpose.msra.mxu0 0.0
      %4338 = vmatpush.xpose.msra.mxu0 0.0
      %4339 = vmatpush.xpose.msra.mxu0 0.0
      %4340 = vmatpush.xpose.msra.mxu0 0.0
      %4341 = vmatpush.xpose.msra.mxu0 0.0
      %4342 = vmatpush.xpose.msra.mxu0 0.0
      %4343 = vmatpush.xpose.msra.mxu0 0.0
      %4344 = vmatpush.xpose.msra.mxu0 0.0
      %4345 = vmatpush.xpose.msra.mxu0 0.0
      %4346 = vmatpush.xpose.msra.mxu0 0.0
      %4347 = vmatpush.xpose.msra.mxu0 0.0
      %4348 = vmatpush.xpose.msra.mxu0 0.0
      %4349 = vmatpush.xpose.msra.mxu0 %v4332
      %4350 = vmatmul.f32.gmra.mxu0 %v4330
      %v4351 = vpop.f32.mrf.mxu0
      %v4352 = vadd.f32 0.0, %v4351
      %4353 = vdwg.mxu0
      %v4354 = vmul.f32 %v4352, 0.25
      %v4355 = vsel %vm943, %v4354, -inf
      %4356 = vmax.xlane.f32.xlu0 %v4355
      %v4357 = vpop.xlane.xlu0 %4356
      %v4358 = vsub.f32 %v4354, %v4357
      %v4359 = vmul.f32 %v4358, 1.442695
      %v4360 = vpow.pop %v4359
      %v4361 = vsel %vm943, %v4360, 0.0
      %4362 = vadd.xlane.f32.xlu0 %v4361
      %v4363 = vpop.xlane.xlu0 %4362
      %v4364 = vrcp.pop %v4363
      %v4365 = vmul.f32 %v4360, %v4364
      %v4368 = vsel %vm943, %v4365, 0
      %4370 = vmatpush.msra.mxu0 0.0
      %4371 = vmatpush.msra.mxu0 0.0
      %4372 = vmatpush.msra.mxu0 0.0
      %4373 = vmatpush.msra.mxu0 0.0
      %4374 = vmatpush.msra.mxu0 0.0
      %4375 = vmatpush.msra.mxu0 0.0
      %4376 = vmatpush.msra.mxu0 0.0
      %4377 = vmatpush.msra.mxu0 0.0
      %4378 = vmatpush.msra.mxu0 0.0
      %4379 = vmatpush.msra.mxu0 0.0
      %4380 = vmatpush.msra.mxu0 0.0
      %4381 = vmatpush.msra.mxu0 0.0
      %4382 = vmatpush.msra.mxu0 0.0
      %4383 = vmatpush.msra.mxu0 0.0
      %4384 = vmatpush.msra.mxu0 0.0
      %4385 = vmatpush.msra.mxu0 %v4329
      %4386 = vmatmul.f32.gmra.mxu0 %v4368
      %v4387 = vpop.f32.mrf.mxu0
      %v4388 = vadd.f32 0.0, %v4387
      %4389 = vdwg.mxu0
      %4390 = vrot.lane.b32.xlu0 %v4127, 72
      %v4391 = vpop.permute.xlu0 %4390
      %v4393 = vsel %vm943, %v4391, %v4315
      %v4394 = vmul.f32 %v4127, %v1174
      %v4395 = vmul.f32 %v4393, %v790
      %4397 = vrot.lane.b32.xlu0 %v4395, 48
      %v4398 = vpop.permute.xlu0 %4397
      %v4400 = vadd.f32 %v4394, %v4398
      %4402 = vrot.lane.b32.xlu0 %v4400, 80
      %v4403 = vpop.permute.xlu0 %4402
      %4404 = vrot.lane.b32.xlu0 %v4164, 80
      %v4405 = vpop.permute.xlu0 %4404
      %v4406 = vsel %vm948, %v4403, 0
      %v4408 = vsel %vm948, %v4405, 0
      %4410 = vmatpush.xpose.msra.mxu0 0.0
      %4411 = vmatpush.xpose.msra.mxu0 0.0
      %4412 = vmatpush.xpose.msra.mxu0 0.0
      %4413 = vmatpush.xpose.msra.mxu0 0.0
      %4414 = vmatpush.xpose.msra.mxu0 0.0
      %4415 = vmatpush.xpose.msra.mxu0 0.0
      %4416 = vmatpush.xpose.msra.mxu0 0.0
      %4417 = vmatpush.xpose.msra.mxu0 0.0
      %4418 = vmatpush.xpose.msra.mxu0 0.0
      %4419 = vmatpush.xpose.msra.mxu0 0.0
      %4420 = vmatpush.xpose.msra.mxu0 0.0
      %4421 = vmatpush.xpose.msra.mxu0 0.0
      %4422 = vmatpush.xpose.msra.mxu0 0.0
      %4423 = vmatpush.xpose.msra.mxu0 0.0
      %4424 = vmatpush.xpose.msra.mxu0 0.0
      %4425 = vmatpush.xpose.msra.mxu0 %v4408
      %4426 = vmatmul.f32.gmra.mxu0 %v4406
      %v4427 = vpop.f32.mrf.mxu0
      %v4428 = vadd.f32 0.0, %v4427
      %4429 = vdwg.mxu0
      %v4430 = vmul.f32 %v4428, 0.25
      %v4431 = vsel %vm943, %v4430, -inf
      %4432 = vmax.xlane.f32.xlu0 %v4431
      %v4433 = vpop.xlane.xlu0 %4432
      %v4434 = vsub.f32 %v4430, %v4433
      %v4435 = vmul.f32 %v4434, 1.442695
      %v4436 = vpow.pop %v4435
      %v4437 = vsel %vm943, %v4436, 0.0
      %4438 = vadd.xlane.f32.xlu0 %v4437
      %v4439 = vpop.xlane.xlu0 %4438
      %v4440 = vrcp.pop %v4439
      %v4441 = vmul.f32 %v4436, %v4440
      %v4444 = vsel %vm943, %v4441, 0
      %4446 = vmatpush.msra.mxu0 0.0
      %4447 = vmatpush.msra.mxu0 0.0
      %4448 = vmatpush.msra.mxu0 0.0
      %4449 = vmatpush.msra.mxu0 0.0
      %4450 = vmatpush.msra.mxu0 0.0
      %4451 = vmatpush.msra.mxu0 0.0
      %4452 = vmatpush.msra.mxu0 0.0
      %4453 = vmatpush.msra.mxu0 0.0
      %4454 = vmatpush.msra.mxu0 0.0
      %4455 = vmatpush.msra.mxu0 0.0
      %4456 = vmatpush.msra.mxu0 0.0
      %4457 = vmatpush.msra.mxu0 0.0
      %4458 = vmatpush.msra.mxu0 0.0
      %4459 = vmatpush.msra.mxu0 0.0
      %4460 = vmatpush.msra.mxu0 0.0
      %4461 = vmatpush.msra.mxu0 %v4405
      %4462 = vmatmul.f32.gmra.mxu0 %v4444
      %v4463 = vpop.f32.mrf.mxu0
      %v4464 = vadd.f32 0.0, %v4463
      %4465 = vdwg.mxu0
      %4467 = vrot.lane.b32.xlu0 %v4312, 16
      %v4468 = vpop.permute.xlu0 %4467
      %4471 = vrot.lane.b32.xlu0 %v4388, 32
      %v4472 = vpop.permute.xlu0 %4471
      %4475 = vrot.lane.b32.xlu0 %v4464, 48
      %v4476 = vpop.permute.xlu0 %4475
      %v4478 = vsel %vm948, %v4236, %v4468
      %v4479 = vsel %vm1261, %v4478, %v4472
      %v4480 = vsel %vm1263, %v4479, %v4476
      %s4481 = scalar_lea.vmem %s15, 448
      %v4482 = vld [vmem:[%s4481] sm:$0xff]
      %v4483 = vld [vmem:[%s4481 + $0x8] sm:$0xff]
      %v4484 = vld [vmem:[%s4481 + $0x10] sm:$0xff]
      %v4485 = vld [vmem:[%s4481 + $0x18] sm:$0xff]
      %v4486 = vld [vmem:[%s4481 + $0x20] sm:$0xff]
      %v4487 = vld [vmem:[%s4481 + $0x28] sm:$0xff]
      %v4488 = vld [vmem:[%s4481 + $0x30] sm:$0xff]
      %v4489 = vld [vmem:[%s4481 + $0x38] sm:$0xff]
      %s4490 = scalar_lea.vmem %s16, 7
      %v4491 = vld [vmem:[%s4490] sm:$0x1]
      %v4493 = vperm.slane %v4491, 0
      %v4496 = vsel %vm877, %v4480, 0
      %4498 = vmatpush.msra.mxu0 0.0
      %4499 = vmatpush.msra.mxu0 0.0
      %4500 = vmatpush.msra.mxu0 0.0
      %4501 = vmatpush.msra.mxu0 0.0
      %4502 = vmatpush.msra.mxu0 0.0
      %4503 = vmatpush.msra.mxu0 0.0
      %4504 = vmatpush.msra.mxu0 0.0
      %4505 = vmatpush.msra.mxu0 0.0
      %4506 = vmatpush.msra.mxu0 %v4489
      %4507 = vmatpush.msra.mxu0 %v4488
      %4508 = vmatpush.msra.mxu0 %v4487
      %4509 = vmatpush.msra.mxu0 %v4486
      %4510 = vmatpush.msra.mxu0 %v4485
      %4511 = vmatpush.msra.mxu0 %v4484
      %4512 = vmatpush.msra.mxu0 %v4483
      %4513 = vmatpush.msra.mxu0 %v4482
      %4514 = vmatmul.f32.gmra.mxu0 %v4496
      %v4515 = vpop.f32.mrf.mxu0
      %v4516 = vadd.f32 %v4493, %v4515
      %4517 = vdwg.mxu0
      %v4518 = vadd.f32 %v4516, %v4094
      %v4519 = vsel %vm877, %v4518, 0.0
      %4520 = vadd.xlane.f32.xlu0 %v4519
      %v4521 = vpop.xlane.xlu0 %4520
      %v4522 = vmul.f32 %v4521, %v1310
      %v4523 = vsub.f32 %v4518, %v4522
      %v4524 = vmul.f32 %v4523, %v4523
      %v4525 = vsel %vm877, %v4524, 0.0
      %4526 = vadd.xlane.f32.xlu0 %v4525
      %v4527 = vpop.xlane.xlu0 %4526
      %v4528 = vmul.f32 %v4527, %v1310
      %v4529 = vadd.f32 %v4528, 1e-05
      %v4530 = vrsqrt.pop %v4529
      %v4531 = vmul.f32 %v4530, %v4529
      %v4532 = vmul.f32 %v4531, %v4530
      %v4533 = vmul.f32 0.5, %v4532
      %v4534 = vsub.f32 1.5, %v4533
      %v4535 = vmul.f32 %v4530, %v4534
      %vm4536 = vweird.f32 %v4529
      %vm4537 = vweird.f32 %v4530
      %vm4538 = vmor %vm4536, %vm4537
      %v4539 = vsel %vm4538, %v4530, %v4535
      %v4540 = vmul.f32 %v4523, %v4539
      %s4541 = scalar_lea.vmem %s17, 7
      %v4542 = vld [vmem:[%s4541] sm:$0x1]
      %v4544 = vperm.slane %v4542, 0
      %v4546 = vmul.f32 %v4540, %v4544
      %s4547 = scalar_lea.vmem %s18, 7
      %v4548 = vld [vmem:[%s4547] sm:$0x1]
      %v4550 = vperm.slane %v4548, 0
      %v4552 = vadd.f32 %v4546, %v4550
      %v4553 = vmax.f32 %v4552, 0.0
      %s4554 = scalar_lea.vmem %s11, 512
      %v4555 = vld [vmem:[%s4554] sm:$0xff]
      %v4556 = vld [vmem:[%s4554 + $0x8] sm:$0xff]
      %v4557 = vld [vmem:[%s4554 + $0x10] sm:$0xff]
      %v4558 = vld [vmem:[%s4554 + $0x18] sm:$0xff]
      %v4559 = vld [vmem:[%s4554 + $0x20] sm:$0xff]
      %v4560 = vld [vmem:[%s4554 + $0x28] sm:$0xff]
      %v4561 = vld [vmem:[%s4554 + $0x30] sm:$0xff]
      %v4562 = vld [vmem:[%s4554 + $0x38] sm:$0xff]
      %s4563 = scalar_lea.vmem %s12, 8
      %v4564 = vld [vmem:[%s4563] sm:$0x1]
      %v4566 = vperm.slane %v4564, 0
      %4568 = vmatpush.msra.mxu0 0.0
      %4569 = vmatpush.msra.mxu0 0.0
      %4570 = vmatpush.msra.mxu0 0.0
      %4571 = vmatpush.msra.mxu0 0.0
      %4572 = vmatpush.msra.mxu0 0.0
      %4573 = vmatpush.msra.mxu0 0.0
      %4574 = vmatpush.msra.mxu0 0.0
      %4575 = vmatpush.msra.mxu0 0.0
      %4576 = vmatpush.msra.mxu0 %v4562
      %4577 = vmatpush.msra.mxu0 %v4561
      %4578 = vmatpush.msra.mxu0 %v4560
      %4579 = vmatpush.msra.mxu0 %v4559
      %4580 = vmatpush.msra.mxu0 %v4558
      %4581 = vmatpush.msra.mxu0 %v4557
      %4582 = vmatpush.msra.mxu0 %v4556
      %4583 = vmatpush.msra.mxu0 %v4555
      %4584 = vmatmul.f32.gmra.mxu0 %v879
      %v4585 = vpop.f32.mrf.mxu0
      %v4586 = vadd.f32 %v4566, %v4585
      %4587 = vdwg.mxu0
      %s4588 = scalar_lea.vmem %s13, 512
      %v4589 = vld [vmem:[%s4588] sm:$0xff]
      %v4590 = vld [vmem:[%s4588 + $0x8] sm:$0xff]
      %v4591 = vld [vmem:[%s4588 + $0x10] sm:$0xff]
      %v4592 = vld [vmem:[%s4588 + $0x18] sm:$0xff]
      %v4593 = vld [vmem:[%s4588 + $0x20] sm:$0xff]
      %v4594 = vld [vmem:[%s4588 + $0x28] sm:$0xff]
      %v4595 = vld [vmem:[%s4588 + $0x30] sm:$0xff]
      %v4596 = vld [vmem:[%s4588 + $0x38] sm:$0xff]
      %s4597 = scalar_lea.vmem %s14, 8
      %v4598 = vld [vmem:[%s4597] sm:$0x1]
      %v4600 = vperm.slane %v4598, 0
      %v4603 = vsel %vm877, %v4553, 0
      %4605 = vmatpush.msra.mxu0 0.0
      %4606 = vmatpush.msra.mxu0 0.0
      %4607 = vmatpush.msra.mxu0 0.0
      %4608 = vmatpush.msra.mxu0 0.0
      %4609 = vmatpush.msra.mxu0 0.0
      %4610 = vmatpush.msra.mxu0 0.0
      %4611 = vmatpush.msra.mxu0 0.0
      %4612 = vmatpush.msra.mxu0 0.0
      %4613 = vmatpush.msra.mxu0 %v4596
      %4614 = vmatpush.msra.mxu0 %v4595
      %4615 = vmatpush.msra.mxu0 %v4594
      %4616 = vmatpush.msra.mxu0 %v4593
      %4617 = vmatpush.msra.mxu0 %v4592
      %4618 = vmatpush.msra.mxu0 %v4591
      %4619 = vmatpush.msra.mxu0 %v4590
      %4620 = vmatpush.msra.mxu0 %v4589
      %4621 = vmatmul.f32.gmra.mxu0 %v4603
      %v4622 = vpop.f32.mrf.mxu0
      %v4623 = vadd.f32 %v4600, %v4622
      %4624 = vdwg.mxu0
      %4626 = vrot.lane.b32.xlu0 %v4586, 120
      %v4627 = vpop.permute.xlu0 %4626
      %4629 = vrot.lane.b32.xlu0 %v4586, 8
      %v4630 = vpop.permute.xlu0 %4629
      %v4632 = vsel %vm943, %v4627, %v4630
      %v4633 = vmul.f32 %v4586, %v789
      %v4634 = vmul.f32 %v4632, %v790
      %v4635 = vadd.f32 %v4633, %v4634
      %v4637 = vsel %vm948, %v4635, 0
      %v4640 = vsel %vm948, %v4623, 0
      %4642 = vmatpush.xpose.msra.mxu0 0.0
      %4643 = vmatpush.xpose.msra.mxu0 0.0
      %4644 = vmatpush.xpose.msra.mxu0 0.0
      %4645 = vmatpush.xpose.msra.mxu0 0.0
      %4646 = vmatpush.xpose.msra.mxu0 0.0
      %4647 = vmatpush.xpose.msra.mxu0 0.0
      %4648 = vmatpush.xpose.msra.mxu0 0.0
      %4649 = vmatpush.xpose.msra.mxu0 0.0
      %4650 = vmatpush.xpose.msra.mxu0 0.0
      %4651 = vmatpush.xpose.msra.mxu0 0.0
      %4652 = vmatpush.xpose.msra.mxu0 0.0
      %4653 = vmatpush.xpose.msra.mxu0 0.0
      %4654 = vmatpush.xpose.msra.mxu0 0.0
      %4655 = vmatpush.xpose.msra.mxu0 0.0
      %4656 = vmatpush.xpose.msra.mxu0 0.0
      %4657 = vmatpush.xpose.msra.mxu0 %v4640
      %4658 = vmatmul.f32.gmra.mxu0 %v4637
      %v4659 = vpop.f32.mrf.mxu0
      %v4660 = vadd.f32 0.0, %v4659
      %4661 = vdwg.mxu0
      %v4662 = vmul.f32 %v4660, 0.25
      %v4663 = vsel %vm943, %v4662, -inf
      %4664 = vmax.xlane.f32.xlu0 %v4663
      %v4665 = vpop.xlane.xlu0 %4664
      %v4666 = vsub.f32 %v4662, %v4665
      %v4667 = vmul.f32 %v4666, 1.442695
      %v4668 = vpow.pop %v4667
      %v4669 = vsel %vm943, %v4668, 0.0
      %4670 = vadd.xlane.f32.xlu0 %v4669
      %v4671 = vpop.xlane.xlu0 %4670
      %v4672 = vrcp.pop %v4671
      %v4673 = vmul.f32 %v4668, %v4672
      %v4675 = vsel %vm943, %v4673, 0
      %4677 = vmatpush.msra.mxu0 0.0
      %4678 = vmatpush.msra.mxu0 0.0
      %4679 = vmatpush.msra.mxu0 0.0
      %4680 = vmatpush.msra.mxu0 0.0
      %4681 = vmatpush.msra.mxu0 0.0
      %4682 = vmatpush.msra.mxu0 0.0
      %4683 = vmatpush.msra.mxu0 0.0
      %4684 = vmatpush.msra.mxu0 0.0
      %4685 = vmatpush.msra.mxu0 0.0
      %4686 = vmatpush.msra.mxu0 0.0
      %4687 = vmatpush.msra.mxu0 0.0
      %4688 = vmatpush.msra.mxu0 0.0
      %4689 = vmatpush.msra.mxu0 0.0
      %4690 = vmatpush.msra.mxu0 0.0
      %4691 = vmatpush.msra.mxu0 0.0
      %4692 = vmatpush.msra.mxu0 %v4623
      %4693 = vmatmul.f32.gmra.mxu0 %v4675
      %v4694 = vpop.f32.mrf.mxu0
      %v4695 = vadd.f32 0.0, %v4694
      %4696 = vdwg.mxu0
      %4697 = vrot.lane.b32.xlu0 %v4586, 104
      %v4698 = vpop.permute.xlu0 %4697
      %v4700 = vsel %vm943, %v4698, %v4627
      %v4701 = vmul.f32 %v4586, %v1016
      %v4702 = vmul.f32 %v4700, %v790
      %4704 = vrot.lane.b32.xlu0 %v4702, 16
      %v4705 = vpop.permute.xlu0 %4704
      %v4707 = vadd.f32 %v4701, %v4705
      %4709 = vrot.lane.b32.xlu0 %v4707, 112
      %v4710 = vpop.permute.xlu0 %4709
      %4711 = vrot.lane.b32.xlu0 %v4623, 112
      %v4712 = vpop.permute.xlu0 %4711
      %v4713 = vsel %vm948, %v4710, 0
      %v4715 = vsel %vm948, %v4712, 0
      %4717 = vmatpush.xpose.msra.mxu0 0.0
      %4718 = vmatpush.xpose.msra.mxu0 0.0
      %4719 = vmatpush.xpose.msra.mxu0 0.0
      %4720 = vmatpush.xpose.msra.mxu0 0.0
      %4721 = vmatpush.xpose.msra.mxu0 0.0
      %4722 = vmatpush.xpose.msra.mxu0 0.0
      %4723 = vmatpush.xpose.msra.mxu0 0.0
      %4724 = vmatpush.xpose.msra.mxu0 0.0
      %4725 = vmatpush.xpose.msra.mxu0 0.0
      %4726 = vmatpush.xpose.msra.mxu0 0.0
      %4727 = vmatpush.xpose.msra.mxu0 0.0
      %4728 = vmatpush.xpose.msra.mxu0 0.0
      %4729 = vmatpush.xpose.msra.mxu0 0.0
      %4730 = vmatpush.xpose.msra.mxu0 0.0
      %4731 = vmatpush.xpose.msra.mxu0 0.0
      %4732 = vmatpush.xpose.msra.mxu0 %v4715
      %4733 = vmatmul.f32.gmra.mxu0 %v4713
      %v4734 = vpop.f32.mrf.mxu0
      %v4735 = vadd.f32 0.0, %v4734
      %4736 = vdwg.mxu0
      %v4737 = vmul.f32 %v4735, 0.25
      %v4738 = vsel %vm943, %v4737, -inf
      %4739 = vmax.xlane.f32.xlu0 %v4738
      %v4740 = vpop.xlane.xlu0 %4739
      %v4741 = vsub.f32 %v4737, %v4740
      %v4742 = vmul.f32 %v4741, 1.442695
      %v4743 = vpow.pop %v4742
      %v4744 = vsel %vm943, %v4743, 0.0
      %4745 = vadd.xlane.f32.xlu0 %v4744
      %v4746 = vpop.xlane.xlu0 %4745
      %v4747 = vrcp.pop %v4746
      %v4748 = vmul.f32 %v4743, %v4747
      %v4751 = vsel %vm943, %v4748, 0
      %4753 = vmatpush.msra.mxu0 0.0
      %4754 = vmatpush.msra.mxu0 0.0
      %4755 = vmatpush.msra.mxu0 0.0
      %4756 = vmatpush.msra.mxu0 0.0
      %4757 = vmatpush.msra.mxu0 0.0
      %4758 = vmatpush.msra.mxu0 0.0
      %4759 = vmatpush.msra.mxu0 0.0
      %4760 = vmatpush.msra.mxu0 0.0
      %4761 = vmatpush.msra.mxu0 0.0
      %4762 = vmatpush.msra.mxu0 0.0
      %4763 = vmatpush.msra.mxu0 0.0
      %4764 = vmatpush.msra.mxu0 0.0
      %4765 = vmatpush.msra.mxu0 0.0
      %4766 = vmatpush.msra.mxu0 0.0
      %4767 = vmatpush.msra.mxu0 0.0
      %4768 = vmatpush.msra.mxu0 %v4712
      %4769 = vmatmul.f32.gmra.mxu0 %v4751
      %v4770 = vpop.f32.mrf.mxu0
      %v4771 = vadd.f32 0.0, %v4770
      %4772 = vdwg.mxu0
      %4773 = vrot.lane.b32.xlu0 %v4586, 88
      %v4774 = vpop.permute.xlu0 %4773
      %v4776 = vsel %vm943, %v4774, %v4698
      %v4777 = vmul.f32 %v4586, %v1095
      %v4778 = vmul.f32 %v4776, %v790
      %4780 = vrot.lane.b32.xlu0 %v4778, 32
      %v4781 = vpop.permute.xlu0 %4780
      %v4783 = vadd.f32 %v4777, %v4781
      %4785 = vrot.lane.b32.xlu0 %v4783, 96
      %v4786 = vpop.permute.xlu0 %4785
      %4787 = vrot.lane.b32.xlu0 %v4623, 96
      %v4788 = vpop.permute.xlu0 %4787
      %v4789 = vsel %vm948, %v4786, 0
      %v4791 = vsel %vm948, %v4788, 0
      %4793 = vmatpush.xpose.msra.mxu0 0.0
      %4794 = vmatpush.xpose.msra.mxu0 0.0
      %4795 = vmatpush.xpose.msra.mxu0 0.0
      %4796 = vmatpush.xpose.msra.mxu0 0.0
      %4797 = vmatpush.xpose.msra.mxu0 0.0
      %4798 = vmatpush.xpose.msra.mxu0 0.0
      %4799 = vmatpush.xpose.msra.mxu0 0.0
      %4800 = vmatpush.xpose.msra.mxu0 0.0
      %4801 = vmatpush.xpose.msra.mxu0 0.0
      %4802 = vmatpush.xpose.msra.mxu0 0.0
      %4803 = vmatpush.xpose.msra.mxu0 0.0
      %4804 = vmatpush.xpose.msra.mxu0 0.0
      %4805 = vmatpush.xpose.msra.mxu0 0.0
      %4806 = vmatpush.xpose.msra.mxu0 0.0
      %4807 = vmatpush.xpose.msra.mxu0 0.0
      %4808 = vmatpush.xpose.msra.mxu0 %v4791
      %4809 = vmatmul.f32.gmra.mxu0 %v4789
      %v4810 = vpop.f32.mrf.mxu0
      %v4811 = vadd.f32 0.0, %v4810
      %4812 = vdwg.mxu0
      %v4813 = vmul.f32 %v4811, 0.25
      %v4814 = vsel %vm943, %v4813, -inf
      %4815 = vmax.xlane.f32.xlu0 %v4814
      %v4816 = vpop.xlane.xlu0 %4815
      %v4817 = vsub.f32 %v4813, %v4816
      %v4818 = vmul.f32 %v4817, 1.442695
      %v4819 = vpow.pop %v4818
      %v4820 = vsel %vm943, %v4819, 0.0
      %4821 = vadd.xlane.f32.xlu0 %v4820
      %v4822 = vpop.xlane.xlu0 %4821
      %v4823 = vrcp.pop %v4822
      %v4824 = vmul.f32 %v4819, %v4823
      %v4827 = vsel %vm943, %v4824, 0
      %4829 = vmatpush.msra.mxu0 0.0
      %4830 = vmatpush.msra.mxu0 0.0
      %4831 = vmatpush.msra.mxu0 0.0
      %4832 = vmatpush.msra.mxu0 0.0
      %4833 = vmatpush.msra.mxu0 0.0
      %4834 = vmatpush.msra.mxu0 0.0
      %4835 = vmatpush.msra.mxu0 0.0
      %4836 = vmatpush.msra.mxu0 0.0
      %4837 = vmatpush.msra.mxu0 0.0
      %4838 = vmatpush.msra.mxu0 0.0
      %4839 = vmatpush.msra.mxu0 0.0
      %4840 = vmatpush.msra.mxu0 0.0
      %4841 = vmatpush.msra.mxu0 0.0
      %4842 = vmatpush.msra.mxu0 0.0
      %4843 = vmatpush.msra.mxu0 0.0
      %4844 = vmatpush.msra.mxu0 %v4788
      %4845 = vmatmul.f32.gmra.mxu0 %v4827
      %v4846 = vpop.f32.mrf.mxu0
      %v4847 = vadd.f32 0.0, %v4846
      %4848 = vdwg.mxu0
      %4849 = vrot.lane.b32.xlu0 %v4586, 72
      %v4850 = vpop.permute.xlu0 %4849
      %v4852 = vsel %vm943, %v4850, %v4774
      %v4853 = vmul.f32 %v4586, %v1174
      %v4854 = vmul.f32 %v4852, %v790
      %4856 = vrot.lane.b32.xlu0 %v4854, 48
      %v4857 = vpop.permute.xlu0 %4856
      %v4859 = vadd.f32 %v4853, %v4857
      %4861 = vrot.lane.b32.xlu0 %v4859, 80
      %v4862 = vpop.permute.xlu0 %4861
      %4863 = vrot.lane.b32.xlu0 %v4623, 80
      %v4864 = vpop.permute.xlu0 %4863
      %v4865 = vsel %vm948, %v4862, 0
      %v4867 = vsel %vm948, %v4864, 0
      %4869 = vmatpush.xpose.msra.mxu0 0.0
      %4870 = vmatpush.xpose.msra.mxu0 0.0
      %4871 = vmatpush.xpose.msra.mxu0 0.0
      %4872 = vmatpush.xpose.msra.mxu0 0.0
      %4873 = vmatpush.xpose.msra.mxu0 0.0
      %4874 = vmatpush.xpose.msra.mxu0 0.0
      %4875 = vmatpush.xpose.msra.mxu0 0.0
      %4876 = vmatpush.xpose.msra.mxu0 0.0
      %4877 = vmatpush.xpose.msra.mxu0 0.0
      %4878 = vmatpush.xpose.msra.mxu0 0.0
      %4879 = vmatpush.xpose.msra.mxu0 0.0
      %4880 = vmatpush.xpose.msra.mxu0 0.0
      %4881 = vmatpush.xpose.msra.mxu0 0.0
      %4882 = vmatpush.xpose.msra.mxu0 0.0
      %4883 = vmatpush.xpose.msra.mxu0 0.0
      %4884 = vmatpush.xpose.msra.mxu0 %v4867
      %4885 = vmatmul.f32.gmra.mxu0 %v4865
      %v4886 = vpop.f32.mrf.mxu0
      %v4887 = vadd.f32 0.0, %v4886
      %4888 = vdwg.mxu0
      %v4889 = vmul.f32 %v4887, 0.25
      %v4890 = vsel %vm943, %v4889, -inf
      %4891 = vmax.xlane.f32.xlu0 %v4890
      %v4892 = vpop.xlane.xlu0 %4891
      %v4893 = vsub.f32 %v4889, %v4892
      %v4894 = vmul.f32 %v4893, 1.442695
      %v4895 = vpow.pop %v4894
      %v4896 = vsel %vm943, %v4895, 0.0
      %4897 = vadd.xlane.f32.xlu0 %v4896
      %v4898 = vpop.xlane.xlu0 %4897
      %v4899 = vrcp.pop %v4898
      %v4900 = vmul.f32 %v4895, %v4899
      %v4903 = vsel %vm943, %v4900, 0
      %4905 = vmatpush.msra.mxu0 0.0
      %4906 = vmatpush.msra.mxu0 0.0
      %4907 = vmatpush.msra.mxu0 0.0
      %4908 = vmatpush.msra.mxu0 0.0
      %4909 = vmatpush.msra.mxu0 0.0
      %4910 = vmatpush.msra.mxu0 0.0
      %4911 = vmatpush.msra.mxu0 0.0
      %4912 = vmatpush.msra.mxu0 0.0
      %4913 = vmatpush.msra.mxu0 0.0
      %4914 = vmatpush.msra.mxu0 0.0
      %4915 = vmatpush.msra.mxu0 0.0
      %4916 = vmatpush.msra.mxu0 0.0
      %4917 = vmatpush.msra.mxu0 0.0
      %4918 = vmatpush.msra.mxu0 0.0
      %4919 = vmatpush.msra.mxu0 0.0
      %4920 = vmatpush.msra.mxu0 %v4864
      %4921 = vmatmul.f32.gmra.mxu0 %v4903
      %v4922 = vpop.f32.mrf.mxu0
      %v4923 = vadd.f32 0.0, %v4922
      %4924 = vdwg.mxu0
      %4926 = vrot.lane.b32.xlu0 %v4771, 16
      %v4927 = vpop.permute.xlu0 %4926
      %4930 = vrot.lane.b32.xlu0 %v4847, 32
      %v4931 = vpop.permute.xlu0 %4930
      %4934 = vrot.lane.b32.xlu0 %v4923, 48
      %v4935 = vpop.permute.xlu0 %4934
      %v4937 = vsel %vm948, %v4695, %v4927
      %v4938 = vsel %vm1261, %v4937, %v4931
      %v4939 = vsel %vm1263, %v4938, %v4935
      %s4940 = scalar_lea.vmem %s15, 512
      %v4941 = vld [vmem:[%s4940] sm:$0xff]
      %v4942 = vld [vmem:[%s4940 + $0x8] sm:$0xff]
      %v4943 = vld [vmem:[%s4940 + $0x10] sm:$0xff]
      %v4944 = vld [vmem:[%s4940 + $0x18] sm:$0xff]
      %v4945 = vld [vmem:[%s4940 + $0x20] sm:$0xff]
      %v4946 = vld [vmem:[%s4940 + $0x28] sm:$0xff]
      %v4947 = vld [vmem:[%s4940 + $0x30] sm:$0xff]
      %v4948 = vld [vmem:[%s4940 + $0x38] sm:$0xff]
      %s4949 = scalar_lea.vmem %s16, 8
      %v4950 = vld [vmem:[%s4949] sm:$0x1]
      %v4952 = vperm.slane %v4950, 0
      %v4955 = vsel %vm877, %v4939, 0
      %4957 = vmatpush.msra.mxu0 0.0
      %4958 = vmatpush.msra.mxu0 0.0
      %4959 = vmatpush.msra.mxu0 0.0
      %4960 = vmatpush.msra.mxu0 0.0
      %4961 = vmatpush.msra.mxu0 0.0
      %4962 = vmatpush.msra.mxu0 0.0
      %4963 = vmatpush.msra.mxu0 0.0
      %4964 = vmatpush.msra.mxu0 0.0
      %4965 = vmatpush.msra.mxu0 %v4948
      %4966 = vmatpush.msra.mxu0 %v4947
      %4967 = vmatpush.msra.mxu0 %v4946
      %4968 = vmatpush.msra.mxu0 %v4945
      %4969 = vmatpush.msra.mxu0 %v4944
      %4970 = vmatpush.msra.mxu0 %v4943
      %4971 = vmatpush.msra.mxu0 %v4942
      %4972 = vmatpush.msra.mxu0 %v4941
      %4973 = vmatmul.f32.gmra.mxu0 %v4955
      %v4974 = vpop.f32.mrf.mxu0
      %v4975 = vadd.f32 %v4952, %v4974
      %4976 = vdwg.mxu0
      %v4977 = vadd.f32 %v4975, %v4553
      %v4978 = vsel %vm877, %v4977, 0.0
      %4979 = vadd.xlane.f32.xlu0 %v4978
      %v4980 = vpop.xlane.xlu0 %4979
      %v4981 = vmul.f32 %v4980, %v1310
      %v4982 = vsub.f32 %v4977, %v4981
      %v4983 = vmul.f32 %v4982, %v4982
      %v4984 = vsel %vm877, %v4983, 0.0
      %4985 = vadd.xlane.f32.xlu0 %v4984
      %v4986 = vpop.xlane.xlu0 %4985
      %v4987 = vmul.f32 %v4986, %v1310
      %v4988 = vadd.f32 %v4987, 1e-05
      %v4989 = vrsqrt.pop %v4988
      %v4990 = vmul.f32 %v4989, %v4988
      %v4991 = vmul.f32 %v4990, %v4989
      %v4992 = vmul.f32 0.5, %v4991
      %v4993 = vsub.f32 1.5, %v4992
      %v4994 = vmul.f32 %v4989, %v4993
      %vm4995 = vweird.f32 %v4988
      %vm4996 = vweird.f32 %v4989
      %vm4997 = vmor %vm4995, %vm4996
      %v4998 = vsel %vm4997, %v4989, %v4994
      %v4999 = vmul.f32 %v4982, %v4998
      %s5000 = scalar_lea.vmem %s17, 8
      %v5001 = vld [vmem:[%s5000] sm:$0x1]
      %v5003 = vperm.slane %v5001, 0
      %v5005 = vmul.f32 %v4999, %v5003
      %s5006 = scalar_lea.vmem %s18, 8
      %v5007 = vld [vmem:[%s5006] sm:$0x1]
      %v5009 = vperm.slane %v5007, 0
      %v5011 = vadd.f32 %v5005, %v5009
      %v5012 = vmax.f32 %v5011, 0.0
      %s5013 = scalar_lea.vmem %s11, 576
      %v5014 = vld [vmem:[%s5013] sm:$0xff]
      %v5015 = vld [vmem:[%s5013 + $0x8] sm:$0xff]
      %v5016 = vld [vmem:[%s5013 + $0x10] sm:$0xff]
      %v5017 = vld [vmem:[%s5013 + $0x18] sm:$0xff]
      %v5018 = vld [vmem:[%s5013 + $0x20] sm:$0xff]
      %v5019 = vld [vmem:[%s5013 + $0x28] sm:$0xff]
      %v5020 = vld [vmem:[%s5013 + $0x30] sm:$0xff]
      %v5021 = vld [vmem:[%s5013 + $0x38] sm:$0xff]
      %s5022 = scalar_lea.vmem %s12, 9
      %v5023 = vld [vmem:[%s5022] sm:$0x1]
      %v5025 = vperm.slane %v5023, 0
      %5027 = vmatpush.msra.mxu0 0.0
      %5028 = vmatpush.msra.mxu0 0.0
      %5029 = vmatpush.msra.mxu0 0.0
      %5030 = vmatpush.msra.mxu0 0.0
      %5031 = vmatpush.msra.mxu0 0.0
      %5032 = vmatpush.msra.mxu0 0.0
      %5033 = vmatpush.msra.mxu0 0.0
      %5034 = vmatpush.msra.mxu0 0.0
      %5035 = vmatpush.msra.mxu0 %v5021
      %5036 = vmatpush.msra.mxu0 %v5020
      %5037 = vmatpush.msra.mxu0 %v5019
      %5038 = vmatpush.msra.mxu0 %v5018
      %5039 = vmatpush.msra.mxu0 %v5017
      %5040 = vmatpush.msra.mxu0 %v5016
      %5041 = vmatpush.msra.mxu0 %v5015
      %5042 = vmatpush.msra.mxu0 %v5014
      %5043 = vmatmul.f32.gmra.mxu0 %v879
      %v5044 = vpop.f32.mrf.mxu0
      %v5045 = vadd.f32 %v5025, %v5044
      %5046 = vdwg.mxu0
      %s5047 = scalar_lea.vmem %s13, 576
      %v5048 = vld [vmem:[%s5047] sm:$0xff]
      %v5049 = vld [vmem:[%s5047 + $0x8] sm:$0xff]
      %v5050 = vld [vmem:[%s5047 + $0x10] sm:$0xff]
      %v5051 = vld [vmem:[%s5047 + $0x18] sm:$0xff]
      %v5052 = vld [vmem:[%s5047 + $0x20] sm:$0xff]
      %v5053 = vld [vmem:[%s5047 + $0x28] sm:$0xff]
      %v5054 = vld [vmem:[%s5047 + $0x30] sm:$0xff]
      %v5055 = vld [vmem:[%s5047 + $0x38] sm:$0xff]
      %s5056 = scalar_lea.vmem %s14, 9
      %v5057 = vld [vmem:[%s5056] sm:$0x1]
      %v5059 = vperm.slane %v5057, 0
      %v5062 = vsel %vm877, %v5012, 0
      %5064 = vmatpush.msra.mxu0 0.0
      %5065 = vmatpush.msra.mxu0 0.0
      %5066 = vmatpush.msra.mxu0 0.0
      %5067 = vmatpush.msra.mxu0 0.0
      %5068 = vmatpush.msra.mxu0 0.0
      %5069 = vmatpush.msra.mxu0 0.0
      %5070 = vmatpush.msra.mxu0 0.0
      %5071 = vmatpush.msra.mxu0 0.0
      %5072 = vmatpush.msra.mxu0 %v5055
      %5073 = vmatpush.msra.mxu0 %v5054
      %5074 = vmatpush.msra.mxu0 %v5053
      %5075 = vmatpush.msra.mxu0 %v5052
      %5076 = vmatpush.msra.mxu0 %v5051
      %5077 = vmatpush.msra.mxu0 %v5050
      %5078 = vmatpush.msra.mxu0 %v5049
      %5079 = vmatpush.msra.mxu0 %v5048
      %5080 = vmatmul.f32.gmra.mxu0 %v5062
      %v5081 = vpop.f32.mrf.mxu0
      %v5082 = vadd.f32 %v5059, %v5081
      %5083 = vdwg.mxu0
      %5085 = vrot.lane.b32.xlu0 %v5045, 120
      %v5086 = vpop.permute.xlu0 %5085
      %5088 = vrot.lane.b32.xlu0 %v5045, 8
      %v5089 = vpop.permute.xlu0 %5088
      %v5091 = vsel %vm943, %v5086, %v5089
      %v5092 = vmul.f32 %v5045, %v789
      %v5093 = vmul.f32 %v5091, %v790
      %v5094 = vadd.f32 %v5092, %v5093
      %v5096 = vsel %vm948, %v5094, 0
      %v5099 = vsel %vm948, %v5082, 0
      %5101 = vmatpush.xpose.msra.mxu0 0.0
      %5102 = vmatpush.xpose.msra.mxu0 0.0
      %5103 = vmatpush.xpose.msra.mxu0 0.0
      %5104 = vmatpush.xpose.msra.mxu0 0.0
      %5105 = vmatpush.xpose.msra.mxu0 0.0
      %5106 = vmatpush.xpose.msra.mxu0 0.0
      %5107 = vmatpush.xpose.msra.mxu0 0.0
      %5108 = vmatpush.xpose.msra.mxu0 0.0
      %5109 = vmatpush.xpose.msra.mxu0 0.0
      %5110 = vmatpush.xpose.msra.mxu0 0.0
      %5111 = vmatpush.xpose.msra.mxu0 0.0
      %5112 = vmatpush.xpose.msra.mxu0 0.0
      %5113 = vmatpush.xpose.msra.mxu0 0.0
      %5114 = vmatpush.xpose.msra.mxu0 0.0
      %5115 = vmatpush.xpose.msra.mxu0 0.0
      %5116 = vmatpush.xpose.msra.mxu0 %v5099
      %5117 = vmatmul.f32.gmra.mxu0 %v5096
      %v5118 = vpop.f32.mrf.mxu0
      %v5119 = vadd.f32 0.0, %v5118
      %5120 = vdwg.mxu0
      %v5121 = vmul.f32 %v5119, 0.25
      %v5122 = vsel %vm943, %v5121, -inf
      %5123 = vmax.xlane.f32.xlu0 %v5122
      %v5124 = vpop.xlane.xlu0 %5123
      %v5125 = vsub.f32 %v5121, %v5124
      %v5126 = vmul.f32 %v5125, 1.442695
      %v5127 = vpow.pop %v5126
      %v5128 = vsel %vm943, %v5127, 0.0
      %5129 = vadd.xlane.f32.xlu0 %v5128
      %v5130 = vpop.xlane.xlu0 %5129
      %v5131 = vrcp.pop %v5130
      %v5132 = vmul.f32 %v5127, %v5131
      %v5134 = vsel %vm943, %v5132, 0
      %5136 = vmatpush.msra.mxu0 0.0
      %5137 = vmatpush.msra.mxu0 0.0
      %5138 = vmatpush.msra.mxu0 0.0
      %5139 = vmatpush.msra.mxu0 0.0
      %5140 = vmatpush.msra.mxu0 0.0
      %5141 = vmatpush.msra.mxu0 0.0
      %5142 = vmatpush.msra.mxu0 0.0
      %5143 = vmatpush.msra.mxu0 0.0
      %5144 = vmatpush.msra.mxu0 0.0
      %5145 = vmatpush.msra.mxu0 0.0
      %5146 = vmatpush.msra.mxu0 0.0
      %5147 = vmatpush.msra.mxu0 0.0
      %5148 = vmatpush.msra.mxu0 0.0
      %5149 = vmatpush.msra.mxu0 0.0
      %5150 = vmatpush.msra.mxu0 0.0
      %5151 = vmatpush.msra.mxu0 %v5082
      %5152 = vmatmul.f32.gmra.mxu0 %v5134
      %v5153 = vpop.f32.mrf.mxu0
      %v5154 = vadd.f32 0.0, %v5153
      %5155 = vdwg.mxu0
      %5156 = vrot.lane.b32.xlu0 %v5045, 104
      %v5157 = vpop.permute.xlu0 %5156
      %v5159 = vsel %vm943, %v5157, %v5086
      %v5160 = vmul.f32 %v5045, %v1016
      %v5161 = vmul.f32 %v5159, %v790
      %5163 = vrot.lane.b32.xlu0 %v5161, 16
      %v5164 = vpop.permute.xlu0 %5163
      %v5166 = vadd.f32 %v5160, %v5164
      %5168 = vrot.lane.b32.xlu0 %v5166, 112
      %v5169 = vpop.permute.xlu0 %5168
      %5170 = vrot.lane.b32.xlu0 %v5082, 112
      %v5171 = vpop.permute.xlu0 %5170
      %v5172 = vsel %vm948, %v5169, 0
      %v5174 = vsel %vm948, %v5171, 0
      %5176 = vmatpush.xpose.msra.mxu0 0.0
      %5177 = vmatpush.xpose.msra.mxu0 0.0
      %5178 = vmatpush.xpose.msra.mxu0 0.0
      %5179 = vmatpush.xpose.msra.mxu0 0.0
      %5180 = vmatpush.xpose.msra.mxu0 0.0
      %5181 = vmatpush.xpose.msra.mxu0 0.0
      %5182 = vmatpush.xpose.msra.mxu0 0.0
      %5183 = vmatpush.xpose.msra.mxu0 0.0
      %5184 = vmatpush.xpose.msra.mxu0 0.0
      %5185 = vmatpush.xpose.msra.mxu0 0.0
      %5186 = vmatpush.xpose.msra.mxu0 0.0
      %5187 = vmatpush.xpose.msra.mxu0 0.0
      %5188 = vmatpush.xpose.msra.mxu0 0.0
      %5189 = vmatpush.xpose.msra.mxu0 0.0
      %5190 = vmatpush.xpose.msra.mxu0 0.0
      %5191 = vmatpush.xpose.msra.mxu0 %v5174
      %5192 = vmatmul.f32.gmra.mxu0 %v5172
      %v5193 = vpop.f32.mrf.mxu0
      %v5194 = vadd.f32 0.0, %v5193
      %5195 = vdwg.mxu0
      %v5196 = vmul.f32 %v5194, 0.25
      %v5197 = vsel %vm943, %v5196, -inf
      %5198 = vmax.xlane.f32.xlu0 %v5197
      %v5199 = vpop.xlane.xlu0 %5198
      %v5200 = vsub.f32 %v5196, %v5199
      %v5201 = vmul.f32 %v5200, 1.442695
      %v5202 = vpow.pop %v5201
      %v5203 = vsel %vm943, %v5202, 0.0
      %5204 = vadd.xlane.f32.xlu0 %v5203
      %v5205 = vpop.xlane.xlu0 %5204
      %v5206 = vrcp.pop %v5205
      %v5207 = vmul.f32 %v5202, %v5206
      %v5210 = vsel %vm943, %v5207, 0
      %5212 = vmatpush.msra.mxu0 0.0
      %5213 = vmatpush.msra.mxu0 0.0
      %5214 = vmatpush.msra.mxu0 0.0
      %5215 = vmatpush.msra.mxu0 0.0
      %5216 = vmatpush.msra.mxu0 0.0
      %5217 = vmatpush.msra.mxu0 0.0
      %5218 = vmatpush.msra.mxu0 0.0
      %5219 = vmatpush.msra.mxu0 0.0
      %5220 = vmatpush.msra.mxu0 0.0
      %5221 = vmatpush.msra.mxu0 0.0
      %5222 = vmatpush.msra.mxu0 0.0
      %5223 = vmatpush.msra.mxu0 0.0
      %5224 = vmatpush.msra.mxu0 0.0
      %5225 = vmatpush.msra.mxu0 0.0
      %5226 = vmatpush.msra.mxu0 0.0
      %5227 = vmatpush.msra.mxu0 %v5171
      %5228 = vmatmul.f32.gmra.mxu0 %v5210
      %v5229 = vpop.f32.mrf.mxu0
      %v5230 = vadd.f32 0.0, %v5229
      %5231 = vdwg.mxu0
      %5232 = vrot.lane.b32.xlu0 %v5045, 88
      %v5233 = vpop.permute.xlu0 %5232
      %v5235 = vsel %vm943, %v5233, %v5157
      %v5236 = vmul.f32 %v5045, %v1095
      %v5237 = vmul.f32 %v5235, %v790
      %5239 = vrot.lane.b32.xlu0 %v5237, 32
      %v5240 = vpop.permute.xlu0 %5239
      %v5242 = vadd.f32 %v5236, %v5240
      %5244 = vrot.lane.b32.xlu0 %v5242, 96
      %v5245 = vpop.permute.xlu0 %5244
      %5246 = vrot.lane.b32.xlu0 %v5082, 96
      %v5247 = vpop.permute.xlu0 %5246
      %v5248 = vsel %vm948, %v5245, 0
      %v5250 = vsel %vm948, %v5247, 0
      %5252 = vmatpush.xpose.msra.mxu0 0.0
      %5253 = vmatpush.xpose.msra.mxu0 0.0
      %5254 = vmatpush.xpose.msra.mxu0 0.0
      %5255 = vmatpush.xpose.msra.mxu0 0.0
      %5256 = vmatpush.xpose.msra.mxu0 0.0
      %5257 = vmatpush.xpose.msra.mxu0 0.0
      %5258 = vmatpush.xpose.msra.mxu0 0.0
      %5259 = vmatpush.xpose.msra.mxu0 0.0
      %5260 = vmatpush.xpose.msra.mxu0 0.0
      %5261 = vmatpush.xpose.msra.mxu0 0.0
      %5262 = vmatpush.xpose.msra.mxu0 0.0
      %5263 = vmatpush.xpose.msra.mxu0 0.0
      %5264 = vmatpush.xpose.msra.mxu0 0.0
      %5265 = vmatpush.xpose.msra.mxu0 0.0
      %5266 = vmatpush.xpose.msra.mxu0 0.0
      %5267 = vmatpush.xpose.msra.mxu0 %v5250
      %5268 = vmatmul.f32.gmra.mxu0 %v5248
      %v5269 = vpop.f32.mrf.mxu0
      %v5270 = vadd.f32 0.0, %v5269
      %5271 = vdwg.mxu0
      %v5272 = vmul.f32 %v5270, 0.25
      %v5273 = vsel %vm943, %v5272, -inf
      %5274 = vmax.xlane.f32.xlu0 %v5273
      %v5275 = vpop.xlane.xlu0 %5274
      %v5276 = vsub.f32 %v5272, %v5275
      %v5277 = vmul.f32 %v5276, 1.442695
      %v5278 = vpow.pop %v5277
      %v5279 = vsel %vm943, %v5278, 0.0
      %5280 = vadd.xlane.f32.xlu0 %v5279
      %v5281 = vpop.xlane.xlu0 %5280
      %v5282 = vrcp.pop %v5281
      %v5283 = vmul.f32 %v5278, %v5282
      %v5286 = vsel %vm943, %v5283, 0
      %5288 = vmatpush.msra.mxu0 0.0
      %5289 = vmatpush.msra.mxu0 0.0
      %5290 = vmatpush.msra.mxu0 0.0
      %5291 = vmatpush.msra.mxu0 0.0
      %5292 = vmatpush.msra.mxu0 0.0
      %5293 = vmatpush.msra.mxu0 0.0
      %5294 = vmatpush.msra.mxu0 0.0
      %5295 = vmatpush.msra.mxu0 0.0
      %5296 = vmatpush.msra.mxu0 0.0
      %5297 = vmatpush.msra.mxu0 0.0
      %5298 = vmatpush.msra.mxu0 0.0
      %5299 = vmatpush.msra.mxu0 0.0
      %5300 = vmatpush.msra.mxu0 0.0
      %5301 = vmatpush.msra.mxu0 0.0
      %5302 = vmatpush.msra.mxu0 0.0
      %5303 = vmatpush.msra.mxu0 %v5247
      %5304 = vmatmul.f32.gmra.mxu0 %v5286
      %v5305 = vpop.f32.mrf.mxu0
      %v5306 = vadd.f32 0.0, %v5305
      %5307 = vdwg.mxu0
      %5308 = vrot.lane.b32.xlu0 %v5045, 72
      %v5309 = vpop.permute.xlu0 %5308
      %v5311 = vsel %vm943, %v5309, %v5233
      %v5312 = vmul.f32 %v5045, %v1174
      %v5313 = vmul.f32 %v5311, %v790
      %5315 = vrot.lane.b32.xlu0 %v5313, 48
      %v5316 = vpop.permute.xlu0 %5315
      %v5318 = vadd.f32 %v5312, %v5316
      %5320 = vrot.lane.b32.xlu0 %v5318, 80
      %v5321 = vpop.permute.xlu0 %5320
      %5322 = vrot.lane.b32.xlu0 %v5082, 80
      %v5323 = vpop.permute.xlu0 %5322
      %v5324 = vsel %vm948, %v5321, 0
      %v5326 = vsel %vm948, %v5323, 0
      %5328 = vmatpush.xpose.msra.mxu0 0.0
      %5329 = vmatpush.xpose.msra.mxu0 0.0
      %5330 = vmatpush.xpose.msra.mxu0 0.0
      %5331 = vmatpush.xpose.msra.mxu0 0.0
      %5332 = vmatpush.xpose.msra.mxu0 0.0
      %5333 = vmatpush.xpose.msra.mxu0 0.0
      %5334 = vmatpush.xpose.msra.mxu0 0.0
      %5335 = vmatpush.xpose.msra.mxu0 0.0
      %5336 = vmatpush.xpose.msra.mxu0 0.0
      %5337 = vmatpush.xpose.msra.mxu0 0.0
      %5338 = vmatpush.xpose.msra.mxu0 0.0
      %5339 = vmatpush.xpose.msra.mxu0 0.0
      %5340 = vmatpush.xpose.msra.mxu0 0.0
      %5341 = vmatpush.xpose.msra.mxu0 0.0
      %5342 = vmatpush.xpose.msra.mxu0 0.0
      %5343 = vmatpush.xpose.msra.mxu0 %v5326
      %5344 = vmatmul.f32.gmra.mxu0 %v5324
      %v5345 = vpop.f32.mrf.mxu0
      %v5346 = vadd.f32 0.0, %v5345
      %5347 = vdwg.mxu0
      %v5348 = vmul.f32 %v5346, 0.25
      %v5349 = vsel %vm943, %v5348, -inf
      %5350 = vmax.xlane.f32.xlu0 %v5349
      %v5351 = vpop.xlane.xlu0 %5350
      %v5352 = vsub.f32 %v5348, %v5351
      %v5353 = vmul.f32 %v5352, 1.442695
      %v5354 = vpow.pop %v5353
      %v5355 = vsel %vm943, %v5354, 0.0
      %5356 = vadd.xlane.f32.xlu0 %v5355
      %v5357 = vpop.xlane.xlu0 %5356
      %v5358 = vrcp.pop %v5357
      %v5359 = vmul.f32 %v5354, %v5358
      %v5362 = vsel %vm943, %v5359, 0
      %5364 = vmatpush.msra.mxu0 0.0
      %5365 = vmatpush.msra.mxu0 0.0
      %5366 = vmatpush.msra.mxu0 0.0
      %5367 = vmatpush.msra.mxu0 0.0
      %5368 = vmatpush.msra.mxu0 0.0
      %5369 = vmatpush.msra.mxu0 0.0
      %5370 = vmatpush.msra.mxu0 0.0
      %5371 = vmatpush.msra.mxu0 0.0
      %5372 = vmatpush.msra.mxu0 0.0
      %5373 = vmatpush.msra.mxu0 0.0
      %5374 = vmatpush.msra.mxu0 0.0
      %5375 = vmatpush.msra.mxu0 0.0
      %5376 = vmatpush.msra.mxu0 0.0
      %5377 = vmatpush.msra.mxu0 0.0
      %5378 = vmatpush.msra.mxu0 0.0
      %5379 = vmatpush.msra.mxu0 %v5323
      %5380 = vmatmul.f32.gmra.mxu0 %v5362
      %v5381 = vpop.f32.mrf.mxu0
      %v5382 = vadd.f32 0.0, %v5381
      %5383 = vdwg.mxu0
      %5385 = vrot.lane.b32.xlu0 %v5230, 16
      %v5386 = vpop.permute.xlu0 %5385
      %5389 = vrot.lane.b32.xlu0 %v5306, 32
      %v5390 = vpop.permute.xlu0 %5389
      %5393 = vrot.lane.b32.xlu0 %v5382, 48
      %v5394 = vpop.permute.xlu0 %5393
      %v5396 = vsel %vm948, %v5154, %v5386
      %v5397 = vsel %vm1261, %v5396, %v5390
      %v5398 = vsel %vm1263, %v5397, %v5394
      %s5399 = scalar_lea.vmem %s15, 576
      %v5400 = vld [vmem:[%s5399] sm:$0xff]
      %v5401 = vld [vmem:[%s5399 + $0x8] sm:$0xff]
      %v5402 = vld [vmem:[%s5399 + $0x10] sm:$0xff]
      %v5403 = vld [vmem:[%s5399 + $0x18] sm:$0xff]
      %v5404 = vld [vmem:[%s5399 + $0x20] sm:$0xff]
      %v5405 = vld [vmem:[%s5399 + $0x28] sm:$0xff]
      %v5406 = vld [vmem:[%s5399 + $0x30] sm:$0xff]
      %v5407 = vld [vmem:[%s5399 + $0x38] sm:$0xff]
      %s5408 = scalar_lea.vmem %s16, 9
      %v5409 = vld [vmem:[%s5408] sm:$0x1]
      %v5411 = vperm.slane %v5409, 0
      %v5414 = vsel %vm877, %v5398, 0
      %5416 = vmatpush.msra.mxu0 0.0
      %5417 = vmatpush.msra.mxu0 0.0
      %5418 = vmatpush.msra.mxu0 0.0
      %5419 = vmatpush.msra.mxu0 0.0
      %5420 = vmatpush.msra.mxu0 0.0
      %5421 = vmatpush.msra.mxu0 0.0
      %5422 = vmatpush.msra.mxu0 0.0
      %5423 = vmatpush.msra.mxu0 0.0
      %5424 = vmatpush.msra.mxu0 %v5407
      %5425 = vmatpush.msra.mxu0 %v5406
      %5426 = vmatpush.msra.mxu0 %v5405
      %5427 = vmatpush.msra.mxu0 %v5404
      %5428 = vmatpush.msra.mxu0 %v5403
      %5429 = vmatpush.msra.mxu0 %v5402
      %5430 = vmatpush.msra.mxu0 %v5401
      %5431 = vmatpush.msra.mxu0 %v5400
      %5432 = vmatmul.f32.gmra.mxu0 %v5414
      %v5433 = vpop.f32.mrf.mxu0
      %v5434 = vadd.f32 %v5411, %v5433
      %5435 = vdwg.mxu0
      %v5436 = vadd.f32 %v5434, %v5012
      %v5437 = vsel %vm877, %v5436, 0.0
      %5438 = vadd.xlane.f32.xlu0 %v5437
      %v5439 = vpop.xlane.xlu0 %5438
      %v5440 = vmul.f32 %v5439, %v1310
      %v5441 = vsub.f32 %v5436, %v5440
      %v5442 = vmul.f32 %v5441, %v5441
      %v5443 = vsel %vm877, %v5442, 0.0
      %5444 = vadd.xlane.f32.xlu0 %v5443
      %v5445 = vpop.xlane.xlu0 %5444
      %v5446 = vmul.f32 %v5445, %v1310
      %v5447 = vadd.f32 %v5446, 1e-05
      %v5448 = vrsqrt.pop %v5447
      %v5449 = vmul.f32 %v5448, %v5447
      %v5450 = vmul.f32 %v5449, %v5448
      %v5451 = vmul.f32 0.5, %v5450
      %v5452 = vsub.f32 1.5, %v5451
      %v5453 = vmul.f32 %v5448, %v5452
      %vm5454 = vweird.f32 %v5447
      %vm5455 = vweird.f32 %v5448
      %vm5456 = vmor %vm5454, %vm5455
      %v5457 = vsel %vm5456, %v5448, %v5453
      %v5458 = vmul.f32 %v5441, %v5457
      %s5459 = scalar_lea.vmem %s17, 9
      %v5460 = vld [vmem:[%s5459] sm:$0x1]
      %v5462 = vperm.slane %v5460, 0
      %v5464 = vmul.f32 %v5458, %v5462
      %s5465 = scalar_lea.vmem %s18, 9
      %v5466 = vld [vmem:[%s5465] sm:$0x1]
      %v5468 = vperm.slane %v5466, 0
      %v5470 = vadd.f32 %v5464, %v5468
      %v5471 = vmax.f32 %v5470, 0.0
      %v5472 = vld [vmem:[%s19] sm:$0xff]
      %v5473 = vld [vmem:[%s19 + $0x8] sm:$0xff]
      %v5474 = vld [vmem:[%s19 + $0x10] sm:$0xff]
      %v5475 = vld [vmem:[%s19 + $0x18] sm:$0xff]
      %v5476 = vld [vmem:[%s19 + $0x20] sm:$0xff]
      %v5477 = vld [vmem:[%s19 + $0x28] sm:$0xff]
      %v5478 = vld [vmem:[%s19 + $0x30] sm:$0xff]
      %v5479 = vld [vmem:[%s19 + $0x38] sm:$0xff]
      %v5480 = vld [vmem:[%s20] sm:$0x1]
      %v5482 = vperm.slane %v5480, 0
      %v5485 = vsel %vm877, %v5471, 0
      %5487 = vmatpush.msra.mxu0 0.0
      %5488 = vmatpush.msra.mxu0 0.0
      %5489 = vmatpush.msra.mxu0 0.0
      %5490 = vmatpush.msra.mxu0 0.0
      %5491 = vmatpush.msra.mxu0 0.0
      %5492 = vmatpush.msra.mxu0 0.0
      %5493 = vmatpush.msra.mxu0 0.0
      %5494 = vmatpush.msra.mxu0 0.0
      %5495 = vmatpush.msra.mxu0 %v5479
      %5496 = vmatpush.msra.mxu0 %v5478
      %5497 = vmatpush.msra.mxu0 %v5477
      %5498 = vmatpush.msra.mxu0 %v5476
      %5499 = vmatpush.msra.mxu0 %v5475
      %5500 = vmatpush.msra.mxu0 %v5474
      %5501 = vmatpush.msra.mxu0 %v5473
      %5502 = vmatpush.msra.mxu0 %v5472
      %5503 = vmatmul.f32.gmra.mxu0 %v5485
      %v5504 = vpop.f32.mrf.mxu0
      %v5505 = vadd.f32 %v5482, %v5504
      %5506 = vdwg.mxu0
      %v5507 = vld [vmem:[%s21] sm:$0xff]
      %v5508 = vld [vmem:[%s21 + $0x8] sm:$0xff]
      %v5509 = vld [vmem:[%s21 + $0x10] sm:$0xff]
      %v5510 = vld [vmem:[%s21 + $0x18] sm:$0xff]
      %v5511 = vld [vmem:[%s22] sm:$0x1]
      %v5513 = vperm.slane %v5511, 0
      %v5516 = vsel %vm1261, %v5505, 0
      %5518 = vmatpush.msra.mxu0 0.0
      %5519 = vmatpush.msra.mxu0 0.0
      %5520 = vmatpush.msra.mxu0 0.0
      %5521 = vmatpush.msra.mxu0 0.0
      %5522 = vmatpush.msra.mxu0 0.0
      %5523 = vmatpush.msra.mxu0 0.0
      %5524 = vmatpush.msra.mxu0 0.0
      %5525 = vmatpush.msra.mxu0 0.0
      %5526 = vmatpush.msra.mxu0 0.0
      %5527 = vmatpush.msra.mxu0 0.0
      %5528 = vmatpush.msra.mxu0 0.0
      %5529 = vmatpush.msra.mxu0 0.0
      %5530 = vmatpush.msra.mxu0 %v5510
      %5531 = vmatpush.msra.mxu0 %v5509
      %5532 = vmatpush.msra.mxu0 %v5508
      %5533 = vmatpush.msra.mxu0 %v5507
      %5534 = vmatmul.f32.gmra.mxu0 %v5516
      %v5535 = vpop.f32.mrf.mxu0
      %v5536 = vadd.f32 %v5513, %v5535
      %5537 = vdwg.mxu0
      %5538 = vst.msk [vmem:[%s767] sm:$0xff] %vm832, %v5536
      %p5539 = scmp.lt.s32.totalorder %s34, 1
      %s5540 = scalar_select %p5539, %s34, 1
      %s5541 = smul.addr %s5540, 8
      %s5542 = scalar_lea.vmem %s23, %s5541
      // Predicated region
      $region113: #{diffusion_forward.21} parent=111 // pred_check
        %p5543 = pneg %p560
      $region114: #{diffusion_forward.21} parent=111 // pred_check_branch
        %5545 = sbr.rel (%p5543) target = $region116
      $region115: #{diffusion_forward.21} parent=111 // pred_region
        _
      $region116: #{diffusion_forward.21} parent=111 // pred_fallthru
        _
    $region112: #{diffusion_forward.21} parent=5 // pred_fallthru
      _
    %p5546 = scmp.le.s32.totalorder 2, %s29
    // Predicated region
    $region117: #{diffusion_forward.21} parent=5 // pred_check
      %p5547 = pneg %p5546
    $region118: #{diffusion_forward.21} parent=5 // pred_check_branch
      %5549 = sbr.rel (%p5547) target = $region120
    $region119: #{diffusion_forward.21} parent=5 // pred_region
      %s5550 = ssub.s32 %s29, 2
      // Predicated region
      $region121: #{diffusion_forward.21} parent=119 // pred_check
        %p5551 = pneg %p566
      $region122: #{diffusion_forward.21} parent=119 // pred_check_branch
        %5553 = sbr.rel (%p5551) target = $region124
      $region123: #{diffusion_forward.21} parent=119 // pred_region
        %p5554 = scmp.lt.s32.totalorder %s35, 1
        %s5555 = scalar_select %p5554, %s35, 1
        %s5556 = smul.addr %s5555, 8
        %s5557 = scalar_lea.vmem %s23, %s5556
      $region124: #{diffusion_forward.21} parent=119 // pred_fallthru
        _
    $region120: #{diffusion_forward.21} parent=5 // pred_fallthru
      _
  $region6: #{diffusion_forward.21} parent=0 // loop_footer
    %s33 = sadd.s32 1, %s29
  $region7: #{diffusion_forward.21} parent=0 // loop_footer_branch
    %28 = sbr.rel target = $region3
  $region8: #{diffusion_forward.21} parent=0 // loop_exit
    _

</llo_original>
